<compile_context>
chip_gen: v6e
topology: v6e:2x2x1
jax: 0.10.0
libtpu: 0.0.40
codegen_flags: <defaults>
</compile_context>

<pallas_src>
from functools import partial

import jax
import jax.numpy as jnp
import numpy as np
from jax.experimental import pallas as pl
from jax.experimental.pallas import tpu as pltpu

_EPS = 1e-5  # PyTorch BatchNorm2d default
_LANE = 128


# ---------------------------------------------------------------------------
# Kernel
# ---------------------------------------------------------------------------

def _conv3x3_acc(src_ref, w_ref, Ho, Wo, stride):
    """Accumulate a 3x3 conv from a padded VMEM scratch (src_ref) as 9 MXU matmuls.

    src_ref : (Hs+2, Ws+2, Cin_pad) bf16 scratch (1-pixel zero halo)
    w_ref   : (9, Cin_pad, Cout_pad) bf16
    returns : (Ho*Wo, Cout_pad) f32 accumulator
    """
    cin = src_ref.shape[-1]
    cout = w_ref.shape[-1]
    acc = jnp.zeros((Ho * Wo, cout), jnp.float32)
    for t in range(9):
        dy, dx = divmod(t, 3)
        if stride == 1:
            reg = src_ref[pl.ds(dy, Ho), pl.ds(dx, Wo), :]
        else:
            reg = src_ref[pl.ds(dy, Ho * stride), pl.ds(dx, Wo * stride), :]
            reg = reg.reshape(Ho, stride, Wo, stride, cin)[:, 0, :, 0, :]
        acc = acc + jnp.dot(reg.reshape(Ho * Wo, cin), w_ref[t],
                            preferred_element_type=jnp.float32)
    return acc


def fused_block_kernel(x_ref, w1_ref, s1_ref, b1_ref, w2_ref, s2_ref, b2_ref,
                       *rest, stride, has_proj):
    """One batch element: conv3x3(stride)+BN+ReLU -> conv3x3+BN -> +shortcut -> ReLU.

    x_ref : (1, H, W, Cin_pad) bf16
    w*_ref: (9, C, C) bf16 flattened conv weights; s*/b*: (1, Cout_pad) folded BN.
    rest  : [wsc, ssc, bsc] (projection only), o_ref, xpad_scratch, hpad_scratch
    """
    if has_proj:
        wsc_ref, ssc_ref, bsc_ref, o_ref, xpad_ref, hpad_ref = rest
    else:
        o_ref, xpad_ref, hpad_ref = rest

    H, W = x_ref.shape[1], x_ref.shape[2]
    Ho, Wo = o_ref.shape[1], o_ref.shape[2]
    cin = x_ref.shape[3]
    cout = o_ref.shape[3]

    # ---- stage 0: build zero-padded input tile in VMEM (1-pixel halo) -------
    # (zeroed every grid step so the halo is correct even when the batch axis is
    #  sharded across TensorCores; the interior is overwritten each step anyway)
    xpad_ref[...] = jnp.zeros_like(xpad_ref)
    xpad_ref[pl.ds(1, H), pl.ds(1, W), :] = x_ref[0]

    # ---- stage 1: conv3x3(stride) + BN + ReLU, kept in VMEM ------------------
    acc1 = _conv3x3_acc(xpad_ref, w1_ref, Ho, Wo, stride)
    h = jnp.maximum(acc1 * s1_ref[...] + b1_ref[...], 0.0)
    hpad_ref[...] = jnp.zeros_like(hpad_ref)
    hpad_ref[pl.ds(1, Ho), pl.ds(1, Wo), :] = (
        h.reshape(Ho, Wo, cout).astype(hpad_ref.dtype))

    # ---- stage 2: conv3x3(1) + BN -------------------------------------------
    acc2 = _conv3x3_acc(hpad_ref, w2_ref, Ho, Wo, 1)
    y = acc2 * s2_ref[...] + b2_ref[...]

    # ---- shortcut + add + ReLU ----------------------------------------------
    if has_proj:
        if stride == 1:
            xr = x_ref[0]
        else:
            xr = x_ref[0].reshape(Ho, stride, Wo, stride, cin)[:, 0, :, 0, :]
        r = jnp.dot(xr.reshape(Ho * Wo, cin), wsc_ref[...],
                    preferred_element_type=jnp.float32)
        r = r * ssc_ref[...] + bsc_ref[...]
    else:
        r = x_ref[0].reshape(Ho * Wo, cout).astype(jnp.float32)

    o_ref[0] = jnp.maximum(y + r, 0.0).reshape(Ho, Wo, cout).astype(o_ref.dtype)


# ---------------------------------------------------------------------------
# Wrapper
# ---------------------------------------------------------------------------

def _round_up(x, m):
    return ((x + m - 1) // m) * m


def _fold_bn(gamma, beta, mean, var, cpad):
    scale = gamma / jnp.sqrt(var + _EPS)
    bias = beta - mean * scale
    scale = jnp.pad(scale, (0, cpad - scale.shape[0]))
    bias = jnp.pad(bias, (0, cpad - bias.shape[0]))
    return scale.reshape(1, -1).astype(jnp.float32), bias.reshape(1, -1).astype(jnp.float32)


def _prep_conv_w(w, cpi, cpo):
    """(3,3,ci,co) HWIO -> (9, cpi, cpo) bf16, zero-padded channels."""
    ci, co = w.shape[2], w.shape[3]
    w = w.reshape(9, ci, co)
    w = jnp.pad(w, ((0, 0), (0, cpi - ci), (0, cpo - co)))
    return w.astype(jnp.bfloat16)


def basic_block_forward(x_nchw, params, stride=1):
    """Forward pass of BasicBlock.  Input/output in NCHW (PyTorch convention)."""
    x = jnp.transpose(x_nchw, (0, 2, 3, 1)).astype(jnp.float32)   # -> NHWC
    N, H, W, Cin = x.shape
    Cout = params["w1"].shape[-1]
    assert H % stride == 0 and W % stride == 0, "demo assumes H, W divisible by stride"
    Ho, Wo = H // stride, W // stride

    Cpi = _round_up(Cin, _LANE)
    Cpo = _round_up(Cout, _LANE)

    # lane-pad channels to 128 and cast MXU inputs to bf16 (f32 accumulation in-kernel)
    xp = jnp.pad(x, ((0, 0), (0, 0), (0, 0), (0, Cpi - Cin))).astype(jnp.bfloat16)

    w1 = _prep_conv_w(params["w1"], Cpi, Cpo)
    w2 = _prep_conv_w(params["w2"], Cpo, Cpo)
    s1, b1 = _fold_bn(params["g1"], params["b1"], params["m1"], params["v1"], Cpo)
    s2, b2 = _fold_bn(params["g2"], params["b2"], params["m2"], params["v2"], Cpo)

    has_proj = (stride != 1) or (Cin != Cout)

    cvec = pl.BlockSpec((1, Cpo), lambda n: (0, 0))
    in_specs = [
        pl.BlockSpec((1, H, W, Cpi), lambda n: (n, 0, 0, 0)),
        pl.BlockSpec((9, Cpi, Cpo), lambda n: (0, 0, 0)),
        cvec, cvec,
        pl.BlockSpec((9, Cpo, Cpo), lambda n: (0, 0, 0)),
        cvec, cvec,
    ]
    args = [xp, w1, s1, b1, w2, s2, b2]

    if has_proj:
        wsc = params["wsc"].reshape(Cin, Cout)
        wsc = jnp.pad(wsc, ((0, Cpi - Cin), (0, Cpo - Cout))).astype(jnp.bfloat16)
        ssc, bsc = _fold_bn(params["gsc"], params["bsc"], params["msc"], params["vsc"], Cpo)
        in_specs += [pl.BlockSpec((Cpi, Cpo), lambda n: (0, 0)), cvec, cvec]
        args += [wsc, ssc, bsc]

    out = pl.pallas_call(
        partial(fused_block_kernel, stride=stride, has_proj=has_proj),
        out_shape=jax.ShapeDtypeStruct((N, Ho, Wo, Cpo), jnp.float32),
        grid=(N,),
        in_specs=in_specs,
        out_specs=pl.BlockSpec((1, Ho, Wo, Cpo), lambda n: (n, 0, 0, 0)),
        scratch_shapes=[
            pltpu.VMEM((H + 2, W + 2, Cpi), jnp.bfloat16),    # padded input tile
            pltpu.VMEM((Ho + 2, Wo + 2, Cpo), jnp.bfloat16),  # padded conv1 output
        ],
        compiler_params=pltpu.CompilerParams(dimension_semantics=("parallel",)),
    )(*args)
    # TODO(synk): for production ResNet shapes, add a row-tiled spatial grid axis
    # (with halo blocks) and 256-wide Cout tiles so per-step blocks stay small on
    # v7x's 64 MiB VMEM; whole-image-per-batch blocks are fine at this demo size.

    out = out[..., :Cout]                                     # drop lane padding
    return jnp.transpose(out, (0, 3, 1, 2))                   # back to NCHW


# ---------------------------------------------------------------------------
# Pure-JAX reference (eval-mode BatchNorm, f32), for correctness checking
# ---------------------------------------------------------------------------

def reference_forward(x_nchw, params, stride=1):
    x = jnp.transpose(x_nchw, (0, 2, 3, 1)).astype(jnp.float32)
    Cin = x.shape[-1]
    Cout = params["w1"].shape[-1]

    def conv(v, w, s, pad):
        return jax.lax.conv_general_dilated(
            v, w, (s, s), pad, dimension_numbers=("NHWC", "HWIO", "NHWC"))

    def bn(v, g, b, m, var):
        return (v - m) / jnp.sqrt(var + _EPS) * g + b

    h = conv(x, params["w1"], stride, ((1, 1), (1, 1)))
    h = jnp.maximum(bn(h, params["g1"], params["b1"], params["m1"], params["v1"]), 0.0)
    h = conv(h, params["w2"], 1, ((1, 1), (1, 1)))
    h = bn(h, params["g2"], params["b2"], params["m2"], params["v2"])

    if stride != 1 or Cin != Cout:
        r = conv(x, params["wsc"], stride, ((0, 0), (0, 0)))
        r = bn(r, params["gsc"], params["bsc"], params["msc"], params["vsc"])
    else:
        r = x
    out = jnp.maximum(h + r, 0.0)
    return jnp.transpose(out, (0, 3, 1, 2))


# ---------------------------------------------------------------------------
# Main
# ---------------------------------------------------------------------------

if __name__ == "__main__":
    N, Cin, H, W = 2, 4, 16, 16
    Cout = 8          # BasicBlock.expansion == 1
    stride = 1        # Cin != Cout -> projection shortcut path is exercised

    key = jax.random.PRNGKey(0)
    ks = jax.random.split(key, 16)

    def bn_params(k):
        k1, k2, k3, k4 = jax.random.split(k, 4)
        return dict(
            g=1.0 + 0.1 * jax.random.normal(k1, (Cout,), jnp.float32),
            b=0.1 * jax.random.normal(k2, (Cout,), jnp.float32),
            m=0.1 * jax.random.normal(k3, (Cout,), jnp.float32),
            v=jax.random.uniform(k4, (Cout,), jnp.float32, 0.5, 1.5),
        )

    bn1, bn2, bnsc = bn_params(ks[1]), bn_params(ks[3]), bn_params(ks[5])
    params = {
        "w1": 0.1 * jax.random.normal(ks[0], (3, 3, Cin, Cout), jnp.float32),
        "g1": bn1["g"], "b1": bn1["b"], "m1": bn1["m"], "v1": bn1["v"],
        "w2": 0.1 * jax.random.normal(ks[2], (3, 3, Cout, Cout), jnp.float32),
        "g2": bn2["g"], "b2": bn2["b"], "m2": bn2["m"], "v2": bn2["v"],
        "wsc": 0.1 * jax.random.normal(ks[4], (1, 1, Cin, Cout), jnp.float32),
        "gsc": bnsc["g"], "bsc": bnsc["b"], "msc": bnsc["m"], "vsc": bnsc["v"],
    }

    x = jax.random.normal(ks[6], (N, Cin, H, W), jnp.float32)

    out = basic_block_forward(x, params, stride=stride)
    out = jax.block_until_ready(out)

    ref = jax.block_until_ready(reference_forward(x, params, stride=stride))

    assert out.shape == (N, Cout, H // stride, W // stride)
    # bf16 MXU inputs with f32 accumulation -> compare at bf16-appropriate tolerance
    np.testing.assert_allclose(np.asarray(out), np.asarray(ref), rtol=5e-2, atol=5e-2)
    print("KERNEL_OK")
</pallas_src>

<mosaic_0001>
module attributes {stable_mosaic.version = 11 : i64} {
  func.func @fused_block_kernel(%arg0: i32, %arg1: memref<1x16x16x128xbf16, #tpu.memory_space<vmem>>, %arg2: memref<9x128x128xbf16, #tpu.memory_space<vmem>>, %arg3: memref<1x128xf32, #tpu.memory_space<vmem>>, %arg4: memref<1x128xf32, #tpu.memory_space<vmem>>, %arg5: memref<9x128x128xbf16, #tpu.memory_space<vmem>>, %arg6: memref<1x128xf32, #tpu.memory_space<vmem>>, %arg7: memref<1x128xf32, #tpu.memory_space<vmem>>, %arg8: memref<128x128xbf16, #tpu.memory_space<vmem>>, %arg9: memref<1x128xf32, #tpu.memory_space<vmem>>, %arg10: memref<1x128xf32, #tpu.memory_space<vmem>>, %arg11: memref<1x16x16x128xf32, #tpu.memory_space<vmem>>, %arg12: memref<18x18x128xbf16, #tpu.memory_space<vmem>>, %arg13: memref<18x18x128xbf16, #tpu.memory_space<vmem>>) attributes {dimension_semantics = [#tpu.dimension_semantics<parallel>], iteration_bounds = array<i64: 2>, scalar_prefetch = 0 : i64, scratch_operands = 2 : i64, tpu.core_type = #tpu.core_type<tc>, window_params = [{transform_indices = @transform_0, window_bounds = array<i64: 1, 16, 16, 128>}, {pipeline_mode = #tpu.pipeline_mode<synchronous>, transform_indices = @transform_1, window_bounds = array<i64: 9, 128, 128>}, {pipeline_mode = #tpu.pipeline_mode<synchronous>, transform_indices = @transform_2, window_bounds = array<i64: 1, 128>}, {pipeline_mode = #tpu.pipeline_mode<synchronous>, transform_indices = @transform_3, window_bounds = array<i64: 1, 128>}, {pipeline_mode = #tpu.pipeline_mode<synchronous>, transform_indices = @transform_4, window_bounds = array<i64: 9, 128, 128>}, {pipeline_mode = #tpu.pipeline_mode<synchronous>, transform_indices = @transform_5, window_bounds = array<i64: 1, 128>}, {pipeline_mode = #tpu.pipeline_mode<synchronous>, transform_indices = @transform_6, window_bounds = array<i64: 1, 128>}, {pipeline_mode = #tpu.pipeline_mode<synchronous>, transform_indices = @transform_7, window_bounds = array<i64: 128, 128>}, {pipeline_mode = #tpu.pipeline_mode<synchronous>, transform_indices = @transform_8, window_bounds = array<i64: 1, 128>}, {pipeline_mode = #tpu.pipeline_mode<synchronous>, transform_indices = @transform_9, window_bounds = array<i64: 1, 128>}, {transform_indices = @transform_10, window_bounds = array<i64: 1, 16, 16, 128>}]} {
    %cst = arith.constant 0.000000e+00 : bf16
    %0 = vector.broadcast %cst : bf16 to vector<18x18x128xbf16>
    %c0 = arith.constant 0 : index
    %c0_0 = arith.constant 0 : index
    %c0_1 = arith.constant 0 : index
    %1 = vector.load %arg12[%c0, %c0_0, %c0_1] : memref<18x18x128xbf16, #tpu.memory_space<vmem>>, vector<18x18x128xbf16>
    tpu.vector_store %arg12[%c0, %c0_0, %c0_1], %0 {strides = array<i32>} : memref<18x18x128xbf16, #tpu.memory_space<vmem>>, vector<18x18x128xbf16>,
    %c0_2 = arith.constant 0 : index
    %c0_3 = arith.constant 0 : index
    %c0_4 = arith.constant 0 : index
    %c0_5 = arith.constant 0 : index
    %2 = vector.load %arg1[%c0_2, %c0_3, %c0_4, %c0_5] : memref<1x16x16x128xbf16, #tpu.memory_space<vmem>>, vector<1x16x16x128xbf16>
    %3 = vector.shape_cast %2 : vector<1x16x16x128xbf16> to vector<16x16x128xbf16>
    %c1 = arith.constant 1 : index
    %c1_6 = arith.constant 1 : index
    %c0_7 = arith.constant 0 : index
    %4 = vector.load %arg12[%c1, %c1_6, %c0_7] : memref<18x18x128xbf16, #tpu.memory_space<vmem>>, vector<16x16x128xbf16>
    tpu.vector_store %arg12[%c1, %c1_6, %c0_7], %3 {strides = array<i32>} : memref<18x18x128xbf16, #tpu.memory_space<vmem>>, vector<16x16x128xbf16>,
    %cst_8 = arith.constant 0.000000e+00 : f32
    %5 = vector.broadcast %cst_8 : f32 to vector<256x128xf32>
    %c0_9 = arith.constant 0 : index
    %c0_10 = arith.constant 0 : index
    %c0_11 = arith.constant 0 : index
    %6 = vector.load %arg12[%c0_9, %c0_10, %c0_11] : memref<18x18x128xbf16, #tpu.memory_space<vmem>>, vector<16x16x128xbf16>
    %7 = vector.shape_cast %6 : vector<16x16x128xbf16> to vector<256x128xbf16>
    %c0_12 = arith.constant 0 : index
    %c0_13 = arith.constant 0 : index
    %c0_14 = arith.constant 0 : index
    %8 = vector.load %arg2[%c0_12, %c0_13, %c0_14] : memref<9x128x128xbf16, #tpu.memory_space<vmem>>, vector<1x128x128xbf16>
    %9 = vector.shape_cast %8 : vector<1x128x128xbf16> to vector<128x128xbf16>
    %cst_15 = arith.constant dense<0.000000e+00> : vector<256x128xf32>
    %10 = tpu.matmul %7, %9, %cst_15 {dimension_numbers = #tpu.dot_dimension_numbers<[1], [0], [0], [1], [0, 0, 1, 1], [], []>} : vector<256x128xbf16>, vector<128x128xbf16>, vector<256x128xf32> -> vector<256x128xf32>
    %11 = arith.addf %5, %10 : vector<256x128xf32>
    %c0_16 = arith.constant 0 : index
    %c1_17 = arith.constant 1 : index
    %c0_18 = arith.constant 0 : index
    %12 = vector.load %arg12[%c0_16, %c1_17, %c0_18] : memref<18x18x128xbf16, #tpu.memory_space<vmem>>, vector<16x16x128xbf16>
    %13 = vector.shape_cast %12 : vector<16x16x128xbf16> to vector<256x128xbf16>
    %c1_19 = arith.constant 1 : index
    %c0_20 = arith.constant 0 : index
    %c0_21 = arith.constant 0 : index
    %14 = vector.load %arg2[%c1_19, %c0_20, %c0_21] : memref<9x128x128xbf16, #tpu.memory_space<vmem>>, vector<1x128x128xbf16>
    %15 = vector.shape_cast %14 : vector<1x128x128xbf16> to vector<128x128xbf16>
    %cst_22 = arith.constant dense<0.000000e+00> : vector<256x128xf32>
    %16 = tpu.matmul %13, %15, %cst_22 {dimension_numbers = #tpu.dot_dimension_numbers<[1], [0], [0], [1], [0, 0, 1, 1], [], []>} : vector<256x128xbf16>, vector<128x128xbf16>, vector<256x128xf32> -> vector<256x128xf32>
    %17 = arith.addf %11, %16 : vector<256x128xf32>
    %c0_23 = arith.constant 0 : index
    %c2 = arith.constant 2 : index
    %c0_24 = arith.constant 0 : index
    %18 = vector.load %arg12[%c0_23, %c2, %c0_24] : memref<18x18x128xbf16, #tpu.memory_space<vmem>>, vector<16x16x128xbf16>
    %19 = vector.shape_cast %18 : vector<16x16x128xbf16> to vector<256x128xbf16>
    %c2_25 = arith.constant 2 : index
    %c0_26 = arith.constant 0 : index
    %c0_27 = arith.constant 0 : index
    %20 = vector.load %arg2[%c2_25, %c0_26, %c0_27] : memref<9x128x128xbf16, #tpu.memory_space<vmem>>, vector<1x128x128xbf16>
    %21 = vector.shape_cast %20 : vector<1x128x128xbf16> to vector<128x128xbf16>
    %cst_28 = arith.constant dense<0.000000e+00> : vector<256x128xf32>
    %22 = tpu.matmul %19, %21, %cst_28 {dimension_numbers = #tpu.dot_dimension_numbers<[1], [0], [0], [1], [0, 0, 1, 1], [], []>} : vector<256x128xbf16>, vector<128x128xbf16>, vector<256x128xf32> -> vector<256x128xf32>
    %23 = arith.addf %17, %22 : vector<256x128xf32>
    %c1_29 = arith.constant 1 : index
    %c0_30 = arith.constant 0 : index
    %c0_31 = arith.constant 0 : index
    %24 = vector.load %arg12[%c1_29, %c0_30, %c0_31] : memref<18x18x128xbf16, #tpu.memory_space<vmem>>, vector<16x16x128xbf16>
    %25 = vector.shape_cast %24 : vector<16x16x128xbf16> to vector<256x128xbf16>
    %c3 = arith.constant 3 : index
    %c0_32 = arith.constant 0 : index
    %c0_33 = arith.constant 0 : index
    %26 = vector.load %arg2[%c3, %c0_32, %c0_33] : memref<9x128x128xbf16, #tpu.memory_space<vmem>>, vector<1x128x128xbf16>
    %27 = vector.shape_cast %26 : vector<1x128x128xbf16> to vector<128x128xbf16>
    %cst_34 = arith.constant dense<0.000000e+00> : vector<256x128xf32>
    %28 = tpu.matmul %25, %27, %cst_34 {dimension_numbers = #tpu.dot_dimension_numbers<[1], [0], [0], [1], [0, 0, 1, 1], [], []>} : vector<256x128xbf16>, vector<128x128xbf16>, vector<256x128xf32> -> vector<256x128xf32>
    %29 = arith.addf %23, %28 : vector<256x128xf32>
    %c1_35 = arith.constant 1 : index
    %c1_36 = arith.constant 1 : index
    %c0_37 = arith.constant 0 : index
    %30 = vector.load %arg12[%c1_35, %c1_36, %c0_37] : memref<18x18x128xbf16, #tpu.memory_space<vmem>>, vector<16x16x128xbf16>
    %31 = vector.shape_cast %30 : vector<16x16x128xbf16> to vector<256x128xbf16>
    %c4 = arith.constant 4 : index
    %c0_38 = arith.constant 0 : index
    %c0_39 = arith.constant 0 : index
    %32 = vector.load %arg2[%c4, %c0_38, %c0_39] : memref<9x128x128xbf16, #tpu.memory_space<vmem>>, vector<1x128x128xbf16>
    %33 = vector.shape_cast %32 : vector<1x128x128xbf16> to vector<128x128xbf16>
    %cst_40 = arith.constant dense<0.000000e+00> : vector<256x128xf32>
    %34 = tpu.matmul %31, %33, %cst_40 {dimension_numbers = #tpu.dot_dimension_numbers<[1], [0], [0], [1], [0, 0, 1, 1], [], []>} : vector<256x128xbf16>, vector<128x128xbf16>, vector<256x128xf32> -> vector<256x128xf32>
    %35 = arith.addf %29, %34 : vector<256x128xf32>
    %c1_41 = arith.constant 1 : index
    %c2_42 = arith.constant 2 : index
    %c0_43 = arith.constant 0 : index
    %36 = vector.load %arg12[%c1_41, %c2_42, %c0_43] : memref<18x18x128xbf16, #tpu.memory_space<vmem>>, vector<16x16x128xbf16>
    %37 = vector.shape_cast %36 : vector<16x16x128xbf16> to vector<256x128xbf16>
    %c5 = arith.constant 5 : index
    %c0_44 = arith.constant 0 : index
    %c0_45 = arith.constant 0 : index
    %38 = vector.load %arg2[%c5, %c0_44, %c0_45] : memref<9x128x128xbf16, #tpu.memory_space<vmem>>, vector<1x128x128xbf16>
    %39 = vector.shape_cast %38 : vector<1x128x128xbf16> to vector<128x128xbf16>
    %cst_46 = arith.constant dense<0.000000e+00> : vector<256x128xf32>
    %40 = tpu.matmul %37, %39, %cst_46 {dimension_numbers = #tpu.dot_dimension_numbers<[1], [0], [0], [1], [0, 0, 1, 1], [], []>} : vector<256x128xbf16>, vector<128x128xbf16>, vector<256x128xf32> -> vector<256x128xf32>
    %41 = arith.addf %35, %40 : vector<256x128xf32>
    %c2_47 = arith.constant 2 : index
    %c0_48 = arith.constant 0 : index
    %c0_49 = arith.constant 0 : index
    %42 = vector.load %arg12[%c2_47, %c0_48, %c0_49] : memref<18x18x128xbf16, #tpu.memory_space<vmem>>, vector<16x16x128xbf16>
    %43 = vector.shape_cast %42 : vector<16x16x128xbf16> to vector<256x128xbf16>
    %c6 = arith.constant 6 : index
    %c0_50 = arith.constant 0 : index
    %c0_51 = arith.constant 0 : index
    %44 = vector.load %arg2[%c6, %c0_50, %c0_51] : memref<9x128x128xbf16, #tpu.memory_space<vmem>>, vector<1x128x128xbf16>
    %45 = vector.shape_cast %44 : vector<1x128x128xbf16> to vector<128x128xbf16>
    %cst_52 = arith.constant dense<0.000000e+00> : vector<256x128xf32>
    %46 = tpu.matmul %43, %45, %cst_52 {dimension_numbers = #tpu.dot_dimension_numbers<[1], [0], [0], [1], [0, 0, 1, 1], [], []>} : vector<256x128xbf16>, vector<128x128xbf16>, vector<256x128xf32> -> vector<256x128xf32>
    %47 = arith.addf %41, %46 : vector<256x128xf32>
    %c2_53 = arith.constant 2 : index
    %c1_54 = arith.constant 1 : index
    %c0_55 = arith.constant 0 : index
    %48 = vector.load %arg12[%c2_53, %c1_54, %c0_55] : memref<18x18x128xbf16, #tpu.memory_space<vmem>>, vector<16x16x128xbf16>
    %49 = vector.shape_cast %48 : vector<16x16x128xbf16> to vector<256x128xbf16>
    %c7 = arith.constant 7 : index
    %c0_56 = arith.constant 0 : index
    %c0_57 = arith.constant 0 : index
    %50 = vector.load %arg2[%c7, %c0_56, %c0_57] : memref<9x128x128xbf16, #tpu.memory_space<vmem>>, vector<1x128x128xbf16>
    %51 = vector.shape_cast %50 : vector<1x128x128xbf16> to vector<128x128xbf16>
    %cst_58 = arith.constant dense<0.000000e+00> : vector<256x128xf32>
    %52 = tpu.matmul %49, %51, %cst_58 {dimension_numbers = #tpu.dot_dimension_numbers<[1], [0], [0], [1], [0, 0, 1, 1], [], []>} : vector<256x128xbf16>, vector<128x128xbf16>, vector<256x128xf32> -> vector<256x128xf32>
    %53 = arith.addf %47, %52 : vector<256x128xf32>
    %c2_59 = arith.constant 2 : index
    %c2_60 = arith.constant 2 : index
    %c0_61 = arith.constant 0 : index
    %54 = vector.load %arg12[%c2_59, %c2_60, %c0_61] : memref<18x18x128xbf16, #tpu.memory_space<vmem>>, vector<16x16x128xbf16>
    %55 = vector.shape_cast %54 : vector<16x16x128xbf16> to vector<256x128xbf16>
    %c8 = arith.constant 8 : index
    %c0_62 = arith.constant 0 : index
    %c0_63 = arith.constant 0 : index
    %56 = vector.load %arg2[%c8, %c0_62, %c0_63] : memref<9x128x128xbf16, #tpu.memory_space<vmem>>, vector<1x128x128xbf16>
    %57 = vector.shape_cast %56 : vector<1x128x128xbf16> to vector<128x128xbf16>
    %cst_64 = arith.constant dense<0.000000e+00> : vector<256x128xf32>
    %58 = tpu.matmul %55, %57, %cst_64 {dimension_numbers = #tpu.dot_dimension_numbers<[1], [0], [0], [1], [0, 0, 1, 1], [], []>} : vector<256x128xbf16>, vector<128x128xbf16>, vector<256x128xf32> -> vector<256x128xf32>
    %59 = arith.addf %53, %58 : vector<256x128xf32>
    %c0_65 = arith.constant 0 : index
    %c0_66 = arith.constant 0 : index
    %60 = vector.load %arg3[%c0_65, %c0_66] : memref<1x128xf32, #tpu.memory_space<vmem>>, vector<1x128xf32>
    %61 = vector.broadcast %60 : vector<1x128xf32> to vector<256x128xf32>
    %62 = arith.mulf %59, %61 : vector<256x128xf32>
    %c0_67 = arith.constant 0 : index
    %c0_68 = arith.constant 0 : index
    %63 = vector.load %arg4[%c0_67, %c0_68] : memref<1x128xf32, #tpu.memory_space<vmem>>, vector<1x128xf32>
    %64 = vector.broadcast %63 : vector<1x128xf32> to vector<256x128xf32>
    %65 = arith.addf %62, %64 : vector<256x128xf32>
    %cst_69 = arith.constant 0.000000e+00 : f32
    %66 = vector.broadcast %cst_69 : f32 to vector<256x128xf32>
    %67 = arith.maximumf %65, %66 : vector<256x128xf32>
    %cst_70 = arith.constant 0.000000e+00 : bf16
    %68 = vector.broadcast %cst_70 : bf16 to vector<18x18x128xbf16>
    %c0_71 = arith.constant 0 : index
    %c0_72 = arith.constant 0 : index
    %c0_73 = arith.constant 0 : index
    %69 = vector.load %arg13[%c0_71, %c0_72, %c0_73] : memref<18x18x128xbf16, #tpu.memory_space<vmem>>, vector<18x18x128xbf16>
    tpu.vector_store %arg13[%c0_71, %c0_72, %c0_73], %68 {strides = array<i32>} : memref<18x18x128xbf16, #tpu.memory_space<vmem>>, vector<18x18x128xbf16>,
    %70 = vector.shape_cast %67 : vector<256x128xf32> to vector<16x16x128xf32>
    %71 = arith.truncf %70 : vector<16x16x128xf32> to vector<16x16x128xbf16>
    %c1_74 = arith.constant 1 : index
    %c1_75 = arith.constant 1 : index
    %c0_76 = arith.constant 0 : index
    %72 = vector.load %arg13[%c1_74, %c1_75, %c0_76] : memref<18x18x128xbf16, #tpu.memory_space<vmem>>, vector<16x16x128xbf16>
    tpu.vector_store %arg13[%c1_74, %c1_75, %c0_76], %71 {strides = array<i32>} : memref<18x18x128xbf16, #tpu.memory_space<vmem>>, vector<16x16x128xbf16>,
    %cst_77 = arith.constant 0.000000e+00 : f32
    %73 = vector.broadcast %cst_77 : f32 to vector<256x128xf32>
    %c0_78 = arith.constant 0 : index
    %c0_79 = arith.constant 0 : index
    %c0_80 = arith.constant 0 : index
    %74 = vector.load %arg13[%c0_78, %c0_79, %c0_80] : memref<18x18x128xbf16, #tpu.memory_space<vmem>>, vector<16x16x128xbf16>
    %75 = vector.shape_cast %74 : vector<16x16x128xbf16> to vector<256x128xbf16>
    %c0_81 = arith.constant 0 : index
    %c0_82 = arith.constant 0 : index
    %c0_83 = arith.constant 0 : index
    %76 = vector.load %arg5[%c0_81, %c0_82, %c0_83] : memref<9x128x128xbf16, #tpu.memory_space<vmem>>, vector<1x128x128xbf16>
    %77 = vector.shape_cast %76 : vector<1x128x128xbf16> to vector<128x128xbf16>
    %cst_84 = arith.constant dense<0.000000e+00> : vector<256x128xf32>
    %78 = tpu.matmul %75, %77, %cst_84 {dimension_numbers = #tpu.dot_dimension_numbers<[1], [0], [0], [1], [0, 0, 1, 1], [], []>} : vector<256x128xbf16>, vector<128x128xbf16>, vector<256x128xf32> -> vector<256x128xf32>
    %79 = arith.addf %73, %78 : vector<256x128xf32>
    %c0_85 = arith.constant 0 : index
    %c1_86 = arith.constant 1 : index
    %c0_87 = arith.constant 0 : index
    %80 = vector.load %arg13[%c0_85, %c1_86, %c0_87] : memref<18x18x128xbf16, #tpu.memory_space<vmem>>, vector<16x16x128xbf16>
    %81 = vector.shape_cast %80 : vector<16x16x128xbf16> to vector<256x128xbf16>
    %c1_88 = arith.constant 1 : index
    %c0_89 = arith.constant 0 : index
    %c0_90 = arith.constant 0 : index
    %82 = vector.load %arg5[%c1_88, %c0_89, %c0_90] : memref<9x128x128xbf16, #tpu.memory_space<vmem>>, vector<1x128x128xbf16>
    %83 = vector.shape_cast %82 : vector<1x128x128xbf16> to vector<128x128xbf16>
    %cst_91 = arith.constant dense<0.000000e+00> : vector<256x128xf32>
    %84 = tpu.matmul %81, %83, %cst_91 {dimension_numbers = #tpu.dot_dimension_numbers<[1], [0], [0], [1], [0, 0, 1, 1], [], []>} : vector<256x128xbf16>, vector<128x128xbf16>, vector<256x128xf32> -> vector<256x128xf32>
    %85 = arith.addf %79, %84 : vector<256x128xf32>
    %c0_92 = arith.constant 0 : index
    %c2_93 = arith.constant 2 : index
    %c0_94 = arith.constant 0 : index
    %86 = vector.load %arg13[%c0_92, %c2_93, %c0_94] : memref<18x18x128xbf16, #tpu.memory_space<vmem>>, vector<16x16x128xbf16>
    %87 = vector.shape_cast %86 : vector<16x16x128xbf16> to vector<256x128xbf16>
    %c2_95 = arith.constant 2 : index
    %c0_96 = arith.constant 0 : index
    %c0_97 = arith.constant 0 : index
    %88 = vector.load %arg5[%c2_95, %c0_96, %c0_97] : memref<9x128x128xbf16, #tpu.memory_space<vmem>>, vector<1x128x128xbf16>
    %89 = vector.shape_cast %88 : vector<1x128x128xbf16> to vector<128x128xbf16>
    %cst_98 = arith.constant dense<0.000000e+00> : vector<256x128xf32>
    %90 = tpu.matmul %87, %89, %cst_98 {dimension_numbers = #tpu.dot_dimension_numbers<[1], [0], [0], [1], [0, 0, 1, 1], [], []>} : vector<256x128xbf16>, vector<128x128xbf16>, vector<256x128xf32> -> vector<256x128xf32>
    %91 = arith.addf %85, %90 : vector<256x128xf32>
    %c1_99 = arith.constant 1 : index
    %c0_100 = arith.constant 0 : index
    %c0_101 = arith.constant 0 : index
    %92 = vector.load %arg13[%c1_99, %c0_100, %c0_101] : memref<18x18x128xbf16, #tpu.memory_space<vmem>>, vector<16x16x128xbf16>
    %93 = vector.shape_cast %92 : vector<16x16x128xbf16> to vector<256x128xbf16>
    %c3_102 = arith.constant 3 : index
    %c0_103 = arith.constant 0 : index
    %c0_104 = arith.constant 0 : index
    %94 = vector.load %arg5[%c3_102, %c0_103, %c0_104] : memref<9x128x128xbf16, #tpu.memory_space<vmem>>, vector<1x128x128xbf16>
    %95 = vector.shape_cast %94 : vector<1x128x128xbf16> to vector<128x128xbf16>
    %cst_105 = arith.constant dense<0.000000e+00> : vector<256x128xf32>
    %96 = tpu.matmul %93, %95, %cst_105 {dimension_numbers = #tpu.dot_dimension_numbers<[1], [0], [0], [1], [0, 0, 1, 1], [], []>} : vector<256x128xbf16>, vector<128x128xbf16>, vector<256x128xf32> -> vector<256x128xf32>
    %97 = arith.addf %91, %96 : vector<256x128xf32>
    %c1_106 = arith.constant 1 : index
    %c1_107 = arith.constant 1 : index
    %c0_108 = arith.constant 0 : index
    %98 = vector.load %arg13[%c1_106, %c1_107, %c0_108] : memref<18x18x128xbf16, #tpu.memory_space<vmem>>, vector<16x16x128xbf16>
    %99 = vector.shape_cast %98 : vector<16x16x128xbf16> to vector<256x128xbf16>
    %c4_109 = arith.constant 4 : index
    %c0_110 = arith.constant 0 : index
    %c0_111 = arith.constant 0 : index
    %100 = vector.load %arg5[%c4_109, %c0_110, %c0_111] : memref<9x128x128xbf16, #tpu.memory_space<vmem>>, vector<1x128x128xbf16>
    %101 = vector.shape_cast %100 : vector<1x128x128xbf16> to vector<128x128xbf16>
    %cst_112 = arith.constant dense<0.000000e+00> : vector<256x128xf32>
    %102 = tpu.matmul %99, %101, %cst_112 {dimension_numbers = #tpu.dot_dimension_numbers<[1], [0], [0], [1], [0, 0, 1, 1], [], []>} : vector<256x128xbf16>, vector<128x128xbf16>, vector<256x128xf32> -> vector<256x128xf32>
    %103 = arith.addf %97, %102 : vector<256x128xf32>
    %c1_113 = arith.constant 1 : index
    %c2_114 = arith.constant 2 : index
    %c0_115 = arith.constant 0 : index
    %104 = vector.load %arg13[%c1_113, %c2_114, %c0_115] : memref<18x18x128xbf16, #tpu.memory_space<vmem>>, vector<16x16x128xbf16>
    %105 = vector.shape_cast %104 : vector<16x16x128xbf16> to vector<256x128xbf16>
    %c5_116 = arith.constant 5 : index
    %c0_117 = arith.constant 0 : index
    %c0_118 = arith.constant 0 : index
    %106 = vector.load %arg5[%c5_116, %c0_117, %c0_118] : memref<9x128x128xbf16, #tpu.memory_space<vmem>>, vector<1x128x128xbf16>
    %107 = vector.shape_cast %106 : vector<1x128x128xbf16> to vector<128x128xbf16>
    %cst_119 = arith.constant dense<0.000000e+00> : vector<256x128xf32>
    %108 = tpu.matmul %105, %107, %cst_119 {dimension_numbers = #tpu.dot_dimension_numbers<[1], [0], [0], [1], [0, 0, 1, 1], [], []>} : vector<256x128xbf16>, vector<128x128xbf16>, vector<256x128xf32> -> vector<256x128xf32>
    %109 = arith.addf %103, %108 : vector<256x128xf32>
    %c2_120 = arith.constant 2 : index
    %c0_121 = arith.constant 0 : index
    %c0_122 = arith.constant 0 : index
    %110 = vector.load %arg13[%c2_120, %c0_121, %c0_122] : memref<18x18x128xbf16, #tpu.memory_space<vmem>>, vector<16x16x128xbf16>
    %111 = vector.shape_cast %110 : vector<16x16x128xbf16> to vector<256x128xbf16>
    %c6_123 = arith.constant 6 : index
    %c0_124 = arith.constant 0 : index
    %c0_125 = arith.constant 0 : index
    %112 = vector.load %arg5[%c6_123, %c0_124, %c0_125] : memref<9x128x128xbf16, #tpu.memory_space<vmem>>, vector<1x128x128xbf16>
    %113 = vector.shape_cast %112 : vector<1x128x128xbf16> to vector<128x128xbf16>
    %cst_126 = arith.constant dense<0.000000e+00> : vector<256x128xf32>
    %114 = tpu.matmul %111, %113, %cst_126 {dimension_numbers = #tpu.dot_dimension_numbers<[1], [0], [0], [1], [0, 0, 1, 1], [], []>} : vector<256x128xbf16>, vector<128x128xbf16>, vector<256x128xf32> -> vector<256x128xf32>
    %115 = arith.addf %109, %114 : vector<256x128xf32>
    %c2_127 = arith.constant 2 : index
    %c1_128 = arith.constant 1 : index
    %c0_129 = arith.constant 0 : index
    %116 = vector.load %arg13[%c2_127, %c1_128, %c0_129] : memref<18x18x128xbf16, #tpu.memory_space<vmem>>, vector<16x16x128xbf16>
    %117 = vector.shape_cast %116 : vector<16x16x128xbf16> to vector<256x128xbf16>
    %c7_130 = arith.constant 7 : index
    %c0_131 = arith.constant 0 : index
    %c0_132 = arith.constant 0 : index
    %118 = vector.load %arg5[%c7_130, %c0_131, %c0_132] : memref<9x128x128xbf16, #tpu.memory_space<vmem>>, vector<1x128x128xbf16>
    %119 = vector.shape_cast %118 : vector<1x128x128xbf16> to vector<128x128xbf16>
    %cst_133 = arith.constant dense<0.000000e+00> : vector<256x128xf32>
    %120 = tpu.matmul %117, %119, %cst_133 {dimension_numbers = #tpu.dot_dimension_numbers<[1], [0], [0], [1], [0, 0, 1, 1], [], []>} : vector<256x128xbf16>, vector<128x128xbf16>, vector<256x128xf32> -> vector<256x128xf32>
    %121 = arith.addf %115, %120 : vector<256x128xf32>
    %c2_134 = arith.constant 2 : index
    %c2_135 = arith.constant 2 : index
    %c0_136 = arith.constant 0 : index
    %122 = vector.load %arg13[%c2_134, %c2_135, %c0_136] : memref<18x18x128xbf16, #tpu.memory_space<vmem>>, vector<16x16x128xbf16>
    %123 = vector.shape_cast %122 : vector<16x16x128xbf16> to vector<256x128xbf16>
    %c8_137 = arith.constant 8 : index
    %c0_138 = arith.constant 0 : index
    %c0_139 = arith.constant 0 : index
    %124 = vector.load %arg5[%c8_137, %c0_138, %c0_139] : memref<9x128x128xbf16, #tpu.memory_space<vmem>>, vector<1x128x128xbf16>
    %125 = vector.shape_cast %124 : vector<1x128x128xbf16> to vector<128x128xbf16>
    %cst_140 = arith.constant dense<0.000000e+00> : vector<256x128xf32>
    %126 = tpu.matmul %123, %125, %cst_140 {dimension_numbers = #tpu.dot_dimension_numbers<[1], [0], [0], [1], [0, 0, 1, 1], [], []>} : vector<256x128xbf16>, vector<128x128xbf16>, vector<256x128xf32> -> vector<256x128xf32>
    %127 = arith.addf %121, %126 : vector<256x128xf32>
    %c0_141 = arith.constant 0 : index
    %c0_142 = arith.constant 0 : index
    %128 = vector.load %arg6[%c0_141, %c0_142] : memref<1x128xf32, #tpu.memory_space<vmem>>, vector<1x128xf32>
    %129 = vector.broadcast %128 : vector<1x128xf32> to vector<256x128xf32>
    %130 = arith.mulf %127, %129 : vector<256x128xf32>
    %c0_143 = arith.constant 0 : index
    %c0_144 = arith.constant 0 : index
    %131 = vector.load %arg7[%c0_143, %c0_144] : memref<1x128xf32, #tpu.memory_space<vmem>>, vector<1x128xf32>
    %132 = vector.broadcast %131 : vector<1x128xf32> to vector<256x128xf32>
    %133 = arith.addf %130, %132 : vector<256x128xf32>
    %c0_145 = arith.constant 0 : index
    %c0_146 = arith.constant 0 : index
    %c0_147 = arith.constant 0 : index
    %c0_148 = arith.constant 0 : index
    %134 = vector.load %arg1[%c0_145, %c0_146, %c0_147, %c0_148] : memref<1x16x16x128xbf16, #tpu.memory_space<vmem>>, vector<1x16x16x128xbf16>
    %135 = vector.shape_cast %134 : vector<1x16x16x128xbf16> to vector<16x16x128xbf16>
    %136 = vector.shape_cast %135 : vector<16x16x128xbf16> to vector<256x128xbf16>
    %c0_149 = arith.constant 0 : index
    %c0_150 = arith.constant 0 : index
    %137 = vector.load %arg8[%c0_149, %c0_150] : memref<128x128xbf16, #tpu.memory_space<vmem>>, vector<128x128xbf16>
    %cst_151 = arith.constant dense<0.000000e+00> : vector<256x128xf32>
    %138 = tpu.matmul %136, %137, %cst_151 {dimension_numbers = #tpu.dot_dimension_numbers<[1], [0], [0], [1], [0, 0, 1, 1], [], []>} : vector<256x128xbf16>, vector<128x128xbf16>, vector<256x128xf32> -> vector<256x128xf32>
    %c0_152 = arith.constant 0 : index
    %c0_153 = arith.constant 0 : index
    %139 = vector.load %arg9[%c0_152, %c0_153] : memref<1x128xf32, #tpu.memory_space<vmem>>, vector<1x128xf32>
    %140 = vector.broadcast %139 : vector<1x128xf32> to vector<256x128xf32>
    %141 = arith.mulf %138, %140 : vector<256x128xf32>
    %c0_154 = arith.constant 0 : index
    %c0_155 = arith.constant 0 : index
    %142 = vector.load %arg10[%c0_154, %c0_155] : memref<1x128xf32, #tpu.memory_space<vmem>>, vector<1x128xf32>
    %143 = vector.broadcast %142 : vector<1x128xf32> to vector<256x128xf32>
    %144 = arith.addf %141, %143 : vector<256x128xf32>
    %145 = arith.addf %133, %144 : vector<256x128xf32>
    %cst_156 = arith.constant 0.000000e+00 : f32
    %146 = vector.broadcast %cst_156 : f32 to vector<256x128xf32>
    %147 = arith.maximumf %145, %146 : vector<256x128xf32>
    %148 = vector.shape_cast %147 : vector<256x128xf32> to vector<16x16x128xf32>
    %c0_157 = arith.constant 0 : index
    %c0_158 = arith.constant 0 : index
    %c0_159 = arith.constant 0 : index
    %c0_160 = arith.constant 0 : index
    %149 = vector.load %arg11[%c0_157, %c0_158, %c0_159, %c0_160] : memref<1x16x16x128xf32, #tpu.memory_space<vmem>>, vector<1x16x16x128xf32>
    %150 = vector.shape_cast %149 : vector<1x16x16x128xf32> to vector<16x16x128xf32>
    %151 = vector.shape_cast %148 : vector<16x16x128xf32> to vector<1x16x16x128xf32>
    tpu.vector_store %arg11[%c0_157, %c0_158, %c0_159, %c0_160], %151 {strides = array<i32>} : memref<1x16x16x128xf32, #tpu.memory_space<vmem>>, vector<1x16x16x128xf32>,
    return
  }
  func.func @transform_0(%arg0: i32) -> (i32, i32, i32, i32) {
    %c0_i32 = arith.constant 0 : i32
    %c0_i32_0 = arith.constant 0 : i32
    %c0_i32_1 = arith.constant 0 : i32
    %c0_i32_2 = arith.constant 0 : i32
    return %arg0, %c0_i32, %c0_i32_0, %c0_i32_1 : i32, i32, i32, i32
  }
  func.func @transform_1(%arg0: i32) -> (i32, i32, i32) {
    %c0_i32 = arith.constant 0 : i32
    %c0_i32_0 = arith.constant 0 : i32
    %c0_i32_1 = arith.constant 0 : i32
    %c0_i32_2 = arith.constant 0 : i32
    return %c0_i32, %c0_i32_0, %c0_i32_1 : i32, i32, i32
  }
  func.func @transform_2(%arg0: i32) -> (i32, i32) {
    %c0_i32 = arith.constant 0 : i32
    %c0_i32_0 = arith.constant 0 : i32
    %c0_i32_1 = arith.constant 0 : i32
    return %c0_i32, %c0_i32_0 : i32, i32
  }
  func.func @transform_3(%arg0: i32) -> (i32, i32) {
    %c0_i32 = arith.constant 0 : i32
    %c0_i32_0 = arith.constant 0 : i32
    %c0_i32_1 = arith.constant 0 : i32
    return %c0_i32, %c0_i32_0 : i32, i32
  }
  func.func @transform_4(%arg0: i32) -> (i32, i32, i32) {
    %c0_i32 = arith.constant 0 : i32
    %c0_i32_0 = arith.constant 0 : i32
    %c0_i32_1 = arith.constant 0 : i32
    %c0_i32_2 = arith.constant 0 : i32
    return %c0_i32, %c0_i32_0, %c0_i32_1 : i32, i32, i32
  }
  func.func @transform_5(%arg0: i32) -> (i32, i32) {
    %c0_i32 = arith.constant 0 : i32
    %c0_i32_0 = arith.constant 0 : i32
    %c0_i32_1 = arith.constant 0 : i32
    return %c0_i32, %c0_i32_0 : i32, i32
  }
  func.func @transform_6(%arg0: i32) -> (i32, i32) {
    %c0_i32 = arith.constant 0 : i32
    %c0_i32_0 = arith.constant 0 : i32
    %c0_i32_1 = arith.constant 0 : i32
    return %c0_i32, %c0_i32_0 : i32, i32
  }
  func.func @transform_7(%arg0: i32) -> (i32, i32) {
    %c0_i32 = arith.constant 0 : i32
    %c0_i32_0 = arith.constant 0 : i32
    %c0_i32_1 = arith.constant 0 : i32
    return %c0_i32, %c0_i32_0 : i32, i32
  }
  func.func @transform_8(%arg0: i32) -> (i32, i32) {
    %c0_i32 = arith.constant 0 : i32
    %c0_i32_0 = arith.constant 0 : i32
    %c0_i32_1 = arith.constant 0 : i32
    return %c0_i32, %c0_i32_0 : i32, i32
  }
  func.func @transform_9(%arg0: i32) -> (i32, i32) {
    %c0_i32 = arith.constant 0 : i32
    %c0_i32_0 = arith.constant 0 : i32
    %c0_i32_1 = arith.constant 0 : i32
    return %c0_i32, %c0_i32_0 : i32, i32
  }
  func.func @transform_10(%arg0: i32) -> (i32, i32, i32, i32) {
    %c0_i32 = arith.constant 0 : i32
    %c0_i32_0 = arith.constant 0 : i32
    %c0_i32_1 = arith.constant 0 : i32
    %c0_i32_2 = arith.constant 0 : i32
    return %arg0, %c0_i32, %c0_i32_0, %c0_i32_1 : i32, i32, i32, i32
  }
}

</mosaic_0001>

<llo_original>
// kernel: tpu_custom_call.1
$region0: #{tpu_custom_call.1}
  #allocation0 [shape = 'u32[]', space=smem, size = 0x4, offset = 0x4, fixed_abs, tag = 'smem constant byte address 0x4 - core index']
  #allocation1 [shape = 'u32[144,128]{1,0:T(1,128)}', space=vmem, size = 0x12000, scoped, tag = 'internal scratch']
  #allocation2 [shape = 'bf16[18,18,128]{2,1,0:T(8,128)(2,1)}', space=vmem, size = 0x1b000, scoped, tag = 'scratch operand']
  #allocation3 [shape = 'bf16[18,18,128]{2,1,0:T(8,128)(2,1)}', space=vmem, size = 0x1b000, scoped, tag = 'scratch operand']
  %s0 = inlined_call_operand.hbm [shape: bf16[2,16,16,128], index: 0, kind: input, shape index: {}]
  %s1 = inlined_call_operand.hbm [shape: bf16[9,128,128], index: 1, kind: input, shape index: {}]
  %s2 = inlined_call_operand.vmem [shape: f32[1,128], index: 2, kind: input, shape index: {}]
  %s3 = inlined_call_operand.vmem [shape: f32[1,128], index: 3, kind: input, shape index: {}]
  %s4 = inlined_call_operand.hbm [shape: bf16[9,128,128], index: 4, kind: input, shape index: {}]
  %s5 = inlined_call_operand.vmem [shape: f32[1,128], index: 5, kind: input, shape index: {}]
  %s6 = inlined_call_operand.vmem [shape: f32[1,128], index: 6, kind: input, shape index: {}]
  %s7 = inlined_call_operand.hbm [shape: bf16[128,128], index: 7, kind: input, shape index: {}]
  %s8 = inlined_call_operand.vmem [shape: f32[1,128], index: 8, kind: input, shape index: {}]
  %s9 = inlined_call_operand.vmem [shape: f32[1,128], index: 9, kind: input, shape index: {}]
  %s10 = inlined_call_operand.hbm [shape: f32[2,16,16,128], index: 10, kind: output, shape index: {}]
  %s11 = sld [smem:[#allocation0]]
  $region89: #{tpu_custom_call.1} parent=0
    _
  %s13 = ssub.s32 1, %s11
  %s14 = scalar_select 0, %s13, %s11
  $region1: #{tpu_custom_call.1} parent=0
    #allocation4 [shape = 'u8[131072]{0}', space=vmem, size = 0x20000, scoped, tag = 'input window, operand 0']
    #allocation5 [shape = 's32[2]{0}', space=sflag, size = 0x8, scoped, tag = 'scoped memory for tpu_custom_call.1']
    #allocation6 [shape = 's32[2]{0}', space=sflag, size = 0x8, scoped, tag = 'scoped memory for tpu_custom_call.1']
    #allocation7 [shape = 'u8[294912]{0}', space=vmem, size = 0x48000, scoped, tag = 'input window, operand 1, single buffered']
    #allocation8 [shape = 's32[1]{0}', space=sflag, size = 0x4, scoped, tag = 'scoped memory for tpu_custom_call.1']
    #allocation9 [shape = 'u8[294912]{0}', space=vmem, size = 0x48000, scoped, tag = 'input window, operand 4, single buffered']
    #allocation10 [shape = 'u8[32768]{0}', space=vmem, size = 0x8000, scoped, tag = 'input window, operand 7, single buffered']
    #allocation11 [shape = 's32[1]{0}', space=sflag, size = 0x4, scoped, tag = 'scoped memory for tpu_custom_call.1']
    #allocation12 [shape = 'u8[262144]{0}', space=vmem, size = 0x40000, scoped, tag = 'output window, operand 0']
    %15 = vsyncpa [#allocation5], 0
    %s16 = scalar_lea.sflag [#allocation5], 1
    %17 = vsyncpa %s16, 0
    %18 = vsyncpa [#allocation8], 0
    %19 = vsyncpa [#allocation11], 0
    %20 = vsyncpa [#allocation6], 0
    %s21 = scalar_lea.sflag [#allocation6], 1
    %22 = vsyncpa %s21, 0
    loop: start=0, step=1, limit=4
    $region2: #{tpu_custom_call.1} parent=1 // loop_pre_header
      _
    $region3: #{tpu_custom_call.1} parent=1 // loop_header
      %s24 = sphi 0, %s28
      %p25 = scmp.ge.s32.totalorder %s24, 4
      %s34 = sphi 0, %s36
      %s37 = sphi 0, %s34
      %s38 = sphi 0, %s37
      %s54 = sphi 0, %s38
      %s58 = sphi 0, %s58
      %s60 = sphi 0, %s58
      %s61 = sphi 0, %s60
      %s75 = sphi 0, %s61
      %s79 = sphi 0, %s79
      %s81 = sphi 0, %s79
      %s82 = sphi 0, %s81
      %s96 = sphi 0, %s82
      %s100 = sphi 0, %s100
      %s102 = sphi 0, %s100
      %s103 = sphi 0, %s102
      %s117 = sphi 0, %s103
      %s121 = sphi 0, %s121
      %s123 = sphi 0, %s121
      %s124 = sphi 0, %s123
      %s138 = sphi 0, %s124
      %s142 = sphi 0, %s142
      %s144 = sphi 0, %s142
      %s145 = sphi 0, %s144
      %s159 = sphi 0, %s145
      %s163 = sphi 0, %s163
      %s165 = sphi 0, %s163
      %s166 = sphi 0, %s165
      %s180 = sphi 0, %s166
      %s184 = sphi 0, %s184
      %s186 = sphi 0, %s184
      %s187 = sphi 0, %s186
      %s201 = sphi 0, %s187
      %s205 = sphi 0, %s205
      %s207 = sphi 0, %s205
      %s208 = sphi 0, %s207
      %s222 = sphi 0, %s208
      %s226 = sphi 0, %s226
      %s228 = sphi 0, %s226
      %s229 = sphi 0, %s228
      %s243 = sphi 0, %s229
      %s249 = sphi 0, %s251
      %s252 = sphi 0, %s249
      %s253 = sphi 0, %s252
      %s269 = sphi 0, %s253
    $region4: #{tpu_custom_call.1} parent=1 // loop_header_branch
      %27 = sbr.rel (%p25) target = $region8
    $region5: #{tpu_custom_call.1} parent=1 // loop_body
      %s29 = ssub.s32 %s24, 1
      %s30 = ssub.s32 %s24, 2
      %s31 = sadd.s32 %s24, 1
      %s32 = ssub.s32 %s24, %s31
      %p33 = scmp.eq.s32.totalorder %s32, 0
      %s35 = sadd.s32 %s34, 1
      %s36 = scalar_select %p33, %s34, %s35
      %p39 = pneg %p33
      %p40 = scmp.eq.s32.totalorder %s24, 1
      %p41 = por %p39, %p40
      %p42 = scmp.ne.s32.totalorder %s34, %s37
      %p43 = scmp.eq.s32.totalorder %s24, 0
      %p44 = por %p42, %p43
      %p45 = scmp.ne.s32.totalorder %s34, %s37
      %p46 = scmp.eq.s32.totalorder %s29, 1
      %p47 = por %p45, %p46
      %p48 = scmp.ne.s32.totalorder %s37, %s38
      %p49 = scmp.eq.s32.totalorder %s29, 0
      %p50 = por %p48, %p49
      %p51 = scmp.ne.s32.totalorder %s37, %s38
      %p52 = scmp.eq.s32.totalorder %s30, 1
      %p53 = por %p51, %p52
      %p55 = scmp.ne.s32.totalorder %s38, %s54
      %p56 = scmp.eq.s32.totalorder %s30, 0
      %p57 = por %p55, %p56
      %s59 = sadd.s32 %s58, 1
      %p62 = scmp.eq.s32.totalorder %s24, 1
      %p63 = scmp.ne.s32.totalorder %s58, %s60
      %p64 = scmp.eq.s32.totalorder %s24, 0
      %p65 = por %p63, %p64
      %p66 = scmp.ne.s32.totalorder %s58, %s60
      %p67 = scmp.eq.s32.totalorder %s29, 1
      %p68 = por %p66, %p67
      %p69 = scmp.ne.s32.totalorder %s60, %s61
      %p70 = scmp.eq.s32.totalorder %s29, 0
      %p71 = por %p69, %p70
      %p72 = scmp.ne.s32.totalorder %s60, %s61
      %p73 = scmp.eq.s32.totalorder %s30, 1
      %p74 = por %p72, %p73
      %p76 = scmp.ne.s32.totalorder %s61, %s75
      %p77 = scmp.eq.s32.totalorder %s30, 0
      %p78 = por %p76, %p77
      %s80 = sadd.s32 %s79, 1
      %p83 = scmp.eq.s32.totalorder %s24, 1
      %p84 = scmp.ne.s32.totalorder %s79, %s81
      %p85 = scmp.eq.s32.totalorder %s24, 0
      %p86 = por %p84, %p85
      %p87 = scmp.ne.s32.totalorder %s79, %s81
      %p88 = scmp.eq.s32.totalorder %s29, 1
      %p89 = por %p87, %p88
      %p90 = scmp.ne.s32.totalorder %s81, %s82
      %p91 = scmp.eq.s32.totalorder %s29, 0
      %p92 = por %p90, %p91
      %p93 = scmp.ne.s32.totalorder %s81, %s82
      %p94 = scmp.eq.s32.totalorder %s30, 1
      %p95 = por %p93, %p94
      %p97 = scmp.ne.s32.totalorder %s82, %s96
      %p98 = scmp.eq.s32.totalorder %s30, 0
      %p99 = por %p97, %p98
      %s101 = sadd.s32 %s100, 1
      %p104 = scmp.eq.s32.totalorder %s24, 1
      %p105 = scmp.ne.s32.totalorder %s100, %s102
      %p106 = scmp.eq.s32.totalorder %s24, 0
      %p107 = por %p105, %p106
      %p108 = scmp.ne.s32.totalorder %s100, %s102
      %p109 = scmp.eq.s32.totalorder %s29, 1
      %p110 = por %p108, %p109
      %p111 = scmp.ne.s32.totalorder %s102, %s103
      %p112 = scmp.eq.s32.totalorder %s29, 0
      %p113 = por %p111, %p112
      %p114 = scmp.ne.s32.totalorder %s102, %s103
      %p115 = scmp.eq.s32.totalorder %s30, 1
      %p116 = por %p114, %p115
      %p118 = scmp.ne.s32.totalorder %s103, %s117
      %p119 = scmp.eq.s32.totalorder %s30, 0
      %p120 = por %p118, %p119
      %s122 = sadd.s32 %s121, 1
      %p125 = scmp.eq.s32.totalorder %s24, 1
      %p126 = scmp.ne.s32.totalorder %s121, %s123
      %p127 = scmp.eq.s32.totalorder %s24, 0
      %p128 = por %p126, %p127
      %p129 = scmp.ne.s32.totalorder %s121, %s123
      %p130 = scmp.eq.s32.totalorder %s29, 1
      %p131 = por %p129, %p130
      %p132 = scmp.ne.s32.totalorder %s123, %s124
      %p133 = scmp.eq.s32.totalorder %s29, 0
      %p134 = por %p132, %p133
      %p135 = scmp.ne.s32.totalorder %s123, %s124
      %p136 = scmp.eq.s32.totalorder %s30, 1
      %p137 = por %p135, %p136
      %p139 = scmp.ne.s32.totalorder %s124, %s138
      %p140 = scmp.eq.s32.totalorder %s30, 0
      %p141 = por %p139, %p140
      %s143 = sadd.s32 %s142, 1
      %p146 = scmp.eq.s32.totalorder %s24, 1
      %p147 = scmp.ne.s32.totalorder %s142, %s144
      %p148 = scmp.eq.s32.totalorder %s24, 0
      %p149 = por %p147, %p148
      %p150 = scmp.ne.s32.totalorder %s142, %s144
      %p151 = scmp.eq.s32.totalorder %s29, 1
      %p152 = por %p150, %p151
      %p153 = scmp.ne.s32.totalorder %s144, %s145
      %p154 = scmp.eq.s32.totalorder %s29, 0
      %p155 = por %p153, %p154
      %p156 = scmp.ne.s32.totalorder %s144, %s145
      %p157 = scmp.eq.s32.totalorder %s30, 1
      %p158 = por %p156, %p157
      %p160 = scmp.ne.s32.totalorder %s145, %s159
      %p161 = scmp.eq.s32.totalorder %s30, 0
      %p162 = por %p160, %p161
      %s164 = sadd.s32 %s163, 1
      %p167 = scmp.eq.s32.totalorder %s24, 1
      %p168 = scmp.ne.s32.totalorder %s163, %s165
      %p169 = scmp.eq.s32.totalorder %s24, 0
      %p170 = por %p168, %p169
      %p171 = scmp.ne.s32.totalorder %s163, %s165
      %p172 = scmp.eq.s32.totalorder %s29, 1
      %p173 = por %p171, %p172
      %p174 = scmp.ne.s32.totalorder %s165, %s166
      %p175 = scmp.eq.s32.totalorder %s29, 0
      %p176 = por %p174, %p175
      %p177 = scmp.ne.s32.totalorder %s165, %s166
      %p178 = scmp.eq.s32.totalorder %s30, 1
      %p179 = por %p177, %p178
      %p181 = scmp.ne.s32.totalorder %s166, %s180
      %p182 = scmp.eq.s32.totalorder %s30, 0
      %p183 = por %p181, %p182
      %s185 = sadd.s32 %s184, 1
      %p188 = scmp.eq.s32.totalorder %s24, 1
      %p189 = scmp.ne.s32.totalorder %s184, %s186
      %p190 = scmp.eq.s32.totalorder %s24, 0
      %p191 = por %p189, %p190
      %p192 = scmp.ne.s32.totalorder %s184, %s186
      %p193 = scmp.eq.s32.totalorder %s29, 1
      %p194 = por %p192, %p193
      %p195 = scmp.ne.s32.totalorder %s186, %s187
      %p196 = scmp.eq.s32.totalorder %s29, 0
      %p197 = por %p195, %p196
      %p198 = scmp.ne.s32.totalorder %s186, %s187
      %p199 = scmp.eq.s32.totalorder %s30, 1
      %p200 = por %p198, %p199
      %p202 = scmp.ne.s32.totalorder %s187, %s201
      %p203 = scmp.eq.s32.totalorder %s30, 0
      %p204 = por %p202, %p203
      %s206 = sadd.s32 %s205, 1
      %p209 = scmp.eq.s32.totalorder %s24, 1
      %p210 = scmp.ne.s32.totalorder %s205, %s207
      %p211 = scmp.eq.s32.totalorder %s24, 0
      %p212 = por %p210, %p211
      %p213 = scmp.ne.s32.totalorder %s205, %s207
      %p214 = scmp.eq.s32.totalorder %s29, 1
      %p215 = por %p213, %p214
      %p216 = scmp.ne.s32.totalorder %s207, %s208
      %p217 = scmp.eq.s32.totalorder %s29, 0
      %p218 = por %p216, %p217
      %p219 = scmp.ne.s32.totalorder %s207, %s208
      %p220 = scmp.eq.s32.totalorder %s30, 1
      %p221 = por %p219, %p220
      %p223 = scmp.ne.s32.totalorder %s208, %s222
      %p224 = scmp.eq.s32.totalorder %s30, 0
      %p225 = por %p223, %p224
      %s227 = sadd.s32 %s226, 1
      %p230 = scmp.eq.s32.totalorder %s24, 1
      %p231 = scmp.ne.s32.totalorder %s226, %s228
      %p232 = scmp.eq.s32.totalorder %s24, 0
      %p233 = por %p231, %p232
      %p234 = scmp.ne.s32.totalorder %s226, %s228
      %p235 = scmp.eq.s32.totalorder %s29, 1
      %p236 = por %p234, %p235
      %p237 = scmp.ne.s32.totalorder %s228, %s229
      %p238 = scmp.eq.s32.totalorder %s29, 0
      %p239 = por %p237, %p238
      %p240 = scmp.ne.s32.totalorder %s228, %s229
      %p241 = scmp.eq.s32.totalorder %s30, 1
      %p242 = por %p240, %p241
      %p244 = scmp.ne.s32.totalorder %s229, %s243
      %p245 = scmp.eq.s32.totalorder %s30, 0
      %p246 = por %p244, %p245
      %s247 = ssub.s32 %s24, %s31
      %p248 = scmp.eq.s32.totalorder %s247, 0
      %s250 = sadd.s32 %s249, 1
      %s251 = scalar_select %p248, %s249, %s250
      %p254 = pneg %p248
      %p255 = scmp.eq.s32.totalorder %s24, 1
      %p256 = por %p254, %p255
      %p257 = scmp.ne.s32.totalorder %s249, %s252
      %p258 = scmp.eq.s32.totalorder %s24, 0
      %p259 = por %p257, %p258
      %p260 = scmp.ne.s32.totalorder %s249, %s252
      %p261 = scmp.eq.s32.totalorder %s29, 1
      %p262 = por %p260, %p261
      %p263 = scmp.ne.s32.totalorder %s252, %s253
      %p264 = scmp.eq.s32.totalorder %s29, 0
      %p265 = por %p263, %p264
      %p266 = scmp.ne.s32.totalorder %s252, %s253
      %p267 = scmp.eq.s32.totalorder %s30, 1
      %p268 = por %p266, %p267
      %p270 = scmp.ne.s32.totalorder %s253, %s269
      %p271 = scmp.eq.s32.totalorder %s30, 0
      %p272 = por %p270, %p271
      %p273 = scmp.le.s32.totalorder 1, %s24
      %p274 = scmp.lt.s32.totalorder %s24, 3
      %p275 = pnand %p273, %p274
      %p276 = pneg %p275
      // Predicated region
      $region9: #{tpu_custom_call.1} parent=5 // pred_check
        _
      $region10: #{tpu_custom_call.1} parent=5 // pred_check_branch
        %278 = sbr.rel (%p275) target = $region12
      $region11: #{tpu_custom_call.1} parent=5 // pred_region
        %s279 = ssub.s32 %s24, 1
        // Predicated region
        $region13: #{tpu_custom_call.1} parent=11 // pred_check
          %p280 = pneg %p71
        $region14: #{tpu_custom_call.1} parent=11 // pred_check_branch
          %282 = sbr.rel (%p280) target = $region16
        $region15: #{tpu_custom_call.1} parent=11 // pred_region
          %s284 = ssub.s32 9216, 9216
          %285 = vsyncadd [#allocation8], %s284
          %s286 = sshll.u32 [#allocation7], 4
          %s287 = int_to_ptr.vmem [resolvable:$true] %s286
          %292 = dma.hbm_to_vmem [thread:$0]  %s1, 9216, %s287, [#allocation8], 64, 64, 4
        $region16: #{tpu_custom_call.1} parent=11 // pred_fallthru
          _
        // Predicated region
        $region17: #{tpu_custom_call.1} parent=11 // pred_check
          %p293 = pneg %p92
        $region18: #{tpu_custom_call.1} parent=11 // pred_check_branch
          %295 = sbr.rel (%p293) target = $region20
        $region19: #{tpu_custom_call.1} parent=11 // pred_region
          _
        $region20: #{tpu_custom_call.1} parent=11 // pred_fallthru
          _
        // Predicated region
        $region21: #{tpu_custom_call.1} parent=11 // pred_check
          %p296 = pneg %p113
        $region22: #{tpu_custom_call.1} parent=11 // pred_check_branch
          %298 = sbr.rel (%p296) target = $region24
        $region23: #{tpu_custom_call.1} parent=11 // pred_region
          _
        $region24: #{tpu_custom_call.1} parent=11 // pred_fallthru
          _
        // Predicated region
        $region25: #{tpu_custom_call.1} parent=11 // pred_check
          %p299 = pneg %p134
        $region26: #{tpu_custom_call.1} parent=11 // pred_check_branch
          %301 = sbr.rel (%p299) target = $region28
        $region27: #{tpu_custom_call.1} parent=11 // pred_region
          %s303 = ssub.s32 9216, 9216
          %304 = vsyncadd [#allocation8], %s303
          %s305 = sshll.u32 [#allocation9], 4
          %s306 = int_to_ptr.vmem [resolvable:$true] %s305
          %311 = dma.hbm_to_vmem [thread:$0]  %s4, 9216, %s306, [#allocation8], 64, 64, 4
        $region28: #{tpu_custom_call.1} parent=11 // pred_fallthru
          _
        // Predicated region
        $region29: #{tpu_custom_call.1} parent=11 // pred_check
          %p312 = pneg %p155
        $region30: #{tpu_custom_call.1} parent=11 // pred_check_branch
          %314 = sbr.rel (%p312) target = $region32
        $region31: #{tpu_custom_call.1} parent=11 // pred_region
          _
        $region32: #{tpu_custom_call.1} parent=11 // pred_fallthru
          _
        // Predicated region
        $region33: #{tpu_custom_call.1} parent=11 // pred_check
          %p315 = pneg %p176
        $region34: #{tpu_custom_call.1} parent=11 // pred_check_branch
          %317 = sbr.rel (%p315) target = $region36
        $region35: #{tpu_custom_call.1} parent=11 // pred_region
          _
        $region36: #{tpu_custom_call.1} parent=11 // pred_fallthru
          _
        // Predicated region
        $region37: #{tpu_custom_call.1} parent=11 // pred_check
          %p318 = pneg %p197
        $region38: #{tpu_custom_call.1} parent=11 // pred_check_branch
          %320 = sbr.rel (%p318) target = $region40
        $region39: #{tpu_custom_call.1} parent=11 // pred_region
          %s322 = ssub.s32 1024, 1024
          %323 = vsyncadd [#allocation11], %s322
          %s324 = sshll.u32 [#allocation10], 4
          %s325 = int_to_ptr.vmem [resolvable:$true] %s324
          %330 = dma.hbm_to_vmem [thread:$0]  %s7, 1024, %s325, [#allocation11], 64, 64, 4
        $region40: #{tpu_custom_call.1} parent=11 // pred_fallthru
          _
        // Predicated region
        $region41: #{tpu_custom_call.1} parent=11 // pred_check
          %p331 = pneg %p218
        $region42: #{tpu_custom_call.1} parent=11 // pred_check_branch
          %333 = sbr.rel (%p331) target = $region44
        $region43: #{tpu_custom_call.1} parent=11 // pred_region
          _
        $region44: #{tpu_custom_call.1} parent=11 // pred_fallthru
          _
        // Predicated region
        $region45: #{tpu_custom_call.1} parent=11 // pred_check
          %p334 = pneg %p239
        $region46: #{tpu_custom_call.1} parent=11 // pred_check_branch
          %336 = sbr.rel (%p334) target = $region48
        $region47: #{tpu_custom_call.1} parent=11 // pred_region
          _
        $region48: #{tpu_custom_call.1} parent=11 // pred_fallthru
          _
      $region12: #{tpu_custom_call.1} parent=5 // pred_fallthru
        _
      %p337 = scmp.lt.s32.totalorder %s24, 2
      // Predicated region
      $region49: #{tpu_custom_call.1} parent=5 // pred_check
        %p338 = pneg %p337
      $region50: #{tpu_custom_call.1} parent=5 // pred_check_branch
        %340 = sbr.rel (%p338) target = $region52
      $region51: #{tpu_custom_call.1} parent=5 // pred_region
        // Predicated region
        $region53: #{tpu_custom_call.1} parent=51 // pred_check
          %p341 = pneg %p44
        $region54: #{tpu_custom_call.1} parent=51 // pred_check_branch
          %343 = sbr.rel (%p341) target = $region56
        $region55: #{tpu_custom_call.1} parent=51 // pred_region
          %s344 = sand.u32 %s34, 1
          %s345 = scalar_lea.sflag [#allocation5], %s344
          %s346 = sand.u32 %s34, 1
          %s347 = smul.addr %s346, 128
          %s348 = scalar_lea.vmem [#allocation4], %s347
          %s350 = ssub.s32 2048, 2048
          %351 = vsyncadd %s345, %s350
          %s352 = smul.addr %s24, 32
          %s353 = smul.addr %s352, 64
          %s354 = scalar_lea.hbm %s0, %s353
          %s355 = sshll.u32 %s348, 4
          %s356 = int_to_ptr.vmem [resolvable:$true] %s355
          %361 = dma.hbm_to_vmem [thread:$0]  %s354, 2048, %s356, %s345, 64, 64, 4
        $region56: #{tpu_custom_call.1} parent=51 // pred_fallthru
          _
      $region52: #{tpu_custom_call.1} parent=5 // pred_fallthru
        _
      %p362 = scmp.le.s32.totalorder 1, %s24
      %p363 = scmp.lt.s32.totalorder %s24, 3
      %p364 = pnand %p362, %p363
      %p365 = pneg %p364
      // Predicated region
      $region57: #{tpu_custom_call.1} parent=5 // pred_check
        _
      $region58: #{tpu_custom_call.1} parent=5 // pred_check_branch
        %367 = sbr.rel (%p364) target = $region60
      $region59: #{tpu_custom_call.1} parent=5 // pred_region
        %s368 = ssub.s32 %s24, 1
        %s369 = sand.u32 %s37, 1
        %s370 = scalar_lea.sflag [#allocation5], %s369
        %s371 = sand.u32 %s37, 1
        %s372 = smul.addr %s371, 128
        %s373 = scalar_lea.vmem [#allocation4], %s372
        // Predicated region
        $region61: #{tpu_custom_call.1} parent=59 // pred_check
          %p374 = pneg %p50
        $region62: #{tpu_custom_call.1} parent=59 // pred_check_branch
          %376 = sbr.rel (%p374) target = $region64
        $region63: #{tpu_custom_call.1} parent=59 // pred_region
          %377 = dma.done %s370, 2048
        $region64: #{tpu_custom_call.1} parent=59 // pred_fallthru
          _
        // Predicated region
        $region65: #{tpu_custom_call.1} parent=59 // pred_check
          %p378 = pneg %p71
        $region66: #{tpu_custom_call.1} parent=59 // pred_check_branch
          %380 = sbr.rel (%p378) target = $region68
        $region67: #{tpu_custom_call.1} parent=59 // pred_region
          %381 = dma.done [#allocation8], 9216
        $region68: #{tpu_custom_call.1} parent=59 // pred_fallthru
          _
        // Predicated region
        $region69: #{tpu_custom_call.1} parent=59 // pred_check
          %p382 = pneg %p134
        $region70: #{tpu_custom_call.1} parent=59 // pred_check_branch
          %384 = sbr.rel (%p382) target = $region72
        $region71: #{tpu_custom_call.1} parent=59 // pred_region
          %385 = dma.done [#allocation8], 9216
        $region72: #{tpu_custom_call.1} parent=59 // pred_fallthru
          _
        // Predicated region
        $region73: #{tpu_custom_call.1} parent=59 // pred_check
          %p386 = pneg %p197
        $region74: #{tpu_custom_call.1} parent=59 // pred_check_branch
          %388 = sbr.rel (%p386) target = $region76
        $region75: #{tpu_custom_call.1} parent=59 // pred_region
          %389 = dma.done [#allocation11], 1024
        $region76: #{tpu_custom_call.1} parent=59 // pred_fallthru
          _
        %s390 = sand.u32 %s37, 1
        %s391 = scalar_lea.sflag [#allocation5], %s390
        %s392 = sand.u32 %s37, 1
        %s393 = smul.addr %s392, 128
        %s394 = scalar_lea.vmem [#allocation4], %s393
        %p395 = pneg %p50
        %p396 = pneg %p47
        %p397 = pneg %p71
        %p398 = pneg %p68
        %p399 = pneg %p92
        %p400 = pneg %p89
        %p401 = pneg %p113
        %p402 = pneg %p110
        %p403 = pneg %p134
        %p404 = pneg %p131
        %p405 = pneg %p155
        %p406 = pneg %p152
        %p407 = pneg %p176
        %p408 = pneg %p173
        %p409 = pneg %p197
        %p410 = pneg %p194
        %p411 = pneg %p218
        %p412 = pneg %p215
        %p413 = pneg %p239
        %p414 = pneg %p236
        %p415 = pneg %p265
        %p416 = pneg %p262
        %s417 = sand.u32 %s252, 1
        %s418 = scalar_lea.sflag [#allocation6], %s417
        %s419 = sand.u32 %s252, 1
        %s420 = smul.addr %s419, 256
        %s421 = scalar_lea.vmem [#allocation12], %s420
        %423 = vst [vmem:[#allocation2] sm:$0xf] 0
        %424 = vst [vmem:[#allocation2 + $0x4] sm:$0xf] 0
        %425 = vst [vmem:[#allocation2 + $0x8] sm:$0x1] 0
        %426 = vst [vmem:[#allocation2 + $0xc] sm:$0xf] 0
        %427 = vst [vmem:[#allocation2 + $0x10] sm:$0xf] 0
        %428 = vst [vmem:[#allocation2 + $0x14] sm:$0x1] 0
        %429 = vst [vmem:[#allocation2 + $0x18] sm:$0xf] 0
        %430 = vst [vmem:[#allocation2 + $0x1c] sm:$0xf] 0
        %431 = vst [vmem:[#allocation2 + $0x20] sm:$0x1] 0
        %432 = vst [vmem:[#allocation2 + $0x24] sm:$0xf] 0
        %433 = vst [vmem:[#allocation2 + $0x28] sm:$0xf] 0
        %434 = vst [vmem:[#allocation2 + $0x2c] sm:$0x1] 0
        %435 = vst [vmem:[#allocation2 + $0x30] sm:$0xf] 0
        %436 = vst [vmem:[#allocation2 + $0x34] sm:$0xf] 0
        %437 = vst [vmem:[#allocation2 + $0x38] sm:$0x1] 0
        %438 = vst [vmem:[#allocation2 + $0x3c] sm:$0xf] 0
        %439 = vst [vmem:[#allocation2 + $0x40] sm:$0xf] 0
        %440 = vst [vmem:[#allocation2 + $0x44] sm:$0x1] 0
        %441 = vst [vmem:[#allocation2 + $0x48] sm:$0xf] 0
        %442 = vst [vmem:[#allocation2 + $0x4c] sm:$0xf] 0
        %443 = vst [vmem:[#allocation2 + $0x50] sm:$0x1] 0
        %444 = vst [vmem:[#allocation2 + $0x54] sm:$0xf] 0
        %445 = vst [vmem:[#allocation2 + $0x58] sm:$0xf] 0
        %446 = vst [vmem:[#allocation2 + $0x5c] sm:$0x1] 0
        %447 = vst [vmem:[#allocation2 + $0x60] sm:$0xf] 0
        %448 = vst [vmem:[#allocation2 + $0x64] sm:$0xf] 0
        %449 = vst [vmem:[#allocation2 + $0x68] sm:$0x1] 0
        %450 = vst [vmem:[#allocation2 + $0x6c] sm:$0xf] 0
        %451 = vst [vmem:[#allocation2 + $0x70] sm:$0xf] 0
        %452 = vst [vmem:[#allocation2 + $0x74] sm:$0x1] 0
        %453 = vst [vmem:[#allocation2 + $0x78] sm:$0xf] 0
        %454 = vst [vmem:[#allocation2 + $0x7c] sm:$0xf] 0
        %455 = vst [vmem:[#allocation2 + $0x80] sm:$0x1] 0
        %456 = vst [vmem:[#allocation2 + $0x84] sm:$0xf] 0
        %457 = vst [vmem:[#allocation2 + $0x88] sm:$0xf] 0
        %458 = vst [vmem:[#allocation2 + $0x8c] sm:$0x1] 0
        %459 = vst [vmem:[#allocation2 + $0x90] sm:$0xf] 0
        %460 = vst [vmem:[#allocation2 + $0x94] sm:$0xf] 0
        %461 = vst [vmem:[#allocation2 + $0x98] sm:$0x1] 0
        %462 = vst [vmem:[#allocation2 + $0x9c] sm:$0xf] 0
        %463 = vst [vmem:[#allocation2 + $0xa0] sm:$0xf] 0
        %464 = vst [vmem:[#allocation2 + $0xa4] sm:$0x1] 0
        %465 = vst [vmem:[#allocation2 + $0xa8] sm:$0xf] 0
        %466 = vst [vmem:[#allocation2 + $0xac] sm:$0xf] 0
        %467 = vst [vmem:[#allocation2 + $0xb0] sm:$0x1] 0
        %468 = vst [vmem:[#allocation2 + $0xb4] sm:$0xf] 0
        %469 = vst [vmem:[#allocation2 + $0xb8] sm:$0xf] 0
        %470 = vst [vmem:[#allocation2 + $0xbc] sm:$0x1] 0
        %471 = vst [vmem:[#allocation2 + $0xc0] sm:$0xf] 0
        %472 = vst [vmem:[#allocation2 + $0xc4] sm:$0xf] 0
        %473 = vst [vmem:[#allocation2 + $0xc8] sm:$0x1] 0
        %474 = vst [vmem:[#allocation2 + $0xcc] sm:$0xf] 0
        %475 = vst [vmem:[#allocation2 + $0xd0] sm:$0xf] 0
        %476 = vst [vmem:[#allocation2 + $0xd4] sm:$0x1] 0
        %v477 = vld [vmem:[%s373] sm:$0xf]
        %v478 = vld [vmem:[%s373 + $0x4] sm:$0xf]
        %v479 = vld [vmem:[%s373 + $0x8] sm:$0xf]
        %v480 = vld [vmem:[%s373 + $0xc] sm:$0xf]
        %v481 = vld [vmem:[%s373 + $0x10] sm:$0xf]
        %v482 = vld [vmem:[%s373 + $0x14] sm:$0xf]
        %v483 = vld [vmem:[%s373 + $0x18] sm:$0xf]
        %v484 = vld [vmem:[%s373 + $0x1c] sm:$0xf]
        %v485 = vld [vmem:[%s373 + $0x20] sm:$0xf]
        %v486 = vld [vmem:[%s373 + $0x24] sm:$0xf]
        %v487 = vld [vmem:[%s373 + $0x28] sm:$0xf]
        %v488 = vld [vmem:[%s373 + $0x2c] sm:$0xf]
        %v489 = vld [vmem:[%s373 + $0x30] sm:$0xf]
        %v490 = vld [vmem:[%s373 + $0x34] sm:$0xf]
        %v491 = vld [vmem:[%s373 + $0x38] sm:$0xf]
        %v492 = vld [vmem:[%s373 + $0x3c] sm:$0xf]
        %v493 = vld [vmem:[%s373 + $0x40] sm:$0xf]
        %v494 = vld [vmem:[%s373 + $0x44] sm:$0xf]
        %v495 = vld [vmem:[%s373 + $0x48] sm:$0xf]
        %v496 = vld [vmem:[%s373 + $0x4c] sm:$0xf]
        %v497 = vld [vmem:[%s373 + $0x50] sm:$0xf]
        %v498 = vld [vmem:[%s373 + $0x54] sm:$0xf]
        %v499 = vld [vmem:[%s373 + $0x58] sm:$0xf]
        %v500 = vld [vmem:[%s373 + $0x5c] sm:$0xf]
        %v501 = vld [vmem:[%s373 + $0x60] sm:$0xf]
        %v502 = vld [vmem:[%s373 + $0x64] sm:$0xf]
        %v503 = vld [vmem:[%s373 + $0x68] sm:$0xf]
        %v504 = vld [vmem:[%s373 + $0x6c] sm:$0xf]
        %v505 = vld [vmem:[%s373 + $0x70] sm:$0xf]
        %v506 = vld [vmem:[%s373 + $0x74] sm:$0xf]
        %v507 = vld [vmem:[%s373 + $0x78] sm:$0xf]
        %v508 = vld [vmem:[%s373 + $0x7c] sm:$0xf]
        %vm509 = vsmask.f32 256
        %vm510 = vsmask.f32 4368
        %vm511 = vmor %vm509, %vm510
        %v513 = vshrl.u32 %v477, 16
        %v515 = vrot.slane %v513, 7
        %v516 = vshll.u32 %v477, 16
        %v518 = vor.u32 %v515, %v516
        %v519 = vrot.slane %v515, 4
        %v521 = vshrl.u32 %v478, 16
        %v523 = vrot.slane %v521, 7
        %v524 = vshll.u32 %v478, 16
        %v526 = vor.u32 %v523, %v524
        %v527 = vsel %vm511, %v519, %v526
        %v528 = vrot.slane %v523, 4
        %v530 = vshrl.u32 %v479, 16
        %v532 = vrot.slane %v530, 7
        %v533 = vshll.u32 %v479, 16
        %v535 = vor.u32 %v532, %v533
        %v536 = vrot.slane %v532, 4
        %v538 = vshrl.u32 %v480, 16
        %v540 = vrot.slane %v538, 7
        %v541 = vshll.u32 %v480, 16
        %v543 = vor.u32 %v540, %v541
        %v544 = vsel %vm511, %v536, %v543
        %v545 = vrot.slane %v540, 4
        %v547 = vshrl.u32 %v481, 16
        %v549 = vrot.slane %v547, 7
        %v550 = vshll.u32 %v481, 16
        %v552 = vor.u32 %v549, %v550
        %v553 = vrot.slane %v549, 4
        %v555 = vshrl.u32 %v482, 16
        %v557 = vrot.slane %v555, 7
        %v558 = vshll.u32 %v482, 16
        %v560 = vor.u32 %v557, %v558
        %v561 = vsel %vm511, %v553, %v560
        %v562 = vrot.slane %v557, 4
        %v564 = vshrl.u32 %v483, 16
        %v566 = vrot.slane %v564, 7
        %v567 = vshll.u32 %v483, 16
        %v569 = vor.u32 %v566, %v567
        %v570 = vrot.slane %v566, 4
        %v572 = vshrl.u32 %v484, 16
        %v574 = vrot.slane %v572, 7
        %v575 = vshll.u32 %v484, 16
        %v577 = vor.u32 %v574, %v575
        %v578 = vsel %vm511, %v570, %v577
        %v579 = vrot.slane %v574, 4
        %v581 = vshrl.u32 %v485, 16
        %v583 = vrot.slane %v581, 7
        %v584 = vshll.u32 %v485, 16
        %v586 = vor.u32 %v583, %v584
        %v587 = vrot.slane %v583, 4
        %v589 = vshrl.u32 %v486, 16
        %v591 = vrot.slane %v589, 7
        %v592 = vshll.u32 %v486, 16
        %v594 = vor.u32 %v591, %v592
        %v595 = vsel %vm511, %v587, %v594
        %v596 = vrot.slane %v591, 4
        %v598 = vshrl.u32 %v487, 16
        %v600 = vrot.slane %v598, 7
        %v601 = vshll.u32 %v487, 16
        %v603 = vor.u32 %v600, %v601
        %v604 = vrot.slane %v600, 4
        %v606 = vshrl.u32 %v488, 16
        %v608 = vrot.slane %v606, 7
        %v609 = vshll.u32 %v488, 16
        %v611 = vor.u32 %v608, %v609
        %v612 = vsel %vm511, %v604, %v611
        %v613 = vrot.slane %v608, 4
        %v615 = vshrl.u32 %v489, 16
        %v617 = vrot.slane %v615, 7
        %v618 = vshll.u32 %v489, 16
        %v620 = vor.u32 %v617, %v618
        %v621 = vrot.slane %v617, 4
        %v623 = vshrl.u32 %v490, 16
        %v625 = vrot.slane %v623, 7
        %v626 = vshll.u32 %v490, 16
        %v628 = vor.u32 %v625, %v626
        %v629 = vsel %vm511, %v621, %v628
        %v630 = vrot.slane %v625, 4
        %v632 = vshrl.u32 %v491, 16
        %v634 = vrot.slane %v632, 7
        %v635 = vshll.u32 %v491, 16
        %v637 = vor.u32 %v634, %v635
        %v638 = vrot.slane %v634, 4
        %v640 = vshrl.u32 %v492, 16
        %v642 = vrot.slane %v640, 7
        %v643 = vshll.u32 %v492, 16
        %v645 = vor.u32 %v642, %v643
        %v646 = vsel %vm511, %v638, %v645
        %v647 = vrot.slane %v642, 4
        %v649 = vshrl.u32 %v493, 16
        %v651 = vrot.slane %v649, 7
        %v652 = vshll.u32 %v493, 16
        %v654 = vor.u32 %v651, %v652
        %v655 = vrot.slane %v651, 4
        %v657 = vshrl.u32 %v494, 16
        %v659 = vrot.slane %v657, 7
        %v660 = vshll.u32 %v494, 16
        %v662 = vor.u32 %v659, %v660
        %v663 = vsel %vm511, %v655, %v662
        %v664 = vrot.slane %v659, 4
        %v666 = vshrl.u32 %v495, 16
        %v668 = vrot.slane %v666, 7
        %v669 = vshll.u32 %v495, 16
        %v671 = vor.u32 %v668, %v669
        %v672 = vrot.slane %v668, 4
        %v674 = vshrl.u32 %v496, 16
        %v676 = vrot.slane %v674, 7
        %v677 = vshll.u32 %v496, 16
        %v679 = vor.u32 %v676, %v677
        %v680 = vsel %vm511, %v672, %v679
        %v681 = vrot.slane %v676, 4
        %v683 = vshrl.u32 %v497, 16
        %v685 = vrot.slane %v683, 7
        %v686 = vshll.u32 %v497, 16
        %v688 = vor.u32 %v685, %v686
        %v689 = vrot.slane %v685, 4
        %v691 = vshrl.u32 %v498, 16
        %v693 = vrot.slane %v691, 7
        %v694 = vshll.u32 %v498, 16
        %v696 = vor.u32 %v693, %v694
        %v697 = vsel %vm511, %v689, %v696
        %v698 = vrot.slane %v693, 4
        %v700 = vshrl.u32 %v499, 16
        %v702 = vrot.slane %v700, 7
        %v703 = vshll.u32 %v499, 16
        %v705 = vor.u32 %v702, %v703
        %v706 = vrot.slane %v702, 4
        %v708 = vshrl.u32 %v500, 16
        %v710 = vrot.slane %v708, 7
        %v711 = vshll.u32 %v500, 16
        %v713 = vor.u32 %v710, %v711
        %v714 = vsel %vm511, %v706, %v713
        %v715 = vrot.slane %v710, 4
        %v717 = vshrl.u32 %v501, 16
        %v719 = vrot.slane %v717, 7
        %v720 = vshll.u32 %v501, 16
        %v722 = vor.u32 %v719, %v720
        %v723 = vrot.slane %v719, 4
        %v725 = vshrl.u32 %v502, 16
        %v727 = vrot.slane %v725, 7
        %v728 = vshll.u32 %v502, 16
        %v730 = vor.u32 %v727, %v728
        %v731 = vsel %vm511, %v723, %v730
        %v732 = vrot.slane %v727, 4
        %v734 = vshrl.u32 %v503, 16
        %v736 = vrot.slane %v734, 7
        %v737 = vshll.u32 %v503, 16
        %v739 = vor.u32 %v736, %v737
        %v740 = vrot.slane %v736, 4
        %v742 = vshrl.u32 %v504, 16
        %v744 = vrot.slane %v742, 7
        %v745 = vshll.u32 %v504, 16
        %v747 = vor.u32 %v744, %v745
        %v748 = vsel %vm511, %v740, %v747
        %v749 = vrot.slane %v744, 4
        %v751 = vshrl.u32 %v505, 16
        %v753 = vrot.slane %v751, 7
        %v754 = vshll.u32 %v505, 16
        %v756 = vor.u32 %v753, %v754
        %v757 = vrot.slane %v753, 4
        %v759 = vshrl.u32 %v506, 16
        %v761 = vrot.slane %v759, 7
        %v762 = vshll.u32 %v506, 16
        %v764 = vor.u32 %v761, %v762
        %v765 = vsel %vm511, %v757, %v764
        %v766 = vrot.slane %v761, 4
        %v768 = vshrl.u32 %v507, 16
        %v770 = vrot.slane %v768, 7
        %v771 = vshll.u32 %v507, 16
        %v773 = vor.u32 %v770, %v771
        %v774 = vrot.slane %v770, 4
        %v776 = vshrl.u32 %v508, 16
        %v778 = vrot.slane %v776, 7
        %v779 = vshll.u32 %v508, 16
        %v781 = vor.u32 %v778, %v779
        %v782 = vsel %vm511, %v774, %v781
        %v783 = vrot.slane %v778, 4
        %s832 = scalar_lea.vmem [#allocation2], 12
        %vm833 = vcmask 1043456
        %vm834 = vsmask.f32 7938
        %vm835 = vmand %vm833, %vm834
        %v836 = vld [vmem:[%s832] sm:$0xf]
        %v837 = vsel %vm835, %v518, %v836
        %838 = vst [vmem:[%s832] sm:$0xf] %v837
        %839 = vst [vmem:[%s832 + $0x4] sm:$0xf] %v527
        %vm840 = vcmask 1040384
        %vm841 = vmand %vm840, %vm509
        %v842 = vld [vmem:[%s832 + $0x8] sm:$0x1]
        %v843 = vsel %vm841, %v528, %v842
        %844 = vst [vmem:[%s832 + $0x8] sm:$0x1] %v843
        %v845 = vld [vmem:[%s832 + $0xc] sm:$0xf]
        %v846 = vsel %vm835, %v535, %v845
        %847 = vst [vmem:[%s832 + $0xc] sm:$0xf] %v846
        %848 = vst [vmem:[%s832 + $0x10] sm:$0xf] %v544
        %v849 = vld [vmem:[%s832 + $0x14] sm:$0x1]
        %v850 = vsel %vm841, %v545, %v849
        %851 = vst [vmem:[%s832 + $0x14] sm:$0x1] %v850
        %v852 = vld [vmem:[%s832 + $0x18] sm:$0xf]
        %v853 = vsel %vm835, %v552, %v852
        %854 = vst [vmem:[%s832 + $0x18] sm:$0xf] %v853
        %855 = vst [vmem:[%s832 + $0x1c] sm:$0xf] %v561
        %v856 = vld [vmem:[%s832 + $0x20] sm:$0x1]
        %v857 = vsel %vm841, %v562, %v856
        %858 = vst [vmem:[%s832 + $0x20] sm:$0x1] %v857
        %v859 = vld [vmem:[%s832 + $0x24] sm:$0xf]
        %v860 = vsel %vm835, %v569, %v859
        %861 = vst [vmem:[%s832 + $0x24] sm:$0xf] %v860
        %862 = vst [vmem:[%s832 + $0x28] sm:$0xf] %v578
        %v863 = vld [vmem:[%s832 + $0x2c] sm:$0x1]
        %v864 = vsel %vm841, %v579, %v863
        %865 = vst [vmem:[%s832 + $0x2c] sm:$0x1] %v864
        %v866 = vld [vmem:[%s832 + $0x30] sm:$0xf]
        %v867 = vsel %vm835, %v586, %v866
        %868 = vst [vmem:[%s832 + $0x30] sm:$0xf] %v867
        %869 = vst [vmem:[%s832 + $0x34] sm:$0xf] %v595
        %v870 = vld [vmem:[%s832 + $0x38] sm:$0x1]
        %v871 = vsel %vm841, %v596, %v870
        %872 = vst [vmem:[%s832 + $0x38] sm:$0x1] %v871
        %v873 = vld [vmem:[%s832 + $0x3c] sm:$0xf]
        %v874 = vsel %vm835, %v603, %v873
        %875 = vst [vmem:[%s832 + $0x3c] sm:$0xf] %v874
        %876 = vst [vmem:[%s832 + $0x40] sm:$0xf] %v612
        %v877 = vld [vmem:[%s832 + $0x44] sm:$0x1]
        %v878 = vsel %vm841, %v613, %v877
        %879 = vst [vmem:[%s832 + $0x44] sm:$0x1] %v878
        %v880 = vld [vmem:[%s832 + $0x48] sm:$0xf]
        %v881 = vsel %vm835, %v620, %v880
        %882 = vst [vmem:[%s832 + $0x48] sm:$0xf] %v881
        %883 = vst [vmem:[%s832 + $0x4c] sm:$0xf] %v629
        %v884 = vld [vmem:[%s832 + $0x50] sm:$0x1]
        %v885 = vsel %vm841, %v630, %v884
        %886 = vst [vmem:[%s832 + $0x50] sm:$0x1] %v885
        %v887 = vld [vmem:[%s832 + $0x54] sm:$0xf]
        %v888 = vsel %vm835, %v637, %v887
        %889 = vst [vmem:[%s832 + $0x54] sm:$0xf] %v888
        %890 = vst [vmem:[%s832 + $0x58] sm:$0xf] %v646
        %v891 = vld [vmem:[%s832 + $0x5c] sm:$0x1]
        %v892 = vsel %vm841, %v647, %v891
        %893 = vst [vmem:[%s832 + $0x5c] sm:$0x1] %v892
        %v894 = vld [vmem:[%s832 + $0x60] sm:$0xf]
        %v895 = vsel %vm835, %v654, %v894
        %896 = vst [vmem:[%s832 + $0x60] sm:$0xf] %v895
        %897 = vst [vmem:[%s832 + $0x64] sm:$0xf] %v663
        %v898 = vld [vmem:[%s832 + $0x68] sm:$0x1]
        %v899 = vsel %vm841, %v664, %v898
        %900 = vst [vmem:[%s832 + $0x68] sm:$0x1] %v899
        %v901 = vld [vmem:[%s832 + $0x6c] sm:$0xf]
        %v902 = vsel %vm835, %v671, %v901
        %903 = vst [vmem:[%s832 + $0x6c] sm:$0xf] %v902
        %904 = vst [vmem:[%s832 + $0x70] sm:$0xf] %v680
        %v905 = vld [vmem:[%s832 + $0x74] sm:$0x1]
        %v906 = vsel %vm841, %v681, %v905
        %907 = vst [vmem:[%s832 + $0x74] sm:$0x1] %v906
        %v908 = vld [vmem:[%s832 + $0x78] sm:$0xf]
        %v909 = vsel %vm835, %v688, %v908
        %910 = vst [vmem:[%s832 + $0x78] sm:$0xf] %v909
        %911 = vst [vmem:[%s832 + $0x7c] sm:$0xf] %v697
        %v912 = vld [vmem:[%s832 + $0x80] sm:$0x1]
        %v913 = vsel %vm841, %v698, %v912
        %914 = vst [vmem:[%s832 + $0x80] sm:$0x1] %v913
        %v915 = vld [vmem:[%s832 + $0x84] sm:$0xf]
        %v916 = vsel %vm835, %v705, %v915
        %917 = vst [vmem:[%s832 + $0x84] sm:$0xf] %v916
        %918 = vst [vmem:[%s832 + $0x88] sm:$0xf] %v714
        %v919 = vld [vmem:[%s832 + $0x8c] sm:$0x1]
        %v920 = vsel %vm841, %v715, %v919
        %921 = vst [vmem:[%s832 + $0x8c] sm:$0x1] %v920
        %v922 = vld [vmem:[%s832 + $0x90] sm:$0xf]
        %v923 = vsel %vm835, %v722, %v922
        %924 = vst [vmem:[%s832 + $0x90] sm:$0xf] %v923
        %925 = vst [vmem:[%s832 + $0x94] sm:$0xf] %v731
        %v926 = vld [vmem:[%s832 + $0x98] sm:$0x1]
        %v927 = vsel %vm841, %v732, %v926
        %928 = vst [vmem:[%s832 + $0x98] sm:$0x1] %v927
        %v929 = vld [vmem:[%s832 + $0x9c] sm:$0xf]
        %v930 = vsel %vm835, %v739, %v929
        %931 = vst [vmem:[%s832 + $0x9c] sm:$0xf] %v930
        %932 = vst [vmem:[%s832 + $0xa0] sm:$0xf] %v748
        %v933 = vld [vmem:[%s832 + $0xa4] sm:$0x1]
        %v934 = vsel %vm841, %v749, %v933
        %935 = vst [vmem:[%s832 + $0xa4] sm:$0x1] %v934
        %v936 = vld [vmem:[%s832 + $0xa8] sm:$0xf]
        %v937 = vsel %vm835, %v756, %v936
        %938 = vst [vmem:[%s832 + $0xa8] sm:$0xf] %v937
        %939 = vst [vmem:[%s832 + $0xac] sm:$0xf] %v765
        %v940 = vld [vmem:[%s832 + $0xb0] sm:$0x1]
        %v941 = vsel %vm841, %v766, %v940
        %942 = vst [vmem:[%s832 + $0xb0] sm:$0x1] %v941
        %v943 = vld [vmem:[%s832 + $0xb4] sm:$0xf]
        %v944 = vsel %vm835, %v773, %v943
        %945 = vst [vmem:[%s832 + $0xb4] sm:$0xf] %v944
        %946 = vst [vmem:[%s832 + $0xb8] sm:$0xf] %v782
        %v947 = vld [vmem:[%s832 + $0xbc] sm:$0x1]
        %v948 = vsel %vm841, %v783, %v947
        %949 = vst [vmem:[%s832 + $0xbc] sm:$0x1] %v948
        %v950 = vld [vmem:[#allocation2] sm:$0xf]
        %v951 = vld [vmem:[#allocation2 + $0x4] sm:$0xf]
        %v952 = vld [vmem:[#allocation2 + $0xc] sm:$0xf]
        %v953 = vld [vmem:[#allocation2 + $0x10] sm:$0xf]
        %v954 = vld [vmem:[#allocation2 + $0x18] sm:$0xf]
        %v955 = vld [vmem:[#allocation2 + $0x1c] sm:$0xf]
        %v956 = vld [vmem:[#allocation2 + $0x24] sm:$0xf]
        %v957 = vld [vmem:[#allocation2 + $0x28] sm:$0xf]
        %v958 = vld [vmem:[#allocation2 + $0x30] sm:$0xf]
        %v959 = vld [vmem:[#allocation2 + $0x34] sm:$0xf]
        %v960 = vld [vmem:[#allocation2 + $0x3c] sm:$0xf]
        %v961 = vld [vmem:[#allocation2 + $0x40] sm:$0xf]
        %v962 = vld [vmem:[#allocation2 + $0x48] sm:$0xf]
        %v963 = vld [vmem:[#allocation2 + $0x4c] sm:$0xf]
        %v964 = vld [vmem:[#allocation2 + $0x54] sm:$0xf]
        %v965 = vld [vmem:[#allocation2 + $0x58] sm:$0xf]
        %v966 = vld [vmem:[#allocation2 + $0x60] sm:$0xf]
        %v967 = vld [vmem:[#allocation2 + $0x64] sm:$0xf]
        %v968 = vld [vmem:[#allocation2 + $0x6c] sm:$0xf]
        %v969 = vld [vmem:[#allocation2 + $0x70] sm:$0xf]
        %v970 = vld [vmem:[#allocation2 + $0x78] sm:$0xf]
        %v971 = vld [vmem:[#allocation2 + $0x7c] sm:$0xf]
        %v972 = vld [vmem:[#allocation2 + $0x84] sm:$0xf]
        %v973 = vld [vmem:[#allocation2 + $0x88] sm:$0xf]
        %v974 = vld [vmem:[#allocation2 + $0x90] sm:$0xf]
        %v975 = vld [vmem:[#allocation2 + $0x94] sm:$0xf]
        %v976 = vld [vmem:[#allocation2 + $0x9c] sm:$0xf]
        %v977 = vld [vmem:[#allocation2 + $0xa0] sm:$0xf]
        %v978 = vld [vmem:[#allocation2 + $0xa8] sm:$0xf]
        %v979 = vld [vmem:[#allocation2 + $0xac] sm:$0xf]
        %v980 = vld [vmem:[#allocation2 + $0xb4] sm:$0xf]
        %v981 = vld [vmem:[#allocation2 + $0xb8] sm:$0xf]
        %v982 = vld [vmem:[#allocation7] sm:$0xf]
        %v983 = vld [vmem:[#allocation7 + $0x4] sm:$0xf]
        %v984 = vld [vmem:[#allocation7 + $0x8] sm:$0xf]
        %v985 = vld [vmem:[#allocation7 + $0xc] sm:$0xf]
        %v986 = vld [vmem:[#allocation7 + $0x10] sm:$0xf]
        %v987 = vld [vmem:[#allocation7 + $0x14] sm:$0xf]
        %v988 = vld [vmem:[#allocation7 + $0x18] sm:$0xf]
        %v989 = vld [vmem:[#allocation7 + $0x1c] sm:$0xf]
        %v990 = vld [vmem:[#allocation7 + $0x20] sm:$0xf]
        %v991 = vld [vmem:[#allocation7 + $0x24] sm:$0xf]
        %v992 = vld [vmem:[#allocation7 + $0x28] sm:$0xf]
        %v993 = vld [vmem:[#allocation7 + $0x2c] sm:$0xf]
        %v994 = vld [vmem:[#allocation7 + $0x30] sm:$0xf]
        %v995 = vld [vmem:[#allocation7 + $0x34] sm:$0xf]
        %v996 = vld [vmem:[#allocation7 + $0x38] sm:$0xf]
        %v997 = vld [vmem:[#allocation7 + $0x3c] sm:$0xf]
        %v998 = vld [vmem:[#allocation2 + $0x8] sm:$0x1]
        %v999 = vld [vmem:[#allocation2 + $0x14] sm:$0x1]
        %v1000 = vld [vmem:[#allocation2 + $0x20] sm:$0x1]
        %v1001 = vld [vmem:[#allocation2 + $0x2c] sm:$0x1]
        %v1002 = vld [vmem:[#allocation2 + $0x38] sm:$0x1]
        %v1003 = vld [vmem:[#allocation2 + $0x44] sm:$0x1]
        %v1004 = vld [vmem:[#allocation2 + $0x50] sm:$0x1]
        %v1005 = vld [vmem:[#allocation2 + $0x5c] sm:$0x1]
        %v1006 = vld [vmem:[#allocation2 + $0x68] sm:$0x1]
        %v1007 = vld [vmem:[#allocation2 + $0x74] sm:$0x1]
        %v1008 = vld [vmem:[#allocation2 + $0x80] sm:$0x1]
        %v1009 = vld [vmem:[#allocation2 + $0x8c] sm:$0x1]
        %v1010 = vld [vmem:[#allocation2 + $0x98] sm:$0x1]
        %v1011 = vld [vmem:[#allocation2 + $0xa4] sm:$0x1]
        %v1012 = vld [vmem:[#allocation2 + $0xb0] sm:$0x1]
        %v1013 = vld [vmem:[#allocation2 + $0xbc] sm:$0x1]
        %vm1014 = vsmask.f32 3328
        %vm1015 = vsmask.f32 7440
        %vm1016 = vmor %vm1014, %vm1015
        %v1018 = vshrl.u32 %v950, 16
        %v1020 = vrot.slane %v1018, 4
        %v1021 = vshll.u32 %v950, 16
        %v1023 = vrot.slane %v1021, 5
        %v1024 = vor.u32 %v1020, %v1023
        %v1025 = vrot.slane %v1024, 4
        %v1027 = vshll.u32 %v951, 16
        %v1029 = vrot.slane %v1027, 5
        %v1030 = vsel %vm1016, %v1025, %v1029
        %v1031 = vshrl.u32 %v951, 16
        %v1033 = vrot.slane %v1031, 4
        %v1034 = vor.u32 %v1033, %v1029
        %v1035 = vrot.slane %v1034, 4
        %v1037 = vshll.u32 %v998, 16
        %v1039 = vrot.slane %v1037, 5
        %v1040 = vsel %vm1016, %v1035, %v1039
        %v1042 = vshrl.u32 %v952, 16
        %v1044 = vrot.slane %v1042, 4
        %v1045 = vshll.u32 %v952, 16
        %v1047 = vrot.slane %v1045, 5
        %v1048 = vor.u32 %v1044, %v1047
        %v1049 = vrot.slane %v1048, 4
        %v1051 = vshll.u32 %v953, 16
        %v1053 = vrot.slane %v1051, 5
        %v1054 = vsel %vm1016, %v1049, %v1053
        %v1055 = vshrl.u32 %v953, 16
        %v1057 = vrot.slane %v1055, 4
        %v1058 = vor.u32 %v1057, %v1053
        %v1059 = vrot.slane %v1058, 4
        %v1061 = vshll.u32 %v999, 16
        %v1063 = vrot.slane %v1061, 5
        %v1064 = vsel %vm1016, %v1059, %v1063
        %v1066 = vshrl.u32 %v954, 16
        %v1068 = vrot.slane %v1066, 4
        %v1069 = vshll.u32 %v954, 16
        %v1071 = vrot.slane %v1069, 5
        %v1072 = vor.u32 %v1068, %v1071
        %v1073 = vrot.slane %v1072, 4
        %v1075 = vshll.u32 %v955, 16
        %v1077 = vrot.slane %v1075, 5
        %v1078 = vsel %vm1016, %v1073, %v1077
        %v1079 = vshrl.u32 %v955, 16
        %v1081 = vrot.slane %v1079, 4
        %v1082 = vor.u32 %v1081, %v1077
        %v1083 = vrot.slane %v1082, 4
        %v1085 = vshll.u32 %v1000, 16
        %v1087 = vrot.slane %v1085, 5
        %v1088 = vsel %vm1016, %v1083, %v1087
        %v1090 = vshrl.u32 %v956, 16
        %v1092 = vrot.slane %v1090, 4
        %v1093 = vshll.u32 %v956, 16
        %v1095 = vrot.slane %v1093, 5
        %v1096 = vor.u32 %v1092, %v1095
        %v1097 = vrot.slane %v1096, 4
        %v1099 = vshll.u32 %v957, 16
        %v1101 = vrot.slane %v1099, 5
        %v1102 = vsel %vm1016, %v1097, %v1101
        %v1103 = vshrl.u32 %v957, 16
        %v1105 = vrot.slane %v1103, 4
        %v1106 = vor.u32 %v1105, %v1101
        %v1107 = vrot.slane %v1106, 4
        %v1109 = vshll.u32 %v1001, 16
        %v1111 = vrot.slane %v1109, 5
        %v1112 = vsel %vm1016, %v1107, %v1111
        %v1114 = vshrl.u32 %v958, 16
        %v1116 = vrot.slane %v1114, 4
        %v1117 = vshll.u32 %v958, 16
        %v1119 = vrot.slane %v1117, 5
        %v1120 = vor.u32 %v1116, %v1119
        %v1121 = vrot.slane %v1120, 4
        %v1123 = vshll.u32 %v959, 16
        %v1125 = vrot.slane %v1123, 5
        %v1126 = vsel %vm1016, %v1121, %v1125
        %v1127 = vshrl.u32 %v959, 16
        %v1129 = vrot.slane %v1127, 4
        %v1130 = vor.u32 %v1129, %v1125
        %v1131 = vrot.slane %v1130, 4
        %v1133 = vshll.u32 %v1002, 16
        %v1135 = vrot.slane %v1133, 5
        %v1136 = vsel %vm1016, %v1131, %v1135
        %v1138 = vshrl.u32 %v960, 16
        %v1140 = vrot.slane %v1138, 4
        %v1141 = vshll.u32 %v960, 16
        %v1143 = vrot.slane %v1141, 5
        %v1144 = vor.u32 %v1140, %v1143
        %v1145 = vrot.slane %v1144, 4
        %v1147 = vshll.u32 %v961, 16
        %v1149 = vrot.slane %v1147, 5
        %v1150 = vsel %vm1016, %v1145, %v1149
        %v1151 = vshrl.u32 %v961, 16
        %v1153 = vrot.slane %v1151, 4
        %v1154 = vor.u32 %v1153, %v1149
        %v1155 = vrot.slane %v1154, 4
        %v1157 = vshll.u32 %v1003, 16
        %v1159 = vrot.slane %v1157, 5
        %v1160 = vsel %vm1016, %v1155, %v1159
        %v1162 = vshrl.u32 %v962, 16
        %v1164 = vrot.slane %v1162, 4
        %v1165 = vshll.u32 %v962, 16
        %v1167 = vrot.slane %v1165, 5
        %v1168 = vor.u32 %v1164, %v1167
        %v1169 = vrot.slane %v1168, 4
        %v1171 = vshll.u32 %v963, 16
        %v1173 = vrot.slane %v1171, 5
        %v1174 = vsel %vm1016, %v1169, %v1173
        %v1175 = vshrl.u32 %v963, 16
        %v1177 = vrot.slane %v1175, 4
        %v1178 = vor.u32 %v1177, %v1173
        %v1179 = vrot.slane %v1178, 4
        %v1181 = vshll.u32 %v1004, 16
        %v1183 = vrot.slane %v1181, 5
        %v1184 = vsel %vm1016, %v1179, %v1183
        %v1186 = vshrl.u32 %v964, 16
        %v1188 = vrot.slane %v1186, 4
        %v1189 = vshll.u32 %v964, 16
        %v1191 = vrot.slane %v1189, 5
        %v1192 = vor.u32 %v1188, %v1191
        %v1193 = vrot.slane %v1192, 4
        %v1195 = vshll.u32 %v965, 16
        %v1197 = vrot.slane %v1195, 5
        %v1198 = vsel %vm1016, %v1193, %v1197
        %v1199 = vshrl.u32 %v965, 16
        %v1201 = vrot.slane %v1199, 4
        %v1202 = vor.u32 %v1201, %v1197
        %v1203 = vrot.slane %v1202, 4
        %v1205 = vshll.u32 %v1005, 16
        %v1207 = vrot.slane %v1205, 5
        %v1208 = vsel %vm1016, %v1203, %v1207
        %v1210 = vshrl.u32 %v966, 16
        %v1212 = vrot.slane %v1210, 4
        %v1213 = vshll.u32 %v966, 16
        %v1215 = vrot.slane %v1213, 5
        %v1216 = vor.u32 %v1212, %v1215
        %v1217 = vrot.slane %v1216, 4
        %v1219 = vshll.u32 %v967, 16
        %v1221 = vrot.slane %v1219, 5
        %v1222 = vsel %vm1016, %v1217, %v1221
        %v1223 = vshrl.u32 %v967, 16
        %v1225 = vrot.slane %v1223, 4
        %v1226 = vor.u32 %v1225, %v1221
        %v1227 = vrot.slane %v1226, 4
        %v1229 = vshll.u32 %v1006, 16
        %v1231 = vrot.slane %v1229, 5
        %v1232 = vsel %vm1016, %v1227, %v1231
        %v1234 = vshrl.u32 %v968, 16
        %v1236 = vrot.slane %v1234, 4
        %v1237 = vshll.u32 %v968, 16
        %v1239 = vrot.slane %v1237, 5
        %v1240 = vor.u32 %v1236, %v1239
        %v1241 = vrot.slane %v1240, 4
        %v1243 = vshll.u32 %v969, 16
        %v1245 = vrot.slane %v1243, 5
        %v1246 = vsel %vm1016, %v1241, %v1245
        %v1247 = vshrl.u32 %v969, 16
        %v1249 = vrot.slane %v1247, 4
        %v1250 = vor.u32 %v1249, %v1245
        %v1251 = vrot.slane %v1250, 4
        %v1253 = vshll.u32 %v1007, 16
        %v1255 = vrot.slane %v1253, 5
        %v1256 = vsel %vm1016, %v1251, %v1255
        %v1258 = vshrl.u32 %v970, 16
        %v1260 = vrot.slane %v1258, 4
        %v1261 = vshll.u32 %v970, 16
        %v1263 = vrot.slane %v1261, 5
        %v1264 = vor.u32 %v1260, %v1263
        %v1265 = vrot.slane %v1264, 4
        %v1267 = vshll.u32 %v971, 16
        %v1269 = vrot.slane %v1267, 5
        %v1270 = vsel %vm1016, %v1265, %v1269
        %v1271 = vshrl.u32 %v971, 16
        %v1273 = vrot.slane %v1271, 4
        %v1274 = vor.u32 %v1273, %v1269
        %v1275 = vrot.slane %v1274, 4
        %v1277 = vshll.u32 %v1008, 16
        %v1279 = vrot.slane %v1277, 5
        %v1280 = vsel %vm1016, %v1275, %v1279
        %v1282 = vshrl.u32 %v972, 16
        %v1284 = vrot.slane %v1282, 4
        %v1285 = vshll.u32 %v972, 16
        %v1287 = vrot.slane %v1285, 5
        %v1288 = vor.u32 %v1284, %v1287
        %v1289 = vrot.slane %v1288, 4
        %v1291 = vshll.u32 %v973, 16
        %v1293 = vrot.slane %v1291, 5
        %v1294 = vsel %vm1016, %v1289, %v1293
        %v1295 = vshrl.u32 %v973, 16
        %v1297 = vrot.slane %v1295, 4
        %v1298 = vor.u32 %v1297, %v1293
        %v1299 = vrot.slane %v1298, 4
        %v1301 = vshll.u32 %v1009, 16
        %v1303 = vrot.slane %v1301, 5
        %v1304 = vsel %vm1016, %v1299, %v1303
        %v1306 = vshrl.u32 %v974, 16
        %v1308 = vrot.slane %v1306, 4
        %v1309 = vshll.u32 %v974, 16
        %v1311 = vrot.slane %v1309, 5
        %v1312 = vor.u32 %v1308, %v1311
        %v1313 = vrot.slane %v1312, 4
        %v1315 = vshll.u32 %v975, 16
        %v1317 = vrot.slane %v1315, 5
        %v1318 = vsel %vm1016, %v1313, %v1317
        %v1319 = vshrl.u32 %v975, 16
        %v1321 = vrot.slane %v1319, 4
        %v1322 = vor.u32 %v1321, %v1317
        %v1323 = vrot.slane %v1322, 4
        %v1325 = vshll.u32 %v1010, 16
        %v1327 = vrot.slane %v1325, 5
        %v1328 = vsel %vm1016, %v1323, %v1327
        %v1330 = vshrl.u32 %v976, 16
        %v1332 = vrot.slane %v1330, 4
        %v1333 = vshll.u32 %v976, 16
        %v1335 = vrot.slane %v1333, 5
        %v1336 = vor.u32 %v1332, %v1335
        %v1337 = vrot.slane %v1336, 4
        %v1339 = vshll.u32 %v977, 16
        %v1341 = vrot.slane %v1339, 5
        %v1342 = vsel %vm1016, %v1337, %v1341
        %v1343 = vshrl.u32 %v977, 16
        %v1345 = vrot.slane %v1343, 4
        %v1346 = vor.u32 %v1345, %v1341
        %v1347 = vrot.slane %v1346, 4
        %v1349 = vshll.u32 %v1011, 16
        %v1351 = vrot.slane %v1349, 5
        %v1352 = vsel %vm1016, %v1347, %v1351
        %v1354 = vshrl.u32 %v978, 16
        %v1356 = vrot.slane %v1354, 4
        %v1357 = vshll.u32 %v978, 16
        %v1359 = vrot.slane %v1357, 5
        %v1360 = vor.u32 %v1356, %v1359
        %v1361 = vrot.slane %v1360, 4
        %v1363 = vshll.u32 %v979, 16
        %v1365 = vrot.slane %v1363, 5
        %v1366 = vsel %vm1016, %v1361, %v1365
        %v1367 = vshrl.u32 %v979, 16
        %v1369 = vrot.slane %v1367, 4
        %v1370 = vor.u32 %v1369, %v1365
        %v1371 = vrot.slane %v1370, 4
        %v1373 = vshll.u32 %v1012, 16
        %v1375 = vrot.slane %v1373, 5
        %v1376 = vsel %vm1016, %v1371, %v1375
        %v1378 = vshrl.u32 %v980, 16
        %v1380 = vrot.slane %v1378, 4
        %v1381 = vshll.u32 %v980, 16
        %v1383 = vrot.slane %v1381, 5
        %v1384 = vor.u32 %v1380, %v1383
        %v1385 = vrot.slane %v1384, 4
        %v1387 = vshll.u32 %v981, 16
        %v1389 = vrot.slane %v1387, 5
        %v1390 = vsel %vm1016, %v1385, %v1389
        %v1391 = vshrl.u32 %v981, 16
        %v1393 = vrot.slane %v1391, 4
        %v1394 = vor.u32 %v1393, %v1389
        %v1395 = vrot.slane %v1394, 4
        %v1397 = vshll.u32 %v1013, 16
        %v1399 = vrot.slane %v1397, 5
        %v1400 = vsel %vm1016, %v1395, %v1399
        %s1401 = scalar_lea.vmem [#allocation7], 64
        %v1402 = vld [vmem:[%s1401] sm:$0xf]
        %v1403 = vld [vmem:[%s1401 + $0x4] sm:$0xf]
        %v1404 = vld [vmem:[%s1401 + $0x8] sm:$0xf]
        %v1405 = vld [vmem:[%s1401 + $0xc] sm:$0xf]
        %v1406 = vld [vmem:[%s1401 + $0x10] sm:$0xf]
        %v1407 = vld [vmem:[%s1401 + $0x14] sm:$0xf]
        %v1408 = vld [vmem:[%s1401 + $0x18] sm:$0xf]
        %v1409 = vld [vmem:[%s1401 + $0x1c] sm:$0xf]
        %v1410 = vld [vmem:[%s1401 + $0x20] sm:$0xf]
        %v1411 = vld [vmem:[%s1401 + $0x24] sm:$0xf]
        %v1412 = vld [vmem:[%s1401 + $0x28] sm:$0xf]
        %v1413 = vld [vmem:[%s1401 + $0x2c] sm:$0xf]
        %v1414 = vld [vmem:[%s1401 + $0x30] sm:$0xf]
        %v1415 = vld [vmem:[%s1401 + $0x34] sm:$0xf]
        %v1416 = vld [vmem:[%s1401 + $0x38] sm:$0xf]
        %v1417 = vld [vmem:[%s1401 + $0x3c] sm:$0xf]
        %v1418 = vunpack.c.l.b16 %v1030
        %v1419 = vunpack.c.l.b16 %v1040
        %v1420 = vunpack.c.l.b16 %v1054
        %v1421 = vunpack.c.l.b16 %v1064
        %v1422 = vunpack.c.l.b16 %v1078
        %v1423 = vunpack.c.l.b16 %v1088
        %v1424 = vunpack.c.l.b16 %v1102
        %v1425 = vunpack.c.l.b16 %v1112
        %v1426 = vunpack.c.l.b16 %v1126
        %v1427 = vunpack.c.l.b16 %v1136
        %v1428 = vunpack.c.l.b16 %v1150
        %v1429 = vunpack.c.l.b16 %v1160
        %v1430 = vunpack.c.l.b16 %v1174
        %v1431 = vunpack.c.l.b16 %v1184
        %v1432 = vunpack.c.l.b16 %v1198
        %v1433 = vunpack.c.l.b16 %v1208
        %v1434 = vunpack.c.l.b16 %v1222
        %v1435 = vunpack.c.l.b16 %v1232
        %v1436 = vunpack.c.l.b16 %v1246
        %v1437 = vunpack.c.l.b16 %v1256
        %v1438 = vunpack.c.l.b16 %v1270
        %v1439 = vunpack.c.l.b16 %v1280
        %v1440 = vunpack.c.l.b16 %v1294
        %v1441 = vunpack.c.l.b16 %v1304
        %v1442 = vunpack.c.l.b16 %v1318
        %v1443 = vunpack.c.l.b16 %v1328
        %v1444 = vunpack.c.l.b16 %v1342
        %v1445 = vunpack.c.l.b16 %v1352
        %v1446 = vunpack.c.l.b16 %v1366
        %v1447 = vunpack.c.l.b16 %v1376
        %v1448 = vunpack.c.l.b16 %v1390
        %v1449 = vunpack.c.l.b16 %v1400
        %v1450 = vpack.c.b16 %v1419, %v1418
        %v1451 = vpack.c.b16 %v1421, %v1420
        %v1452 = vpack.c.b16 %v1423, %v1422
        %v1453 = vpack.c.b16 %v1425, %v1424
        %v1454 = vpack.c.b16 %v1427, %v1426
        %v1455 = vpack.c.b16 %v1429, %v1428
        %v1456 = vpack.c.b16 %v1431, %v1430
        %v1457 = vpack.c.b16 %v1433, %v1432
        %v1458 = vpack.c.b16 %v1435, %v1434
        %v1459 = vpack.c.b16 %v1437, %v1436
        %v1460 = vpack.c.b16 %v1439, %v1438
        %v1461 = vpack.c.b16 %v1441, %v1440
        %v1462 = vpack.c.b16 %v1443, %v1442
        %v1463 = vpack.c.b16 %v1445, %v1444
        %v1464 = vpack.c.b16 %v1447, %v1446
        %v1465 = vpack.c.b16 %v1449, %v1448
        %v1498 = vunpack.c.l.b16 %v1402
        %v1499 = vunpack.c.l.b16 %v1403
        %v1500 = vunpack.c.l.b16 %v1404
        %v1501 = vunpack.c.l.b16 %v1405
        %v1502 = vunpack.c.l.b16 %v1406
        %v1503 = vunpack.c.l.b16 %v1407
        %v1504 = vunpack.c.l.b16 %v1408
        %v1505 = vunpack.c.l.b16 %v1409
        %v1506 = vunpack.c.l.b16 %v1410
        %v1507 = vunpack.c.l.b16 %v1411
        %v1508 = vunpack.c.l.b16 %v1412
        %v1509 = vunpack.c.l.b16 %v1413
        %v1510 = vunpack.c.l.b16 %v1414
        %v1511 = vunpack.c.l.b16 %v1415
        %v1512 = vunpack.c.l.b16 %v1416
        %v1513 = vunpack.c.l.b16 %v1417
        %v1514 = vpack.c.b16 %v1499, %v1498
        %v1515 = vpack.c.b16 %v1501, %v1500
        %v1516 = vpack.c.b16 %v1503, %v1502
        %v1517 = vpack.c.b16 %v1505, %v1504
        %v1518 = vpack.c.b16 %v1507, %v1506
        %v1519 = vpack.c.b16 %v1509, %v1508
        %v1520 = vpack.c.b16 %v1511, %v1510
        %v1521 = vpack.c.b16 %v1513, %v1512
        %1530 = vmatprep.subr.bf16.mxu0 0
        %1531 = vmatpush1.bf16.msra.mxu0 %v1521
        %1532 = vmatprep.subr.bf16.mxu0 0
        %1533 = vmatpush1.bf16.msra.mxu0 %v1520
        %1534 = vmatprep.subr.bf16.mxu0 0
        %1535 = vmatpush1.bf16.msra.mxu0 %v1519
        %1536 = vmatprep.subr.bf16.mxu0 0
        %1537 = vmatpush1.bf16.msra.mxu0 %v1518
        %1538 = vmatprep.subr.bf16.mxu0 0
        %1539 = vmatpush1.bf16.msra.mxu0 %v1517
        %1540 = vmatprep.subr.bf16.mxu0 0
        %1541 = vmatpush1.bf16.msra.mxu0 %v1516
        %1542 = vmatprep.subr.bf16.mxu0 0
        %1543 = vmatpush1.bf16.msra.mxu0 %v1515
        %1544 = vmatprep.subr.bf16.mxu0 0
        %1545 = vmatpush1.bf16.msra.mxu0 %v1514
        %1546 = vmatprep.subr.bf16.mxu0 0
        %1547 = vmatpush2.bf16.msra.mxu0 0
        %1548 = vmatprep.subr.bf16.mxu0 0
        %1549 = vmatpush2.bf16.msra.mxu0 0
        %1550 = vmatprep.subr.bf16.mxu0 0
        %1551 = vmatpush2.bf16.msra.mxu0 0
        %1552 = vmatprep.subr.bf16.mxu0 0
        %1553 = vmatpush2.bf16.msra.mxu0 0
        %1554 = vmatprep.subr.bf16.mxu0 0
        %1555 = vmatpush2.bf16.msra.mxu0 0
        %1556 = vmatprep.subr.bf16.mxu0 0
        %1557 = vmatpush2.bf16.msra.mxu0 0
        %1558 = vmatprep.subr.bf16.mxu0 0
        %1559 = vmatpush2.bf16.msra.mxu0 0
        %1560 = vmatprep.subr.bf16.mxu0 0
        %1561 = vmatpush2.bf16.msra.mxu0 0
        %1562 = vmatprep.mubr.bf16.mxu0 0
        %1563 = vmatmul.mubr.bf16.gmra.mxu0 %v1450
        %v1564 = vpop.f32.mrf.mxu0
        %v1565 = vadd.f32 0.0, %v1564
        %v1566 = vpop.f32.mrf.mxu0
        %v1567 = vpop.f32.mrf.mxu0
        %v1568 = vadd.f32 0.0, %v1567
        %v1569 = vpop.f32.mrf.mxu0
        %1570 = vmatprep.mubr.bf16.mxu0 0
        %1571 = vmatmul.mubr.bf16.gmra.mxu0 %v1451
        %v1572 = vpop.f32.mrf.mxu0
        %v1573 = vadd.f32 0.0, %v1572
        %v1574 = vpop.f32.mrf.mxu0
        %v1575 = vpop.f32.mrf.mxu0
        %v1576 = vadd.f32 0.0, %v1575
        %v1577 = vpop.f32.mrf.mxu0
        %1578 = vmatprep.mubr.bf16.mxu0 0
        %1579 = vmatmul.mubr.bf16.gmra.mxu0 %v1452
        %v1580 = vpop.f32.mrf.mxu0
        %v1581 = vadd.f32 0.0, %v1580
        %v1582 = vpop.f32.mrf.mxu0
        %v1583 = vpop.f32.mrf.mxu0
        %v1584 = vadd.f32 0.0, %v1583
        %v1585 = vpop.f32.mrf.mxu0
        %1586 = vmatprep.mubr.bf16.mxu0 0
        %1587 = vmatmul.mubr.bf16.gmra.mxu0 %v1453
        %v1588 = vpop.f32.mrf.mxu0
        %v1589 = vadd.f32 0.0, %v1588
        %v1590 = vpop.f32.mrf.mxu0
        %v1591 = vpop.f32.mrf.mxu0
        %v1592 = vadd.f32 0.0, %v1591
        %v1593 = vpop.f32.mrf.mxu0
        %1594 = vmatprep.mubr.bf16.mxu0 0
        %1595 = vmatmul.mubr.bf16.gmra.mxu0 %v1454
        %v1596 = vpop.f32.mrf.mxu0
        %v1597 = vadd.f32 0.0, %v1596
        %v1598 = vpop.f32.mrf.mxu0
        %v1599 = vpop.f32.mrf.mxu0
        %v1600 = vadd.f32 0.0, %v1599
        %v1601 = vpop.f32.mrf.mxu0
        %1602 = vmatprep.mubr.bf16.mxu0 0
        %1603 = vmatmul.mubr.bf16.gmra.mxu0 %v1455
        %v1604 = vpop.f32.mrf.mxu0
        %v1605 = vadd.f32 0.0, %v1604
        %v1606 = vpop.f32.mrf.mxu0
        %v1607 = vpop.f32.mrf.mxu0
        %v1608 = vadd.f32 0.0, %v1607
        %v1609 = vpop.f32.mrf.mxu0
        %1610 = vmatprep.mubr.bf16.mxu0 0
        %1611 = vmatmul.mubr.bf16.gmra.mxu0 %v1456
        %v1612 = vpop.f32.mrf.mxu0
        %v1613 = vadd.f32 0.0, %v1612
        %v1614 = vpop.f32.mrf.mxu0
        %v1615 = vpop.f32.mrf.mxu0
        %v1616 = vadd.f32 0.0, %v1615
        %v1617 = vpop.f32.mrf.mxu0
        %1618 = vmatprep.mubr.bf16.mxu0 0
        %1619 = vmatmul.mubr.bf16.gmra.mxu0 %v1457
        %v1620 = vpop.f32.mrf.mxu0
        %v1621 = vadd.f32 0.0, %v1620
        %v1622 = vpop.f32.mrf.mxu0
        %v1623 = vpop.f32.mrf.mxu0
        %v1624 = vadd.f32 0.0, %v1623
        %v1625 = vpop.f32.mrf.mxu0
        %1626 = vmatprep.mubr.bf16.mxu0 0
        %1627 = vmatmul.mubr.bf16.gmra.mxu0 %v1458
        %v1628 = vpop.f32.mrf.mxu0
        %v1629 = vadd.f32 0.0, %v1628
        %v1630 = vpop.f32.mrf.mxu0
        %v1631 = vpop.f32.mrf.mxu0
        %v1632 = vadd.f32 0.0, %v1631
        %v1633 = vpop.f32.mrf.mxu0
        %1634 = vmatprep.mubr.bf16.mxu0 0
        %1635 = vmatmul.mubr.bf16.gmra.mxu0 %v1459
        %v1636 = vpop.f32.mrf.mxu0
        %v1637 = vadd.f32 0.0, %v1636
        %v1638 = vpop.f32.mrf.mxu0
        %v1639 = vpop.f32.mrf.mxu0
        %v1640 = vadd.f32 0.0, %v1639
        %v1641 = vpop.f32.mrf.mxu0
        %1642 = vmatprep.mubr.bf16.mxu0 0
        %1643 = vmatmul.mubr.bf16.gmra.mxu0 %v1460
        %v1644 = vpop.f32.mrf.mxu0
        %v1645 = vadd.f32 0.0, %v1644
        %v1646 = vpop.f32.mrf.mxu0
        %v1647 = vpop.f32.mrf.mxu0
        %v1648 = vadd.f32 0.0, %v1647
        %v1649 = vpop.f32.mrf.mxu0
        %1650 = vmatprep.mubr.bf16.mxu0 0
        %1651 = vmatmul.mubr.bf16.gmra.mxu0 %v1461
        %v1652 = vpop.f32.mrf.mxu0
        %v1653 = vadd.f32 0.0, %v1652
        %v1654 = vpop.f32.mrf.mxu0
        %v1655 = vpop.f32.mrf.mxu0
        %v1656 = vadd.f32 0.0, %v1655
        %v1657 = vpop.f32.mrf.mxu0
        %1658 = vmatprep.mubr.bf16.mxu0 0
        %1659 = vmatmul.mubr.bf16.gmra.mxu0 %v1462
        %v1660 = vpop.f32.mrf.mxu0
        %v1661 = vadd.f32 0.0, %v1660
        %v1662 = vpop.f32.mrf.mxu0
        %v1663 = vpop.f32.mrf.mxu0
        %v1664 = vadd.f32 0.0, %v1663
        %v1665 = vpop.f32.mrf.mxu0
        %1666 = vmatprep.mubr.bf16.mxu0 0
        %1667 = vmatmul.mubr.bf16.gmra.mxu0 %v1463
        %v1668 = vpop.f32.mrf.mxu0
        %v1669 = vadd.f32 0.0, %v1668
        %v1670 = vpop.f32.mrf.mxu0
        %v1671 = vpop.f32.mrf.mxu0
        %v1672 = vadd.f32 0.0, %v1671
        %v1673 = vpop.f32.mrf.mxu0
        %1674 = vmatprep.mubr.bf16.mxu0 0
        %1675 = vmatmul.mubr.bf16.gmra.mxu0 %v1464
        %v1676 = vpop.f32.mrf.mxu0
        %v1677 = vadd.f32 0.0, %v1676
        %v1678 = vpop.f32.mrf.mxu0
        %v1679 = vpop.f32.mrf.mxu0
        %v1680 = vadd.f32 0.0, %v1679
        %v1681 = vpop.f32.mrf.mxu0
        %1682 = vmatprep.mubr.bf16.mxu0 0
        %1683 = vmatmul.mubr.bf16.gmra.mxu0 %v1465
        %v1684 = vpop.f32.mrf.mxu0
        %v1685 = vadd.f32 0.0, %v1684
        %v1686 = vpop.f32.mrf.mxu0
        %v1687 = vpop.f32.mrf.mxu0
        %v1688 = vadd.f32 0.0, %v1687
        %v1689 = vpop.f32.mrf.mxu0
        %1690 = vdwg.mxu0
        %v1723 = vunpack.c.l.b16 %v950
        %v1724 = vunpack.c.l.b16 %v951
        %v1725 = vunpack.c.l.b16 %v952
        %v1726 = vunpack.c.l.b16 %v953
        %v1727 = vunpack.c.l.b16 %v954
        %v1728 = vunpack.c.l.b16 %v955
        %v1729 = vunpack.c.l.b16 %v956
        %v1730 = vunpack.c.l.b16 %v957
        %v1731 = vunpack.c.l.b16 %v958
        %v1732 = vunpack.c.l.b16 %v959
        %v1733 = vunpack.c.l.b16 %v960
        %v1734 = vunpack.c.l.b16 %v961
        %v1735 = vunpack.c.l.b16 %v962
        %v1736 = vunpack.c.l.b16 %v963
        %v1737 = vunpack.c.l.b16 %v964
        %v1738 = vunpack.c.l.b16 %v965
        %v1739 = vunpack.c.l.b16 %v966
        %v1740 = vunpack.c.l.b16 %v967
        %v1741 = vunpack.c.l.b16 %v968
        %v1742 = vunpack.c.l.b16 %v969
        %v1743 = vunpack.c.l.b16 %v970
        %v1744 = vunpack.c.l.b16 %v971
        %v1745 = vunpack.c.l.b16 %v972
        %v1746 = vunpack.c.l.b16 %v973
        %v1747 = vunpack.c.l.b16 %v974
        %v1748 = vunpack.c.l.b16 %v975
        %v1749 = vunpack.c.l.b16 %v976
        %v1750 = vunpack.c.l.b16 %v977
        %v1751 = vunpack.c.l.b16 %v978
        %v1752 = vunpack.c.l.b16 %v979
        %v1753 = vunpack.c.l.b16 %v980
        %v1754 = vunpack.c.l.b16 %v981
        %v1755 = vpack.c.b16 %v1724, %v1723
        %v1756 = vpack.c.b16 %v1726, %v1725
        %v1757 = vpack.c.b16 %v1728, %v1727
        %v1758 = vpack.c.b16 %v1730, %v1729
        %v1759 = vpack.c.b16 %v1732, %v1731
        %v1760 = vpack.c.b16 %v1734, %v1733
        %v1761 = vpack.c.b16 %v1736, %v1735
        %v1762 = vpack.c.b16 %v1738, %v1737
        %v1763 = vpack.c.b16 %v1740, %v1739
        %v1764 = vpack.c.b16 %v1742, %v1741
        %v1765 = vpack.c.b16 %v1744, %v1743
        %v1766 = vpack.c.b16 %v1746, %v1745
        %v1767 = vpack.c.b16 %v1748, %v1747
        %v1768 = vpack.c.b16 %v1750, %v1749
        %v1769 = vpack.c.b16 %v1752, %v1751
        %v1770 = vpack.c.b16 %v1754, %v1753
        %v1803 = vunpack.c.l.b16 %v982
        %v1804 = vunpack.c.l.b16 %v983
        %v1805 = vunpack.c.l.b16 %v984
        %v1806 = vunpack.c.l.b16 %v985
        %v1807 = vunpack.c.l.b16 %v986
        %v1808 = vunpack.c.l.b16 %v987
        %v1809 = vunpack.c.l.b16 %v988
        %v1810 = vunpack.c.l.b16 %v989
        %v1811 = vunpack.c.l.b16 %v990
        %v1812 = vunpack.c.l.b16 %v991
        %v1813 = vunpack.c.l.b16 %v992
        %v1814 = vunpack.c.l.b16 %v993
        %v1815 = vunpack.c.l.b16 %v994
        %v1816 = vunpack.c.l.b16 %v995
        %v1817 = vunpack.c.l.b16 %v996
        %v1818 = vunpack.c.l.b16 %v997
        %v1819 = vpack.c.b16 %v1804, %v1803
        %v1820 = vpack.c.b16 %v1806, %v1805
        %v1821 = vpack.c.b16 %v1808, %v1807
        %v1822 = vpack.c.b16 %v1810, %v1809
        %v1823 = vpack.c.b16 %v1812, %v1811
        %v1824 = vpack.c.b16 %v1814, %v1813
        %v1825 = vpack.c.b16 %v1816, %v1815
        %v1826 = vpack.c.b16 %v1818, %v1817
        %1835 = vmatprep.subr.bf16.mxu0 0
        %1836 = vmatpush1.bf16.msra.mxu0 %v1826
        %1837 = vmatprep.subr.bf16.mxu0 0
        %1838 = vmatpush1.bf16.msra.mxu0 %v1825
        %1839 = vmatprep.subr.bf16.mxu0 0
        %1840 = vmatpush1.bf16.msra.mxu0 %v1824
        %1841 = vmatprep.subr.bf16.mxu0 0
        %1842 = vmatpush1.bf16.msra.mxu0 %v1823
        %1843 = vmatprep.subr.bf16.mxu0 0
        %1844 = vmatpush1.bf16.msra.mxu0 %v1822
        %1845 = vmatprep.subr.bf16.mxu0 0
        %1846 = vmatpush1.bf16.msra.mxu0 %v1821
        %1847 = vmatprep.subr.bf16.mxu0 0
        %1848 = vmatpush1.bf16.msra.mxu0 %v1820
        %1849 = vmatprep.subr.bf16.mxu0 0
        %1850 = vmatpush1.bf16.msra.mxu0 %v1819
        %1851 = vmatprep.subr.bf16.mxu0 0
        %1852 = vmatpush2.bf16.msra.mxu0 0
        %1853 = vmatprep.subr.bf16.mxu0 0
        %1854 = vmatpush2.bf16.msra.mxu0 0
        %1855 = vmatprep.subr.bf16.mxu0 0
        %1856 = vmatpush2.bf16.msra.mxu0 0
        %1857 = vmatprep.subr.bf16.mxu0 0
        %1858 = vmatpush2.bf16.msra.mxu0 0
        %1859 = vmatprep.subr.bf16.mxu0 0
        %1860 = vmatpush2.bf16.msra.mxu0 0
        %1861 = vmatprep.subr.bf16.mxu0 0
        %1862 = vmatpush2.bf16.msra.mxu0 0
        %1863 = vmatprep.subr.bf16.mxu0 0
        %1864 = vmatpush2.bf16.msra.mxu0 0
        %1865 = vmatprep.subr.bf16.mxu0 0
        %1866 = vmatpush2.bf16.msra.mxu0 0
        %1867 = vmatprep.mubr.bf16.mxu0 0
        %1868 = vmatmul.mubr.bf16.gmra.mxu0 %v1755
        %v1869 = vpop.f32.mrf.mxu0
        %v1870 = vadd.f32 %v1565, %v1869
        %v1871 = vpop.f32.mrf.mxu0
        %v1872 = vpop.f32.mrf.mxu0
        %v1873 = vadd.f32 %v1568, %v1872
        %v1874 = vpop.f32.mrf.mxu0
        %1875 = vmatprep.mubr.bf16.mxu0 0
        %1876 = vmatmul.mubr.bf16.gmra.mxu0 %v1756
        %v1877 = vpop.f32.mrf.mxu0
        %v1878 = vadd.f32 %v1573, %v1877
        %v1879 = vpop.f32.mrf.mxu0
        %v1880 = vpop.f32.mrf.mxu0
        %v1881 = vadd.f32 %v1576, %v1880
        %v1882 = vpop.f32.mrf.mxu0
        %1883 = vmatprep.mubr.bf16.mxu0 0
        %1884 = vmatmul.mubr.bf16.gmra.mxu0 %v1757
        %v1885 = vpop.f32.mrf.mxu0
        %v1886 = vadd.f32 %v1581, %v1885
        %v1887 = vpop.f32.mrf.mxu0
        %v1888 = vpop.f32.mrf.mxu0
        %v1889 = vadd.f32 %v1584, %v1888
        %v1890 = vpop.f32.mrf.mxu0
        %1891 = vmatprep.mubr.bf16.mxu0 0
        %1892 = vmatmul.mubr.bf16.gmra.mxu0 %v1758
        %v1893 = vpop.f32.mrf.mxu0
        %v1894 = vadd.f32 %v1589, %v1893
        %v1895 = vpop.f32.mrf.mxu0
        %v1896 = vpop.f32.mrf.mxu0
        %v1897 = vadd.f32 %v1592, %v1896
        %v1898 = vpop.f32.mrf.mxu0
        %1899 = vmatprep.mubr.bf16.mxu0 0
        %1900 = vmatmul.mubr.bf16.gmra.mxu0 %v1759
        %v1901 = vpop.f32.mrf.mxu0
        %v1902 = vadd.f32 %v1597, %v1901
        %v1903 = vpop.f32.mrf.mxu0
        %v1904 = vpop.f32.mrf.mxu0
        %v1905 = vadd.f32 %v1600, %v1904
        %v1906 = vpop.f32.mrf.mxu0
        %1907 = vmatprep.mubr.bf16.mxu0 0
        %1908 = vmatmul.mubr.bf16.gmra.mxu0 %v1760
        %v1909 = vpop.f32.mrf.mxu0
        %v1910 = vadd.f32 %v1605, %v1909
        %v1911 = vpop.f32.mrf.mxu0
        %v1912 = vpop.f32.mrf.mxu0
        %v1913 = vadd.f32 %v1608, %v1912
        %v1914 = vpop.f32.mrf.mxu0
        %1915 = vmatprep.mubr.bf16.mxu0 0
        %1916 = vmatmul.mubr.bf16.gmra.mxu0 %v1761
        %v1917 = vpop.f32.mrf.mxu0
        %v1918 = vadd.f32 %v1613, %v1917
        %v1919 = vpop.f32.mrf.mxu0
        %v1920 = vpop.f32.mrf.mxu0
        %v1921 = vadd.f32 %v1616, %v1920
        %v1922 = vpop.f32.mrf.mxu0
        %1923 = vmatprep.mubr.bf16.mxu0 0
        %1924 = vmatmul.mubr.bf16.gmra.mxu0 %v1762
        %v1925 = vpop.f32.mrf.mxu0
        %v1926 = vadd.f32 %v1621, %v1925
        %v1927 = vpop.f32.mrf.mxu0
        %v1928 = vpop.f32.mrf.mxu0
        %v1929 = vadd.f32 %v1624, %v1928
        %v1930 = vpop.f32.mrf.mxu0
        %1931 = vmatprep.mubr.bf16.mxu0 0
        %1932 = vmatmul.mubr.bf16.gmra.mxu0 %v1763
        %v1933 = vpop.f32.mrf.mxu0
        %v1934 = vadd.f32 %v1629, %v1933
        %v1935 = vpop.f32.mrf.mxu0
        %v1936 = vpop.f32.mrf.mxu0
        %v1937 = vadd.f32 %v1632, %v1936
        %v1938 = vpop.f32.mrf.mxu0
        %1939 = vmatprep.mubr.bf16.mxu0 0
        %1940 = vmatmul.mubr.bf16.gmra.mxu0 %v1764
        %v1941 = vpop.f32.mrf.mxu0
        %v1942 = vadd.f32 %v1637, %v1941
        %v1943 = vpop.f32.mrf.mxu0
        %v1944 = vpop.f32.mrf.mxu0
        %v1945 = vadd.f32 %v1640, %v1944
        %v1946 = vpop.f32.mrf.mxu0
        %1947 = vmatprep.mubr.bf16.mxu0 0
        %1948 = vmatmul.mubr.bf16.gmra.mxu0 %v1765
        %v1949 = vpop.f32.mrf.mxu0
        %v1950 = vadd.f32 %v1645, %v1949
        %v1951 = vpop.f32.mrf.mxu0
        %v1952 = vpop.f32.mrf.mxu0
        %v1953 = vadd.f32 %v1648, %v1952
        %v1954 = vpop.f32.mrf.mxu0
        %1955 = vmatprep.mubr.bf16.mxu0 0
        %1956 = vmatmul.mubr.bf16.gmra.mxu0 %v1766
        %v1957 = vpop.f32.mrf.mxu0
        %v1958 = vadd.f32 %v1653, %v1957
        %v1959 = vpop.f32.mrf.mxu0
        %v1960 = vpop.f32.mrf.mxu0
        %v1961 = vadd.f32 %v1656, %v1960
        %v1962 = vpop.f32.mrf.mxu0
        %1963 = vmatprep.mubr.bf16.mxu0 0
        %1964 = vmatmul.mubr.bf16.gmra.mxu0 %v1767
        %v1965 = vpop.f32.mrf.mxu0
        %v1966 = vadd.f32 %v1661, %v1965
        %v1967 = vpop.f32.mrf.mxu0
        %v1968 = vpop.f32.mrf.mxu0
        %v1969 = vadd.f32 %v1664, %v1968
        %v1970 = vpop.f32.mrf.mxu0
        %1971 = vmatprep.mubr.bf16.mxu0 0
        %1972 = vmatmul.mubr.bf16.gmra.mxu0 %v1768
        %v1973 = vpop.f32.mrf.mxu0
        %v1974 = vadd.f32 %v1669, %v1973
        %v1975 = vpop.f32.mrf.mxu0
        %v1976 = vpop.f32.mrf.mxu0
        %v1977 = vadd.f32 %v1672, %v1976
        %v1978 = vpop.f32.mrf.mxu0
        %1979 = vmatprep.mubr.bf16.mxu0 0
        %1980 = vmatmul.mubr.bf16.gmra.mxu0 %v1769
        %v1981 = vpop.f32.mrf.mxu0
        %v1982 = vadd.f32 %v1677, %v1981
        %v1983 = vpop.f32.mrf.mxu0
        %v1984 = vpop.f32.mrf.mxu0
        %v1985 = vadd.f32 %v1680, %v1984
        %v1986 = vpop.f32.mrf.mxu0
        %1987 = vmatprep.mubr.bf16.mxu0 0
        %1988 = vmatmul.mubr.bf16.gmra.mxu0 %v1770
        %v1989 = vpop.f32.mrf.mxu0
        %v1990 = vadd.f32 %v1685, %v1989
        %v1991 = vpop.f32.mrf.mxu0
        %v1992 = vpop.f32.mrf.mxu0
        %v1993 = vadd.f32 %v1688, %v1992
        %v1994 = vpop.f32.mrf.mxu0
        %1995 = vdwg.mxu0
        %v1996 = vld [vmem:[#allocation2] sm:$0xe]
        %v1997 = vld [vmem:[#allocation2 + $0xc] sm:$0xe]
        %v1998 = vld [vmem:[#allocation2 + $0x18] sm:$0xe]
        %v1999 = vld [vmem:[#allocation2 + $0x24] sm:$0xe]
        %v2000 = vld [vmem:[#allocation2 + $0x30] sm:$0xe]
        %v2001 = vld [vmem:[#allocation2 + $0x3c] sm:$0xe]
        %v2002 = vld [vmem:[#allocation2 + $0x48] sm:$0xe]
        %v2003 = vld [vmem:[#allocation2 + $0x54] sm:$0xe]
        %v2004 = vld [vmem:[#allocation2 + $0x60] sm:$0xe]
        %v2005 = vld [vmem:[#allocation2 + $0x6c] sm:$0xe]
        %v2006 = vld [vmem:[#allocation2 + $0x78] sm:$0xe]
        %v2007 = vld [vmem:[#allocation2 + $0x84] sm:$0xe]
        %v2008 = vld [vmem:[#allocation2 + $0x90] sm:$0xe]
        %v2009 = vld [vmem:[#allocation2 + $0x9c] sm:$0xe]
        %v2010 = vld [vmem:[#allocation2 + $0xa8] sm:$0xe]
        %v2011 = vld [vmem:[#allocation2 + $0xb4] sm:$0xe]
        %vm2044 = vcmask 1042432
        %vm2045 = vcmask 1046532
        %vm2046 = vmor %vm2044, %vm2045
        %v2047 = vrot.slane %v1996, 5
        %v2048 = vrot.slane %v2047, 4
        %v2049 = vrot.slane %v951, 5
        %v2050 = vsel %vm2046, %v2048, %v2049
        %v2051 = vrot.slane %v2049, 4
        %v2052 = vrot.slane %v998, 5
        %v2053 = vsel %vm2046, %v2051, %v2052
        %v2054 = vrot.slane %v1997, 5
        %v2055 = vrot.slane %v2054, 4
        %v2056 = vrot.slane %v953, 5
        %v2057 = vsel %vm2046, %v2055, %v2056
        %v2058 = vrot.slane %v2056, 4
        %v2059 = vrot.slane %v999, 5
        %v2060 = vsel %vm2046, %v2058, %v2059
        %v2061 = vrot.slane %v1998, 5
        %v2062 = vrot.slane %v2061, 4
        %v2063 = vrot.slane %v955, 5
        %v2064 = vsel %vm2046, %v2062, %v2063
        %v2065 = vrot.slane %v2063, 4
        %v2066 = vrot.slane %v1000, 5
        %v2067 = vsel %vm2046, %v2065, %v2066
        %v2068 = vrot.slane %v1999, 5
        %v2069 = vrot.slane %v2068, 4
        %v2070 = vrot.slane %v957, 5
        %v2071 = vsel %vm2046, %v2069, %v2070
        %v2072 = vrot.slane %v2070, 4
        %v2073 = vrot.slane %v1001, 5
        %v2074 = vsel %vm2046, %v2072, %v2073
        %v2075 = vrot.slane %v2000, 5
        %v2076 = vrot.slane %v2075, 4
        %v2077 = vrot.slane %v959, 5
        %v2078 = vsel %vm2046, %v2076, %v2077
        %v2079 = vrot.slane %v2077, 4
        %v2080 = vrot.slane %v1002, 5
        %v2081 = vsel %vm2046, %v2079, %v2080
        %v2082 = vrot.slane %v2001, 5
        %v2083 = vrot.slane %v2082, 4
        %v2084 = vrot.slane %v961, 5
        %v2085 = vsel %vm2046, %v2083, %v2084
        %v2086 = vrot.slane %v2084, 4
        %v2087 = vrot.slane %v1003, 5
        %v2088 = vsel %vm2046, %v2086, %v2087
        %v2089 = vrot.slane %v2002, 5
        %v2090 = vrot.slane %v2089, 4
        %v2091 = vrot.slane %v963, 5
        %v2092 = vsel %vm2046, %v2090, %v2091
        %v2093 = vrot.slane %v2091, 4
        %v2094 = vrot.slane %v1004, 5
        %v2095 = vsel %vm2046, %v2093, %v2094
        %v2096 = vrot.slane %v2003, 5
        %v2097 = vrot.slane %v2096, 4
        %v2098 = vrot.slane %v965, 5
        %v2099 = vsel %vm2046, %v2097, %v2098
        %v2100 = vrot.slane %v2098, 4
        %v2101 = vrot.slane %v1005, 5
        %v2102 = vsel %vm2046, %v2100, %v2101
        %v2103 = vrot.slane %v2004, 5
        %v2104 = vrot.slane %v2103, 4
        %v2105 = vrot.slane %v967, 5
        %v2106 = vsel %vm2046, %v2104, %v2105
        %v2107 = vrot.slane %v2105, 4
        %v2108 = vrot.slane %v1006, 5
        %v2109 = vsel %vm2046, %v2107, %v2108
        %v2110 = vrot.slane %v2005, 5
        %v2111 = vrot.slane %v2110, 4
        %v2112 = vrot.slane %v969, 5
        %v2113 = vsel %vm2046, %v2111, %v2112
        %v2114 = vrot.slane %v2112, 4
        %v2115 = vrot.slane %v1007, 5
        %v2116 = vsel %vm2046, %v2114, %v2115
        %v2117 = vrot.slane %v2006, 5
        %v2118 = vrot.slane %v2117, 4
        %v2119 = vrot.slane %v971, 5
        %v2120 = vsel %vm2046, %v2118, %v2119
        %v2121 = vrot.slane %v2119, 4
        %v2122 = vrot.slane %v1008, 5
        %v2123 = vsel %vm2046, %v2121, %v2122
        %v2124 = vrot.slane %v2007, 5
        %v2125 = vrot.slane %v2124, 4
        %v2126 = vrot.slane %v973, 5
        %v2127 = vsel %vm2046, %v2125, %v2126
        %v2128 = vrot.slane %v2126, 4
        %v2129 = vrot.slane %v1009, 5
        %v2130 = vsel %vm2046, %v2128, %v2129
        %v2131 = vrot.slane %v2008, 5
        %v2132 = vrot.slane %v2131, 4
        %v2133 = vrot.slane %v975, 5
        %v2134 = vsel %vm2046, %v2132, %v2133
        %v2135 = vrot.slane %v2133, 4
        %v2136 = vrot.slane %v1010, 5
        %v2137 = vsel %vm2046, %v2135, %v2136
        %v2138 = vrot.slane %v2009, 5
        %v2139 = vrot.slane %v2138, 4
        %v2140 = vrot.slane %v977, 5
        %v2141 = vsel %vm2046, %v2139, %v2140
        %v2142 = vrot.slane %v2140, 4
        %v2143 = vrot.slane %v1011, 5
        %v2144 = vsel %vm2046, %v2142, %v2143
        %v2145 = vrot.slane %v2010, 5
        %v2146 = vrot.slane %v2145, 4
        %v2147 = vrot.slane %v979, 5
        %v2148 = vsel %vm2046, %v2146, %v2147
        %v2149 = vrot.slane %v2147, 4
        %v2150 = vrot.slane %v1012, 5
        %v2151 = vsel %vm2046, %v2149, %v2150
        %v2152 = vrot.slane %v2011, 5
        %v2153 = vrot.slane %v2152, 4
        %v2154 = vrot.slane %v981, 5
        %v2155 = vsel %vm2046, %v2153, %v2154
        %v2156 = vrot.slane %v2154, 4
        %v2157 = vrot.slane %v1013, 5
        %v2158 = vsel %vm2046, %v2156, %v2157
        %s2159 = scalar_lea.vmem [#allocation7], 128
        %v2160 = vld [vmem:[%s2159] sm:$0xf]
        %v2161 = vld [vmem:[%s2159 + $0x4] sm:$0xf]
        %v2162 = vld [vmem:[%s2159 + $0x8] sm:$0xf]
        %v2163 = vld [vmem:[%s2159 + $0xc] sm:$0xf]
        %v2164 = vld [vmem:[%s2159 + $0x10] sm:$0xf]
        %v2165 = vld [vmem:[%s2159 + $0x14] sm:$0xf]
        %v2166 = vld [vmem:[%s2159 + $0x18] sm:$0xf]
        %v2167 = vld [vmem:[%s2159 + $0x1c] sm:$0xf]
        %v2168 = vld [vmem:[%s2159 + $0x20] sm:$0xf]
        %v2169 = vld [vmem:[%s2159 + $0x24] sm:$0xf]
        %v2170 = vld [vmem:[%s2159 + $0x28] sm:$0xf]
        %v2171 = vld [vmem:[%s2159 + $0x2c] sm:$0xf]
        %v2172 = vld [vmem:[%s2159 + $0x30] sm:$0xf]
        %v2173 = vld [vmem:[%s2159 + $0x34] sm:$0xf]
        %v2174 = vld [vmem:[%s2159 + $0x38] sm:$0xf]
        %v2175 = vld [vmem:[%s2159 + $0x3c] sm:$0xf]
        %v2176 = vunpack.c.l.b16 %v2050
        %v2177 = vunpack.c.l.b16 %v2053
        %v2178 = vunpack.c.l.b16 %v2057
        %v2179 = vunpack.c.l.b16 %v2060
        %v2180 = vunpack.c.l.b16 %v2064
        %v2181 = vunpack.c.l.b16 %v2067
        %v2182 = vunpack.c.l.b16 %v2071
        %v2183 = vunpack.c.l.b16 %v2074
        %v2184 = vunpack.c.l.b16 %v2078
        %v2185 = vunpack.c.l.b16 %v2081
        %v2186 = vunpack.c.l.b16 %v2085
        %v2187 = vunpack.c.l.b16 %v2088
        %v2188 = vunpack.c.l.b16 %v2092
        %v2189 = vunpack.c.l.b16 %v2095
        %v2190 = vunpack.c.l.b16 %v2099
        %v2191 = vunpack.c.l.b16 %v2102
        %v2192 = vunpack.c.l.b16 %v2106
        %v2193 = vunpack.c.l.b16 %v2109
        %v2194 = vunpack.c.l.b16 %v2113
        %v2195 = vunpack.c.l.b16 %v2116
        %v2196 = vunpack.c.l.b16 %v2120
        %v2197 = vunpack.c.l.b16 %v2123
        %v2198 = vunpack.c.l.b16 %v2127
        %v2199 = vunpack.c.l.b16 %v2130
        %v2200 = vunpack.c.l.b16 %v2134
        %v2201 = vunpack.c.l.b16 %v2137
        %v2202 = vunpack.c.l.b16 %v2141
        %v2203 = vunpack.c.l.b16 %v2144
        %v2204 = vunpack.c.l.b16 %v2148
        %v2205 = vunpack.c.l.b16 %v2151
        %v2206 = vunpack.c.l.b16 %v2155
        %v2207 = vunpack.c.l.b16 %v2158
        %v2208 = vpack.c.b16 %v2177, %v2176
        %v2209 = vpack.c.b16 %v2179, %v2178
        %v2210 = vpack.c.b16 %v2181, %v2180
        %v2211 = vpack.c.b16 %v2183, %v2182
        %v2212 = vpack.c.b16 %v2185, %v2184
        %v2213 = vpack.c.b16 %v2187, %v2186
        %v2214 = vpack.c.b16 %v2189, %v2188
        %v2215 = vpack.c.b16 %v2191, %v2190
        %v2216 = vpack.c.b16 %v2193, %v2192
        %v2217 = vpack.c.b16 %v2195, %v2194
        %v2218 = vpack.c.b16 %v2197, %v2196
        %v2219 = vpack.c.b16 %v2199, %v2198
        %v2220 = vpack.c.b16 %v2201, %v2200
        %v2221 = vpack.c.b16 %v2203, %v2202
        %v2222 = vpack.c.b16 %v2205, %v2204
        %v2223 = vpack.c.b16 %v2207, %v2206
        %v2256 = vunpack.c.l.b16 %v2160
        %v2257 = vunpack.c.l.b16 %v2161
        %v2258 = vunpack.c.l.b16 %v2162
        %v2259 = vunpack.c.l.b16 %v2163
        %v2260 = vunpack.c.l.b16 %v2164
        %v2261 = vunpack.c.l.b16 %v2165
        %v2262 = vunpack.c.l.b16 %v2166
        %v2263 = vunpack.c.l.b16 %v2167
        %v2264 = vunpack.c.l.b16 %v2168
        %v2265 = vunpack.c.l.b16 %v2169
        %v2266 = vunpack.c.l.b16 %v2170
        %v2267 = vunpack.c.l.b16 %v2171
        %v2268 = vunpack.c.l.b16 %v2172
        %v2269 = vunpack.c.l.b16 %v2173
        %v2270 = vunpack.c.l.b16 %v2174
        %v2271 = vunpack.c.l.b16 %v2175
        %v2272 = vpack.c.b16 %v2257, %v2256
        %v2273 = vpack.c.b16 %v2259, %v2258
        %v2274 = vpack.c.b16 %v2261, %v2260
        %v2275 = vpack.c.b16 %v2263, %v2262
        %v2276 = vpack.c.b16 %v2265, %v2264
        %v2277 = vpack.c.b16 %v2267, %v2266
        %v2278 = vpack.c.b16 %v2269, %v2268
        %v2279 = vpack.c.b16 %v2271, %v2270
        %2288 = vmatprep.subr.bf16.mxu0 0
        %2289 = vmatpush1.bf16.msra.mxu0 %v2279
        %2290 = vmatprep.subr.bf16.mxu0 0
        %2291 = vmatpush1.bf16.msra.mxu0 %v2278
        %2292 = vmatprep.subr.bf16.mxu0 0
        %2293 = vmatpush1.bf16.msra.mxu0 %v2277
        %2294 = vmatprep.subr.bf16.mxu0 0
        %2295 = vmatpush1.bf16.msra.mxu0 %v2276
        %2296 = vmatprep.subr.bf16.mxu0 0
        %2297 = vmatpush1.bf16.msra.mxu0 %v2275
        %2298 = vmatprep.subr.bf16.mxu0 0
        %2299 = vmatpush1.bf16.msra.mxu0 %v2274
        %2300 = vmatprep.subr.bf16.mxu0 0
        %2301 = vmatpush1.bf16.msra.mxu0 %v2273
        %2302 = vmatprep.subr.bf16.mxu0 0
        %2303 = vmatpush1.bf16.msra.mxu0 %v2272
        %2304 = vmatprep.subr.bf16.mxu0 0
        %2305 = vmatpush2.bf16.msra.mxu0 0
        %2306 = vmatprep.subr.bf16.mxu0 0
        %2307 = vmatpush2.bf16.msra.mxu0 0
        %2308 = vmatprep.subr.bf16.mxu0 0
        %2309 = vmatpush2.bf16.msra.mxu0 0
        %2310 = vmatprep.subr.bf16.mxu0 0
        %2311 = vmatpush2.bf16.msra.mxu0 0
        %2312 = vmatprep.subr.bf16.mxu0 0
        %2313 = vmatpush2.bf16.msra.mxu0 0
        %2314 = vmatprep.subr.bf16.mxu0 0
        %2315 = vmatpush2.bf16.msra.mxu0 0
        %2316 = vmatprep.subr.bf16.mxu0 0
        %2317 = vmatpush2.bf16.msra.mxu0 0
        %2318 = vmatprep.subr.bf16.mxu0 0
        %2319 = vmatpush2.bf16.msra.mxu0 0
        %2320 = vmatprep.mubr.bf16.mxu0 0
        %2321 = vmatmul.mubr.bf16.gmra.mxu0 %v2208
        %v2322 = vpop.f32.mrf.mxu0
        %v2323 = vadd.f32 0.0, %v2322
        %v2324 = vpop.f32.mrf.mxu0
        %v2325 = vpop.f32.mrf.mxu0
        %v2326 = vadd.f32 0.0, %v2325
        %v2327 = vpop.f32.mrf.mxu0
        %2328 = vmatprep.mubr.bf16.mxu0 0
        %2329 = vmatmul.mubr.bf16.gmra.mxu0 %v2209
        %v2330 = vpop.f32.mrf.mxu0
        %v2331 = vadd.f32 0.0, %v2330
        %v2332 = vpop.f32.mrf.mxu0
        %v2333 = vpop.f32.mrf.mxu0
        %v2334 = vadd.f32 0.0, %v2333
        %v2335 = vpop.f32.mrf.mxu0
        %2336 = vmatprep.mubr.bf16.mxu0 0
        %2337 = vmatmul.mubr.bf16.gmra.mxu0 %v2210
        %v2338 = vpop.f32.mrf.mxu0
        %v2339 = vadd.f32 0.0, %v2338
        %v2340 = vpop.f32.mrf.mxu0
        %v2341 = vpop.f32.mrf.mxu0
        %v2342 = vadd.f32 0.0, %v2341
        %v2343 = vpop.f32.mrf.mxu0
        %2344 = vmatprep.mubr.bf16.mxu0 0
        %2345 = vmatmul.mubr.bf16.gmra.mxu0 %v2211
        %v2346 = vpop.f32.mrf.mxu0
        %v2347 = vadd.f32 0.0, %v2346
        %v2348 = vpop.f32.mrf.mxu0
        %v2349 = vpop.f32.mrf.mxu0
        %v2350 = vadd.f32 0.0, %v2349
        %v2351 = vpop.f32.mrf.mxu0
        %2352 = vmatprep.mubr.bf16.mxu0 0
        %2353 = vmatmul.mubr.bf16.gmra.mxu0 %v2212
        %v2354 = vpop.f32.mrf.mxu0
        %v2355 = vadd.f32 0.0, %v2354
        %v2356 = vpop.f32.mrf.mxu0
        %v2357 = vpop.f32.mrf.mxu0
        %v2358 = vadd.f32 0.0, %v2357
        %v2359 = vpop.f32.mrf.mxu0
        %2360 = vmatprep.mubr.bf16.mxu0 0
        %2361 = vmatmul.mubr.bf16.gmra.mxu0 %v2213
        %v2362 = vpop.f32.mrf.mxu0
        %v2363 = vadd.f32 0.0, %v2362
        %v2364 = vpop.f32.mrf.mxu0
        %v2365 = vpop.f32.mrf.mxu0
        %v2366 = vadd.f32 0.0, %v2365
        %v2367 = vpop.f32.mrf.mxu0
        %2368 = vmatprep.mubr.bf16.mxu0 0
        %2369 = vmatmul.mubr.bf16.gmra.mxu0 %v2214
        %v2370 = vpop.f32.mrf.mxu0
        %v2371 = vadd.f32 0.0, %v2370
        %v2372 = vpop.f32.mrf.mxu0
        %v2373 = vpop.f32.mrf.mxu0
        %v2374 = vadd.f32 0.0, %v2373
        %v2375 = vpop.f32.mrf.mxu0
        %2376 = vmatprep.mubr.bf16.mxu0 0
        %2377 = vmatmul.mubr.bf16.gmra.mxu0 %v2215
        %v2378 = vpop.f32.mrf.mxu0
        %v2379 = vadd.f32 0.0, %v2378
        %v2380 = vpop.f32.mrf.mxu0
        %v2381 = vpop.f32.mrf.mxu0
        %v2382 = vadd.f32 0.0, %v2381
        %v2383 = vpop.f32.mrf.mxu0
        %2384 = vmatprep.mubr.bf16.mxu0 0
        %2385 = vmatmul.mubr.bf16.gmra.mxu0 %v2216
        %v2386 = vpop.f32.mrf.mxu0
        %v2387 = vadd.f32 0.0, %v2386
        %v2388 = vpop.f32.mrf.mxu0
        %v2389 = vpop.f32.mrf.mxu0
        %v2390 = vadd.f32 0.0, %v2389
        %v2391 = vpop.f32.mrf.mxu0
        %2392 = vmatprep.mubr.bf16.mxu0 0
        %2393 = vmatmul.mubr.bf16.gmra.mxu0 %v2217
        %v2394 = vpop.f32.mrf.mxu0
        %v2395 = vadd.f32 0.0, %v2394
        %v2396 = vpop.f32.mrf.mxu0
        %v2397 = vpop.f32.mrf.mxu0
        %v2398 = vadd.f32 0.0, %v2397
        %v2399 = vpop.f32.mrf.mxu0
        %2400 = vmatprep.mubr.bf16.mxu0 0
        %2401 = vmatmul.mubr.bf16.gmra.mxu0 %v2218
        %v2402 = vpop.f32.mrf.mxu0
        %v2403 = vadd.f32 0.0, %v2402
        %v2404 = vpop.f32.mrf.mxu0
        %v2405 = vpop.f32.mrf.mxu0
        %v2406 = vadd.f32 0.0, %v2405
        %v2407 = vpop.f32.mrf.mxu0
        %2408 = vmatprep.mubr.bf16.mxu0 0
        %2409 = vmatmul.mubr.bf16.gmra.mxu0 %v2219
        %v2410 = vpop.f32.mrf.mxu0
        %v2411 = vadd.f32 0.0, %v2410
        %v2412 = vpop.f32.mrf.mxu0
        %v2413 = vpop.f32.mrf.mxu0
        %v2414 = vadd.f32 0.0, %v2413
        %v2415 = vpop.f32.mrf.mxu0
        %2416 = vmatprep.mubr.bf16.mxu0 0
        %2417 = vmatmul.mubr.bf16.gmra.mxu0 %v2220
        %v2418 = vpop.f32.mrf.mxu0
        %v2419 = vadd.f32 0.0, %v2418
        %v2420 = vpop.f32.mrf.mxu0
        %v2421 = vpop.f32.mrf.mxu0
        %v2422 = vadd.f32 0.0, %v2421
        %v2423 = vpop.f32.mrf.mxu0
        %2424 = vmatprep.mubr.bf16.mxu0 0
        %2425 = vmatmul.mubr.bf16.gmra.mxu0 %v2221
        %v2426 = vpop.f32.mrf.mxu0
        %v2427 = vadd.f32 0.0, %v2426
        %v2428 = vpop.f32.mrf.mxu0
        %v2429 = vpop.f32.mrf.mxu0
        %v2430 = vadd.f32 0.0, %v2429
        %v2431 = vpop.f32.mrf.mxu0
        %2432 = vmatprep.mubr.bf16.mxu0 0
        %2433 = vmatmul.mubr.bf16.gmra.mxu0 %v2222
        %v2434 = vpop.f32.mrf.mxu0
        %v2435 = vadd.f32 0.0, %v2434
        %v2436 = vpop.f32.mrf.mxu0
        %v2437 = vpop.f32.mrf.mxu0
        %v2438 = vadd.f32 0.0, %v2437
        %v2439 = vpop.f32.mrf.mxu0
        %2440 = vmatprep.mubr.bf16.mxu0 0
        %2441 = vmatmul.mubr.bf16.gmra.mxu0 %v2223
        %v2442 = vpop.f32.mrf.mxu0
        %v2443 = vadd.f32 0.0, %v2442
        %v2444 = vpop.f32.mrf.mxu0
        %v2445 = vpop.f32.mrf.mxu0
        %v2446 = vadd.f32 0.0, %v2445
        %v2447 = vpop.f32.mrf.mxu0
        %2448 = vdwg.mxu0
        %v2449 = vadd.f32 %v1870, %v2323
        %v2450 = vadd.f32 %v1873, %v2326
        %v2451 = vadd.f32 %v1878, %v2331
        %v2452 = vadd.f32 %v1881, %v2334
        %v2453 = vadd.f32 %v1886, %v2339
        %v2454 = vadd.f32 %v1889, %v2342
        %v2455 = vadd.f32 %v1894, %v2347
        %v2456 = vadd.f32 %v1897, %v2350
        %v2457 = vadd.f32 %v1902, %v2355
        %v2458 = vadd.f32 %v1905, %v2358
        %v2459 = vadd.f32 %v1910, %v2363
        %v2460 = vadd.f32 %v1913, %v2366
        %v2461 = vadd.f32 %v1918, %v2371
        %v2462 = vadd.f32 %v1921, %v2374
        %v2463 = vadd.f32 %v1926, %v2379
        %v2464 = vadd.f32 %v1929, %v2382
        %v2465 = vadd.f32 %v1934, %v2387
        %v2466 = vadd.f32 %v1937, %v2390
        %v2467 = vadd.f32 %v1942, %v2395
        %v2468 = vadd.f32 %v1945, %v2398
        %v2469 = vadd.f32 %v1950, %v2403
        %v2470 = vadd.f32 %v1953, %v2406
        %v2471 = vadd.f32 %v1958, %v2411
        %v2472 = vadd.f32 %v1961, %v2414
        %v2473 = vadd.f32 %v1966, %v2419
        %v2474 = vadd.f32 %v1969, %v2422
        %v2475 = vadd.f32 %v1974, %v2427
        %v2476 = vadd.f32 %v1977, %v2430
        %v2477 = vadd.f32 %v1982, %v2435
        %v2478 = vadd.f32 %v1985, %v2438
        %v2479 = vadd.f32 %v1990, %v2443
        %v2480 = vadd.f32 %v1993, %v2446
        %v2481 = vld [vmem:[%s832] sm:$0xf]
        %v2482 = vld [vmem:[%s832 + $0x4] sm:$0xf]
        %v2483 = vld [vmem:[%s832 + $0xc] sm:$0xf]
        %v2484 = vld [vmem:[%s832 + $0x10] sm:$0xf]
        %v2485 = vld [vmem:[%s832 + $0x18] sm:$0xf]
        %v2486 = vld [vmem:[%s832 + $0x1c] sm:$0xf]
        %v2487 = vld [vmem:[%s832 + $0x24] sm:$0xf]
        %v2488 = vld [vmem:[%s832 + $0x28] sm:$0xf]
        %v2489 = vld [vmem:[%s832 + $0x30] sm:$0xf]
        %v2490 = vld [vmem:[%s832 + $0x34] sm:$0xf]
        %v2491 = vld [vmem:[%s832 + $0x3c] sm:$0xf]
        %v2492 = vld [vmem:[%s832 + $0x40] sm:$0xf]
        %v2493 = vld [vmem:[%s832 + $0x48] sm:$0xf]
        %v2494 = vld [vmem:[%s832 + $0x4c] sm:$0xf]
        %v2495 = vld [vmem:[%s832 + $0x54] sm:$0xf]
        %v2496 = vld [vmem:[%s832 + $0x58] sm:$0xf]
        %v2497 = vld [vmem:[%s832 + $0x60] sm:$0xf]
        %v2498 = vld [vmem:[%s832 + $0x64] sm:$0xf]
        %v2499 = vld [vmem:[%s832 + $0x6c] sm:$0xf]
        %v2500 = vld [vmem:[%s832 + $0x70] sm:$0xf]
        %v2501 = vld [vmem:[%s832 + $0x78] sm:$0xf]
        %v2502 = vld [vmem:[%s832 + $0x7c] sm:$0xf]
        %v2503 = vld [vmem:[%s832 + $0x84] sm:$0xf]
        %v2504 = vld [vmem:[%s832 + $0x88] sm:$0xf]
        %v2505 = vld [vmem:[%s832 + $0x90] sm:$0xf]
        %v2506 = vld [vmem:[%s832 + $0x94] sm:$0xf]
        %v2507 = vld [vmem:[%s832 + $0x9c] sm:$0xf]
        %v2508 = vld [vmem:[%s832 + $0xa0] sm:$0xf]
        %v2509 = vld [vmem:[%s832 + $0xa8] sm:$0xf]
        %v2510 = vld [vmem:[%s832 + $0xac] sm:$0xf]
        %v2511 = vld [vmem:[%s832 + $0xb4] sm:$0xf]
        %v2512 = vld [vmem:[%s832 + $0xb8] sm:$0xf]
        %s2513 = scalar_lea.vmem [#allocation7], 192
        %v2514 = vld [vmem:[%s2513] sm:$0xf]
        %v2515 = vld [vmem:[%s2513 + $0x4] sm:$0xf]
        %v2516 = vld [vmem:[%s2513 + $0x8] sm:$0xf]
        %v2517 = vld [vmem:[%s2513 + $0xc] sm:$0xf]
        %v2518 = vld [vmem:[%s2513 + $0x10] sm:$0xf]
        %v2519 = vld [vmem:[%s2513 + $0x14] sm:$0xf]
        %v2520 = vld [vmem:[%s2513 + $0x18] sm:$0xf]
        %v2521 = vld [vmem:[%s2513 + $0x1c] sm:$0xf]
        %v2522 = vld [vmem:[%s2513 + $0x20] sm:$0xf]
        %v2523 = vld [vmem:[%s2513 + $0x24] sm:$0xf]
        %v2524 = vld [vmem:[%s2513 + $0x28] sm:$0xf]
        %v2525 = vld [vmem:[%s2513 + $0x2c] sm:$0xf]
        %v2526 = vld [vmem:[%s2513 + $0x30] sm:$0xf]
        %v2527 = vld [vmem:[%s2513 + $0x34] sm:$0xf]
        %v2528 = vld [vmem:[%s2513 + $0x38] sm:$0xf]
        %v2529 = vld [vmem:[%s2513 + $0x3c] sm:$0xf]
        %v2562 = vunpack.c.l.b16 %v2481
        %v2563 = vunpack.c.l.b16 %v2482
        %v2564 = vunpack.c.l.b16 %v2483
        %v2565 = vunpack.c.l.b16 %v2484
        %v2566 = vunpack.c.l.b16 %v2485
        %v2567 = vunpack.c.l.b16 %v2486
        %v2568 = vunpack.c.l.b16 %v2487
        %v2569 = vunpack.c.l.b16 %v2488
        %v2570 = vunpack.c.l.b16 %v2489
        %v2571 = vunpack.c.l.b16 %v2490
        %v2572 = vunpack.c.l.b16 %v2491
        %v2573 = vunpack.c.l.b16 %v2492
        %v2574 = vunpack.c.l.b16 %v2493
        %v2575 = vunpack.c.l.b16 %v2494
        %v2576 = vunpack.c.l.b16 %v2495
        %v2577 = vunpack.c.l.b16 %v2496
        %v2578 = vunpack.c.l.b16 %v2497
        %v2579 = vunpack.c.l.b16 %v2498
        %v2580 = vunpack.c.l.b16 %v2499
        %v2581 = vunpack.c.l.b16 %v2500
        %v2582 = vunpack.c.l.b16 %v2501
        %v2583 = vunpack.c.l.b16 %v2502
        %v2584 = vunpack.c.l.b16 %v2503
        %v2585 = vunpack.c.l.b16 %v2504
        %v2586 = vunpack.c.l.b16 %v2505
        %v2587 = vunpack.c.l.b16 %v2506
        %v2588 = vunpack.c.l.b16 %v2507
        %v2589 = vunpack.c.l.b16 %v2508
        %v2590 = vunpack.c.l.b16 %v2509
        %v2591 = vunpack.c.l.b16 %v2510
        %v2592 = vunpack.c.l.b16 %v2511
        %v2593 = vunpack.c.l.b16 %v2512
        %v2594 = vpack.c.b16 %v2563, %v2562
        %v2595 = vpack.c.b16 %v2565, %v2564
        %v2596 = vpack.c.b16 %v2567, %v2566
        %v2597 = vpack.c.b16 %v2569, %v2568
        %v2598 = vpack.c.b16 %v2571, %v2570
        %v2599 = vpack.c.b16 %v2573, %v2572
        %v2600 = vpack.c.b16 %v2575, %v2574
        %v2601 = vpack.c.b16 %v2577, %v2576
        %v2602 = vpack.c.b16 %v2579, %v2578
        %v2603 = vpack.c.b16 %v2581, %v2580
        %v2604 = vpack.c.b16 %v2583, %v2582
        %v2605 = vpack.c.b16 %v2585, %v2584
        %v2606 = vpack.c.b16 %v2587, %v2586
        %v2607 = vpack.c.b16 %v2589, %v2588
        %v2608 = vpack.c.b16 %v2591, %v2590
        %v2609 = vpack.c.b16 %v2593, %v2592
        %v2642 = vunpack.c.l.b16 %v2514
        %v2643 = vunpack.c.l.b16 %v2515
        %v2644 = vunpack.c.l.b16 %v2516
        %v2645 = vunpack.c.l.b16 %v2517
        %v2646 = vunpack.c.l.b16 %v2518
        %v2647 = vunpack.c.l.b16 %v2519
        %v2648 = vunpack.c.l.b16 %v2520
        %v2649 = vunpack.c.l.b16 %v2521
        %v2650 = vunpack.c.l.b16 %v2522
        %v2651 = vunpack.c.l.b16 %v2523
        %v2652 = vunpack.c.l.b16 %v2524
        %v2653 = vunpack.c.l.b16 %v2525
        %v2654 = vunpack.c.l.b16 %v2526
        %v2655 = vunpack.c.l.b16 %v2527
        %v2656 = vunpack.c.l.b16 %v2528
        %v2657 = vunpack.c.l.b16 %v2529
        %v2658 = vpack.c.b16 %v2643, %v2642
        %v2659 = vpack.c.b16 %v2645, %v2644
        %v2660 = vpack.c.b16 %v2647, %v2646
        %v2661 = vpack.c.b16 %v2649, %v2648
        %v2662 = vpack.c.b16 %v2651, %v2650
        %v2663 = vpack.c.b16 %v2653, %v2652
        %v2664 = vpack.c.b16 %v2655, %v2654
        %v2665 = vpack.c.b16 %v2657, %v2656
        %2674 = vmatprep.subr.bf16.mxu0 0
        %2675 = vmatpush1.bf16.msra.mxu0 %v2665
        %2676 = vmatprep.subr.bf16.mxu0 0
        %2677 = vmatpush1.bf16.msra.mxu0 %v2664
        %2678 = vmatprep.subr.bf16.mxu0 0
        %2679 = vmatpush1.bf16.msra.mxu0 %v2663
        %2680 = vmatprep.subr.bf16.mxu0 0
        %2681 = vmatpush1.bf16.msra.mxu0 %v2662
        %2682 = vmatprep.subr.bf16.mxu0 0
        %2683 = vmatpush1.bf16.msra.mxu0 %v2661
        %2684 = vmatprep.subr.bf16.mxu0 0
        %2685 = vmatpush1.bf16.msra.mxu0 %v2660
        %2686 = vmatprep.subr.bf16.mxu0 0
        %2687 = vmatpush1.bf16.msra.mxu0 %v2659
        %2688 = vmatprep.subr.bf16.mxu0 0
        %2689 = vmatpush1.bf16.msra.mxu0 %v2658
        %2690 = vmatprep.subr.bf16.mxu0 0
        %2691 = vmatpush2.bf16.msra.mxu0 0
        %2692 = vmatprep.subr.bf16.mxu0 0
        %2693 = vmatpush2.bf16.msra.mxu0 0
        %2694 = vmatprep.subr.bf16.mxu0 0
        %2695 = vmatpush2.bf16.msra.mxu0 0
        %2696 = vmatprep.subr.bf16.mxu0 0
        %2697 = vmatpush2.bf16.msra.mxu0 0
        %2698 = vmatprep.subr.bf16.mxu0 0
        %2699 = vmatpush2.bf16.msra.mxu0 0
        %2700 = vmatprep.subr.bf16.mxu0 0
        %2701 = vmatpush2.bf16.msra.mxu0 0
        %2702 = vmatprep.subr.bf16.mxu0 0
        %2703 = vmatpush2.bf16.msra.mxu0 0
        %2704 = vmatprep.subr.bf16.mxu0 0
        %2705 = vmatpush2.bf16.msra.mxu0 0
        %2706 = vmatprep.mubr.bf16.mxu0 0
        %2707 = vmatmul.mubr.bf16.gmra.mxu0 %v2594
        %v2708 = vpop.f32.mrf.mxu0
        %v2709 = vadd.f32 0.0, %v2708
        %v2710 = vpop.f32.mrf.mxu0
        %v2711 = vpop.f32.mrf.mxu0
        %v2712 = vadd.f32 0.0, %v2711
        %v2713 = vpop.f32.mrf.mxu0
        %2714 = vmatprep.mubr.bf16.mxu0 0
        %2715 = vmatmul.mubr.bf16.gmra.mxu0 %v2595
        %v2716 = vpop.f32.mrf.mxu0
        %v2717 = vadd.f32 0.0, %v2716
        %v2718 = vpop.f32.mrf.mxu0
        %v2719 = vpop.f32.mrf.mxu0
        %v2720 = vadd.f32 0.0, %v2719
        %v2721 = vpop.f32.mrf.mxu0
        %2722 = vmatprep.mubr.bf16.mxu0 0
        %2723 = vmatmul.mubr.bf16.gmra.mxu0 %v2596
        %v2724 = vpop.f32.mrf.mxu0
        %v2725 = vadd.f32 0.0, %v2724
        %v2726 = vpop.f32.mrf.mxu0
        %v2727 = vpop.f32.mrf.mxu0
        %v2728 = vadd.f32 0.0, %v2727
        %v2729 = vpop.f32.mrf.mxu0
        %2730 = vmatprep.mubr.bf16.mxu0 0
        %2731 = vmatmul.mubr.bf16.gmra.mxu0 %v2597
        %v2732 = vpop.f32.mrf.mxu0
        %v2733 = vadd.f32 0.0, %v2732
        %v2734 = vpop.f32.mrf.mxu0
        %v2735 = vpop.f32.mrf.mxu0
        %v2736 = vadd.f32 0.0, %v2735
        %v2737 = vpop.f32.mrf.mxu0
        %2738 = vmatprep.mubr.bf16.mxu0 0
        %2739 = vmatmul.mubr.bf16.gmra.mxu0 %v2598
        %v2740 = vpop.f32.mrf.mxu0
        %v2741 = vadd.f32 0.0, %v2740
        %v2742 = vpop.f32.mrf.mxu0
        %v2743 = vpop.f32.mrf.mxu0
        %v2744 = vadd.f32 0.0, %v2743
        %v2745 = vpop.f32.mrf.mxu0
        %2746 = vmatprep.mubr.bf16.mxu0 0
        %2747 = vmatmul.mubr.bf16.gmra.mxu0 %v2599
        %v2748 = vpop.f32.mrf.mxu0
        %v2749 = vadd.f32 0.0, %v2748
        %v2750 = vpop.f32.mrf.mxu0
        %v2751 = vpop.f32.mrf.mxu0
        %v2752 = vadd.f32 0.0, %v2751
        %v2753 = vpop.f32.mrf.mxu0
        %2754 = vmatprep.mubr.bf16.mxu0 0
        %2755 = vmatmul.mubr.bf16.gmra.mxu0 %v2600
        %v2756 = vpop.f32.mrf.mxu0
        %v2757 = vadd.f32 0.0, %v2756
        %v2758 = vpop.f32.mrf.mxu0
        %v2759 = vpop.f32.mrf.mxu0
        %v2760 = vadd.f32 0.0, %v2759
        %v2761 = vpop.f32.mrf.mxu0
        %2762 = vmatprep.mubr.bf16.mxu0 0
        %2763 = vmatmul.mubr.bf16.gmra.mxu0 %v2601
        %v2764 = vpop.f32.mrf.mxu0
        %v2765 = vadd.f32 0.0, %v2764
        %v2766 = vpop.f32.mrf.mxu0
        %v2767 = vpop.f32.mrf.mxu0
        %v2768 = vadd.f32 0.0, %v2767
        %v2769 = vpop.f32.mrf.mxu0
        %2770 = vmatprep.mubr.bf16.mxu0 0
        %2771 = vmatmul.mubr.bf16.gmra.mxu0 %v2602
        %v2772 = vpop.f32.mrf.mxu0
        %v2773 = vadd.f32 0.0, %v2772
        %v2774 = vpop.f32.mrf.mxu0
        %v2775 = vpop.f32.mrf.mxu0
        %v2776 = vadd.f32 0.0, %v2775
        %v2777 = vpop.f32.mrf.mxu0
        %2778 = vmatprep.mubr.bf16.mxu0 0
        %2779 = vmatmul.mubr.bf16.gmra.mxu0 %v2603
        %v2780 = vpop.f32.mrf.mxu0
        %v2781 = vadd.f32 0.0, %v2780
        %v2782 = vpop.f32.mrf.mxu0
        %v2783 = vpop.f32.mrf.mxu0
        %v2784 = vadd.f32 0.0, %v2783
        %v2785 = vpop.f32.mrf.mxu0
        %2786 = vmatprep.mubr.bf16.mxu0 0
        %2787 = vmatmul.mubr.bf16.gmra.mxu0 %v2604
        %v2788 = vpop.f32.mrf.mxu0
        %v2789 = vadd.f32 0.0, %v2788
        %v2790 = vpop.f32.mrf.mxu0
        %v2791 = vpop.f32.mrf.mxu0
        %v2792 = vadd.f32 0.0, %v2791
        %v2793 = vpop.f32.mrf.mxu0
        %2794 = vmatprep.mubr.bf16.mxu0 0
        %2795 = vmatmul.mubr.bf16.gmra.mxu0 %v2605
        %v2796 = vpop.f32.mrf.mxu0
        %v2797 = vadd.f32 0.0, %v2796
        %v2798 = vpop.f32.mrf.mxu0
        %v2799 = vpop.f32.mrf.mxu0
        %v2800 = vadd.f32 0.0, %v2799
        %v2801 = vpop.f32.mrf.mxu0
        %2802 = vmatprep.mubr.bf16.mxu0 0
        %2803 = vmatmul.mubr.bf16.gmra.mxu0 %v2606
        %v2804 = vpop.f32.mrf.mxu0
        %v2805 = vadd.f32 0.0, %v2804
        %v2806 = vpop.f32.mrf.mxu0
        %v2807 = vpop.f32.mrf.mxu0
        %v2808 = vadd.f32 0.0, %v2807
        %v2809 = vpop.f32.mrf.mxu0
        %2810 = vmatprep.mubr.bf16.mxu0 0
        %2811 = vmatmul.mubr.bf16.gmra.mxu0 %v2607
        %v2812 = vpop.f32.mrf.mxu0
        %v2813 = vadd.f32 0.0, %v2812
        %v2814 = vpop.f32.mrf.mxu0
        %v2815 = vpop.f32.mrf.mxu0
        %v2816 = vadd.f32 0.0, %v2815
        %v2817 = vpop.f32.mrf.mxu0
        %2818 = vmatprep.mubr.bf16.mxu0 0
        %2819 = vmatmul.mubr.bf16.gmra.mxu0 %v2608
        %v2820 = vpop.f32.mrf.mxu0
        %v2821 = vadd.f32 0.0, %v2820
        %v2822 = vpop.f32.mrf.mxu0
        %v2823 = vpop.f32.mrf.mxu0
        %v2824 = vadd.f32 0.0, %v2823
        %v2825 = vpop.f32.mrf.mxu0
        %2826 = vmatprep.mubr.bf16.mxu0 0
        %2827 = vmatmul.mubr.bf16.gmra.mxu0 %v2609
        %v2828 = vpop.f32.mrf.mxu0
        %v2829 = vadd.f32 0.0, %v2828
        %v2830 = vpop.f32.mrf.mxu0
        %v2831 = vpop.f32.mrf.mxu0
        %v2832 = vadd.f32 0.0, %v2831
        %v2833 = vpop.f32.mrf.mxu0
        %2834 = vdwg.mxu0
        %v2835 = vadd.f32 %v2449, %v2709
        %v2836 = vadd.f32 %v2450, %v2712
        %v2837 = vadd.f32 %v2451, %v2717
        %v2838 = vadd.f32 %v2452, %v2720
        %v2839 = vadd.f32 %v2453, %v2725
        %v2840 = vadd.f32 %v2454, %v2728
        %v2841 = vadd.f32 %v2455, %v2733
        %v2842 = vadd.f32 %v2456, %v2736
        %v2843 = vadd.f32 %v2457, %v2741
        %v2844 = vadd.f32 %v2458, %v2744
        %v2845 = vadd.f32 %v2459, %v2749
        %v2846 = vadd.f32 %v2460, %v2752
        %v2847 = vadd.f32 %v2461, %v2757
        %v2848 = vadd.f32 %v2462, %v2760
        %v2849 = vadd.f32 %v2463, %v2765
        %v2850 = vadd.f32 %v2464, %v2768
        %v2851 = vadd.f32 %v2465, %v2773
        %v2852 = vadd.f32 %v2466, %v2776
        %v2853 = vadd.f32 %v2467, %v2781
        %v2854 = vadd.f32 %v2468, %v2784
        %v2855 = vadd.f32 %v2469, %v2789
        %v2856 = vadd.f32 %v2470, %v2792
        %v2857 = vadd.f32 %v2471, %v2797
        %v2858 = vadd.f32 %v2472, %v2800
        %v2859 = vadd.f32 %v2473, %v2805
        %v2860 = vadd.f32 %v2474, %v2808
        %v2861 = vadd.f32 %v2475, %v2813
        %v2862 = vadd.f32 %v2476, %v2816
        %v2863 = vadd.f32 %v2477, %v2821
        %v2864 = vadd.f32 %v2478, %v2824
        %v2865 = vadd.f32 %v2479, %v2829
        %v2866 = vadd.f32 %v2480, %v2832
        %v2867 = vld [vmem:[%s832] sm:$0xf]
        %v2868 = vld [vmem:[%s832 + $0x4] sm:$0xf]
        %v2869 = vld [vmem:[%s832 + $0x8] sm:$0x1]
        %v2870 = vld [vmem:[%s832 + $0xc] sm:$0xf]
        %v2871 = vld [vmem:[%s832 + $0x10] sm:$0xf]
        %v2872 = vld [vmem:[%s832 + $0x14] sm:$0x1]
        %v2873 = vld [vmem:[%s832 + $0x18] sm:$0xf]
        %v2874 = vld [vmem:[%s832 + $0x1c] sm:$0xf]
        %v2875 = vld [vmem:[%s832 + $0x20] sm:$0x1]
        %v2876 = vld [vmem:[%s832 + $0x24] sm:$0xf]
        %v2877 = vld [vmem:[%s832 + $0x28] sm:$0xf]
        %v2878 = vld [vmem:[%s832 + $0x2c] sm:$0x1]
        %v2879 = vld [vmem:[%s832 + $0x30] sm:$0xf]
        %v2880 = vld [vmem:[%s832 + $0x34] sm:$0xf]
        %v2881 = vld [vmem:[%s832 + $0x38] sm:$0x1]
        %v2882 = vld [vmem:[%s832 + $0x3c] sm:$0xf]
        %v2883 = vld [vmem:[%s832 + $0x40] sm:$0xf]
        %v2884 = vld [vmem:[%s832 + $0x44] sm:$0x1]
        %v2885 = vld [vmem:[%s832 + $0x48] sm:$0xf]
        %v2886 = vld [vmem:[%s832 + $0x4c] sm:$0xf]
        %v2887 = vld [vmem:[%s832 + $0x50] sm:$0x1]
        %v2888 = vld [vmem:[%s832 + $0x54] sm:$0xf]
        %v2889 = vld [vmem:[%s832 + $0x58] sm:$0xf]
        %v2890 = vld [vmem:[%s832 + $0x5c] sm:$0x1]
        %v2891 = vld [vmem:[%s832 + $0x60] sm:$0xf]
        %v2892 = vld [vmem:[%s832 + $0x64] sm:$0xf]
        %v2893 = vld [vmem:[%s832 + $0x68] sm:$0x1]
        %v2894 = vld [vmem:[%s832 + $0x6c] sm:$0xf]
        %v2895 = vld [vmem:[%s832 + $0x70] sm:$0xf]
        %v2896 = vld [vmem:[%s832 + $0x74] sm:$0x1]
        %v2897 = vld [vmem:[%s832 + $0x78] sm:$0xf]
        %v2898 = vld [vmem:[%s832 + $0x7c] sm:$0xf]
        %v2899 = vld [vmem:[%s832 + $0x80] sm:$0x1]
        %v2900 = vld [vmem:[%s832 + $0x84] sm:$0xf]
        %v2901 = vld [vmem:[%s832 + $0x88] sm:$0xf]
        %v2902 = vld [vmem:[%s832 + $0x8c] sm:$0x1]
        %v2903 = vld [vmem:[%s832 + $0x90] sm:$0xf]
        %v2904 = vld [vmem:[%s832 + $0x94] sm:$0xf]
        %v2905 = vld [vmem:[%s832 + $0x98] sm:$0x1]
        %v2906 = vld [vmem:[%s832 + $0x9c] sm:$0xf]
        %v2907 = vld [vmem:[%s832 + $0xa0] sm:$0xf]
        %v2908 = vld [vmem:[%s832 + $0xa4] sm:$0x1]
        %v2909 = vld [vmem:[%s832 + $0xa8] sm:$0xf]
        %v2910 = vld [vmem:[%s832 + $0xac] sm:$0xf]
        %v2911 = vld [vmem:[%s832 + $0xb0] sm:$0x1]
        %v2912 = vld [vmem:[%s832 + $0xb4] sm:$0xf]
        %v2913 = vld [vmem:[%s832 + $0xb8] sm:$0xf]
        %v2914 = vld [vmem:[%s832 + $0xbc] sm:$0x1]
        %v2916 = vshrl.u32 %v2867, 16
        %v2918 = vrot.slane %v2916, 4
        %v2919 = vshll.u32 %v2867, 16
        %v2921 = vrot.slane %v2919, 5
        %v2922 = vor.u32 %v2918, %v2921
        %v2923 = vrot.slane %v2922, 4
        %v2925 = vshll.u32 %v2868, 16
        %v2927 = vrot.slane %v2925, 5
        %v2928 = vsel %vm1016, %v2923, %v2927
        %v2929 = vshrl.u32 %v2868, 16
        %v2931 = vrot.slane %v2929, 4
        %v2932 = vor.u32 %v2931, %v2927
        %v2933 = vrot.slane %v2932, 4
        %v2935 = vshll.u32 %v2869, 16
        %v2937 = vrot.slane %v2935, 5
        %v2938 = vsel %vm1016, %v2933, %v2937
        %v2940 = vshrl.u32 %v2870, 16
        %v2942 = vrot.slane %v2940, 4
        %v2943 = vshll.u32 %v2870, 16
        %v2945 = vrot.slane %v2943, 5
        %v2946 = vor.u32 %v2942, %v2945
        %v2947 = vrot.slane %v2946, 4
        %v2949 = vshll.u32 %v2871, 16
        %v2951 = vrot.slane %v2949, 5
        %v2952 = vsel %vm1016, %v2947, %v2951
        %v2953 = vshrl.u32 %v2871, 16
        %v2955 = vrot.slane %v2953, 4
        %v2956 = vor.u32 %v2955, %v2951
        %v2957 = vrot.slane %v2956, 4
        %v2959 = vshll.u32 %v2872, 16
        %v2961 = vrot.slane %v2959, 5
        %v2962 = vsel %vm1016, %v2957, %v2961
        %v2964 = vshrl.u32 %v2873, 16
        %v2966 = vrot.slane %v2964, 4
        %v2967 = vshll.u32 %v2873, 16
        %v2969 = vrot.slane %v2967, 5
        %v2970 = vor.u32 %v2966, %v2969
        %v2971 = vrot.slane %v2970, 4
        %v2973 = vshll.u32 %v2874, 16
        %v2975 = vrot.slane %v2973, 5
        %v2976 = vsel %vm1016, %v2971, %v2975
        %v2977 = vshrl.u32 %v2874, 16
        %v2979 = vrot.slane %v2977, 4
        %v2980 = vor.u32 %v2979, %v2975
        %v2981 = vrot.slane %v2980, 4
        %v2983 = vshll.u32 %v2875, 16
        %v2985 = vrot.slane %v2983, 5
        %v2986 = vsel %vm1016, %v2981, %v2985
        %v2988 = vshrl.u32 %v2876, 16
        %v2990 = vrot.slane %v2988, 4
        %v2991 = vshll.u32 %v2876, 16
        %v2993 = vrot.slane %v2991, 5
        %v2994 = vor.u32 %v2990, %v2993
        %v2995 = vrot.slane %v2994, 4
        %v2997 = vshll.u32 %v2877, 16
        %v2999 = vrot.slane %v2997, 5
        %v3000 = vsel %vm1016, %v2995, %v2999
        %v3001 = vshrl.u32 %v2877, 16
        %v3003 = vrot.slane %v3001, 4
        %v3004 = vor.u32 %v3003, %v2999
        %v3005 = vrot.slane %v3004, 4
        %v3007 = vshll.u32 %v2878, 16
        %v3009 = vrot.slane %v3007, 5
        %v3010 = vsel %vm1016, %v3005, %v3009
        %v3012 = vshrl.u32 %v2879, 16
        %v3014 = vrot.slane %v3012, 4
        %v3015 = vshll.u32 %v2879, 16
        %v3017 = vrot.slane %v3015, 5
        %v3018 = vor.u32 %v3014, %v3017
        %v3019 = vrot.slane %v3018, 4
        %v3021 = vshll.u32 %v2880, 16
        %v3023 = vrot.slane %v3021, 5
        %v3024 = vsel %vm1016, %v3019, %v3023
        %v3025 = vshrl.u32 %v2880, 16
        %v3027 = vrot.slane %v3025, 4
        %v3028 = vor.u32 %v3027, %v3023
        %v3029 = vrot.slane %v3028, 4
        %v3031 = vshll.u32 %v2881, 16
        %v3033 = vrot.slane %v3031, 5
        %v3034 = vsel %vm1016, %v3029, %v3033
        %v3036 = vshrl.u32 %v2882, 16
        %v3038 = vrot.slane %v3036, 4
        %v3039 = vshll.u32 %v2882, 16
        %v3041 = vrot.slane %v3039, 5
        %v3042 = vor.u32 %v3038, %v3041
        %v3043 = vrot.slane %v3042, 4
        %v3045 = vshll.u32 %v2883, 16
        %v3047 = vrot.slane %v3045, 5
        %v3048 = vsel %vm1016, %v3043, %v3047
        %v3049 = vshrl.u32 %v2883, 16
        %v3051 = vrot.slane %v3049, 4
        %v3052 = vor.u32 %v3051, %v3047
        %v3053 = vrot.slane %v3052, 4
        %v3055 = vshll.u32 %v2884, 16
        %v3057 = vrot.slane %v3055, 5
        %v3058 = vsel %vm1016, %v3053, %v3057
        %v3060 = vshrl.u32 %v2885, 16
        %v3062 = vrot.slane %v3060, 4
        %v3063 = vshll.u32 %v2885, 16
        %v3065 = vrot.slane %v3063, 5
        %v3066 = vor.u32 %v3062, %v3065
        %v3067 = vrot.slane %v3066, 4
        %v3069 = vshll.u32 %v2886, 16
        %v3071 = vrot.slane %v3069, 5
        %v3072 = vsel %vm1016, %v3067, %v3071
        %v3073 = vshrl.u32 %v2886, 16
        %v3075 = vrot.slane %v3073, 4
        %v3076 = vor.u32 %v3075, %v3071
        %v3077 = vrot.slane %v3076, 4
        %v3079 = vshll.u32 %v2887, 16
        %v3081 = vrot.slane %v3079, 5
        %v3082 = vsel %vm1016, %v3077, %v3081
        %v3084 = vshrl.u32 %v2888, 16
        %v3086 = vrot.slane %v3084, 4
        %v3087 = vshll.u32 %v2888, 16
        %v3089 = vrot.slane %v3087, 5
        %v3090 = vor.u32 %v3086, %v3089
        %v3091 = vrot.slane %v3090, 4
        %v3093 = vshll.u32 %v2889, 16
        %v3095 = vrot.slane %v3093, 5
        %v3096 = vsel %vm1016, %v3091, %v3095
        %v3097 = vshrl.u32 %v2889, 16
        %v3099 = vrot.slane %v3097, 4
        %v3100 = vor.u32 %v3099, %v3095
        %v3101 = vrot.slane %v3100, 4
        %v3103 = vshll.u32 %v2890, 16
        %v3105 = vrot.slane %v3103, 5
        %v3106 = vsel %vm1016, %v3101, %v3105
        %v3108 = vshrl.u32 %v2891, 16
        %v3110 = vrot.slane %v3108, 4
        %v3111 = vshll.u32 %v2891, 16
        %v3113 = vrot.slane %v3111, 5
        %v3114 = vor.u32 %v3110, %v3113
        %v3115 = vrot.slane %v3114, 4
        %v3117 = vshll.u32 %v2892, 16
        %v3119 = vrot.slane %v3117, 5
        %v3120 = vsel %vm1016, %v3115, %v3119
        %v3121 = vshrl.u32 %v2892, 16
        %v3123 = vrot.slane %v3121, 4
        %v3124 = vor.u32 %v3123, %v3119
        %v3125 = vrot.slane %v3124, 4
        %v3127 = vshll.u32 %v2893, 16
        %v3129 = vrot.slane %v3127, 5
        %v3130 = vsel %vm1016, %v3125, %v3129
        %v3132 = vshrl.u32 %v2894, 16
        %v3134 = vrot.slane %v3132, 4
        %v3135 = vshll.u32 %v2894, 16
        %v3137 = vrot.slane %v3135, 5
        %v3138 = vor.u32 %v3134, %v3137
        %v3139 = vrot.slane %v3138, 4
        %v3141 = vshll.u32 %v2895, 16
        %v3143 = vrot.slane %v3141, 5
        %v3144 = vsel %vm1016, %v3139, %v3143
        %v3145 = vshrl.u32 %v2895, 16
        %v3147 = vrot.slane %v3145, 4
        %v3148 = vor.u32 %v3147, %v3143
        %v3149 = vrot.slane %v3148, 4
        %v3151 = vshll.u32 %v2896, 16
        %v3153 = vrot.slane %v3151, 5
        %v3154 = vsel %vm1016, %v3149, %v3153
        %v3156 = vshrl.u32 %v2897, 16
        %v3158 = vrot.slane %v3156, 4
        %v3159 = vshll.u32 %v2897, 16
        %v3161 = vrot.slane %v3159, 5
        %v3162 = vor.u32 %v3158, %v3161
        %v3163 = vrot.slane %v3162, 4
        %v3165 = vshll.u32 %v2898, 16
        %v3167 = vrot.slane %v3165, 5
        %v3168 = vsel %vm1016, %v3163, %v3167
        %v3169 = vshrl.u32 %v2898, 16
        %v3171 = vrot.slane %v3169, 4
        %v3172 = vor.u32 %v3171, %v3167
        %v3173 = vrot.slane %v3172, 4
        %v3175 = vshll.u32 %v2899, 16
        %v3177 = vrot.slane %v3175, 5
        %v3178 = vsel %vm1016, %v3173, %v3177
        %v3180 = vshrl.u32 %v2900, 16
        %v3182 = vrot.slane %v3180, 4
        %v3183 = vshll.u32 %v2900, 16
        %v3185 = vrot.slane %v3183, 5
        %v3186 = vor.u32 %v3182, %v3185
        %v3187 = vrot.slane %v3186, 4
        %v3189 = vshll.u32 %v2901, 16
        %v3191 = vrot.slane %v3189, 5
        %v3192 = vsel %vm1016, %v3187, %v3191
        %v3193 = vshrl.u32 %v2901, 16
        %v3195 = vrot.slane %v3193, 4
        %v3196 = vor.u32 %v3195, %v3191
        %v3197 = vrot.slane %v3196, 4
        %v3199 = vshll.u32 %v2902, 16
        %v3201 = vrot.slane %v3199, 5
        %v3202 = vsel %vm1016, %v3197, %v3201
        %v3204 = vshrl.u32 %v2903, 16
        %v3206 = vrot.slane %v3204, 4
        %v3207 = vshll.u32 %v2903, 16
        %v3209 = vrot.slane %v3207, 5
        %v3210 = vor.u32 %v3206, %v3209
        %v3211 = vrot.slane %v3210, 4
        %v3213 = vshll.u32 %v2904, 16
        %v3215 = vrot.slane %v3213, 5
        %v3216 = vsel %vm1016, %v3211, %v3215
        %v3217 = vshrl.u32 %v2904, 16
        %v3219 = vrot.slane %v3217, 4
        %v3220 = vor.u32 %v3219, %v3215
        %v3221 = vrot.slane %v3220, 4
        %v3223 = vshll.u32 %v2905, 16
        %v3225 = vrot.slane %v3223, 5
        %v3226 = vsel %vm1016, %v3221, %v3225
        %v3228 = vshrl.u32 %v2906, 16
        %v3230 = vrot.slane %v3228, 4
        %v3231 = vshll.u32 %v2906, 16
        %v3233 = vrot.slane %v3231, 5
        %v3234 = vor.u32 %v3230, %v3233
        %v3235 = vrot.slane %v3234, 4
        %v3237 = vshll.u32 %v2907, 16
        %v3239 = vrot.slane %v3237, 5
        %v3240 = vsel %vm1016, %v3235, %v3239
        %v3241 = vshrl.u32 %v2907, 16
        %v3243 = vrot.slane %v3241, 4
        %v3244 = vor.u32 %v3243, %v3239
        %v3245 = vrot.slane %v3244, 4
        %v3247 = vshll.u32 %v2908, 16
        %v3249 = vrot.slane %v3247, 5
        %v3250 = vsel %vm1016, %v3245, %v3249
        %v3252 = vshrl.u32 %v2909, 16
        %v3254 = vrot.slane %v3252, 4
        %v3255 = vshll.u32 %v2909, 16
        %v3257 = vrot.slane %v3255, 5
        %v3258 = vor.u32 %v3254, %v3257
        %v3259 = vrot.slane %v3258, 4
        %v3261 = vshll.u32 %v2910, 16
        %v3263 = vrot.slane %v3261, 5
        %v3264 = vsel %vm1016, %v3259, %v3263
        %v3265 = vshrl.u32 %v2910, 16
        %v3267 = vrot.slane %v3265, 4
        %v3268 = vor.u32 %v3267, %v3263
        %v3269 = vrot.slane %v3268, 4
        %v3271 = vshll.u32 %v2911, 16
        %v3273 = vrot.slane %v3271, 5
        %v3274 = vsel %vm1016, %v3269, %v3273
        %v3276 = vshrl.u32 %v2912, 16
        %v3278 = vrot.slane %v3276, 4
        %v3279 = vshll.u32 %v2912, 16
        %v3281 = vrot.slane %v3279, 5
        %v3282 = vor.u32 %v3278, %v3281
        %v3283 = vrot.slane %v3282, 4
        %v3285 = vshll.u32 %v2913, 16
        %v3287 = vrot.slane %v3285, 5
        %v3288 = vsel %vm1016, %v3283, %v3287
        %v3289 = vshrl.u32 %v2913, 16
        %v3291 = vrot.slane %v3289, 4
        %v3292 = vor.u32 %v3291, %v3287
        %v3293 = vrot.slane %v3292, 4
        %v3295 = vshll.u32 %v2914, 16
        %v3297 = vrot.slane %v3295, 5
        %v3298 = vsel %vm1016, %v3293, %v3297
        %s3299 = scalar_lea.vmem [#allocation7], 256
        %v3300 = vld [vmem:[%s3299] sm:$0xf]
        %v3301 = vld [vmem:[%s3299 + $0x4] sm:$0xf]
        %v3302 = vld [vmem:[%s3299 + $0x8] sm:$0xf]
        %v3303 = vld [vmem:[%s3299 + $0xc] sm:$0xf]
        %v3304 = vld [vmem:[%s3299 + $0x10] sm:$0xf]
        %v3305 = vld [vmem:[%s3299 + $0x14] sm:$0xf]
        %v3306 = vld [vmem:[%s3299 + $0x18] sm:$0xf]
        %v3307 = vld [vmem:[%s3299 + $0x1c] sm:$0xf]
        %v3308 = vld [vmem:[%s3299 + $0x20] sm:$0xf]
        %v3309 = vld [vmem:[%s3299 + $0x24] sm:$0xf]
        %v3310 = vld [vmem:[%s3299 + $0x28] sm:$0xf]
        %v3311 = vld [vmem:[%s3299 + $0x2c] sm:$0xf]
        %v3312 = vld [vmem:[%s3299 + $0x30] sm:$0xf]
        %v3313 = vld [vmem:[%s3299 + $0x34] sm:$0xf]
        %v3314 = vld [vmem:[%s3299 + $0x38] sm:$0xf]
        %v3315 = vld [vmem:[%s3299 + $0x3c] sm:$0xf]
        %v3316 = vunpack.c.l.b16 %v2928
        %v3317 = vunpack.c.l.b16 %v2938
        %v3318 = vunpack.c.l.b16 %v2952
        %v3319 = vunpack.c.l.b16 %v2962
        %v3320 = vunpack.c.l.b16 %v2976
        %v3321 = vunpack.c.l.b16 %v2986
        %v3322 = vunpack.c.l.b16 %v3000
        %v3323 = vunpack.c.l.b16 %v3010
        %v3324 = vunpack.c.l.b16 %v3024
        %v3325 = vunpack.c.l.b16 %v3034
        %v3326 = vunpack.c.l.b16 %v3048
        %v3327 = vunpack.c.l.b16 %v3058
        %v3328 = vunpack.c.l.b16 %v3072
        %v3329 = vunpack.c.l.b16 %v3082
        %v3330 = vunpack.c.l.b16 %v3096
        %v3331 = vunpack.c.l.b16 %v3106
        %v3332 = vunpack.c.l.b16 %v3120
        %v3333 = vunpack.c.l.b16 %v3130
        %v3334 = vunpack.c.l.b16 %v3144
        %v3335 = vunpack.c.l.b16 %v3154
        %v3336 = vunpack.c.l.b16 %v3168
        %v3337 = vunpack.c.l.b16 %v3178
        %v3338 = vunpack.c.l.b16 %v3192
        %v3339 = vunpack.c.l.b16 %v3202
        %v3340 = vunpack.c.l.b16 %v3216
        %v3341 = vunpack.c.l.b16 %v3226
        %v3342 = vunpack.c.l.b16 %v3240
        %v3343 = vunpack.c.l.b16 %v3250
        %v3344 = vunpack.c.l.b16 %v3264
        %v3345 = vunpack.c.l.b16 %v3274
        %v3346 = vunpack.c.l.b16 %v3288
        %v3347 = vunpack.c.l.b16 %v3298
        %v3348 = vpack.c.b16 %v3317, %v3316
        %v3349 = vpack.c.b16 %v3319, %v3318
        %v3350 = vpack.c.b16 %v3321, %v3320
        %v3351 = vpack.c.b16 %v3323, %v3322
        %v3352 = vpack.c.b16 %v3325, %v3324
        %v3353 = vpack.c.b16 %v3327, %v3326
        %v3354 = vpack.c.b16 %v3329, %v3328
        %v3355 = vpack.c.b16 %v3331, %v3330
        %v3356 = vpack.c.b16 %v3333, %v3332
        %v3357 = vpack.c.b16 %v3335, %v3334
        %v3358 = vpack.c.b16 %v3337, %v3336
        %v3359 = vpack.c.b16 %v3339, %v3338
        %v3360 = vpack.c.b16 %v3341, %v3340
        %v3361 = vpack.c.b16 %v3343, %v3342
        %v3362 = vpack.c.b16 %v3345, %v3344
        %v3363 = vpack.c.b16 %v3347, %v3346
        %v3396 = vunpack.c.l.b16 %v3300
        %v3397 = vunpack.c.l.b16 %v3301
        %v3398 = vunpack.c.l.b16 %v3302
        %v3399 = vunpack.c.l.b16 %v3303
        %v3400 = vunpack.c.l.b16 %v3304
        %v3401 = vunpack.c.l.b16 %v3305
        %v3402 = vunpack.c.l.b16 %v3306
        %v3403 = vunpack.c.l.b16 %v3307
        %v3404 = vunpack.c.l.b16 %v3308
        %v3405 = vunpack.c.l.b16 %v3309
        %v3406 = vunpack.c.l.b16 %v3310
        %v3407 = vunpack.c.l.b16 %v3311
        %v3408 = vunpack.c.l.b16 %v3312
        %v3409 = vunpack.c.l.b16 %v3313
        %v3410 = vunpack.c.l.b16 %v3314
        %v3411 = vunpack.c.l.b16 %v3315
        %v3412 = vpack.c.b16 %v3397, %v3396
        %v3413 = vpack.c.b16 %v3399, %v3398
        %v3414 = vpack.c.b16 %v3401, %v3400
        %v3415 = vpack.c.b16 %v3403, %v3402
        %v3416 = vpack.c.b16 %v3405, %v3404
        %v3417 = vpack.c.b16 %v3407, %v3406
        %v3418 = vpack.c.b16 %v3409, %v3408
        %v3419 = vpack.c.b16 %v3411, %v3410
        %3428 = vmatprep.subr.bf16.mxu0 0
        %3429 = vmatpush1.bf16.msra.mxu0 %v3419
        %3430 = vmatprep.subr.bf16.mxu0 0
        %3431 = vmatpush1.bf16.msra.mxu0 %v3418
        %3432 = vmatprep.subr.bf16.mxu0 0
        %3433 = vmatpush1.bf16.msra.mxu0 %v3417
        %3434 = vmatprep.subr.bf16.mxu0 0
        %3435 = vmatpush1.bf16.msra.mxu0 %v3416
        %3436 = vmatprep.subr.bf16.mxu0 0
        %3437 = vmatpush1.bf16.msra.mxu0 %v3415
        %3438 = vmatprep.subr.bf16.mxu0 0
        %3439 = vmatpush1.bf16.msra.mxu0 %v3414
        %3440 = vmatprep.subr.bf16.mxu0 0
        %3441 = vmatpush1.bf16.msra.mxu0 %v3413
        %3442 = vmatprep.subr.bf16.mxu0 0
        %3443 = vmatpush1.bf16.msra.mxu0 %v3412
        %3444 = vmatprep.subr.bf16.mxu0 0
        %3445 = vmatpush2.bf16.msra.mxu0 0
        %3446 = vmatprep.subr.bf16.mxu0 0
        %3447 = vmatpush2.bf16.msra.mxu0 0
        %3448 = vmatprep.subr.bf16.mxu0 0
        %3449 = vmatpush2.bf16.msra.mxu0 0
        %3450 = vmatprep.subr.bf16.mxu0 0
        %3451 = vmatpush2.bf16.msra.mxu0 0
        %3452 = vmatprep.subr.bf16.mxu0 0
        %3453 = vmatpush2.bf16.msra.mxu0 0
        %3454 = vmatprep.subr.bf16.mxu0 0
        %3455 = vmatpush2.bf16.msra.mxu0 0
        %3456 = vmatprep.subr.bf16.mxu0 0
        %3457 = vmatpush2.bf16.msra.mxu0 0
        %3458 = vmatprep.subr.bf16.mxu0 0
        %3459 = vmatpush2.bf16.msra.mxu0 0
        %3460 = vmatprep.mubr.bf16.mxu0 0
        %3461 = vmatmul.mubr.bf16.gmra.mxu0 %v3348
        %v3462 = vpop.f32.mrf.mxu0
        %v3463 = vadd.f32 0.0, %v3462
        %v3464 = vpop.f32.mrf.mxu0
        %v3465 = vpop.f32.mrf.mxu0
        %v3466 = vadd.f32 0.0, %v3465
        %v3467 = vpop.f32.mrf.mxu0
        %3468 = vmatprep.mubr.bf16.mxu0 0
        %3469 = vmatmul.mubr.bf16.gmra.mxu0 %v3349
        %v3470 = vpop.f32.mrf.mxu0
        %v3471 = vadd.f32 0.0, %v3470
        %v3472 = vpop.f32.mrf.mxu0
        %v3473 = vpop.f32.mrf.mxu0
        %v3474 = vadd.f32 0.0, %v3473
        %v3475 = vpop.f32.mrf.mxu0
        %3476 = vmatprep.mubr.bf16.mxu0 0
        %3477 = vmatmul.mubr.bf16.gmra.mxu0 %v3350
        %v3478 = vpop.f32.mrf.mxu0
        %v3479 = vadd.f32 0.0, %v3478
        %v3480 = vpop.f32.mrf.mxu0
        %v3481 = vpop.f32.mrf.mxu0
        %v3482 = vadd.f32 0.0, %v3481
        %v3483 = vpop.f32.mrf.mxu0
        %3484 = vmatprep.mubr.bf16.mxu0 0
        %3485 = vmatmul.mubr.bf16.gmra.mxu0 %v3351
        %v3486 = vpop.f32.mrf.mxu0
        %v3487 = vadd.f32 0.0, %v3486
        %v3488 = vpop.f32.mrf.mxu0
        %v3489 = vpop.f32.mrf.mxu0
        %v3490 = vadd.f32 0.0, %v3489
        %v3491 = vpop.f32.mrf.mxu0
        %3492 = vmatprep.mubr.bf16.mxu0 0
        %3493 = vmatmul.mubr.bf16.gmra.mxu0 %v3352
        %v3494 = vpop.f32.mrf.mxu0
        %v3495 = vadd.f32 0.0, %v3494
        %v3496 = vpop.f32.mrf.mxu0
        %v3497 = vpop.f32.mrf.mxu0
        %v3498 = vadd.f32 0.0, %v3497
        %v3499 = vpop.f32.mrf.mxu0
        %3500 = vmatprep.mubr.bf16.mxu0 0
        %3501 = vmatmul.mubr.bf16.gmra.mxu0 %v3353
        %v3502 = vpop.f32.mrf.mxu0
        %v3503 = vadd.f32 0.0, %v3502
        %v3504 = vpop.f32.mrf.mxu0
        %v3505 = vpop.f32.mrf.mxu0
        %v3506 = vadd.f32 0.0, %v3505
        %v3507 = vpop.f32.mrf.mxu0
        %3508 = vmatprep.mubr.bf16.mxu0 0
        %3509 = vmatmul.mubr.bf16.gmra.mxu0 %v3354
        %v3510 = vpop.f32.mrf.mxu0
        %v3511 = vadd.f32 0.0, %v3510
        %v3512 = vpop.f32.mrf.mxu0
        %v3513 = vpop.f32.mrf.mxu0
        %v3514 = vadd.f32 0.0, %v3513
        %v3515 = vpop.f32.mrf.mxu0
        %3516 = vmatprep.mubr.bf16.mxu0 0
        %3517 = vmatmul.mubr.bf16.gmra.mxu0 %v3355
        %v3518 = vpop.f32.mrf.mxu0
        %v3519 = vadd.f32 0.0, %v3518
        %v3520 = vpop.f32.mrf.mxu0
        %v3521 = vpop.f32.mrf.mxu0
        %v3522 = vadd.f32 0.0, %v3521
        %v3523 = vpop.f32.mrf.mxu0
        %3524 = vmatprep.mubr.bf16.mxu0 0
        %3525 = vmatmul.mubr.bf16.gmra.mxu0 %v3356
        %v3526 = vpop.f32.mrf.mxu0
        %v3527 = vadd.f32 0.0, %v3526
        %v3528 = vpop.f32.mrf.mxu0
        %v3529 = vpop.f32.mrf.mxu0
        %v3530 = vadd.f32 0.0, %v3529
        %v3531 = vpop.f32.mrf.mxu0
        %3532 = vmatprep.mubr.bf16.mxu0 0
        %3533 = vmatmul.mubr.bf16.gmra.mxu0 %v3357
        %v3534 = vpop.f32.mrf.mxu0
        %v3535 = vadd.f32 0.0, %v3534
        %v3536 = vpop.f32.mrf.mxu0
        %v3537 = vpop.f32.mrf.mxu0
        %v3538 = vadd.f32 0.0, %v3537
        %v3539 = vpop.f32.mrf.mxu0
        %3540 = vmatprep.mubr.bf16.mxu0 0
        %3541 = vmatmul.mubr.bf16.gmra.mxu0 %v3358
        %v3542 = vpop.f32.mrf.mxu0
        %v3543 = vadd.f32 0.0, %v3542
        %v3544 = vpop.f32.mrf.mxu0
        %v3545 = vpop.f32.mrf.mxu0
        %v3546 = vadd.f32 0.0, %v3545
        %v3547 = vpop.f32.mrf.mxu0
        %3548 = vmatprep.mubr.bf16.mxu0 0
        %3549 = vmatmul.mubr.bf16.gmra.mxu0 %v3359
        %v3550 = vpop.f32.mrf.mxu0
        %v3551 = vadd.f32 0.0, %v3550
        %v3552 = vpop.f32.mrf.mxu0
        %v3553 = vpop.f32.mrf.mxu0
        %v3554 = vadd.f32 0.0, %v3553
        %v3555 = vpop.f32.mrf.mxu0
        %3556 = vmatprep.mubr.bf16.mxu0 0
        %3557 = vmatmul.mubr.bf16.gmra.mxu0 %v3360
        %v3558 = vpop.f32.mrf.mxu0
        %v3559 = vadd.f32 0.0, %v3558
        %v3560 = vpop.f32.mrf.mxu0
        %v3561 = vpop.f32.mrf.mxu0
        %v3562 = vadd.f32 0.0, %v3561
        %v3563 = vpop.f32.mrf.mxu0
        %3564 = vmatprep.mubr.bf16.mxu0 0
        %3565 = vmatmul.mubr.bf16.gmra.mxu0 %v3361
        %v3566 = vpop.f32.mrf.mxu0
        %v3567 = vadd.f32 0.0, %v3566
        %v3568 = vpop.f32.mrf.mxu0
        %v3569 = vpop.f32.mrf.mxu0
        %v3570 = vadd.f32 0.0, %v3569
        %v3571 = vpop.f32.mrf.mxu0
        %3572 = vmatprep.mubr.bf16.mxu0 0
        %3573 = vmatmul.mubr.bf16.gmra.mxu0 %v3362
        %v3574 = vpop.f32.mrf.mxu0
        %v3575 = vadd.f32 0.0, %v3574
        %v3576 = vpop.f32.mrf.mxu0
        %v3577 = vpop.f32.mrf.mxu0
        %v3578 = vadd.f32 0.0, %v3577
        %v3579 = vpop.f32.mrf.mxu0
        %3580 = vmatprep.mubr.bf16.mxu0 0
        %3581 = vmatmul.mubr.bf16.gmra.mxu0 %v3363
        %v3582 = vpop.f32.mrf.mxu0
        %v3583 = vadd.f32 0.0, %v3582
        %v3584 = vpop.f32.mrf.mxu0
        %v3585 = vpop.f32.mrf.mxu0
        %v3586 = vadd.f32 0.0, %v3585
        %v3587 = vpop.f32.mrf.mxu0
        %3588 = vdwg.mxu0
        %v3589 = vadd.f32 %v2835, %v3463
        %v3590 = vadd.f32 %v2836, %v3466
        %v3591 = vadd.f32 %v2837, %v3471
        %v3592 = vadd.f32 %v2838, %v3474
        %v3593 = vadd.f32 %v2839, %v3479
        %v3594 = vadd.f32 %v2840, %v3482
        %v3595 = vadd.f32 %v2841, %v3487
        %v3596 = vadd.f32 %v2842, %v3490
        %v3597 = vadd.f32 %v2843, %v3495
        %v3598 = vadd.f32 %v2844, %v3498
        %v3599 = vadd.f32 %v2845, %v3503
        %v3600 = vadd.f32 %v2846, %v3506
        %v3601 = vadd.f32 %v2847, %v3511
        %v3602 = vadd.f32 %v2848, %v3514
        %v3603 = vadd.f32 %v2849, %v3519
        %v3604 = vadd.f32 %v2850, %v3522
        %v3605 = vadd.f32 %v2851, %v3527
        %v3606 = vadd.f32 %v2852, %v3530
        %v3607 = vadd.f32 %v2853, %v3535
        %v3608 = vadd.f32 %v2854, %v3538
        %v3609 = vadd.f32 %v2855, %v3543
        %v3610 = vadd.f32 %v2856, %v3546
        %v3611 = vadd.f32 %v2857, %v3551
        %v3612 = vadd.f32 %v2858, %v3554
        %v3613 = vadd.f32 %v2859, %v3559
        %v3614 = vadd.f32 %v2860, %v3562
        %v3615 = vadd.f32 %v2861, %v3567
        %v3616 = vadd.f32 %v2862, %v3570
        %v3617 = vadd.f32 %v2863, %v3575
        %v3618 = vadd.f32 %v2864, %v3578
        %v3619 = vadd.f32 %v2865, %v3583
        %v3620 = vadd.f32 %v2866, %v3586
        %v3621 = vld [vmem:[%s832] sm:$0xe]
        %v3622 = vld [vmem:[%s832 + $0xc] sm:$0xe]
        %v3623 = vld [vmem:[%s832 + $0x18] sm:$0xe]
        %v3624 = vld [vmem:[%s832 + $0x24] sm:$0xe]
        %v3625 = vld [vmem:[%s832 + $0x30] sm:$0xe]
        %v3626 = vld [vmem:[%s832 + $0x3c] sm:$0xe]
        %v3627 = vld [vmem:[%s832 + $0x48] sm:$0xe]
        %v3628 = vld [vmem:[%s832 + $0x54] sm:$0xe]
        %v3629 = vld [vmem:[%s832 + $0x60] sm:$0xe]
        %v3630 = vld [vmem:[%s832 + $0x6c] sm:$0xe]
        %v3631 = vld [vmem:[%s832 + $0x78] sm:$0xe]
        %v3632 = vld [vmem:[%s832 + $0x84] sm:$0xe]
        %v3633 = vld [vmem:[%s832 + $0x90] sm:$0xe]
        %v3634 = vld [vmem:[%s832 + $0x9c] sm:$0xe]
        %v3635 = vld [vmem:[%s832 + $0xa8] sm:$0xe]
        %v3636 = vld [vmem:[%s832 + $0xb4] sm:$0xe]
        %v3685 = vrot.slane %v3621, 5
        %v3686 = vrot.slane %v3685, 4
        %v3687 = vrot.slane %v2868, 5
        %v3688 = vsel %vm2046, %v3686, %v3687
        %v3689 = vrot.slane %v3687, 4
        %v3690 = vrot.slane %v2869, 5
        %v3691 = vsel %vm2046, %v3689, %v3690
        %v3692 = vrot.slane %v3622, 5
        %v3693 = vrot.slane %v3692, 4
        %v3694 = vrot.slane %v2871, 5
        %v3695 = vsel %vm2046, %v3693, %v3694
        %v3696 = vrot.slane %v3694, 4
        %v3697 = vrot.slane %v2872, 5
        %v3698 = vsel %vm2046, %v3696, %v3697
        %v3699 = vrot.slane %v3623, 5
        %v3700 = vrot.slane %v3699, 4
        %v3701 = vrot.slane %v2874, 5
        %v3702 = vsel %vm2046, %v3700, %v3701
        %v3703 = vrot.slane %v3701, 4
        %v3704 = vrot.slane %v2875, 5
        %v3705 = vsel %vm2046, %v3703, %v3704
        %v3706 = vrot.slane %v3624, 5
        %v3707 = vrot.slane %v3706, 4
        %v3708 = vrot.slane %v2877, 5
        %v3709 = vsel %vm2046, %v3707, %v3708
        %v3710 = vrot.slane %v3708, 4
        %v3711 = vrot.slane %v2878, 5
        %v3712 = vsel %vm2046, %v3710, %v3711
        %v3713 = vrot.slane %v3625, 5
        %v3714 = vrot.slane %v3713, 4
        %v3715 = vrot.slane %v2880, 5
        %v3716 = vsel %vm2046, %v3714, %v3715
        %v3717 = vrot.slane %v3715, 4
        %v3718 = vrot.slane %v2881, 5
        %v3719 = vsel %vm2046, %v3717, %v3718
        %v3720 = vrot.slane %v3626, 5
        %v3721 = vrot.slane %v3720, 4
        %v3722 = vrot.slane %v2883, 5
        %v3723 = vsel %vm2046, %v3721, %v3722
        %v3724 = vrot.slane %v3722, 4
        %v3725 = vrot.slane %v2884, 5
        %v3726 = vsel %vm2046, %v3724, %v3725
        %v3727 = vrot.slane %v3627, 5
        %v3728 = vrot.slane %v3727, 4
        %v3729 = vrot.slane %v2886, 5
        %v3730 = vsel %vm2046, %v3728, %v3729
        %v3731 = vrot.slane %v3729, 4
        %v3732 = vrot.slane %v2887, 5
        %v3733 = vsel %vm2046, %v3731, %v3732
        %v3734 = vrot.slane %v3628, 5
        %v3735 = vrot.slane %v3734, 4
        %v3736 = vrot.slane %v2889, 5
        %v3737 = vsel %vm2046, %v3735, %v3736
        %v3738 = vrot.slane %v3736, 4
        %v3739 = vrot.slane %v2890, 5
        %v3740 = vsel %vm2046, %v3738, %v3739
        %v3741 = vrot.slane %v3629, 5
        %v3742 = vrot.slane %v3741, 4
        %v3743 = vrot.slane %v2892, 5
        %v3744 = vsel %vm2046, %v3742, %v3743
        %v3745 = vrot.slane %v3743, 4
        %v3746 = vrot.slane %v2893, 5
        %v3747 = vsel %vm2046, %v3745, %v3746
        %v3748 = vrot.slane %v3630, 5
        %v3749 = vrot.slane %v3748, 4
        %v3750 = vrot.slane %v2895, 5
        %v3751 = vsel %vm2046, %v3749, %v3750
        %v3752 = vrot.slane %v3750, 4
        %v3753 = vrot.slane %v2896, 5
        %v3754 = vsel %vm2046, %v3752, %v3753
        %v3755 = vrot.slane %v3631, 5
        %v3756 = vrot.slane %v3755, 4
        %v3757 = vrot.slane %v2898, 5
        %v3758 = vsel %vm2046, %v3756, %v3757
        %v3759 = vrot.slane %v3757, 4
        %v3760 = vrot.slane %v2899, 5
        %v3761 = vsel %vm2046, %v3759, %v3760
        %v3762 = vrot.slane %v3632, 5
        %v3763 = vrot.slane %v3762, 4
        %v3764 = vrot.slane %v2901, 5
        %v3765 = vsel %vm2046, %v3763, %v3764
        %v3766 = vrot.slane %v3764, 4
        %v3767 = vrot.slane %v2902, 5
        %v3768 = vsel %vm2046, %v3766, %v3767
        %v3769 = vrot.slane %v3633, 5
        %v3770 = vrot.slane %v3769, 4
        %v3771 = vrot.slane %v2904, 5
        %v3772 = vsel %vm2046, %v3770, %v3771
        %v3773 = vrot.slane %v3771, 4
        %v3774 = vrot.slane %v2905, 5
        %v3775 = vsel %vm2046, %v3773, %v3774
        %v3776 = vrot.slane %v3634, 5
        %v3777 = vrot.slane %v3776, 4
        %v3778 = vrot.slane %v2907, 5
        %v3779 = vsel %vm2046, %v3777, %v3778
        %v3780 = vrot.slane %v3778, 4
        %v3781 = vrot.slane %v2908, 5
        %v3782 = vsel %vm2046, %v3780, %v3781
        %v3783 = vrot.slane %v3635, 5
        %v3784 = vrot.slane %v3783, 4
        %v3785 = vrot.slane %v2910, 5
        %v3786 = vsel %vm2046, %v3784, %v3785
        %v3787 = vrot.slane %v3785, 4
        %v3788 = vrot.slane %v2911, 5
        %v3789 = vsel %vm2046, %v3787, %v3788
        %v3790 = vrot.slane %v3636, 5
        %v3791 = vrot.slane %v3790, 4
        %v3792 = vrot.slane %v2913, 5
        %v3793 = vsel %vm2046, %v3791, %v3792
        %v3794 = vrot.slane %v3792, 4
        %v3795 = vrot.slane %v2914, 5
        %v3796 = vsel %vm2046, %v3794, %v3795
        %s3797 = scalar_lea.vmem [#allocation7], 320
        %v3798 = vld [vmem:[%s3797] sm:$0xf]
        %v3799 = vld [vmem:[%s3797 + $0x4] sm:$0xf]
        %v3800 = vld [vmem:[%s3797 + $0x8] sm:$0xf]
        %v3801 = vld [vmem:[%s3797 + $0xc] sm:$0xf]
        %v3802 = vld [vmem:[%s3797 + $0x10] sm:$0xf]
        %v3803 = vld [vmem:[%s3797 + $0x14] sm:$0xf]
        %v3804 = vld [vmem:[%s3797 + $0x18] sm:$0xf]
        %v3805 = vld [vmem:[%s3797 + $0x1c] sm:$0xf]
        %v3806 = vld [vmem:[%s3797 + $0x20] sm:$0xf]
        %v3807 = vld [vmem:[%s3797 + $0x24] sm:$0xf]
        %v3808 = vld [vmem:[%s3797 + $0x28] sm:$0xf]
        %v3809 = vld [vmem:[%s3797 + $0x2c] sm:$0xf]
        %v3810 = vld [vmem:[%s3797 + $0x30] sm:$0xf]
        %v3811 = vld [vmem:[%s3797 + $0x34] sm:$0xf]
        %v3812 = vld [vmem:[%s3797 + $0x38] sm:$0xf]
        %v3813 = vld [vmem:[%s3797 + $0x3c] sm:$0xf]
        %v3814 = vunpack.c.l.b16 %v3688
        %v3815 = vunpack.c.l.b16 %v3691
        %v3816 = vunpack.c.l.b16 %v3695
        %v3817 = vunpack.c.l.b16 %v3698
        %v3818 = vunpack.c.l.b16 %v3702
        %v3819 = vunpack.c.l.b16 %v3705
        %v3820 = vunpack.c.l.b16 %v3709
        %v3821 = vunpack.c.l.b16 %v3712
        %v3822 = vunpack.c.l.b16 %v3716
        %v3823 = vunpack.c.l.b16 %v3719
        %v3824 = vunpack.c.l.b16 %v3723
        %v3825 = vunpack.c.l.b16 %v3726
        %v3826 = vunpack.c.l.b16 %v3730
        %v3827 = vunpack.c.l.b16 %v3733
        %v3828 = vunpack.c.l.b16 %v3737
        %v3829 = vunpack.c.l.b16 %v3740
        %v3830 = vunpack.c.l.b16 %v3744
        %v3831 = vunpack.c.l.b16 %v3747
        %v3832 = vunpack.c.l.b16 %v3751
        %v3833 = vunpack.c.l.b16 %v3754
        %v3834 = vunpack.c.l.b16 %v3758
        %v3835 = vunpack.c.l.b16 %v3761
        %v3836 = vunpack.c.l.b16 %v3765
        %v3837 = vunpack.c.l.b16 %v3768
        %v3838 = vunpack.c.l.b16 %v3772
        %v3839 = vunpack.c.l.b16 %v3775
        %v3840 = vunpack.c.l.b16 %v3779
        %v3841 = vunpack.c.l.b16 %v3782
        %v3842 = vunpack.c.l.b16 %v3786
        %v3843 = vunpack.c.l.b16 %v3789
        %v3844 = vunpack.c.l.b16 %v3793
        %v3845 = vunpack.c.l.b16 %v3796
        %v3846 = vpack.c.b16 %v3815, %v3814
        %v3847 = vpack.c.b16 %v3817, %v3816
        %v3848 = vpack.c.b16 %v3819, %v3818
        %v3849 = vpack.c.b16 %v3821, %v3820
        %v3850 = vpack.c.b16 %v3823, %v3822
        %v3851 = vpack.c.b16 %v3825, %v3824
        %v3852 = vpack.c.b16 %v3827, %v3826
        %v3853 = vpack.c.b16 %v3829, %v3828
        %v3854 = vpack.c.b16 %v3831, %v3830
        %v3855 = vpack.c.b16 %v3833, %v3832
        %v3856 = vpack.c.b16 %v3835, %v3834
        %v3857 = vpack.c.b16 %v3837, %v3836
        %v3858 = vpack.c.b16 %v3839, %v3838
        %v3859 = vpack.c.b16 %v3841, %v3840
        %v3860 = vpack.c.b16 %v3843, %v3842
        %v3861 = vpack.c.b16 %v3845, %v3844
        %v3894 = vunpack.c.l.b16 %v3798
        %v3895 = vunpack.c.l.b16 %v3799
        %v3896 = vunpack.c.l.b16 %v3800
        %v3897 = vunpack.c.l.b16 %v3801
        %v3898 = vunpack.c.l.b16 %v3802
        %v3899 = vunpack.c.l.b16 %v3803
        %v3900 = vunpack.c.l.b16 %v3804
        %v3901 = vunpack.c.l.b16 %v3805
        %v3902 = vunpack.c.l.b16 %v3806
        %v3903 = vunpack.c.l.b16 %v3807
        %v3904 = vunpack.c.l.b16 %v3808
        %v3905 = vunpack.c.l.b16 %v3809
        %v3906 = vunpack.c.l.b16 %v3810
        %v3907 = vunpack.c.l.b16 %v3811
        %v3908 = vunpack.c.l.b16 %v3812
        %v3909 = vunpack.c.l.b16 %v3813
        %v3910 = vpack.c.b16 %v3895, %v3894
        %v3911 = vpack.c.b16 %v3897, %v3896
        %v3912 = vpack.c.b16 %v3899, %v3898
        %v3913 = vpack.c.b16 %v3901, %v3900
        %v3914 = vpack.c.b16 %v3903, %v3902
        %v3915 = vpack.c.b16 %v3905, %v3904
        %v3916 = vpack.c.b16 %v3907, %v3906
        %v3917 = vpack.c.b16 %v3909, %v3908
        %3926 = vmatprep.subr.bf16.mxu0 0
        %3927 = vmatpush1.bf16.msra.mxu0 %v3917
        %3928 = vmatprep.subr.bf16.mxu0 0
        %3929 = vmatpush1.bf16.msra.mxu0 %v3916
        %3930 = vmatprep.subr.bf16.mxu0 0
        %3931 = vmatpush1.bf16.msra.mxu0 %v3915
        %3932 = vmatprep.subr.bf16.mxu0 0
        %3933 = vmatpush1.bf16.msra.mxu0 %v3914
        %3934 = vmatprep.subr.bf16.mxu0 0
        %3935 = vmatpush1.bf16.msra.mxu0 %v3913
        %3936 = vmatprep.subr.bf16.mxu0 0
        %3937 = vmatpush1.bf16.msra.mxu0 %v3912
        %3938 = vmatprep.subr.bf16.mxu0 0
        %3939 = vmatpush1.bf16.msra.mxu0 %v3911
        %3940 = vmatprep.subr.bf16.mxu0 0
        %3941 = vmatpush1.bf16.msra.mxu0 %v3910
        %3942 = vmatprep.subr.bf16.mxu0 0
        %3943 = vmatpush2.bf16.msra.mxu0 0
        %3944 = vmatprep.subr.bf16.mxu0 0
        %3945 = vmatpush2.bf16.msra.mxu0 0
        %3946 = vmatprep.subr.bf16.mxu0 0
        %3947 = vmatpush2.bf16.msra.mxu0 0
        %3948 = vmatprep.subr.bf16.mxu0 0
        %3949 = vmatpush2.bf16.msra.mxu0 0
        %3950 = vmatprep.subr.bf16.mxu0 0
        %3951 = vmatpush2.bf16.msra.mxu0 0
        %3952 = vmatprep.subr.bf16.mxu0 0
        %3953 = vmatpush2.bf16.msra.mxu0 0
        %3954 = vmatprep.subr.bf16.mxu0 0
        %3955 = vmatpush2.bf16.msra.mxu0 0
        %3956 = vmatprep.subr.bf16.mxu0 0
        %3957 = vmatpush2.bf16.msra.mxu0 0
        %3958 = vmatprep.mubr.bf16.mxu0 0
        %3959 = vmatmul.mubr.bf16.gmra.mxu0 %v3846
        %v3960 = vpop.f32.mrf.mxu0
        %v3961 = vadd.f32 0.0, %v3960
        %v3962 = vpop.f32.mrf.mxu0
        %v3963 = vpop.f32.mrf.mxu0
        %v3964 = vadd.f32 0.0, %v3963
        %v3965 = vpop.f32.mrf.mxu0
        %3966 = vmatprep.mubr.bf16.mxu0 0
        %3967 = vmatmul.mubr.bf16.gmra.mxu0 %v3847
        %v3968 = vpop.f32.mrf.mxu0
        %v3969 = vadd.f32 0.0, %v3968
        %v3970 = vpop.f32.mrf.mxu0
        %v3971 = vpop.f32.mrf.mxu0
        %v3972 = vadd.f32 0.0, %v3971
        %v3973 = vpop.f32.mrf.mxu0
        %3974 = vmatprep.mubr.bf16.mxu0 0
        %3975 = vmatmul.mubr.bf16.gmra.mxu0 %v3848
        %v3976 = vpop.f32.mrf.mxu0
        %v3977 = vadd.f32 0.0, %v3976
        %v3978 = vpop.f32.mrf.mxu0
        %v3979 = vpop.f32.mrf.mxu0
        %v3980 = vadd.f32 0.0, %v3979
        %v3981 = vpop.f32.mrf.mxu0
        %3982 = vmatprep.mubr.bf16.mxu0 0
        %3983 = vmatmul.mubr.bf16.gmra.mxu0 %v3849
        %v3984 = vpop.f32.mrf.mxu0
        %v3985 = vadd.f32 0.0, %v3984
        %v3986 = vpop.f32.mrf.mxu0
        %v3987 = vpop.f32.mrf.mxu0
        %v3988 = vadd.f32 0.0, %v3987
        %v3989 = vpop.f32.mrf.mxu0
        %3990 = vmatprep.mubr.bf16.mxu0 0
        %3991 = vmatmul.mubr.bf16.gmra.mxu0 %v3850
        %v3992 = vpop.f32.mrf.mxu0
        %v3993 = vadd.f32 0.0, %v3992
        %v3994 = vpop.f32.mrf.mxu0
        %v3995 = vpop.f32.mrf.mxu0
        %v3996 = vadd.f32 0.0, %v3995
        %v3997 = vpop.f32.mrf.mxu0
        %3998 = vmatprep.mubr.bf16.mxu0 0
        %3999 = vmatmul.mubr.bf16.gmra.mxu0 %v3851
        %v4000 = vpop.f32.mrf.mxu0
        %v4001 = vadd.f32 0.0, %v4000
        %v4002 = vpop.f32.mrf.mxu0
        %v4003 = vpop.f32.mrf.mxu0
        %v4004 = vadd.f32 0.0, %v4003
        %v4005 = vpop.f32.mrf.mxu0
        %4006 = vmatprep.mubr.bf16.mxu0 0
        %4007 = vmatmul.mubr.bf16.gmra.mxu0 %v3852
        %v4008 = vpop.f32.mrf.mxu0
        %v4009 = vadd.f32 0.0, %v4008
        %v4010 = vpop.f32.mrf.mxu0
        %v4011 = vpop.f32.mrf.mxu0
        %v4012 = vadd.f32 0.0, %v4011
        %v4013 = vpop.f32.mrf.mxu0
        %4014 = vmatprep.mubr.bf16.mxu0 0
        %4015 = vmatmul.mubr.bf16.gmra.mxu0 %v3853
        %v4016 = vpop.f32.mrf.mxu0
        %v4017 = vadd.f32 0.0, %v4016
        %v4018 = vpop.f32.mrf.mxu0
        %v4019 = vpop.f32.mrf.mxu0
        %v4020 = vadd.f32 0.0, %v4019
        %v4021 = vpop.f32.mrf.mxu0
        %4022 = vmatprep.mubr.bf16.mxu0 0
        %4023 = vmatmul.mubr.bf16.gmra.mxu0 %v3854
        %v4024 = vpop.f32.mrf.mxu0
        %v4025 = vadd.f32 0.0, %v4024
        %v4026 = vpop.f32.mrf.mxu0
        %v4027 = vpop.f32.mrf.mxu0
        %v4028 = vadd.f32 0.0, %v4027
        %v4029 = vpop.f32.mrf.mxu0
        %4030 = vmatprep.mubr.bf16.mxu0 0
        %4031 = vmatmul.mubr.bf16.gmra.mxu0 %v3855
        %v4032 = vpop.f32.mrf.mxu0
        %v4033 = vadd.f32 0.0, %v4032
        %v4034 = vpop.f32.mrf.mxu0
        %v4035 = vpop.f32.mrf.mxu0
        %v4036 = vadd.f32 0.0, %v4035
        %v4037 = vpop.f32.mrf.mxu0
        %4038 = vmatprep.mubr.bf16.mxu0 0
        %4039 = vmatmul.mubr.bf16.gmra.mxu0 %v3856
        %v4040 = vpop.f32.mrf.mxu0
        %v4041 = vadd.f32 0.0, %v4040
        %v4042 = vpop.f32.mrf.mxu0
        %v4043 = vpop.f32.mrf.mxu0
        %v4044 = vadd.f32 0.0, %v4043
        %v4045 = vpop.f32.mrf.mxu0
        %4046 = vmatprep.mubr.bf16.mxu0 0
        %4047 = vmatmul.mubr.bf16.gmra.mxu0 %v3857
        %v4048 = vpop.f32.mrf.mxu0
        %v4049 = vadd.f32 0.0, %v4048
        %v4050 = vpop.f32.mrf.mxu0
        %v4051 = vpop.f32.mrf.mxu0
        %v4052 = vadd.f32 0.0, %v4051
        %v4053 = vpop.f32.mrf.mxu0
        %4054 = vmatprep.mubr.bf16.mxu0 0
        %4055 = vmatmul.mubr.bf16.gmra.mxu0 %v3858
        %v4056 = vpop.f32.mrf.mxu0
        %v4057 = vadd.f32 0.0, %v4056
        %v4058 = vpop.f32.mrf.mxu0
        %v4059 = vpop.f32.mrf.mxu0
        %v4060 = vadd.f32 0.0, %v4059
        %v4061 = vpop.f32.mrf.mxu0
        %4062 = vmatprep.mubr.bf16.mxu0 0
        %4063 = vmatmul.mubr.bf16.gmra.mxu0 %v3859
        %v4064 = vpop.f32.mrf.mxu0
        %v4065 = vadd.f32 0.0, %v4064
        %v4066 = vpop.f32.mrf.mxu0
        %v4067 = vpop.f32.mrf.mxu0
        %v4068 = vadd.f32 0.0, %v4067
        %v4069 = vpop.f32.mrf.mxu0
        %4070 = vmatprep.mubr.bf16.mxu0 0
        %4071 = vmatmul.mubr.bf16.gmra.mxu0 %v3860
        %v4072 = vpop.f32.mrf.mxu0
        %v4073 = vadd.f32 0.0, %v4072
        %v4074 = vpop.f32.mrf.mxu0
        %v4075 = vpop.f32.mrf.mxu0
        %v4076 = vadd.f32 0.0, %v4075
        %v4077 = vpop.f32.mrf.mxu0
        %4078 = vmatprep.mubr.bf16.mxu0 0
        %4079 = vmatmul.mubr.bf16.gmra.mxu0 %v3861
        %v4080 = vpop.f32.mrf.mxu0
        %v4081 = vadd.f32 0.0, %v4080
        %v4082 = vpop.f32.mrf.mxu0
        %v4083 = vpop.f32.mrf.mxu0
        %v4084 = vadd.f32 0.0, %v4083
        %v4085 = vpop.f32.mrf.mxu0
        %4086 = vdwg.mxu0
        %v4087 = vadd.f32 %v3589, %v3961
        %v4088 = vadd.f32 %v3590, %v3964
        %v4089 = vadd.f32 %v3591, %v3969
        %v4090 = vadd.f32 %v3592, %v3972
        %v4091 = vadd.f32 %v3593, %v3977
        %v4092 = vadd.f32 %v3594, %v3980
        %v4093 = vadd.f32 %v3595, %v3985
        %v4094 = vadd.f32 %v3596, %v3988
        %v4095 = vadd.f32 %v3597, %v3993
        %v4096 = vadd.f32 %v3598, %v3996
        %v4097 = vadd.f32 %v3599, %v4001
        %v4098 = vadd.f32 %v3600, %v4004
        %v4099 = vadd.f32 %v3601, %v4009
        %v4100 = vadd.f32 %v3602, %v4012
        %v4101 = vadd.f32 %v3603, %v4017
        %v4102 = vadd.f32 %v3604, %v4020
        %v4103 = vadd.f32 %v3605, %v4025
        %v4104 = vadd.f32 %v3606, %v4028
        %v4105 = vadd.f32 %v3607, %v4033
        %v4106 = vadd.f32 %v3608, %v4036
        %v4107 = vadd.f32 %v3609, %v4041
        %v4108 = vadd.f32 %v3610, %v4044
        %v4109 = vadd.f32 %v3611, %v4049
        %v4110 = vadd.f32 %v3612, %v4052
        %v4111 = vadd.f32 %v3613, %v4057
        %v4112 = vadd.f32 %v3614, %v4060
        %v4113 = vadd.f32 %v3615, %v4065
        %v4114 = vadd.f32 %v3616, %v4068
        %v4115 = vadd.f32 %v3617, %v4073
        %v4116 = vadd.f32 %v3618, %v4076
        %v4117 = vadd.f32 %v3619, %v4081
        %v4118 = vadd.f32 %v3620, %v4084
        %s4119 = scalar_lea.vmem [#allocation2], 24
        %v4120 = vld [vmem:[%s4119] sm:$0xf]
        %v4121 = vld [vmem:[%s4119 + $0x4] sm:$0xf]
        %v4122 = vld [vmem:[%s4119 + $0xc] sm:$0xf]
        %v4123 = vld [vmem:[%s4119 + $0x10] sm:$0xf]
        %v4124 = vld [vmem:[%s4119 + $0x18] sm:$0xf]
        %v4125 = vld [vmem:[%s4119 + $0x1c] sm:$0xf]
        %v4126 = vld [vmem:[%s4119 + $0x24] sm:$0xf]
        %v4127 = vld [vmem:[%s4119 + $0x28] sm:$0xf]
        %v4128 = vld [vmem:[%s4119 + $0x30] sm:$0xf]
        %v4129 = vld [vmem:[%s4119 + $0x34] sm:$0xf]
        %v4130 = vld [vmem:[%s4119 + $0x3c] sm:$0xf]
        %v4131 = vld [vmem:[%s4119 + $0x40] sm:$0xf]
        %v4132 = vld [vmem:[%s4119 + $0x48] sm:$0xf]
        %v4133 = vld [vmem:[%s4119 + $0x4c] sm:$0xf]
        %v4134 = vld [vmem:[%s4119 + $0x54] sm:$0xf]
        %v4135 = vld [vmem:[%s4119 + $0x58] sm:$0xf]
        %v4136 = vld [vmem:[%s4119 + $0x60] sm:$0xf]
        %v4137 = vld [vmem:[%s4119 + $0x64] sm:$0xf]
        %v4138 = vld [vmem:[%s4119 + $0x6c] sm:$0xf]
        %v4139 = vld [vmem:[%s4119 + $0x70] sm:$0xf]
        %v4140 = vld [vmem:[%s4119 + $0x78] sm:$0xf]
        %v4141 = vld [vmem:[%s4119 + $0x7c] sm:$0xf]
        %v4142 = vld [vmem:[%s4119 + $0x84] sm:$0xf]
        %v4143 = vld [vmem:[%s4119 + $0x88] sm:$0xf]
        %v4144 = vld [vmem:[%s4119 + $0x90] sm:$0xf]
        %v4145 = vld [vmem:[%s4119 + $0x94] sm:$0xf]
        %v4146 = vld [vmem:[%s4119 + $0x9c] sm:$0xf]
        %v4147 = vld [vmem:[%s4119 + $0xa0] sm:$0xf]
        %v4148 = vld [vmem:[%s4119 + $0xa8] sm:$0xf]
        %v4149 = vld [vmem:[%s4119 + $0xac] sm:$0xf]
        %v4150 = vld [vmem:[%s4119 + $0xb4] sm:$0xf]
        %v4151 = vld [vmem:[%s4119 + $0xb8] sm:$0xf]
        %s4152 = scalar_lea.vmem [#allocation7], 384
        %v4153 = vld [vmem:[%s4152] sm:$0xf]
        %v4154 = vld [vmem:[%s4152 + $0x4] sm:$0xf]
        %v4155 = vld [vmem:[%s4152 + $0x8] sm:$0xf]
        %v4156 = vld [vmem:[%s4152 + $0xc] sm:$0xf]
        %v4157 = vld [vmem:[%s4152 + $0x10] sm:$0xf]
        %v4158 = vld [vmem:[%s4152 + $0x14] sm:$0xf]
        %v4159 = vld [vmem:[%s4152 + $0x18] sm:$0xf]
        %v4160 = vld [vmem:[%s4152 + $0x1c] sm:$0xf]
        %v4161 = vld [vmem:[%s4152 + $0x20] sm:$0xf]
        %v4162 = vld [vmem:[%s4152 + $0x24] sm:$0xf]
        %v4163 = vld [vmem:[%s4152 + $0x28] sm:$0xf]
        %v4164 = vld [vmem:[%s4152 + $0x2c] sm:$0xf]
        %v4165 = vld [vmem:[%s4152 + $0x30] sm:$0xf]
        %v4166 = vld [vmem:[%s4152 + $0x34] sm:$0xf]
        %v4167 = vld [vmem:[%s4152 + $0x38] sm:$0xf]
        %v4168 = vld [vmem:[%s4152 + $0x3c] sm:$0xf]
        %v4201 = vunpack.c.l.b16 %v4120
        %v4202 = vunpack.c.l.b16 %v4121
        %v4203 = vunpack.c.l.b16 %v4122
        %v4204 = vunpack.c.l.b16 %v4123
        %v4205 = vunpack.c.l.b16 %v4124
        %v4206 = vunpack.c.l.b16 %v4125
        %v4207 = vunpack.c.l.b16 %v4126
        %v4208 = vunpack.c.l.b16 %v4127
        %v4209 = vunpack.c.l.b16 %v4128
        %v4210 = vunpack.c.l.b16 %v4129
        %v4211 = vunpack.c.l.b16 %v4130
        %v4212 = vunpack.c.l.b16 %v4131
        %v4213 = vunpack.c.l.b16 %v4132
        %v4214 = vunpack.c.l.b16 %v4133
        %v4215 = vunpack.c.l.b16 %v4134
        %v4216 = vunpack.c.l.b16 %v4135
        %v4217 = vunpack.c.l.b16 %v4136
        %v4218 = vunpack.c.l.b16 %v4137
        %v4219 = vunpack.c.l.b16 %v4138
        %v4220 = vunpack.c.l.b16 %v4139
        %v4221 = vunpack.c.l.b16 %v4140
        %v4222 = vunpack.c.l.b16 %v4141
        %v4223 = vunpack.c.l.b16 %v4142
        %v4224 = vunpack.c.l.b16 %v4143
        %v4225 = vunpack.c.l.b16 %v4144
        %v4226 = vunpack.c.l.b16 %v4145
        %v4227 = vunpack.c.l.b16 %v4146
        %v4228 = vunpack.c.l.b16 %v4147
        %v4229 = vunpack.c.l.b16 %v4148
        %v4230 = vunpack.c.l.b16 %v4149
        %v4231 = vunpack.c.l.b16 %v4150
        %v4232 = vunpack.c.l.b16 %v4151
        %v4233 = vpack.c.b16 %v4202, %v4201
        %v4234 = vpack.c.b16 %v4204, %v4203
        %v4235 = vpack.c.b16 %v4206, %v4205
        %v4236 = vpack.c.b16 %v4208, %v4207
        %v4237 = vpack.c.b16 %v4210, %v4209
        %v4238 = vpack.c.b16 %v4212, %v4211
        %v4239 = vpack.c.b16 %v4214, %v4213
        %v4240 = vpack.c.b16 %v4216, %v4215
        %v4241 = vpack.c.b16 %v4218, %v4217
        %v4242 = vpack.c.b16 %v4220, %v4219
        %v4243 = vpack.c.b16 %v4222, %v4221
        %v4244 = vpack.c.b16 %v4224, %v4223
        %v4245 = vpack.c.b16 %v4226, %v4225
        %v4246 = vpack.c.b16 %v4228, %v4227
        %v4247 = vpack.c.b16 %v4230, %v4229
        %v4248 = vpack.c.b16 %v4232, %v4231
        %v4281 = vunpack.c.l.b16 %v4153
        %v4282 = vunpack.c.l.b16 %v4154
        %v4283 = vunpack.c.l.b16 %v4155
        %v4284 = vunpack.c.l.b16 %v4156
        %v4285 = vunpack.c.l.b16 %v4157
        %v4286 = vunpack.c.l.b16 %v4158
        %v4287 = vunpack.c.l.b16 %v4159
        %v4288 = vunpack.c.l.b16 %v4160
        %v4289 = vunpack.c.l.b16 %v4161
        %v4290 = vunpack.c.l.b16 %v4162
        %v4291 = vunpack.c.l.b16 %v4163
        %v4292 = vunpack.c.l.b16 %v4164
        %v4293 = vunpack.c.l.b16 %v4165
        %v4294 = vunpack.c.l.b16 %v4166
        %v4295 = vunpack.c.l.b16 %v4167
        %v4296 = vunpack.c.l.b16 %v4168
        %v4297 = vpack.c.b16 %v4282, %v4281
        %v4298 = vpack.c.b16 %v4284, %v4283
        %v4299 = vpack.c.b16 %v4286, %v4285
        %v4300 = vpack.c.b16 %v4288, %v4287
        %v4301 = vpack.c.b16 %v4290, %v4289
        %v4302 = vpack.c.b16 %v4292, %v4291
        %v4303 = vpack.c.b16 %v4294, %v4293
        %v4304 = vpack.c.b16 %v4296, %v4295
        %4313 = vmatprep.subr.bf16.mxu0 0
        %4314 = vmatpush1.bf16.msra.mxu0 %v4304
        %4315 = vmatprep.subr.bf16.mxu0 0
        %4316 = vmatpush1.bf16.msra.mxu0 %v4303
        %4317 = vmatprep.subr.bf16.mxu0 0
        %4318 = vmatpush1.bf16.msra.mxu0 %v4302
        %4319 = vmatprep.subr.bf16.mxu0 0
        %4320 = vmatpush1.bf16.msra.mxu0 %v4301
        %4321 = vmatprep.subr.bf16.mxu0 0
        %4322 = vmatpush1.bf16.msra.mxu0 %v4300
        %4323 = vmatprep.subr.bf16.mxu0 0
        %4324 = vmatpush1.bf16.msra.mxu0 %v4299
        %4325 = vmatprep.subr.bf16.mxu0 0
        %4326 = vmatpush1.bf16.msra.mxu0 %v4298
        %4327 = vmatprep.subr.bf16.mxu0 0
        %4328 = vmatpush1.bf16.msra.mxu0 %v4297
        %4329 = vmatprep.subr.bf16.mxu0 0
        %4330 = vmatpush2.bf16.msra.mxu0 0
        %4331 = vmatprep.subr.bf16.mxu0 0
        %4332 = vmatpush2.bf16.msra.mxu0 0
        %4333 = vmatprep.subr.bf16.mxu0 0
        %4334 = vmatpush2.bf16.msra.mxu0 0
        %4335 = vmatprep.subr.bf16.mxu0 0
        %4336 = vmatpush2.bf16.msra.mxu0 0
        %4337 = vmatprep.subr.bf16.mxu0 0
        %4338 = vmatpush2.bf16.msra.mxu0 0
        %4339 = vmatprep.subr.bf16.mxu0 0
        %4340 = vmatpush2.bf16.msra.mxu0 0
        %4341 = vmatprep.subr.bf16.mxu0 0
        %4342 = vmatpush2.bf16.msra.mxu0 0
        %4343 = vmatprep.subr.bf16.mxu0 0
        %4344 = vmatpush2.bf16.msra.mxu0 0
        %4345 = vmatprep.mubr.bf16.mxu0 0
        %4346 = vmatmul.mubr.bf16.gmra.mxu0 %v4233
        %v4347 = vpop.f32.mrf.mxu0
        %v4348 = vadd.f32 0.0, %v4347
        %v4349 = vpop.f32.mrf.mxu0
        %v4350 = vpop.f32.mrf.mxu0
        %v4351 = vadd.f32 0.0, %v4350
        %v4352 = vpop.f32.mrf.mxu0
        %4353 = vmatprep.mubr.bf16.mxu0 0
        %4354 = vmatmul.mubr.bf16.gmra.mxu0 %v4234
        %v4355 = vpop.f32.mrf.mxu0
        %v4356 = vadd.f32 0.0, %v4355
        %v4357 = vpop.f32.mrf.mxu0
        %v4358 = vpop.f32.mrf.mxu0
        %v4359 = vadd.f32 0.0, %v4358
        %v4360 = vpop.f32.mrf.mxu0
        %4361 = vmatprep.mubr.bf16.mxu0 0
        %4362 = vmatmul.mubr.bf16.gmra.mxu0 %v4235
        %v4363 = vpop.f32.mrf.mxu0
        %v4364 = vadd.f32 0.0, %v4363
        %v4365 = vpop.f32.mrf.mxu0
        %v4366 = vpop.f32.mrf.mxu0
        %v4367 = vadd.f32 0.0, %v4366
        %v4368 = vpop.f32.mrf.mxu0
        %4369 = vmatprep.mubr.bf16.mxu0 0
        %4370 = vmatmul.mubr.bf16.gmra.mxu0 %v4236
        %v4371 = vpop.f32.mrf.mxu0
        %v4372 = vadd.f32 0.0, %v4371
        %v4373 = vpop.f32.mrf.mxu0
        %v4374 = vpop.f32.mrf.mxu0
        %v4375 = vadd.f32 0.0, %v4374
        %v4376 = vpop.f32.mrf.mxu0
        %4377 = vmatprep.mubr.bf16.mxu0 0
        %4378 = vmatmul.mubr.bf16.gmra.mxu0 %v4237
        %v4379 = vpop.f32.mrf.mxu0
        %v4380 = vadd.f32 0.0, %v4379
        %v4381 = vpop.f32.mrf.mxu0
        %v4382 = vpop.f32.mrf.mxu0
        %v4383 = vadd.f32 0.0, %v4382
        %v4384 = vpop.f32.mrf.mxu0
        %4385 = vmatprep.mubr.bf16.mxu0 0
        %4386 = vmatmul.mubr.bf16.gmra.mxu0 %v4238
        %v4387 = vpop.f32.mrf.mxu0
        %v4388 = vadd.f32 0.0, %v4387
        %v4389 = vpop.f32.mrf.mxu0
        %v4390 = vpop.f32.mrf.mxu0
        %v4391 = vadd.f32 0.0, %v4390
        %v4392 = vpop.f32.mrf.mxu0
        %4393 = vmatprep.mubr.bf16.mxu0 0
        %4394 = vmatmul.mubr.bf16.gmra.mxu0 %v4239
        %v4395 = vpop.f32.mrf.mxu0
        %v4396 = vadd.f32 0.0, %v4395
        %v4397 = vpop.f32.mrf.mxu0
        %v4398 = vpop.f32.mrf.mxu0
        %v4399 = vadd.f32 0.0, %v4398
        %v4400 = vpop.f32.mrf.mxu0
        %4401 = vmatprep.mubr.bf16.mxu0 0
        %4402 = vmatmul.mubr.bf16.gmra.mxu0 %v4240
        %v4403 = vpop.f32.mrf.mxu0
        %v4404 = vadd.f32 0.0, %v4403
        %v4405 = vpop.f32.mrf.mxu0
        %v4406 = vpop.f32.mrf.mxu0
        %v4407 = vadd.f32 0.0, %v4406
        %v4408 = vpop.f32.mrf.mxu0
        %4409 = vmatprep.mubr.bf16.mxu0 0
        %4410 = vmatmul.mubr.bf16.gmra.mxu0 %v4241
        %v4411 = vpop.f32.mrf.mxu0
        %v4412 = vadd.f32 0.0, %v4411
        %v4413 = vpop.f32.mrf.mxu0
        %v4414 = vpop.f32.mrf.mxu0
        %v4415 = vadd.f32 0.0, %v4414
        %v4416 = vpop.f32.mrf.mxu0
        %4417 = vmatprep.mubr.bf16.mxu0 0
        %4418 = vmatmul.mubr.bf16.gmra.mxu0 %v4242
        %v4419 = vpop.f32.mrf.mxu0
        %v4420 = vadd.f32 0.0, %v4419
        %v4421 = vpop.f32.mrf.mxu0
        %v4422 = vpop.f32.mrf.mxu0
        %v4423 = vadd.f32 0.0, %v4422
        %v4424 = vpop.f32.mrf.mxu0
        %4425 = vmatprep.mubr.bf16.mxu0 0
        %4426 = vmatmul.mubr.bf16.gmra.mxu0 %v4243
        %v4427 = vpop.f32.mrf.mxu0
        %v4428 = vadd.f32 0.0, %v4427
        %v4429 = vpop.f32.mrf.mxu0
        %v4430 = vpop.f32.mrf.mxu0
        %v4431 = vadd.f32 0.0, %v4430
        %v4432 = vpop.f32.mrf.mxu0
        %4433 = vmatprep.mubr.bf16.mxu0 0
        %4434 = vmatmul.mubr.bf16.gmra.mxu0 %v4244
        %v4435 = vpop.f32.mrf.mxu0
        %v4436 = vadd.f32 0.0, %v4435
        %v4437 = vpop.f32.mrf.mxu0
        %v4438 = vpop.f32.mrf.mxu0
        %v4439 = vadd.f32 0.0, %v4438
        %v4440 = vpop.f32.mrf.mxu0
        %4441 = vmatprep.mubr.bf16.mxu0 0
        %4442 = vmatmul.mubr.bf16.gmra.mxu0 %v4245
        %v4443 = vpop.f32.mrf.mxu0
        %v4444 = vadd.f32 0.0, %v4443
        %v4445 = vpop.f32.mrf.mxu0
        %v4446 = vpop.f32.mrf.mxu0
        %v4447 = vadd.f32 0.0, %v4446
        %v4448 = vpop.f32.mrf.mxu0
        %4449 = vmatprep.mubr.bf16.mxu0 0
        %4450 = vmatmul.mubr.bf16.gmra.mxu0 %v4246
        %v4451 = vpop.f32.mrf.mxu0
        %v4452 = vadd.f32 0.0, %v4451
        %v4453 = vpop.f32.mrf.mxu0
        %v4454 = vpop.f32.mrf.mxu0
        %v4455 = vadd.f32 0.0, %v4454
        %v4456 = vpop.f32.mrf.mxu0
        %4457 = vmatprep.mubr.bf16.mxu0 0
        %4458 = vmatmul.mubr.bf16.gmra.mxu0 %v4247
        %v4459 = vpop.f32.mrf.mxu0
        %v4460 = vadd.f32 0.0, %v4459
        %v4461 = vpop.f32.mrf.mxu0
        %v4462 = vpop.f32.mrf.mxu0
        %v4463 = vadd.f32 0.0, %v4462
        %v4464 = vpop.f32.mrf.mxu0
        %4465 = vmatprep.mubr.bf16.mxu0 0
        %4466 = vmatmul.mubr.bf16.gmra.mxu0 %v4248
        %v4467 = vpop.f32.mrf.mxu0
        %v4468 = vadd.f32 0.0, %v4467
        %v4469 = vpop.f32.mrf.mxu0
        %v4470 = vpop.f32.mrf.mxu0
        %v4471 = vadd.f32 0.0, %v4470
        %v4472 = vpop.f32.mrf.mxu0
        %4473 = vdwg.mxu0
        %v4474 = vadd.f32 %v4087, %v4348
        %v4475 = vadd.f32 %v4088, %v4351
        %v4476 = vadd.f32 %v4089, %v4356
        %v4477 = vadd.f32 %v4090, %v4359
        %v4478 = vadd.f32 %v4091, %v4364
        %v4479 = vadd.f32 %v4092, %v4367
        %v4480 = vadd.f32 %v4093, %v4372
        %v4481 = vadd.f32 %v4094, %v4375
        %v4482 = vadd.f32 %v4095, %v4380
        %v4483 = vadd.f32 %v4096, %v4383
        %v4484 = vadd.f32 %v4097, %v4388
        %v4485 = vadd.f32 %v4098, %v4391
        %v4486 = vadd.f32 %v4099, %v4396
        %v4487 = vadd.f32 %v4100, %v4399
        %v4488 = vadd.f32 %v4101, %v4404
        %v4489 = vadd.f32 %v4102, %v4407
        %v4490 = vadd.f32 %v4103, %v4412
        %v4491 = vadd.f32 %v4104, %v4415
        %v4492 = vadd.f32 %v4105, %v4420
        %v4493 = vadd.f32 %v4106, %v4423
        %v4494 = vadd.f32 %v4107, %v4428
        %v4495 = vadd.f32 %v4108, %v4431
        %v4496 = vadd.f32 %v4109, %v4436
        %v4497 = vadd.f32 %v4110, %v4439
        %v4498 = vadd.f32 %v4111, %v4444
        %v4499 = vadd.f32 %v4112, %v4447
        %v4500 = vadd.f32 %v4113, %v4452
        %v4501 = vadd.f32 %v4114, %v4455
        %v4502 = vadd.f32 %v4115, %v4460
        %v4503 = vadd.f32 %v4116, %v4463
        %v4504 = vadd.f32 %v4117, %v4468
        %v4505 = vadd.f32 %v4118, %v4471
        %v4506 = vld [vmem:[%s4119] sm:$0xf]
        %v4507 = vld [vmem:[%s4119 + $0x4] sm:$0xf]
        %v4508 = vld [vmem:[%s4119 + $0x8] sm:$0x1]
        %v4509 = vld [vmem:[%s4119 + $0xc] sm:$0xf]
        %v4510 = vld [vmem:[%s4119 + $0x10] sm:$0xf]
        %v4511 = vld [vmem:[%s4119 + $0x14] sm:$0x1]
        %v4512 = vld [vmem:[%s4119 + $0x18] sm:$0xf]
        %v4513 = vld [vmem:[%s4119 + $0x1c] sm:$0xf]
        %v4514 = vld [vmem:[%s4119 + $0x20] sm:$0x1]
        %v4515 = vld [vmem:[%s4119 + $0x24] sm:$0xf]
        %v4516 = vld [vmem:[%s4119 + $0x28] sm:$0xf]
        %v4517 = vld [vmem:[%s4119 + $0x2c] sm:$0x1]
        %v4518 = vld [vmem:[%s4119 + $0x30] sm:$0xf]
        %v4519 = vld [vmem:[%s4119 + $0x34] sm:$0xf]
        %v4520 = vld [vmem:[%s4119 + $0x38] sm:$0x1]
        %v4521 = vld [vmem:[%s4119 + $0x3c] sm:$0xf]
        %v4522 = vld [vmem:[%s4119 + $0x40] sm:$0xf]
        %v4523 = vld [vmem:[%s4119 + $0x44] sm:$0x1]
        %v4524 = vld [vmem:[%s4119 + $0x48] sm:$0xf]
        %v4525 = vld [vmem:[%s4119 + $0x4c] sm:$0xf]
        %v4526 = vld [vmem:[%s4119 + $0x50] sm:$0x1]
        %v4527 = vld [vmem:[%s4119 + $0x54] sm:$0xf]
        %v4528 = vld [vmem:[%s4119 + $0x58] sm:$0xf]
        %v4529 = vld [vmem:[%s4119 + $0x5c] sm:$0x1]
        %v4530 = vld [vmem:[%s4119 + $0x60] sm:$0xf]
        %v4531 = vld [vmem:[%s4119 + $0x64] sm:$0xf]
        %v4532 = vld [vmem:[%s4119 + $0x68] sm:$0x1]
        %v4533 = vld [vmem:[%s4119 + $0x6c] sm:$0xf]
        %v4534 = vld [vmem:[%s4119 + $0x70] sm:$0xf]
        %v4535 = vld [vmem:[%s4119 + $0x74] sm:$0x1]
        %v4536 = vld [vmem:[%s4119 + $0x78] sm:$0xf]
        %v4537 = vld [vmem:[%s4119 + $0x7c] sm:$0xf]
        %v4538 = vld [vmem:[%s4119 + $0x80] sm:$0x1]
        %v4539 = vld [vmem:[%s4119 + $0x84] sm:$0xf]
        %v4540 = vld [vmem:[%s4119 + $0x88] sm:$0xf]
        %v4541 = vld [vmem:[%s4119 + $0x8c] sm:$0x1]
        %v4542 = vld [vmem:[%s4119 + $0x90] sm:$0xf]
        %v4543 = vld [vmem:[%s4119 + $0x94] sm:$0xf]
        %v4544 = vld [vmem:[%s4119 + $0x98] sm:$0x1]
        %v4545 = vld [vmem:[%s4119 + $0x9c] sm:$0xf]
        %v4546 = vld [vmem:[%s4119 + $0xa0] sm:$0xf]
        %v4547 = vld [vmem:[%s4119 + $0xa4] sm:$0x1]
        %v4548 = vld [vmem:[%s4119 + $0xa8] sm:$0xf]
        %v4549 = vld [vmem:[%s4119 + $0xac] sm:$0xf]
        %v4550 = vld [vmem:[%s4119 + $0xb0] sm:$0x1]
        %v4551 = vld [vmem:[%s4119 + $0xb4] sm:$0xf]
        %v4552 = vld [vmem:[%s4119 + $0xb8] sm:$0xf]
        %v4553 = vld [vmem:[%s4119 + $0xbc] sm:$0x1]
        %v4555 = vshrl.u32 %v4506, 16
        %v4557 = vrot.slane %v4555, 4
        %v4558 = vshll.u32 %v4506, 16
        %v4560 = vrot.slane %v4558, 5
        %v4561 = vor.u32 %v4557, %v4560
        %v4562 = vrot.slane %v4561, 4
        %v4564 = vshll.u32 %v4507, 16
        %v4566 = vrot.slane %v4564, 5
        %v4567 = vsel %vm1016, %v4562, %v4566
        %v4568 = vshrl.u32 %v4507, 16
        %v4570 = vrot.slane %v4568, 4
        %v4571 = vor.u32 %v4570, %v4566
        %v4572 = vrot.slane %v4571, 4
        %v4574 = vshll.u32 %v4508, 16
        %v4576 = vrot.slane %v4574, 5
        %v4577 = vsel %vm1016, %v4572, %v4576
        %v4579 = vshrl.u32 %v4509, 16
        %v4581 = vrot.slane %v4579, 4
        %v4582 = vshll.u32 %v4509, 16
        %v4584 = vrot.slane %v4582, 5
        %v4585 = vor.u32 %v4581, %v4584
        %v4586 = vrot.slane %v4585, 4
        %v4588 = vshll.u32 %v4510, 16
        %v4590 = vrot.slane %v4588, 5
        %v4591 = vsel %vm1016, %v4586, %v4590
        %v4592 = vshrl.u32 %v4510, 16
        %v4594 = vrot.slane %v4592, 4
        %v4595 = vor.u32 %v4594, %v4590
        %v4596 = vrot.slane %v4595, 4
        %v4598 = vshll.u32 %v4511, 16
        %v4600 = vrot.slane %v4598, 5
        %v4601 = vsel %vm1016, %v4596, %v4600
        %v4603 = vshrl.u32 %v4512, 16
        %v4605 = vrot.slane %v4603, 4
        %v4606 = vshll.u32 %v4512, 16
        %v4608 = vrot.slane %v4606, 5
        %v4609 = vor.u32 %v4605, %v4608
        %v4610 = vrot.slane %v4609, 4
        %v4612 = vshll.u32 %v4513, 16
        %v4614 = vrot.slane %v4612, 5
        %v4615 = vsel %vm1016, %v4610, %v4614
        %v4616 = vshrl.u32 %v4513, 16
        %v4618 = vrot.slane %v4616, 4
        %v4619 = vor.u32 %v4618, %v4614
        %v4620 = vrot.slane %v4619, 4
        %v4622 = vshll.u32 %v4514, 16
        %v4624 = vrot.slane %v4622, 5
        %v4625 = vsel %vm1016, %v4620, %v4624
        %v4627 = vshrl.u32 %v4515, 16
        %v4629 = vrot.slane %v4627, 4
        %v4630 = vshll.u32 %v4515, 16
        %v4632 = vrot.slane %v4630, 5
        %v4633 = vor.u32 %v4629, %v4632
        %v4634 = vrot.slane %v4633, 4
        %v4636 = vshll.u32 %v4516, 16
        %v4638 = vrot.slane %v4636, 5
        %v4639 = vsel %vm1016, %v4634, %v4638
        %v4640 = vshrl.u32 %v4516, 16
        %v4642 = vrot.slane %v4640, 4
        %v4643 = vor.u32 %v4642, %v4638
        %v4644 = vrot.slane %v4643, 4
        %v4646 = vshll.u32 %v4517, 16
        %v4648 = vrot.slane %v4646, 5
        %v4649 = vsel %vm1016, %v4644, %v4648
        %v4651 = vshrl.u32 %v4518, 16
        %v4653 = vrot.slane %v4651, 4
        %v4654 = vshll.u32 %v4518, 16
        %v4656 = vrot.slane %v4654, 5
        %v4657 = vor.u32 %v4653, %v4656
        %v4658 = vrot.slane %v4657, 4
        %v4660 = vshll.u32 %v4519, 16
        %v4662 = vrot.slane %v4660, 5
        %v4663 = vsel %vm1016, %v4658, %v4662
        %v4664 = vshrl.u32 %v4519, 16
        %v4666 = vrot.slane %v4664, 4
        %v4667 = vor.u32 %v4666, %v4662
        %v4668 = vrot.slane %v4667, 4
        %v4670 = vshll.u32 %v4520, 16
        %v4672 = vrot.slane %v4670, 5
        %v4673 = vsel %vm1016, %v4668, %v4672
        %v4675 = vshrl.u32 %v4521, 16
        %v4677 = vrot.slane %v4675, 4
        %v4678 = vshll.u32 %v4521, 16
        %v4680 = vrot.slane %v4678, 5
        %v4681 = vor.u32 %v4677, %v4680
        %v4682 = vrot.slane %v4681, 4
        %v4684 = vshll.u32 %v4522, 16
        %v4686 = vrot.slane %v4684, 5
        %v4687 = vsel %vm1016, %v4682, %v4686
        %v4688 = vshrl.u32 %v4522, 16
        %v4690 = vrot.slane %v4688, 4
        %v4691 = vor.u32 %v4690, %v4686
        %v4692 = vrot.slane %v4691, 4
        %v4694 = vshll.u32 %v4523, 16
        %v4696 = vrot.slane %v4694, 5
        %v4697 = vsel %vm1016, %v4692, %v4696
        %v4699 = vshrl.u32 %v4524, 16
        %v4701 = vrot.slane %v4699, 4
        %v4702 = vshll.u32 %v4524, 16
        %v4704 = vrot.slane %v4702, 5
        %v4705 = vor.u32 %v4701, %v4704
        %v4706 = vrot.slane %v4705, 4
        %v4708 = vshll.u32 %v4525, 16
        %v4710 = vrot.slane %v4708, 5
        %v4711 = vsel %vm1016, %v4706, %v4710
        %v4712 = vshrl.u32 %v4525, 16
        %v4714 = vrot.slane %v4712, 4
        %v4715 = vor.u32 %v4714, %v4710
        %v4716 = vrot.slane %v4715, 4
        %v4718 = vshll.u32 %v4526, 16
        %v4720 = vrot.slane %v4718, 5
        %v4721 = vsel %vm1016, %v4716, %v4720
        %v4723 = vshrl.u32 %v4527, 16
        %v4725 = vrot.slane %v4723, 4
        %v4726 = vshll.u32 %v4527, 16
        %v4728 = vrot.slane %v4726, 5
        %v4729 = vor.u32 %v4725, %v4728
        %v4730 = vrot.slane %v4729, 4
        %v4732 = vshll.u32 %v4528, 16
        %v4734 = vrot.slane %v4732, 5
        %v4735 = vsel %vm1016, %v4730, %v4734
        %v4736 = vshrl.u32 %v4528, 16
        %v4738 = vrot.slane %v4736, 4
        %v4739 = vor.u32 %v4738, %v4734
        %v4740 = vrot.slane %v4739, 4
        %v4742 = vshll.u32 %v4529, 16
        %v4744 = vrot.slane %v4742, 5
        %v4745 = vsel %vm1016, %v4740, %v4744
        %v4747 = vshrl.u32 %v4530, 16
        %v4749 = vrot.slane %v4747, 4
        %v4750 = vshll.u32 %v4530, 16
        %v4752 = vrot.slane %v4750, 5
        %v4753 = vor.u32 %v4749, %v4752
        %v4754 = vrot.slane %v4753, 4
        %v4756 = vshll.u32 %v4531, 16
        %v4758 = vrot.slane %v4756, 5
        %v4759 = vsel %vm1016, %v4754, %v4758
        %v4760 = vshrl.u32 %v4531, 16
        %v4762 = vrot.slane %v4760, 4
        %v4763 = vor.u32 %v4762, %v4758
        %v4764 = vrot.slane %v4763, 4
        %v4766 = vshll.u32 %v4532, 16
        %v4768 = vrot.slane %v4766, 5
        %v4769 = vsel %vm1016, %v4764, %v4768
        %v4771 = vshrl.u32 %v4533, 16
        %v4773 = vrot.slane %v4771, 4
        %v4774 = vshll.u32 %v4533, 16
        %v4776 = vrot.slane %v4774, 5
        %v4777 = vor.u32 %v4773, %v4776
        %v4778 = vrot.slane %v4777, 4
        %v4780 = vshll.u32 %v4534, 16
        %v4782 = vrot.slane %v4780, 5
        %v4783 = vsel %vm1016, %v4778, %v4782
        %v4784 = vshrl.u32 %v4534, 16
        %v4786 = vrot.slane %v4784, 4
        %v4787 = vor.u32 %v4786, %v4782
        %v4788 = vrot.slane %v4787, 4
        %v4790 = vshll.u32 %v4535, 16
        %v4792 = vrot.slane %v4790, 5
        %v4793 = vsel %vm1016, %v4788, %v4792
        %v4795 = vshrl.u32 %v4536, 16
        %v4797 = vrot.slane %v4795, 4
        %v4798 = vshll.u32 %v4536, 16
        %v4800 = vrot.slane %v4798, 5
        %v4801 = vor.u32 %v4797, %v4800
        %v4802 = vrot.slane %v4801, 4
        %v4804 = vshll.u32 %v4537, 16
        %v4806 = vrot.slane %v4804, 5
        %v4807 = vsel %vm1016, %v4802, %v4806
        %v4808 = vshrl.u32 %v4537, 16
        %v4810 = vrot.slane %v4808, 4
        %v4811 = vor.u32 %v4810, %v4806
        %v4812 = vrot.slane %v4811, 4
        %v4814 = vshll.u32 %v4538, 16
        %v4816 = vrot.slane %v4814, 5
        %v4817 = vsel %vm1016, %v4812, %v4816
        %v4819 = vshrl.u32 %v4539, 16
        %v4821 = vrot.slane %v4819, 4
        %v4822 = vshll.u32 %v4539, 16
        %v4824 = vrot.slane %v4822, 5
        %v4825 = vor.u32 %v4821, %v4824
        %v4826 = vrot.slane %v4825, 4
        %v4828 = vshll.u32 %v4540, 16
        %v4830 = vrot.slane %v4828, 5
        %v4831 = vsel %vm1016, %v4826, %v4830
        %v4832 = vshrl.u32 %v4540, 16
        %v4834 = vrot.slane %v4832, 4
        %v4835 = vor.u32 %v4834, %v4830
        %v4836 = vrot.slane %v4835, 4
        %v4838 = vshll.u32 %v4541, 16
        %v4840 = vrot.slane %v4838, 5
        %v4841 = vsel %vm1016, %v4836, %v4840
        %v4843 = vshrl.u32 %v4542, 16
        %v4845 = vrot.slane %v4843, 4
        %v4846 = vshll.u32 %v4542, 16
        %v4848 = vrot.slane %v4846, 5
        %v4849 = vor.u32 %v4845, %v4848
        %v4850 = vrot.slane %v4849, 4
        %v4852 = vshll.u32 %v4543, 16
        %v4854 = vrot.slane %v4852, 5
        %v4855 = vsel %vm1016, %v4850, %v4854
        %v4856 = vshrl.u32 %v4543, 16
        %v4858 = vrot.slane %v4856, 4
        %v4859 = vor.u32 %v4858, %v4854
        %v4860 = vrot.slane %v4859, 4
        %v4862 = vshll.u32 %v4544, 16
        %v4864 = vrot.slane %v4862, 5
        %v4865 = vsel %vm1016, %v4860, %v4864
        %v4867 = vshrl.u32 %v4545, 16
        %v4869 = vrot.slane %v4867, 4
        %v4870 = vshll.u32 %v4545, 16
        %v4872 = vrot.slane %v4870, 5
        %v4873 = vor.u32 %v4869, %v4872
        %v4874 = vrot.slane %v4873, 4
        %v4876 = vshll.u32 %v4546, 16
        %v4878 = vrot.slane %v4876, 5
        %v4879 = vsel %vm1016, %v4874, %v4878
        %v4880 = vshrl.u32 %v4546, 16
        %v4882 = vrot.slane %v4880, 4
        %v4883 = vor.u32 %v4882, %v4878
        %v4884 = vrot.slane %v4883, 4
        %v4886 = vshll.u32 %v4547, 16
        %v4888 = vrot.slane %v4886, 5
        %v4889 = vsel %vm1016, %v4884, %v4888
        %v4891 = vshrl.u32 %v4548, 16
        %v4893 = vrot.slane %v4891, 4
        %v4894 = vshll.u32 %v4548, 16
        %v4896 = vrot.slane %v4894, 5
        %v4897 = vor.u32 %v4893, %v4896
        %v4898 = vrot.slane %v4897, 4
        %v4900 = vshll.u32 %v4549, 16
        %v4902 = vrot.slane %v4900, 5
        %v4903 = vsel %vm1016, %v4898, %v4902
        %v4904 = vshrl.u32 %v4549, 16
        %v4906 = vrot.slane %v4904, 4
        %v4907 = vor.u32 %v4906, %v4902
        %v4908 = vrot.slane %v4907, 4
        %v4910 = vshll.u32 %v4550, 16
        %v4912 = vrot.slane %v4910, 5
        %v4913 = vsel %vm1016, %v4908, %v4912
        %v4915 = vshrl.u32 %v4551, 16
        %v4917 = vrot.slane %v4915, 4
        %v4918 = vshll.u32 %v4551, 16
        %v4920 = vrot.slane %v4918, 5
        %v4921 = vor.u32 %v4917, %v4920
        %v4922 = vrot.slane %v4921, 4
        %v4924 = vshll.u32 %v4552, 16
        %v4926 = vrot.slane %v4924, 5
        %v4927 = vsel %vm1016, %v4922, %v4926
        %v4928 = vshrl.u32 %v4552, 16
        %v4930 = vrot.slane %v4928, 4
        %v4931 = vor.u32 %v4930, %v4926
        %v4932 = vrot.slane %v4931, 4
        %v4934 = vshll.u32 %v4553, 16
        %v4936 = vrot.slane %v4934, 5
        %v4937 = vsel %vm1016, %v4932, %v4936
        %s4938 = scalar_lea.vmem [#allocation7], 448
        %v4939 = vld [vmem:[%s4938] sm:$0xf]
        %v4940 = vld [vmem:[%s4938 + $0x4] sm:$0xf]
        %v4941 = vld [vmem:[%s4938 + $0x8] sm:$0xf]
        %v4942 = vld [vmem:[%s4938 + $0xc] sm:$0xf]
        %v4943 = vld [vmem:[%s4938 + $0x10] sm:$0xf]
        %v4944 = vld [vmem:[%s4938 + $0x14] sm:$0xf]
        %v4945 = vld [vmem:[%s4938 + $0x18] sm:$0xf]
        %v4946 = vld [vmem:[%s4938 + $0x1c] sm:$0xf]
        %v4947 = vld [vmem:[%s4938 + $0x20] sm:$0xf]
        %v4948 = vld [vmem:[%s4938 + $0x24] sm:$0xf]
        %v4949 = vld [vmem:[%s4938 + $0x28] sm:$0xf]
        %v4950 = vld [vmem:[%s4938 + $0x2c] sm:$0xf]
        %v4951 = vld [vmem:[%s4938 + $0x30] sm:$0xf]
        %v4952 = vld [vmem:[%s4938 + $0x34] sm:$0xf]
        %v4953 = vld [vmem:[%s4938 + $0x38] sm:$0xf]
        %v4954 = vld [vmem:[%s4938 + $0x3c] sm:$0xf]
        %v4955 = vunpack.c.l.b16 %v4567
        %v4956 = vunpack.c.l.b16 %v4577
        %v4957 = vunpack.c.l.b16 %v4591
        %v4958 = vunpack.c.l.b16 %v4601
        %v4959 = vunpack.c.l.b16 %v4615
        %v4960 = vunpack.c.l.b16 %v4625
        %v4961 = vunpack.c.l.b16 %v4639
        %v4962 = vunpack.c.l.b16 %v4649
        %v4963 = vunpack.c.l.b16 %v4663
        %v4964 = vunpack.c.l.b16 %v4673
        %v4965 = vunpack.c.l.b16 %v4687
        %v4966 = vunpack.c.l.b16 %v4697
        %v4967 = vunpack.c.l.b16 %v4711
        %v4968 = vunpack.c.l.b16 %v4721
        %v4969 = vunpack.c.l.b16 %v4735
        %v4970 = vunpack.c.l.b16 %v4745
        %v4971 = vunpack.c.l.b16 %v4759
        %v4972 = vunpack.c.l.b16 %v4769
        %v4973 = vunpack.c.l.b16 %v4783
        %v4974 = vunpack.c.l.b16 %v4793
        %v4975 = vunpack.c.l.b16 %v4807
        %v4976 = vunpack.c.l.b16 %v4817
        %v4977 = vunpack.c.l.b16 %v4831
        %v4978 = vunpack.c.l.b16 %v4841
        %v4979 = vunpack.c.l.b16 %v4855
        %v4980 = vunpack.c.l.b16 %v4865
        %v4981 = vunpack.c.l.b16 %v4879
        %v4982 = vunpack.c.l.b16 %v4889
        %v4983 = vunpack.c.l.b16 %v4903
        %v4984 = vunpack.c.l.b16 %v4913
        %v4985 = vunpack.c.l.b16 %v4927
        %v4986 = vunpack.c.l.b16 %v4937
        %v4987 = vpack.c.b16 %v4956, %v4955
        %v4988 = vpack.c.b16 %v4958, %v4957
        %v4989 = vpack.c.b16 %v4960, %v4959
        %v4990 = vpack.c.b16 %v4962, %v4961
        %v4991 = vpack.c.b16 %v4964, %v4963
        %v4992 = vpack.c.b16 %v4966, %v4965
        %v4993 = vpack.c.b16 %v4968, %v4967
        %v4994 = vpack.c.b16 %v4970, %v4969
        %v4995 = vpack.c.b16 %v4972, %v4971
        %v4996 = vpack.c.b16 %v4974, %v4973
        %v4997 = vpack.c.b16 %v4976, %v4975
        %v4998 = vpack.c.b16 %v4978, %v4977
        %v4999 = vpack.c.b16 %v4980, %v4979
        %v5000 = vpack.c.b16 %v4982, %v4981
        %v5001 = vpack.c.b16 %v4984, %v4983
        %v5002 = vpack.c.b16 %v4986, %v4985
        %v5035 = vunpack.c.l.b16 %v4939
        %v5036 = vunpack.c.l.b16 %v4940
        %v5037 = vunpack.c.l.b16 %v4941
        %v5038 = vunpack.c.l.b16 %v4942
        %v5039 = vunpack.c.l.b16 %v4943
        %v5040 = vunpack.c.l.b16 %v4944
        %v5041 = vunpack.c.l.b16 %v4945
        %v5042 = vunpack.c.l.b16 %v4946
        %v5043 = vunpack.c.l.b16 %v4947
        %v5044 = vunpack.c.l.b16 %v4948
        %v5045 = vunpack.c.l.b16 %v4949
        %v5046 = vunpack.c.l.b16 %v4950
        %v5047 = vunpack.c.l.b16 %v4951
        %v5048 = vunpack.c.l.b16 %v4952
        %v5049 = vunpack.c.l.b16 %v4953
        %v5050 = vunpack.c.l.b16 %v4954
        %v5051 = vpack.c.b16 %v5036, %v5035
        %v5052 = vpack.c.b16 %v5038, %v5037
        %v5053 = vpack.c.b16 %v5040, %v5039
        %v5054 = vpack.c.b16 %v5042, %v5041
        %v5055 = vpack.c.b16 %v5044, %v5043
        %v5056 = vpack.c.b16 %v5046, %v5045
        %v5057 = vpack.c.b16 %v5048, %v5047
        %v5058 = vpack.c.b16 %v5050, %v5049
        %5067 = vmatprep.subr.bf16.mxu0 0
        %5068 = vmatpush1.bf16.msra.mxu0 %v5058
        %5069 = vmatprep.subr.bf16.mxu0 0
        %5070 = vmatpush1.bf16.msra.mxu0 %v5057
        %5071 = vmatprep.subr.bf16.mxu0 0
        %5072 = vmatpush1.bf16.msra.mxu0 %v5056
        %5073 = vmatprep.subr.bf16.mxu0 0
        %5074 = vmatpush1.bf16.msra.mxu0 %v5055
        %5075 = vmatprep.subr.bf16.mxu0 0
        %5076 = vmatpush1.bf16.msra.mxu0 %v5054
        %5077 = vmatprep.subr.bf16.mxu0 0
        %5078 = vmatpush1.bf16.msra.mxu0 %v5053
        %5079 = vmatprep.subr.bf16.mxu0 0
        %5080 = vmatpush1.bf16.msra.mxu0 %v5052
        %5081 = vmatprep.subr.bf16.mxu0 0
        %5082 = vmatpush1.bf16.msra.mxu0 %v5051
        %5083 = vmatprep.subr.bf16.mxu0 0
        %5084 = vmatpush2.bf16.msra.mxu0 0
        %5085 = vmatprep.subr.bf16.mxu0 0
        %5086 = vmatpush2.bf16.msra.mxu0 0
        %5087 = vmatprep.subr.bf16.mxu0 0
        %5088 = vmatpush2.bf16.msra.mxu0 0
        %5089 = vmatprep.subr.bf16.mxu0 0
        %5090 = vmatpush2.bf16.msra.mxu0 0
        %5091 = vmatprep.subr.bf16.mxu0 0
        %5092 = vmatpush2.bf16.msra.mxu0 0
        %5093 = vmatprep.subr.bf16.mxu0 0
        %5094 = vmatpush2.bf16.msra.mxu0 0
        %5095 = vmatprep.subr.bf16.mxu0 0
        %5096 = vmatpush2.bf16.msra.mxu0 0
        %5097 = vmatprep.subr.bf16.mxu0 0
        %5098 = vmatpush2.bf16.msra.mxu0 0
        %5099 = vmatprep.mubr.bf16.mxu0 0
        %5100 = vmatmul.mubr.bf16.gmra.mxu0 %v4987
        %v5101 = vpop.f32.mrf.mxu0
        %v5102 = vadd.f32 0.0, %v5101
        %v5103 = vpop.f32.mrf.mxu0
        %v5104 = vpop.f32.mrf.mxu0
        %v5105 = vadd.f32 0.0, %v5104
        %v5106 = vpop.f32.mrf.mxu0
        %5107 = vmatprep.mubr.bf16.mxu0 0
        %5108 = vmatmul.mubr.bf16.gmra.mxu0 %v4988
        %v5109 = vpop.f32.mrf.mxu0
        %v5110 = vadd.f32 0.0, %v5109
        %v5111 = vpop.f32.mrf.mxu0
        %v5112 = vpop.f32.mrf.mxu0
        %v5113 = vadd.f32 0.0, %v5112
        %v5114 = vpop.f32.mrf.mxu0
        %5115 = vmatprep.mubr.bf16.mxu0 0
        %5116 = vmatmul.mubr.bf16.gmra.mxu0 %v4989
        %v5117 = vpop.f32.mrf.mxu0
        %v5118 = vadd.f32 0.0, %v5117
        %v5119 = vpop.f32.mrf.mxu0
        %v5120 = vpop.f32.mrf.mxu0
        %v5121 = vadd.f32 0.0, %v5120
        %v5122 = vpop.f32.mrf.mxu0
        %5123 = vmatprep.mubr.bf16.mxu0 0
        %5124 = vmatmul.mubr.bf16.gmra.mxu0 %v4990
        %v5125 = vpop.f32.mrf.mxu0
        %v5126 = vadd.f32 0.0, %v5125
        %v5127 = vpop.f32.mrf.mxu0
        %v5128 = vpop.f32.mrf.mxu0
        %v5129 = vadd.f32 0.0, %v5128
        %v5130 = vpop.f32.mrf.mxu0
        %5131 = vmatprep.mubr.bf16.mxu0 0
        %5132 = vmatmul.mubr.bf16.gmra.mxu0 %v4991
        %v5133 = vpop.f32.mrf.mxu0
        %v5134 = vadd.f32 0.0, %v5133
        %v5135 = vpop.f32.mrf.mxu0
        %v5136 = vpop.f32.mrf.mxu0
        %v5137 = vadd.f32 0.0, %v5136
        %v5138 = vpop.f32.mrf.mxu0
        %5139 = vmatprep.mubr.bf16.mxu0 0
        %5140 = vmatmul.mubr.bf16.gmra.mxu0 %v4992
        %v5141 = vpop.f32.mrf.mxu0
        %v5142 = vadd.f32 0.0, %v5141
        %v5143 = vpop.f32.mrf.mxu0
        %v5144 = vpop.f32.mrf.mxu0
        %v5145 = vadd.f32 0.0, %v5144
        %v5146 = vpop.f32.mrf.mxu0
        %5147 = vmatprep.mubr.bf16.mxu0 0
        %5148 = vmatmul.mubr.bf16.gmra.mxu0 %v4993
        %v5149 = vpop.f32.mrf.mxu0
        %v5150 = vadd.f32 0.0, %v5149
        %v5151 = vpop.f32.mrf.mxu0
        %v5152 = vpop.f32.mrf.mxu0
        %v5153 = vadd.f32 0.0, %v5152
        %v5154 = vpop.f32.mrf.mxu0
        %5155 = vmatprep.mubr.bf16.mxu0 0
        %5156 = vmatmul.mubr.bf16.gmra.mxu0 %v4994
        %v5157 = vpop.f32.mrf.mxu0
        %v5158 = vadd.f32 0.0, %v5157
        %v5159 = vpop.f32.mrf.mxu0
        %v5160 = vpop.f32.mrf.mxu0
        %v5161 = vadd.f32 0.0, %v5160
        %v5162 = vpop.f32.mrf.mxu0
        %5163 = vmatprep.mubr.bf16.mxu0 0
        %5164 = vmatmul.mubr.bf16.gmra.mxu0 %v4995
        %v5165 = vpop.f32.mrf.mxu0
        %v5166 = vadd.f32 0.0, %v5165
        %v5167 = vpop.f32.mrf.mxu0
        %v5168 = vpop.f32.mrf.mxu0
        %v5169 = vadd.f32 0.0, %v5168
        %v5170 = vpop.f32.mrf.mxu0
        %5171 = vmatprep.mubr.bf16.mxu0 0
        %5172 = vmatmul.mubr.bf16.gmra.mxu0 %v4996
        %v5173 = vpop.f32.mrf.mxu0
        %v5174 = vadd.f32 0.0, %v5173
        %v5175 = vpop.f32.mrf.mxu0
        %v5176 = vpop.f32.mrf.mxu0
        %v5177 = vadd.f32 0.0, %v5176
        %v5178 = vpop.f32.mrf.mxu0
        %5179 = vmatprep.mubr.bf16.mxu0 0
        %5180 = vmatmul.mubr.bf16.gmra.mxu0 %v4997
        %v5181 = vpop.f32.mrf.mxu0
        %v5182 = vadd.f32 0.0, %v5181
        %v5183 = vpop.f32.mrf.mxu0
        %v5184 = vpop.f32.mrf.mxu0
        %v5185 = vadd.f32 0.0, %v5184
        %v5186 = vpop.f32.mrf.mxu0
        %5187 = vmatprep.mubr.bf16.mxu0 0
        %5188 = vmatmul.mubr.bf16.gmra.mxu0 %v4998
        %v5189 = vpop.f32.mrf.mxu0
        %v5190 = vadd.f32 0.0, %v5189
        %v5191 = vpop.f32.mrf.mxu0
        %v5192 = vpop.f32.mrf.mxu0
        %v5193 = vadd.f32 0.0, %v5192
        %v5194 = vpop.f32.mrf.mxu0
        %5195 = vmatprep.mubr.bf16.mxu0 0
        %5196 = vmatmul.mubr.bf16.gmra.mxu0 %v4999
        %v5197 = vpop.f32.mrf.mxu0
        %v5198 = vadd.f32 0.0, %v5197
        %v5199 = vpop.f32.mrf.mxu0
        %v5200 = vpop.f32.mrf.mxu0
        %v5201 = vadd.f32 0.0, %v5200
        %v5202 = vpop.f32.mrf.mxu0
        %5203 = vmatprep.mubr.bf16.mxu0 0
        %5204 = vmatmul.mubr.bf16.gmra.mxu0 %v5000
        %v5205 = vpop.f32.mrf.mxu0
        %v5206 = vadd.f32 0.0, %v5205
        %v5207 = vpop.f32.mrf.mxu0
        %v5208 = vpop.f32.mrf.mxu0
        %v5209 = vadd.f32 0.0, %v5208
        %v5210 = vpop.f32.mrf.mxu0
        %5211 = vmatprep.mubr.bf16.mxu0 0
        %5212 = vmatmul.mubr.bf16.gmra.mxu0 %v5001
        %v5213 = vpop.f32.mrf.mxu0
        %v5214 = vadd.f32 0.0, %v5213
        %v5215 = vpop.f32.mrf.mxu0
        %v5216 = vpop.f32.mrf.mxu0
        %v5217 = vadd.f32 0.0, %v5216
        %v5218 = vpop.f32.mrf.mxu0
        %5219 = vmatprep.mubr.bf16.mxu0 0
        %5220 = vmatmul.mubr.bf16.gmra.mxu0 %v5002
        %v5221 = vpop.f32.mrf.mxu0
        %v5222 = vadd.f32 0.0, %v5221
        %v5223 = vpop.f32.mrf.mxu0
        %v5224 = vpop.f32.mrf.mxu0
        %v5225 = vadd.f32 0.0, %v5224
        %v5226 = vpop.f32.mrf.mxu0
        %5227 = vdwg.mxu0
        %v5228 = vadd.f32 %v4474, %v5102
        %v5229 = vadd.f32 %v4475, %v5105
        %v5230 = vadd.f32 %v4476, %v5110
        %v5231 = vadd.f32 %v4477, %v5113
        %v5232 = vadd.f32 %v4478, %v5118
        %v5233 = vadd.f32 %v4479, %v5121
        %v5234 = vadd.f32 %v4480, %v5126
        %v5235 = vadd.f32 %v4481, %v5129
        %v5236 = vadd.f32 %v4482, %v5134
        %v5237 = vadd.f32 %v4483, %v5137
        %v5238 = vadd.f32 %v4484, %v5142
        %v5239 = vadd.f32 %v4485, %v5145
        %v5240 = vadd.f32 %v4486, %v5150
        %v5241 = vadd.f32 %v4487, %v5153
        %v5242 = vadd.f32 %v4488, %v5158
        %v5243 = vadd.f32 %v4489, %v5161
        %v5244 = vadd.f32 %v4490, %v5166
        %v5245 = vadd.f32 %v4491, %v5169
        %v5246 = vadd.f32 %v4492, %v5174
        %v5247 = vadd.f32 %v4493, %v5177
        %v5248 = vadd.f32 %v4494, %v5182
        %v5249 = vadd.f32 %v4495, %v5185
        %v5250 = vadd.f32 %v4496, %v5190
        %v5251 = vadd.f32 %v4497, %v5193
        %v5252 = vadd.f32 %v4498, %v5198
        %v5253 = vadd.f32 %v4499, %v5201
        %v5254 = vadd.f32 %v4500, %v5206
        %v5255 = vadd.f32 %v4501, %v5209
        %v5256 = vadd.f32 %v4502, %v5214
        %v5257 = vadd.f32 %v4503, %v5217
        %v5258 = vadd.f32 %v4504, %v5222
        %v5259 = vadd.f32 %v4505, %v5225
        %v5260 = vld [vmem:[%s4119] sm:$0xe]
        %v5261 = vld [vmem:[%s4119 + $0xc] sm:$0xe]
        %v5262 = vld [vmem:[%s4119 + $0x18] sm:$0xe]
        %v5263 = vld [vmem:[%s4119 + $0x24] sm:$0xe]
        %v5264 = vld [vmem:[%s4119 + $0x30] sm:$0xe]
        %v5265 = vld [vmem:[%s4119 + $0x3c] sm:$0xe]
        %v5266 = vld [vmem:[%s4119 + $0x48] sm:$0xe]
        %v5267 = vld [vmem:[%s4119 + $0x54] sm:$0xe]
        %v5268 = vld [vmem:[%s4119 + $0x60] sm:$0xe]
        %v5269 = vld [vmem:[%s4119 + $0x6c] sm:$0xe]
        %v5270 = vld [vmem:[%s4119 + $0x78] sm:$0xe]
        %v5271 = vld [vmem:[%s4119 + $0x84] sm:$0xe]
        %v5272 = vld [vmem:[%s4119 + $0x90] sm:$0xe]
        %v5273 = vld [vmem:[%s4119 + $0x9c] sm:$0xe]
        %v5274 = vld [vmem:[%s4119 + $0xa8] sm:$0xe]
        %v5275 = vld [vmem:[%s4119 + $0xb4] sm:$0xe]
        %v5324 = vrot.slane %v5260, 5
        %v5325 = vrot.slane %v5324, 4
        %v5326 = vrot.slane %v4507, 5
        %v5327 = vsel %vm2046, %v5325, %v5326
        %v5328 = vrot.slane %v5326, 4
        %v5329 = vrot.slane %v4508, 5
        %v5330 = vsel %vm2046, %v5328, %v5329
        %v5331 = vrot.slane %v5261, 5
        %v5332 = vrot.slane %v5331, 4
        %v5333 = vrot.slane %v4510, 5
        %v5334 = vsel %vm2046, %v5332, %v5333
        %v5335 = vrot.slane %v5333, 4
        %v5336 = vrot.slane %v4511, 5
        %v5337 = vsel %vm2046, %v5335, %v5336
        %v5338 = vrot.slane %v5262, 5
        %v5339 = vrot.slane %v5338, 4
        %v5340 = vrot.slane %v4513, 5
        %v5341 = vsel %vm2046, %v5339, %v5340
        %v5342 = vrot.slane %v5340, 4
        %v5343 = vrot.slane %v4514, 5
        %v5344 = vsel %vm2046, %v5342, %v5343
        %v5345 = vrot.slane %v5263, 5
        %v5346 = vrot.slane %v5345, 4
        %v5347 = vrot.slane %v4516, 5
        %v5348 = vsel %vm2046, %v5346, %v5347
        %v5349 = vrot.slane %v5347, 4
        %v5350 = vrot.slane %v4517, 5
        %v5351 = vsel %vm2046, %v5349, %v5350
        %v5352 = vrot.slane %v5264, 5
        %v5353 = vrot.slane %v5352, 4
        %v5354 = vrot.slane %v4519, 5
        %v5355 = vsel %vm2046, %v5353, %v5354
        %v5356 = vrot.slane %v5354, 4
        %v5357 = vrot.slane %v4520, 5
        %v5358 = vsel %vm2046, %v5356, %v5357
        %v5359 = vrot.slane %v5265, 5
        %v5360 = vrot.slane %v5359, 4
        %v5361 = vrot.slane %v4522, 5
        %v5362 = vsel %vm2046, %v5360, %v5361
        %v5363 = vrot.slane %v5361, 4
        %v5364 = vrot.slane %v4523, 5
        %v5365 = vsel %vm2046, %v5363, %v5364
        %v5366 = vrot.slane %v5266, 5
        %v5367 = vrot.slane %v5366, 4
        %v5368 = vrot.slane %v4525, 5
        %v5369 = vsel %vm2046, %v5367, %v5368
        %v5370 = vrot.slane %v5368, 4
        %v5371 = vrot.slane %v4526, 5
        %v5372 = vsel %vm2046, %v5370, %v5371
        %v5373 = vrot.slane %v5267, 5
        %v5374 = vrot.slane %v5373, 4
        %v5375 = vrot.slane %v4528, 5
        %v5376 = vsel %vm2046, %v5374, %v5375
        %v5377 = vrot.slane %v5375, 4
        %v5378 = vrot.slane %v4529, 5
        %v5379 = vsel %vm2046, %v5377, %v5378
        %v5380 = vrot.slane %v5268, 5
        %v5381 = vrot.slane %v5380, 4
        %v5382 = vrot.slane %v4531, 5
        %v5383 = vsel %vm2046, %v5381, %v5382
        %v5384 = vrot.slane %v5382, 4
        %v5385 = vrot.slane %v4532, 5
        %v5386 = vsel %vm2046, %v5384, %v5385
        %v5387 = vrot.slane %v5269, 5
        %v5388 = vrot.slane %v5387, 4
        %v5389 = vrot.slane %v4534, 5
        %v5390 = vsel %vm2046, %v5388, %v5389
        %v5391 = vrot.slane %v5389, 4
        %v5392 = vrot.slane %v4535, 5
        %v5393 = vsel %vm2046, %v5391, %v5392
        %v5394 = vrot.slane %v5270, 5
        %v5395 = vrot.slane %v5394, 4
        %v5396 = vrot.slane %v4537, 5
        %v5397 = vsel %vm2046, %v5395, %v5396
        %v5398 = vrot.slane %v5396, 4
        %v5399 = vrot.slane %v4538, 5
        %v5400 = vsel %vm2046, %v5398, %v5399
        %v5401 = vrot.slane %v5271, 5
        %v5402 = vrot.slane %v5401, 4
        %v5403 = vrot.slane %v4540, 5
        %v5404 = vsel %vm2046, %v5402, %v5403
        %v5405 = vrot.slane %v5403, 4
        %v5406 = vrot.slane %v4541, 5
        %v5407 = vsel %vm2046, %v5405, %v5406
        %v5408 = vrot.slane %v5272, 5
        %v5409 = vrot.slane %v5408, 4
        %v5410 = vrot.slane %v4543, 5
        %v5411 = vsel %vm2046, %v5409, %v5410
        %v5412 = vrot.slane %v5410, 4
        %v5413 = vrot.slane %v4544, 5
        %v5414 = vsel %vm2046, %v5412, %v5413
        %v5415 = vrot.slane %v5273, 5
        %v5416 = vrot.slane %v5415, 4
        %v5417 = vrot.slane %v4546, 5
        %v5418 = vsel %vm2046, %v5416, %v5417
        %v5419 = vrot.slane %v5417, 4
        %v5420 = vrot.slane %v4547, 5
        %v5421 = vsel %vm2046, %v5419, %v5420
        %v5422 = vrot.slane %v5274, 5
        %v5423 = vrot.slane %v5422, 4
        %v5424 = vrot.slane %v4549, 5
        %v5425 = vsel %vm2046, %v5423, %v5424
        %v5426 = vrot.slane %v5424, 4
        %v5427 = vrot.slane %v4550, 5
        %v5428 = vsel %vm2046, %v5426, %v5427
        %v5429 = vrot.slane %v5275, 5
        %v5430 = vrot.slane %v5429, 4
        %v5431 = vrot.slane %v4552, 5
        %v5432 = vsel %vm2046, %v5430, %v5431
        %v5433 = vrot.slane %v5431, 4
        %v5434 = vrot.slane %v4553, 5
        %v5435 = vsel %vm2046, %v5433, %v5434
        %s5436 = scalar_lea.vmem [#allocation7], 512
        %v5437 = vld [vmem:[%s5436] sm:$0xf]
        %v5438 = vld [vmem:[%s5436 + $0x4] sm:$0xf]
        %v5439 = vld [vmem:[%s5436 + $0x8] sm:$0xf]
        %v5440 = vld [vmem:[%s5436 + $0xc] sm:$0xf]
        %v5441 = vld [vmem:[%s5436 + $0x10] sm:$0xf]
        %v5442 = vld [vmem:[%s5436 + $0x14] sm:$0xf]
        %v5443 = vld [vmem:[%s5436 + $0x18] sm:$0xf]
        %v5444 = vld [vmem:[%s5436 + $0x1c] sm:$0xf]
        %v5445 = vld [vmem:[%s5436 + $0x20] sm:$0xf]
        %v5446 = vld [vmem:[%s5436 + $0x24] sm:$0xf]
        %v5447 = vld [vmem:[%s5436 + $0x28] sm:$0xf]
        %v5448 = vld [vmem:[%s5436 + $0x2c] sm:$0xf]
        %v5449 = vld [vmem:[%s5436 + $0x30] sm:$0xf]
        %v5450 = vld [vmem:[%s5436 + $0x34] sm:$0xf]
        %v5451 = vld [vmem:[%s5436 + $0x38] sm:$0xf]
        %v5452 = vld [vmem:[%s5436 + $0x3c] sm:$0xf]
        %v5453 = vunpack.c.l.b16 %v5327
        %v5454 = vunpack.c.l.b16 %v5330
        %v5455 = vunpack.c.l.b16 %v5334
        %v5456 = vunpack.c.l.b16 %v5337
        %v5457 = vunpack.c.l.b16 %v5341
        %v5458 = vunpack.c.l.b16 %v5344
        %v5459 = vunpack.c.l.b16 %v5348
        %v5460 = vunpack.c.l.b16 %v5351
        %v5461 = vunpack.c.l.b16 %v5355
        %v5462 = vunpack.c.l.b16 %v5358
        %v5463 = vunpack.c.l.b16 %v5362
        %v5464 = vunpack.c.l.b16 %v5365
        %v5465 = vunpack.c.l.b16 %v5369
        %v5466 = vunpack.c.l.b16 %v5372
        %v5467 = vunpack.c.l.b16 %v5376
        %v5468 = vunpack.c.l.b16 %v5379
        %v5469 = vunpack.c.l.b16 %v5383
        %v5470 = vunpack.c.l.b16 %v5386
        %v5471 = vunpack.c.l.b16 %v5390
        %v5472 = vunpack.c.l.b16 %v5393
        %v5473 = vunpack.c.l.b16 %v5397
        %v5474 = vunpack.c.l.b16 %v5400
        %v5475 = vunpack.c.l.b16 %v5404
        %v5476 = vunpack.c.l.b16 %v5407
        %v5477 = vunpack.c.l.b16 %v5411
        %v5478 = vunpack.c.l.b16 %v5414
        %v5479 = vunpack.c.l.b16 %v5418
        %v5480 = vunpack.c.l.b16 %v5421
        %v5481 = vunpack.c.l.b16 %v5425
        %v5482 = vunpack.c.l.b16 %v5428
        %v5483 = vunpack.c.l.b16 %v5432
        %v5484 = vunpack.c.l.b16 %v5435
        %v5485 = vpack.c.b16 %v5454, %v5453
        %v5486 = vpack.c.b16 %v5456, %v5455
        %v5487 = vpack.c.b16 %v5458, %v5457
        %v5488 = vpack.c.b16 %v5460, %v5459
        %v5489 = vpack.c.b16 %v5462, %v5461
        %v5490 = vpack.c.b16 %v5464, %v5463
        %v5491 = vpack.c.b16 %v5466, %v5465
        %v5492 = vpack.c.b16 %v5468, %v5467
        %v5493 = vpack.c.b16 %v5470, %v5469
        %v5494 = vpack.c.b16 %v5472, %v5471
        %v5495 = vpack.c.b16 %v5474, %v5473
        %v5496 = vpack.c.b16 %v5476, %v5475
        %v5497 = vpack.c.b16 %v5478, %v5477
        %v5498 = vpack.c.b16 %v5480, %v5479
        %v5499 = vpack.c.b16 %v5482, %v5481
        %v5500 = vpack.c.b16 %v5484, %v5483
        %v5533 = vunpack.c.l.b16 %v5437
        %v5534 = vunpack.c.l.b16 %v5438
        %v5535 = vunpack.c.l.b16 %v5439
        %v5536 = vunpack.c.l.b16 %v5440
        %v5537 = vunpack.c.l.b16 %v5441
        %v5538 = vunpack.c.l.b16 %v5442
        %v5539 = vunpack.c.l.b16 %v5443
        %v5540 = vunpack.c.l.b16 %v5444
        %v5541 = vunpack.c.l.b16 %v5445
        %v5542 = vunpack.c.l.b16 %v5446
        %v5543 = vunpack.c.l.b16 %v5447
        %v5544 = vunpack.c.l.b16 %v5448
        %v5545 = vunpack.c.l.b16 %v5449
        %v5546 = vunpack.c.l.b16 %v5450
        %v5547 = vunpack.c.l.b16 %v5451
        %v5548 = vunpack.c.l.b16 %v5452
        %v5549 = vpack.c.b16 %v5534, %v5533
        %v5550 = vpack.c.b16 %v5536, %v5535
        %v5551 = vpack.c.b16 %v5538, %v5537
        %v5552 = vpack.c.b16 %v5540, %v5539
        %v5553 = vpack.c.b16 %v5542, %v5541
        %v5554 = vpack.c.b16 %v5544, %v5543
        %v5555 = vpack.c.b16 %v5546, %v5545
        %v5556 = vpack.c.b16 %v5548, %v5547
        %5565 = vmatprep.subr.bf16.mxu0 0
        %5566 = vmatpush1.bf16.msra.mxu0 %v5556
        %5567 = vmatprep.subr.bf16.mxu0 0
        %5568 = vmatpush1.bf16.msra.mxu0 %v5555
        %5569 = vmatprep.subr.bf16.mxu0 0
        %5570 = vmatpush1.bf16.msra.mxu0 %v5554
        %5571 = vmatprep.subr.bf16.mxu0 0
        %5572 = vmatpush1.bf16.msra.mxu0 %v5553
        %5573 = vmatprep.subr.bf16.mxu0 0
        %5574 = vmatpush1.bf16.msra.mxu0 %v5552
        %5575 = vmatprep.subr.bf16.mxu0 0
        %5576 = vmatpush1.bf16.msra.mxu0 %v5551
        %5577 = vmatprep.subr.bf16.mxu0 0
        %5578 = vmatpush1.bf16.msra.mxu0 %v5550
        %5579 = vmatprep.subr.bf16.mxu0 0
        %5580 = vmatpush1.bf16.msra.mxu0 %v5549
        %5581 = vmatprep.subr.bf16.mxu0 0
        %5582 = vmatpush2.bf16.msra.mxu0 0
        %5583 = vmatprep.subr.bf16.mxu0 0
        %5584 = vmatpush2.bf16.msra.mxu0 0
        %5585 = vmatprep.subr.bf16.mxu0 0
        %5586 = vmatpush2.bf16.msra.mxu0 0
        %5587 = vmatprep.subr.bf16.mxu0 0
        %5588 = vmatpush2.bf16.msra.mxu0 0
        %5589 = vmatprep.subr.bf16.mxu0 0
        %5590 = vmatpush2.bf16.msra.mxu0 0
        %5591 = vmatprep.subr.bf16.mxu0 0
        %5592 = vmatpush2.bf16.msra.mxu0 0
        %5593 = vmatprep.subr.bf16.mxu0 0
        %5594 = vmatpush2.bf16.msra.mxu0 0
        %5595 = vmatprep.subr.bf16.mxu0 0
        %5596 = vmatpush2.bf16.msra.mxu0 0
        %5597 = vmatprep.mubr.bf16.mxu0 0
        %5598 = vmatmul.mubr.bf16.gmra.mxu0 %v5485
        %v5599 = vpop.f32.mrf.mxu0
        %v5600 = vadd.f32 0.0, %v5599
        %v5601 = vpop.f32.mrf.mxu0
        %v5602 = vpop.f32.mrf.mxu0
        %v5603 = vadd.f32 0.0, %v5602
        %v5604 = vpop.f32.mrf.mxu0
        %5605 = vmatprep.mubr.bf16.mxu0 0
        %5606 = vmatmul.mubr.bf16.gmra.mxu0 %v5486
        %v5607 = vpop.f32.mrf.mxu0
        %v5608 = vadd.f32 0.0, %v5607
        %v5609 = vpop.f32.mrf.mxu0
        %v5610 = vpop.f32.mrf.mxu0
        %v5611 = vadd.f32 0.0, %v5610
        %v5612 = vpop.f32.mrf.mxu0
        %5613 = vmatprep.mubr.bf16.mxu0 0
        %5614 = vmatmul.mubr.bf16.gmra.mxu0 %v5487
        %v5615 = vpop.f32.mrf.mxu0
        %v5616 = vadd.f32 0.0, %v5615
        %v5617 = vpop.f32.mrf.mxu0
        %v5618 = vpop.f32.mrf.mxu0
        %v5619 = vadd.f32 0.0, %v5618
        %v5620 = vpop.f32.mrf.mxu0
        %5621 = vmatprep.mubr.bf16.mxu0 0
        %5622 = vmatmul.mubr.bf16.gmra.mxu0 %v5488
        %v5623 = vpop.f32.mrf.mxu0
        %v5624 = vadd.f32 0.0, %v5623
        %v5625 = vpop.f32.mrf.mxu0
        %v5626 = vpop.f32.mrf.mxu0
        %v5627 = vadd.f32 0.0, %v5626
        %v5628 = vpop.f32.mrf.mxu0
        %5629 = vmatprep.mubr.bf16.mxu0 0
        %5630 = vmatmul.mubr.bf16.gmra.mxu0 %v5489
        %v5631 = vpop.f32.mrf.mxu0
        %v5632 = vadd.f32 0.0, %v5631
        %v5633 = vpop.f32.mrf.mxu0
        %v5634 = vpop.f32.mrf.mxu0
        %v5635 = vadd.f32 0.0, %v5634
        %v5636 = vpop.f32.mrf.mxu0
        %5637 = vmatprep.mubr.bf16.mxu0 0
        %5638 = vmatmul.mubr.bf16.gmra.mxu0 %v5490
        %v5639 = vpop.f32.mrf.mxu0
        %v5640 = vadd.f32 0.0, %v5639
        %v5641 = vpop.f32.mrf.mxu0
        %v5642 = vpop.f32.mrf.mxu0
        %v5643 = vadd.f32 0.0, %v5642
        %v5644 = vpop.f32.mrf.mxu0
        %5645 = vmatprep.mubr.bf16.mxu0 0
        %5646 = vmatmul.mubr.bf16.gmra.mxu0 %v5491
        %v5647 = vpop.f32.mrf.mxu0
        %v5648 = vadd.f32 0.0, %v5647
        %v5649 = vpop.f32.mrf.mxu0
        %v5650 = vpop.f32.mrf.mxu0
        %v5651 = vadd.f32 0.0, %v5650
        %v5652 = vpop.f32.mrf.mxu0
        %5653 = vmatprep.mubr.bf16.mxu0 0
        %5654 = vmatmul.mubr.bf16.gmra.mxu0 %v5492
        %v5655 = vpop.f32.mrf.mxu0
        %v5656 = vadd.f32 0.0, %v5655
        %v5657 = vpop.f32.mrf.mxu0
        %v5658 = vpop.f32.mrf.mxu0
        %v5659 = vadd.f32 0.0, %v5658
        %v5660 = vpop.f32.mrf.mxu0
        %5661 = vmatprep.mubr.bf16.mxu0 0
        %5662 = vmatmul.mubr.bf16.gmra.mxu0 %v5493
        %v5663 = vpop.f32.mrf.mxu0
        %v5664 = vadd.f32 0.0, %v5663
        %v5665 = vpop.f32.mrf.mxu0
        %v5666 = vpop.f32.mrf.mxu0
        %v5667 = vadd.f32 0.0, %v5666
        %v5668 = vpop.f32.mrf.mxu0
        %5669 = vmatprep.mubr.bf16.mxu0 0
        %5670 = vmatmul.mubr.bf16.gmra.mxu0 %v5494
        %v5671 = vpop.f32.mrf.mxu0
        %v5672 = vadd.f32 0.0, %v5671
        %v5673 = vpop.f32.mrf.mxu0
        %v5674 = vpop.f32.mrf.mxu0
        %v5675 = vadd.f32 0.0, %v5674
        %v5676 = vpop.f32.mrf.mxu0
        %5677 = vmatprep.mubr.bf16.mxu0 0
        %5678 = vmatmul.mubr.bf16.gmra.mxu0 %v5495
        %v5679 = vpop.f32.mrf.mxu0
        %v5680 = vadd.f32 0.0, %v5679
        %v5681 = vpop.f32.mrf.mxu0
        %v5682 = vpop.f32.mrf.mxu0
        %v5683 = vadd.f32 0.0, %v5682
        %v5684 = vpop.f32.mrf.mxu0
        %5685 = vmatprep.mubr.bf16.mxu0 0
        %5686 = vmatmul.mubr.bf16.gmra.mxu0 %v5496
        %v5687 = vpop.f32.mrf.mxu0
        %v5688 = vadd.f32 0.0, %v5687
        %v5689 = vpop.f32.mrf.mxu0
        %v5690 = vpop.f32.mrf.mxu0
        %v5691 = vadd.f32 0.0, %v5690
        %v5692 = vpop.f32.mrf.mxu0
        %5693 = vmatprep.mubr.bf16.mxu0 0
        %5694 = vmatmul.mubr.bf16.gmra.mxu0 %v5497
        %v5695 = vpop.f32.mrf.mxu0
        %v5696 = vadd.f32 0.0, %v5695
        %v5697 = vpop.f32.mrf.mxu0
        %v5698 = vpop.f32.mrf.mxu0
        %v5699 = vadd.f32 0.0, %v5698
        %v5700 = vpop.f32.mrf.mxu0
        %5701 = vmatprep.mubr.bf16.mxu0 0
        %5702 = vmatmul.mubr.bf16.gmra.mxu0 %v5498
        %v5703 = vpop.f32.mrf.mxu0
        %v5704 = vadd.f32 0.0, %v5703
        %v5705 = vpop.f32.mrf.mxu0
        %v5706 = vpop.f32.mrf.mxu0
        %v5707 = vadd.f32 0.0, %v5706
        %v5708 = vpop.f32.mrf.mxu0
        %5709 = vmatprep.mubr.bf16.mxu0 0
        %5710 = vmatmul.mubr.bf16.gmra.mxu0 %v5499
        %v5711 = vpop.f32.mrf.mxu0
        %v5712 = vadd.f32 0.0, %v5711
        %v5713 = vpop.f32.mrf.mxu0
        %v5714 = vpop.f32.mrf.mxu0
        %v5715 = vadd.f32 0.0, %v5714
        %v5716 = vpop.f32.mrf.mxu0
        %5717 = vmatprep.mubr.bf16.mxu0 0
        %5718 = vmatmul.mubr.bf16.gmra.mxu0 %v5500
        %v5719 = vpop.f32.mrf.mxu0
        %v5720 = vadd.f32 0.0, %v5719
        %v5721 = vpop.f32.mrf.mxu0
        %v5722 = vpop.f32.mrf.mxu0
        %v5723 = vadd.f32 0.0, %v5722
        %v5724 = vpop.f32.mrf.mxu0
        %5725 = vdwg.mxu0
        %v5726 = vadd.f32 %v5228, %v5600
        %v5727 = vadd.f32 %v5229, %v5603
        %v5728 = vadd.f32 %v5230, %v5608
        %v5729 = vadd.f32 %v5231, %v5611
        %v5730 = vadd.f32 %v5232, %v5616
        %v5731 = vadd.f32 %v5233, %v5619
        %v5732 = vadd.f32 %v5234, %v5624
        %v5733 = vadd.f32 %v5235, %v5627
        %v5734 = vadd.f32 %v5236, %v5632
        %v5735 = vadd.f32 %v5237, %v5635
        %v5736 = vadd.f32 %v5238, %v5640
        %v5737 = vadd.f32 %v5239, %v5643
        %v5738 = vadd.f32 %v5240, %v5648
        %v5739 = vadd.f32 %v5241, %v5651
        %v5740 = vadd.f32 %v5242, %v5656
        %v5741 = vadd.f32 %v5243, %v5659
        %v5742 = vadd.f32 %v5244, %v5664
        %v5743 = vadd.f32 %v5245, %v5667
        %v5744 = vadd.f32 %v5246, %v5672
        %v5745 = vadd.f32 %v5247, %v5675
        %v5746 = vadd.f32 %v5248, %v5680
        %v5747 = vadd.f32 %v5249, %v5683
        %v5748 = vadd.f32 %v5250, %v5688
        %v5749 = vadd.f32 %v5251, %v5691
        %v5750 = vadd.f32 %v5252, %v5696
        %v5751 = vadd.f32 %v5253, %v5699
        %v5752 = vadd.f32 %v5254, %v5704
        %v5753 = vadd.f32 %v5255, %v5707
        %v5754 = vadd.f32 %v5256, %v5712
        %v5755 = vadd.f32 %v5257, %v5715
        %v5756 = vadd.f32 %v5258, %v5720
        %v5757 = vadd.f32 %v5259, %v5723
        %v5758 = vld [vmem:[%s2] sm:$0x1]
        %v5760 = vlaneseq
        %v5761 = vshrl.u32 %v5760, 7
        %v5762 = vsub.s32 0, %v5761
        %v5763 = vrot.slane %v5758, %v5762
        %v5765 = vmul.f32 %v5726, %v5763
        %v5766 = vmul.f32 %v5727, %v5763
        %v5767 = vmul.f32 %v5728, %v5763
        %v5768 = vmul.f32 %v5729, %v5763
        %v5769 = vmul.f32 %v5730, %v5763
        %v5770 = vmul.f32 %v5731, %v5763
        %v5771 = vmul.f32 %v5732, %v5763
        %v5772 = vmul.f32 %v5733, %v5763
        %v5773 = vmul.f32 %v5734, %v5763
        %v5774 = vmul.f32 %v5735, %v5763
        %v5775 = vmul.f32 %v5736, %v5763
        %v5776 = vmul.f32 %v5737, %v5763
        %v5777 = vmul.f32 %v5738, %v5763
        %v5778 = vmul.f32 %v5739, %v5763
        %v5779 = vmul.f32 %v5740, %v5763
        %v5780 = vmul.f32 %v5741, %v5763
        %v5781 = vmul.f32 %v5742, %v5763
        %v5782 = vmul.f32 %v5743, %v5763
        %v5783 = vmul.f32 %v5744, %v5763
        %v5784 = vmul.f32 %v5745, %v5763
        %v5785 = vmul.f32 %v5746, %v5763
        %v5786 = vmul.f32 %v5747, %v5763
        %v5787 = vmul.f32 %v5748, %v5763
        %v5788 = vmul.f32 %v5749, %v5763
        %v5789 = vmul.f32 %v5750, %v5763
        %v5790 = vmul.f32 %v5751, %v5763
        %v5791 = vmul.f32 %v5752, %v5763
        %v5792 = vmul.f32 %v5753, %v5763
        %v5793 = vmul.f32 %v5754, %v5763
        %v5794 = vmul.f32 %v5755, %v5763
        %v5795 = vmul.f32 %v5756, %v5763
        %v5796 = vmul.f32 %v5757, %v5763
        %v5797 = vld [vmem:[%s3] sm:$0x1]
        %v5799 = vlaneseq
        %v5800 = vshrl.u32 %v5799, 7
        %v5801 = vsub.s32 0, %v5800
        %v5802 = vrot.slane %v5797, %v5801
        %v5804 = vadd.f32 %v5765, %v5802
        %v5805 = vadd.f32 %v5766, %v5802
        %v5806 = vadd.f32 %v5767, %v5802
        %v5807 = vadd.f32 %v5768, %v5802
        %v5808 = vadd.f32 %v5769, %v5802
        %v5809 = vadd.f32 %v5770, %v5802
        %v5810 = vadd.f32 %v5771, %v5802
        %v5811 = vadd.f32 %v5772, %v5802
        %v5812 = vadd.f32 %v5773, %v5802
        %v5813 = vadd.f32 %v5774, %v5802
        %v5814 = vadd.f32 %v5775, %v5802
        %v5815 = vadd.f32 %v5776, %v5802
        %v5816 = vadd.f32 %v5777, %v5802
        %v5817 = vadd.f32 %v5778, %v5802
        %v5818 = vadd.f32 %v5779, %v5802
        %v5819 = vadd.f32 %v5780, %v5802
        %v5820 = vadd.f32 %v5781, %v5802
        %v5821 = vadd.f32 %v5782, %v5802
        %v5822 = vadd.f32 %v5783, %v5802
        %v5823 = vadd.f32 %v5784, %v5802
        %v5824 = vadd.f32 %v5785, %v5802
        %v5825 = vadd.f32 %v5786, %v5802
        %v5826 = vadd.f32 %v5787, %v5802
        %v5827 = vadd.f32 %v5788, %v5802
        %v5828 = vadd.f32 %v5789, %v5802
        %v5829 = vadd.f32 %v5790, %v5802
        %v5830 = vadd.f32 %v5791, %v5802
        %v5831 = vadd.f32 %v5792, %v5802
        %v5832 = vadd.f32 %v5793, %v5802
        %v5833 = vadd.f32 %v5794, %v5802
        %v5834 = vadd.f32 %v5795, %v5802
        %v5835 = vadd.f32 %v5796, %v5802
        %v5836 = vmax.f32 %v5804, 0.0
        %v5837 = vmax.f32 %v5805, 0.0
        %v5838 = vmax.f32 %v5806, 0.0
        %v5839 = vmax.f32 %v5807, 0.0
        %v5840 = vmax.f32 %v5808, 0.0
        %v5841 = vmax.f32 %v5809, 0.0
        %v5842 = vmax.f32 %v5810, 0.0
        %v5843 = vmax.f32 %v5811, 0.0
        %v5844 = vmax.f32 %v5812, 0.0
        %v5845 = vmax.f32 %v5813, 0.0
        %v5846 = vmax.f32 %v5814, 0.0
        %v5847 = vmax.f32 %v5815, 0.0
        %v5848 = vmax.f32 %v5816, 0.0
        %v5849 = vmax.f32 %v5817, 0.0
        %v5850 = vmax.f32 %v5818, 0.0
        %v5851 = vmax.f32 %v5819, 0.0
        %v5852 = vmax.f32 %v5820, 0.0
        %v5853 = vmax.f32 %v5821, 0.0
        %v5854 = vmax.f32 %v5822, 0.0
        %v5855 = vmax.f32 %v5823, 0.0
        %v5856 = vmax.f32 %v5824, 0.0
        %v5857 = vmax.f32 %v5825, 0.0
        %v5858 = vmax.f32 %v5826, 0.0
        %v5859 = vmax.f32 %v5827, 0.0
        %v5860 = vmax.f32 %v5828, 0.0
        %v5861 = vmax.f32 %v5829, 0.0
        %v5862 = vmax.f32 %v5830, 0.0
        %v5863 = vmax.f32 %v5831, 0.0
        %v5864 = vmax.f32 %v5832, 0.0
        %v5865 = vmax.f32 %v5833, 0.0
        %v5866 = vmax.f32 %v5834, 0.0
        %v5867 = vmax.f32 %v5835, 0.0
        %5868 = vst [vmem:[#allocation3] sm:$0xf] 0
        %5869 = vst [vmem:[#allocation3 + $0x4] sm:$0xf] 0
        %5870 = vst [vmem:[#allocation3 + $0x8] sm:$0x1] 0
        %5871 = vst [vmem:[#allocation3 + $0xc] sm:$0xf] 0
        %5872 = vst [vmem:[#allocation3 + $0x10] sm:$0xf] 0
        %5873 = vst [vmem:[#allocation3 + $0x14] sm:$0x1] 0
        %5874 = vst [vmem:[#allocation3 + $0x18] sm:$0xf] 0
        %5875 = vst [vmem:[#allocation3 + $0x1c] sm:$0xf] 0
        %5876 = vst [vmem:[#allocation3 + $0x20] sm:$0x1] 0
        %5877 = vst [vmem:[#allocation3 + $0x24] sm:$0xf] 0
        %5878 = vst [vmem:[#allocation3 + $0x28] sm:$0xf] 0
        %5879 = vst [vmem:[#allocation3 + $0x2c] sm:$0x1] 0
        %5880 = vst [vmem:[#allocation3 + $0x30] sm:$0xf] 0
        %5881 = vst [vmem:[#allocation3 + $0x34] sm:$0xf] 0
        %5882 = vst [vmem:[#allocation3 + $0x38] sm:$0x1] 0
        %5883 = vst [vmem:[#allocation3 + $0x3c] sm:$0xf] 0
        %5884 = vst [vmem:[#allocation3 + $0x40] sm:$0xf] 0
        %5885 = vst [vmem:[#allocation3 + $0x44] sm:$0x1] 0
        %5886 = vst [vmem:[#allocation3 + $0x48] sm:$0xf] 0
        %5887 = vst [vmem:[#allocation3 + $0x4c] sm:$0xf] 0
        %5888 = vst [vmem:[#allocation3 + $0x50] sm:$0x1] 0
        %5889 = vst [vmem:[#allocation3 + $0x54] sm:$0xf] 0
        %5890 = vst [vmem:[#allocation3 + $0x58] sm:$0xf] 0
        %5891 = vst [vmem:[#allocation3 + $0x5c] sm:$0x1] 0
        %5892 = vst [vmem:[#allocation3 + $0x60] sm:$0xf] 0
        %5893 = vst [vmem:[#allocation3 + $0x64] sm:$0xf] 0
        %5894 = vst [vmem:[#allocation3 + $0x68] sm:$0x1] 0
        %5895 = vst [vmem:[#allocation3 + $0x6c] sm:$0xf] 0
        %5896 = vst [vmem:[#allocation3 + $0x70] sm:$0xf] 0
        %5897 = vst [vmem:[#allocation3 + $0x74] sm:$0x1] 0
        %5898 = vst [vmem:[#allocation3 + $0x78] sm:$0xf] 0
        %5899 = vst [vmem:[#allocation3 + $0x7c] sm:$0xf] 0
        %5900 = vst [vmem:[#allocation3 + $0x80] sm:$0x1] 0
        %5901 = vst [vmem:[#allocation3 + $0x84] sm:$0xf] 0
        %5902 = vst [vmem:[#allocation3 + $0x88] sm:$0xf] 0
        %5903 = vst [vmem:[#allocation3 + $0x8c] sm:$0x1] 0
        %5904 = vst [vmem:[#allocation3 + $0x90] sm:$0xf] 0
        %5905 = vst [vmem:[#allocation3 + $0x94] sm:$0xf] 0
        %5906 = vst [vmem:[#allocation3 + $0x98] sm:$0x1] 0
        %5907 = vst [vmem:[#allocation3 + $0x9c] sm:$0xf] 0
        %5908 = vst [vmem:[#allocation3 + $0xa0] sm:$0xf] 0
        %5909 = vst [vmem:[#allocation3 + $0xa4] sm:$0x1] 0
        %5910 = vst [vmem:[#allocation3 + $0xa8] sm:$0xf] 0
        %5911 = vst [vmem:[#allocation3 + $0xac] sm:$0xf] 0
        %5912 = vst [vmem:[#allocation3 + $0xb0] sm:$0x1] 0
        %5913 = vst [vmem:[#allocation3 + $0xb4] sm:$0xf] 0
        %5914 = vst [vmem:[#allocation3 + $0xb8] sm:$0xf] 0
        %5915 = vst [vmem:[#allocation3 + $0xbc] sm:$0x1] 0
        %5916 = vst [vmem:[#allocation3 + $0xc0] sm:$0xf] 0
        %5917 = vst [vmem:[#allocation3 + $0xc4] sm:$0xf] 0
        %5918 = vst [vmem:[#allocation3 + $0xc8] sm:$0x1] 0
        %5919 = vst [vmem:[#allocation3 + $0xcc] sm:$0xf] 0
        %5920 = vst [vmem:[#allocation3 + $0xd0] sm:$0xf] 0
        %5921 = vst [vmem:[#allocation3 + $0xd4] sm:$0x1] 0
        %v5922 = vpack.c.bf16 %v5837, %v5836
        %v5923 = vpack.c.bf16 %v5839, %v5838
        %v5924 = vpack.c.bf16 %v5841, %v5840
        %v5925 = vpack.c.bf16 %v5843, %v5842
        %v5926 = vpack.c.bf16 %v5845, %v5844
        %v5927 = vpack.c.bf16 %v5847, %v5846
        %v5928 = vpack.c.bf16 %v5849, %v5848
        %v5929 = vpack.c.bf16 %v5851, %v5850
        %v5930 = vpack.c.bf16 %v5853, %v5852
        %v5931 = vpack.c.bf16 %v5855, %v5854
        %v5932 = vpack.c.bf16 %v5857, %v5856
        %v5933 = vpack.c.bf16 %v5859, %v5858
        %v5934 = vpack.c.bf16 %v5861, %v5860
        %v5935 = vpack.c.bf16 %v5863, %v5862
        %v5936 = vpack.c.bf16 %v5865, %v5864
        %v5937 = vpack.c.bf16 %v5867, %v5866
        %v5954 = vunpack.c.l.b16 %v5922
        %v5955 = vunpack.c.h.b16 %v5922
        %v5956 = vunpack.c.l.b16 %v5923
        %v5957 = vunpack.c.h.b16 %v5923
        %v5958 = vunpack.c.l.b16 %v5924
        %v5959 = vunpack.c.h.b16 %v5924
        %v5960 = vunpack.c.l.b16 %v5925
        %v5961 = vunpack.c.h.b16 %v5925
        %v5962 = vunpack.c.l.b16 %v5926
        %v5963 = vunpack.c.h.b16 %v5926
        %v5964 = vunpack.c.l.b16 %v5927
        %v5965 = vunpack.c.h.b16 %v5927
        %v5966 = vunpack.c.l.b16 %v5928
        %v5967 = vunpack.c.h.b16 %v5928
        %v5968 = vunpack.c.l.b16 %v5929
        %v5969 = vunpack.c.h.b16 %v5929
        %v5970 = vunpack.c.l.b16 %v5930
        %v5971 = vunpack.c.h.b16 %v5930
        %v5972 = vunpack.c.l.b16 %v5931
        %v5973 = vunpack.c.h.b16 %v5931
        %v5974 = vunpack.c.l.b16 %v5932
        %v5975 = vunpack.c.h.b16 %v5932
        %v5976 = vunpack.c.l.b16 %v5933
        %v5977 = vunpack.c.h.b16 %v5933
        %v5978 = vunpack.c.l.b16 %v5934
        %v5979 = vunpack.c.h.b16 %v5934
        %v5980 = vunpack.c.l.b16 %v5935
        %v5981 = vunpack.c.h.b16 %v5935
        %v5982 = vunpack.c.l.b16 %v5936
        %v5983 = vunpack.c.h.b16 %v5936
        %v5984 = vunpack.c.l.b16 %v5937
        %v5985 = vunpack.c.h.b16 %v5937
        %v5986 = vpack.c.b16 %v5954, %v5954
        %v5987 = vpack.c.b16 %v5955, %v5955
        %v5988 = vpack.c.b16 %v5956, %v5956
        %v5989 = vpack.c.b16 %v5957, %v5957
        %v5990 = vpack.c.b16 %v5958, %v5958
        %v5991 = vpack.c.b16 %v5959, %v5959
        %v5992 = vpack.c.b16 %v5960, %v5960
        %v5993 = vpack.c.b16 %v5961, %v5961
        %v5994 = vpack.c.b16 %v5962, %v5962
        %v5995 = vpack.c.b16 %v5963, %v5963
        %v5996 = vpack.c.b16 %v5964, %v5964
        %v5997 = vpack.c.b16 %v5965, %v5965
        %v5998 = vpack.c.b16 %v5966, %v5966
        %v5999 = vpack.c.b16 %v5967, %v5967
        %v6000 = vpack.c.b16 %v5968, %v5968
        %v6001 = vpack.c.b16 %v5969, %v5969
        %v6002 = vpack.c.b16 %v5970, %v5970
        %v6003 = vpack.c.b16 %v5971, %v5971
        %v6004 = vpack.c.b16 %v5972, %v5972
        %v6005 = vpack.c.b16 %v5973, %v5973
        %v6006 = vpack.c.b16 %v5974, %v5974
        %v6007 = vpack.c.b16 %v5975, %v5975
        %v6008 = vpack.c.b16 %v5976, %v5976
        %v6009 = vpack.c.b16 %v5977, %v5977
        %v6010 = vpack.c.b16 %v5978, %v5978
        %v6011 = vpack.c.b16 %v5979, %v5979
        %v6012 = vpack.c.b16 %v5980, %v5980
        %v6013 = vpack.c.b16 %v5981, %v5981
        %v6014 = vpack.c.b16 %v5982, %v5982
        %v6015 = vpack.c.b16 %v5983, %v5983
        %v6016 = vpack.c.b16 %v5984, %v5984
        %v6017 = vpack.c.b16 %v5985, %v5985
        %v6019 = vshrl.u32 %v5986, 16
        %v6021 = vrot.slane %v6019, 7
        %v6022 = vshll.u32 %v5986, 16
        %v6024 = vor.u32 %v6021, %v6022
        %v6025 = vrot.slane %v6021, 4
        %v6027 = vshrl.u32 %v5987, 16
        %v6029 = vrot.slane %v6027, 7
        %v6030 = vshll.u32 %v5987, 16
        %v6032 = vor.u32 %v6029, %v6030
        %v6033 = vsel %vm511, %v6025, %v6032
        %v6034 = vrot.slane %v6029, 4
        %v6036 = vshrl.u32 %v5988, 16
        %v6038 = vrot.slane %v6036, 7
        %v6039 = vshll.u32 %v5988, 16
        %v6041 = vor.u32 %v6038, %v6039
        %v6042 = vrot.slane %v6038, 4
        %v6044 = vshrl.u32 %v5989, 16
        %v6046 = vrot.slane %v6044, 7
        %v6047 = vshll.u32 %v5989, 16
        %v6049 = vor.u32 %v6046, %v6047
        %v6050 = vsel %vm511, %v6042, %v6049
        %v6051 = vrot.slane %v6046, 4
        %v6053 = vshrl.u32 %v5990, 16
        %v6055 = vrot.slane %v6053, 7
        %v6056 = vshll.u32 %v5990, 16
        %v6058 = vor.u32 %v6055, %v6056
        %v6059 = vrot.slane %v6055, 4
        %v6061 = vshrl.u32 %v5991, 16
        %v6063 = vrot.slane %v6061, 7
        %v6064 = vshll.u32 %v5991, 16
        %v6066 = vor.u32 %v6063, %v6064
        %v6067 = vsel %vm511, %v6059, %v6066
        %v6068 = vrot.slane %v6063, 4
        %v6070 = vshrl.u32 %v5992, 16
        %v6072 = vrot.slane %v6070, 7
        %v6073 = vshll.u32 %v5992, 16
        %v6075 = vor.u32 %v6072, %v6073
        %v6076 = vrot.slane %v6072, 4
        %v6078 = vshrl.u32 %v5993, 16
        %v6080 = vrot.slane %v6078, 7
        %v6081 = vshll.u32 %v5993, 16
        %v6083 = vor.u32 %v6080, %v6081
        %v6084 = vsel %vm511, %v6076, %v6083
        %v6085 = vrot.slane %v6080, 4
        %v6087 = vshrl.u32 %v5994, 16
        %v6089 = vrot.slane %v6087, 7
        %v6090 = vshll.u32 %v5994, 16
        %v6092 = vor.u32 %v6089, %v6090
        %v6093 = vrot.slane %v6089, 4
        %v6095 = vshrl.u32 %v5995, 16
        %v6097 = vrot.slane %v6095, 7
        %v6098 = vshll.u32 %v5995, 16
        %v6100 = vor.u32 %v6097, %v6098
        %v6101 = vsel %vm511, %v6093, %v6100
        %v6102 = vrot.slane %v6097, 4
        %v6104 = vshrl.u32 %v5996, 16
        %v6106 = vrot.slane %v6104, 7
        %v6107 = vshll.u32 %v5996, 16
        %v6109 = vor.u32 %v6106, %v6107
        %v6110 = vrot.slane %v6106, 4
        %v6112 = vshrl.u32 %v5997, 16
        %v6114 = vrot.slane %v6112, 7
        %v6115 = vshll.u32 %v5997, 16
        %v6117 = vor.u32 %v6114, %v6115
        %v6118 = vsel %vm511, %v6110, %v6117
        %v6119 = vrot.slane %v6114, 4
        %v6121 = vshrl.u32 %v5998, 16
        %v6123 = vrot.slane %v6121, 7
        %v6124 = vshll.u32 %v5998, 16
        %v6126 = vor.u32 %v6123, %v6124
        %v6127 = vrot.slane %v6123, 4
        %v6129 = vshrl.u32 %v5999, 16
        %v6131 = vrot.slane %v6129, 7
        %v6132 = vshll.u32 %v5999, 16
        %v6134 = vor.u32 %v6131, %v6132
        %v6135 = vsel %vm511, %v6127, %v6134
        %v6136 = vrot.slane %v6131, 4
        %v6138 = vshrl.u32 %v6000, 16
        %v6140 = vrot.slane %v6138, 7
        %v6141 = vshll.u32 %v6000, 16
        %v6143 = vor.u32 %v6140, %v6141
        %v6144 = vrot.slane %v6140, 4
        %v6146 = vshrl.u32 %v6001, 16
        %v6148 = vrot.slane %v6146, 7
        %v6149 = vshll.u32 %v6001, 16
        %v6151 = vor.u32 %v6148, %v6149
        %v6152 = vsel %vm511, %v6144, %v6151
        %v6153 = vrot.slane %v6148, 4
        %v6155 = vshrl.u32 %v6002, 16
        %v6157 = vrot.slane %v6155, 7
        %v6158 = vshll.u32 %v6002, 16
        %v6160 = vor.u32 %v6157, %v6158
        %v6161 = vrot.slane %v6157, 4
        %v6163 = vshrl.u32 %v6003, 16
        %v6165 = vrot.slane %v6163, 7
        %v6166 = vshll.u32 %v6003, 16
        %v6168 = vor.u32 %v6165, %v6166
        %v6169 = vsel %vm511, %v6161, %v6168
        %v6170 = vrot.slane %v6165, 4
        %v6172 = vshrl.u32 %v6004, 16
        %v6174 = vrot.slane %v6172, 7
        %v6175 = vshll.u32 %v6004, 16
        %v6177 = vor.u32 %v6174, %v6175
        %v6178 = vrot.slane %v6174, 4
        %v6180 = vshrl.u32 %v6005, 16
        %v6182 = vrot.slane %v6180, 7
        %v6183 = vshll.u32 %v6005, 16
        %v6185 = vor.u32 %v6182, %v6183
        %v6186 = vsel %vm511, %v6178, %v6185
        %v6187 = vrot.slane %v6182, 4
        %v6189 = vshrl.u32 %v6006, 16
        %v6191 = vrot.slane %v6189, 7
        %v6192 = vshll.u32 %v6006, 16
        %v6194 = vor.u32 %v6191, %v6192
        %v6195 = vrot.slane %v6191, 4
        %v6197 = vshrl.u32 %v6007, 16
        %v6199 = vrot.slane %v6197, 7
        %v6200 = vshll.u32 %v6007, 16
        %v6202 = vor.u32 %v6199, %v6200
        %v6203 = vsel %vm511, %v6195, %v6202
        %v6204 = vrot.slane %v6199, 4
        %v6206 = vshrl.u32 %v6008, 16
        %v6208 = vrot.slane %v6206, 7
        %v6209 = vshll.u32 %v6008, 16
        %v6211 = vor.u32 %v6208, %v6209
        %v6212 = vrot.slane %v6208, 4
        %v6214 = vshrl.u32 %v6009, 16
        %v6216 = vrot.slane %v6214, 7
        %v6217 = vshll.u32 %v6009, 16
        %v6219 = vor.u32 %v6216, %v6217
        %v6220 = vsel %vm511, %v6212, %v6219
        %v6221 = vrot.slane %v6216, 4
        %v6223 = vshrl.u32 %v6010, 16
        %v6225 = vrot.slane %v6223, 7
        %v6226 = vshll.u32 %v6010, 16
        %v6228 = vor.u32 %v6225, %v6226
        %v6229 = vrot.slane %v6225, 4
        %v6231 = vshrl.u32 %v6011, 16
        %v6233 = vrot.slane %v6231, 7
        %v6234 = vshll.u32 %v6011, 16
        %v6236 = vor.u32 %v6233, %v6234
        %v6237 = vsel %vm511, %v6229, %v6236
        %v6238 = vrot.slane %v6233, 4
        %v6240 = vshrl.u32 %v6012, 16
        %v6242 = vrot.slane %v6240, 7
        %v6243 = vshll.u32 %v6012, 16
        %v6245 = vor.u32 %v6242, %v6243
        %v6246 = vrot.slane %v6242, 4
        %v6248 = vshrl.u32 %v6013, 16
        %v6250 = vrot.slane %v6248, 7
        %v6251 = vshll.u32 %v6013, 16
        %v6253 = vor.u32 %v6250, %v6251
        %v6254 = vsel %vm511, %v6246, %v6253
        %v6255 = vrot.slane %v6250, 4
        %v6257 = vshrl.u32 %v6014, 16
        %v6259 = vrot.slane %v6257, 7
        %v6260 = vshll.u32 %v6014, 16
        %v6262 = vor.u32 %v6259, %v6260
        %v6263 = vrot.slane %v6259, 4
        %v6265 = vshrl.u32 %v6015, 16
        %v6267 = vrot.slane %v6265, 7
        %v6268 = vshll.u32 %v6015, 16
        %v6270 = vor.u32 %v6267, %v6268
        %v6271 = vsel %vm511, %v6263, %v6270
        %v6272 = vrot.slane %v6267, 4
        %v6274 = vshrl.u32 %v6016, 16
        %v6276 = vrot.slane %v6274, 7
        %v6277 = vshll.u32 %v6016, 16
        %v6279 = vor.u32 %v6276, %v6277
        %v6280 = vrot.slane %v6276, 4
        %v6282 = vshrl.u32 %v6017, 16
        %v6284 = vrot.slane %v6282, 7
        %v6285 = vshll.u32 %v6017, 16
        %v6287 = vor.u32 %v6284, %v6285
        %v6288 = vsel %vm511, %v6280, %v6287
        %v6289 = vrot.slane %v6284, 4
        %s6338 = scalar_lea.vmem [#allocation3], 12
        %v6339 = vld [vmem:[%s6338] sm:$0xf]
        %v6340 = vsel %vm835, %v6024, %v6339
        %6341 = vst [vmem:[%s6338] sm:$0xf] %v6340
        %6342 = vst [vmem:[%s6338 + $0x4] sm:$0xf] %v6033
        %v6343 = vld [vmem:[%s6338 + $0x8] sm:$0x1]
        %v6344 = vsel %vm841, %v6034, %v6343
        %6345 = vst [vmem:[%s6338 + $0x8] sm:$0x1] %v6344
        %v6346 = vld [vmem:[%s6338 + $0xc] sm:$0xf]
        %v6347 = vsel %vm835, %v6041, %v6346
        %6348 = vst [vmem:[%s6338 + $0xc] sm:$0xf] %v6347
        %6349 = vst [vmem:[%s6338 + $0x10] sm:$0xf] %v6050
        %v6350 = vld [vmem:[%s6338 + $0x14] sm:$0x1]
        %v6351 = vsel %vm841, %v6051, %v6350
        %6352 = vst [vmem:[%s6338 + $0x14] sm:$0x1] %v6351
        %v6353 = vld [vmem:[%s6338 + $0x18] sm:$0xf]
        %v6354 = vsel %vm835, %v6058, %v6353
        %6355 = vst [vmem:[%s6338 + $0x18] sm:$0xf] %v6354
        %6356 = vst [vmem:[%s6338 + $0x1c] sm:$0xf] %v6067
        %v6357 = vld [vmem:[%s6338 + $0x20] sm:$0x1]
        %v6358 = vsel %vm841, %v6068, %v6357
        %6359 = vst [vmem:[%s6338 + $0x20] sm:$0x1] %v6358
        %v6360 = vld [vmem:[%s6338 + $0x24] sm:$0xf]
        %v6361 = vsel %vm835, %v6075, %v6360
        %6362 = vst [vmem:[%s6338 + $0x24] sm:$0xf] %v6361
        %6363 = vst [vmem:[%s6338 + $0x28] sm:$0xf] %v6084
        %v6364 = vld [vmem:[%s6338 + $0x2c] sm:$0x1]
        %v6365 = vsel %vm841, %v6085, %v6364
        %6366 = vst [vmem:[%s6338 + $0x2c] sm:$0x1] %v6365
        %v6367 = vld [vmem:[%s6338 + $0x30] sm:$0xf]
        %v6368 = vsel %vm835, %v6092, %v6367
        %6369 = vst [vmem:[%s6338 + $0x30] sm:$0xf] %v6368
        %6370 = vst [vmem:[%s6338 + $0x34] sm:$0xf] %v6101
        %v6371 = vld [vmem:[%s6338 + $0x38] sm:$0x1]
        %v6372 = vsel %vm841, %v6102, %v6371
        %6373 = vst [vmem:[%s6338 + $0x38] sm:$0x1] %v6372
        %v6374 = vld [vmem:[%s6338 + $0x3c] sm:$0xf]
        %v6375 = vsel %vm835, %v6109, %v6374
        %6376 = vst [vmem:[%s6338 + $0x3c] sm:$0xf] %v6375
        %6377 = vst [vmem:[%s6338 + $0x40] sm:$0xf] %v6118
        %v6378 = vld [vmem:[%s6338 + $0x44] sm:$0x1]
        %v6379 = vsel %vm841, %v6119, %v6378
        %6380 = vst [vmem:[%s6338 + $0x44] sm:$0x1] %v6379
        %v6381 = vld [vmem:[%s6338 + $0x48] sm:$0xf]
        %v6382 = vsel %vm835, %v6126, %v6381
        %6383 = vst [vmem:[%s6338 + $0x48] sm:$0xf] %v6382
        %6384 = vst [vmem:[%s6338 + $0x4c] sm:$0xf] %v6135
        %v6385 = vld [vmem:[%s6338 + $0x50] sm:$0x1]
        %v6386 = vsel %vm841, %v6136, %v6385
        %6387 = vst [vmem:[%s6338 + $0x50] sm:$0x1] %v6386
        %v6388 = vld [vmem:[%s6338 + $0x54] sm:$0xf]
        %v6389 = vsel %vm835, %v6143, %v6388
        %6390 = vst [vmem:[%s6338 + $0x54] sm:$0xf] %v6389
        %6391 = vst [vmem:[%s6338 + $0x58] sm:$0xf] %v6152
        %v6392 = vld [vmem:[%s6338 + $0x5c] sm:$0x1]
        %v6393 = vsel %vm841, %v6153, %v6392
        %6394 = vst [vmem:[%s6338 + $0x5c] sm:$0x1] %v6393
        %v6395 = vld [vmem:[%s6338 + $0x60] sm:$0xf]
        %v6396 = vsel %vm835, %v6160, %v6395
        %6397 = vst [vmem:[%s6338 + $0x60] sm:$0xf] %v6396
        %6398 = vst [vmem:[%s6338 + $0x64] sm:$0xf] %v6169
        %v6399 = vld [vmem:[%s6338 + $0x68] sm:$0x1]
        %v6400 = vsel %vm841, %v6170, %v6399
        %6401 = vst [vmem:[%s6338 + $0x68] sm:$0x1] %v6400
        %v6402 = vld [vmem:[%s6338 + $0x6c] sm:$0xf]
        %v6403 = vsel %vm835, %v6177, %v6402
        %6404 = vst [vmem:[%s6338 + $0x6c] sm:$0xf] %v6403
        %6405 = vst [vmem:[%s6338 + $0x70] sm:$0xf] %v6186
        %v6406 = vld [vmem:[%s6338 + $0x74] sm:$0x1]
        %v6407 = vsel %vm841, %v6187, %v6406
        %6408 = vst [vmem:[%s6338 + $0x74] sm:$0x1] %v6407
        %v6409 = vld [vmem:[%s6338 + $0x78] sm:$0xf]
        %v6410 = vsel %vm835, %v6194, %v6409
        %6411 = vst [vmem:[%s6338 + $0x78] sm:$0xf] %v6410
        %6412 = vst [vmem:[%s6338 + $0x7c] sm:$0xf] %v6203
        %v6413 = vld [vmem:[%s6338 + $0x80] sm:$0x1]
        %v6414 = vsel %vm841, %v6204, %v6413
        %6415 = vst [vmem:[%s6338 + $0x80] sm:$0x1] %v6414
        %v6416 = vld [vmem:[%s6338 + $0x84] sm:$0xf]
        %v6417 = vsel %vm835, %v6211, %v6416
        %6418 = vst [vmem:[%s6338 + $0x84] sm:$0xf] %v6417
        %6419 = vst [vmem:[%s6338 + $0x88] sm:$0xf] %v6220
        %v6420 = vld [vmem:[%s6338 + $0x8c] sm:$0x1]
        %v6421 = vsel %vm841, %v6221, %v6420
        %6422 = vst [vmem:[%s6338 + $0x8c] sm:$0x1] %v6421
        %v6423 = vld [vmem:[%s6338 + $0x90] sm:$0xf]
        %v6424 = vsel %vm835, %v6228, %v6423
        %6425 = vst [vmem:[%s6338 + $0x90] sm:$0xf] %v6424
        %6426 = vst [vmem:[%s6338 + $0x94] sm:$0xf] %v6237
        %v6427 = vld [vmem:[%s6338 + $0x98] sm:$0x1]
        %v6428 = vsel %vm841, %v6238, %v6427
        %6429 = vst [vmem:[%s6338 + $0x98] sm:$0x1] %v6428
        %v6430 = vld [vmem:[%s6338 + $0x9c] sm:$0xf]
        %v6431 = vsel %vm835, %v6245, %v6430
        %6432 = vst [vmem:[%s6338 + $0x9c] sm:$0xf] %v6431
        %6433 = vst [vmem:[%s6338 + $0xa0] sm:$0xf] %v6254
        %v6434 = vld [vmem:[%s6338 + $0xa4] sm:$0x1]
        %v6435 = vsel %vm841, %v6255, %v6434
        %6436 = vst [vmem:[%s6338 + $0xa4] sm:$0x1] %v6435
        %v6437 = vld [vmem:[%s6338 + $0xa8] sm:$0xf]
        %v6438 = vsel %vm835, %v6262, %v6437
        %6439 = vst [vmem:[%s6338 + $0xa8] sm:$0xf] %v6438
        %6440 = vst [vmem:[%s6338 + $0xac] sm:$0xf] %v6271
        %v6441 = vld [vmem:[%s6338 + $0xb0] sm:$0x1]
        %v6442 = vsel %vm841, %v6272, %v6441
        %6443 = vst [vmem:[%s6338 + $0xb0] sm:$0x1] %v6442
        %v6444 = vld [vmem:[%s6338 + $0xb4] sm:$0xf]
        %v6445 = vsel %vm835, %v6279, %v6444
        %6446 = vst [vmem:[%s6338 + $0xb4] sm:$0xf] %v6445
        %6447 = vst [vmem:[%s6338 + $0xb8] sm:$0xf] %v6288
        %v6448 = vld [vmem:[%s6338 + $0xbc] sm:$0x1]
        %v6449 = vsel %vm841, %v6289, %v6448
        %6450 = vst [vmem:[%s6338 + $0xbc] sm:$0x1] %v6449
        %v6451 = vld [vmem:[#allocation3] sm:$0xf]
        %v6452 = vld [vmem:[#allocation3 + $0x4] sm:$0xf]
        %v6453 = vld [vmem:[#allocation3 + $0xc] sm:$0xf]
        %v6454 = vld [vmem:[#allocation3 + $0x10] sm:$0xf]
        %v6455 = vld [vmem:[#allocation3 + $0x18] sm:$0xf]
        %v6456 = vld [vmem:[#allocation3 + $0x1c] sm:$0xf]
        %v6457 = vld [vmem:[#allocation3 + $0x24] sm:$0xf]
        %v6458 = vld [vmem:[#allocation3 + $0x28] sm:$0xf]
        %v6459 = vld [vmem:[#allocation3 + $0x30] sm:$0xf]
        %v6460 = vld [vmem:[#allocation3 + $0x34] sm:$0xf]
        %v6461 = vld [vmem:[#allocation3 + $0x3c] sm:$0xf]
        %v6462 = vld [vmem:[#allocation3 + $0x40] sm:$0xf]
        %v6463 = vld [vmem:[#allocation3 + $0x48] sm:$0xf]
        %v6464 = vld [vmem:[#allocation3 + $0x4c] sm:$0xf]
        %v6465 = vld [vmem:[#allocation3 + $0x54] sm:$0xf]
        %v6466 = vld [vmem:[#allocation3 + $0x58] sm:$0xf]
        %v6467 = vld [vmem:[#allocation3 + $0x60] sm:$0xf]
        %v6468 = vld [vmem:[#allocation3 + $0x64] sm:$0xf]
        %v6469 = vld [vmem:[#allocation3 + $0x6c] sm:$0xf]
        %v6470 = vld [vmem:[#allocation3 + $0x70] sm:$0xf]
        %v6471 = vld [vmem:[#allocation3 + $0x78] sm:$0xf]
        %v6472 = vld [vmem:[#allocation3 + $0x7c] sm:$0xf]
        %v6473 = vld [vmem:[#allocation3 + $0x84] sm:$0xf]
        %v6474 = vld [vmem:[#allocation3 + $0x88] sm:$0xf]
        %v6475 = vld [vmem:[#allocation3 + $0x90] sm:$0xf]
        %v6476 = vld [vmem:[#allocation3 + $0x94] sm:$0xf]
        %v6477 = vld [vmem:[#allocation3 + $0x9c] sm:$0xf]
        %v6478 = vld [vmem:[#allocation3 + $0xa0] sm:$0xf]
        %v6479 = vld [vmem:[#allocation3 + $0xa8] sm:$0xf]
        %v6480 = vld [vmem:[#allocation3 + $0xac] sm:$0xf]
        %v6481 = vld [vmem:[#allocation3 + $0xb4] sm:$0xf]
        %v6482 = vld [vmem:[#allocation3 + $0xb8] sm:$0xf]
        %v6483 = vld [vmem:[#allocation9] sm:$0xf]
        %v6484 = vld [vmem:[#allocation9 + $0x4] sm:$0xf]
        %v6485 = vld [vmem:[#allocation9 + $0x8] sm:$0xf]
        %v6486 = vld [vmem:[#allocation9 + $0xc] sm:$0xf]
        %v6487 = vld [vmem:[#allocation9 + $0x10] sm:$0xf]
        %v6488 = vld [vmem:[#allocation9 + $0x14] sm:$0xf]
        %v6489 = vld [vmem:[#allocation9 + $0x18] sm:$0xf]
        %v6490 = vld [vmem:[#allocation9 + $0x1c] sm:$0xf]
        %v6491 = vld [vmem:[#allocation9 + $0x20] sm:$0xf]
        %v6492 = vld [vmem:[#allocation9 + $0x24] sm:$0xf]
        %v6493 = vld [vmem:[#allocation9 + $0x28] sm:$0xf]
        %v6494 = vld [vmem:[#allocation9 + $0x2c] sm:$0xf]
        %v6495 = vld [vmem:[#allocation9 + $0x30] sm:$0xf]
        %v6496 = vld [vmem:[#allocation9 + $0x34] sm:$0xf]
        %v6497 = vld [vmem:[#allocation9 + $0x38] sm:$0xf]
        %v6498 = vld [vmem:[#allocation9 + $0x3c] sm:$0xf]
        %v6499 = vld [vmem:[#allocation3 + $0x8] sm:$0x1]
        %v6500 = vld [vmem:[#allocation3 + $0x14] sm:$0x1]
        %v6501 = vld [vmem:[#allocation3 + $0x20] sm:$0x1]
        %v6502 = vld [vmem:[#allocation3 + $0x2c] sm:$0x1]
        %v6503 = vld [vmem:[#allocation3 + $0x38] sm:$0x1]
        %v6504 = vld [vmem:[#allocation3 + $0x44] sm:$0x1]
        %v6505 = vld [vmem:[#allocation3 + $0x50] sm:$0x1]
        %v6506 = vld [vmem:[#allocation3 + $0x5c] sm:$0x1]
        %v6507 = vld [vmem:[#allocation3 + $0x68] sm:$0x1]
        %v6508 = vld [vmem:[#allocation3 + $0x74] sm:$0x1]
        %v6509 = vld [vmem:[#allocation3 + $0x80] sm:$0x1]
        %v6510 = vld [vmem:[#allocation3 + $0x8c] sm:$0x1]
        %v6511 = vld [vmem:[#allocation3 + $0x98] sm:$0x1]
        %v6512 = vld [vmem:[#allocation3 + $0xa4] sm:$0x1]
        %v6513 = vld [vmem:[#allocation3 + $0xb0] sm:$0x1]
        %v6514 = vld [vmem:[#allocation3 + $0xbc] sm:$0x1]
        %v6516 = vshrl.u32 %v6451, 16
        %v6518 = vrot.slane %v6516, 4
        %v6519 = vshll.u32 %v6451, 16
        %v6521 = vrot.slane %v6519, 5
        %v6522 = vor.u32 %v6518, %v6521
        %v6523 = vrot.slane %v6522, 4
        %v6525 = vshll.u32 %v6452, 16
        %v6527 = vrot.slane %v6525, 5
        %v6528 = vsel %vm1016, %v6523, %v6527
        %v6529 = vshrl.u32 %v6452, 16
        %v6531 = vrot.slane %v6529, 4
        %v6532 = vor.u32 %v6531, %v6527
        %v6533 = vrot.slane %v6532, 4
        %v6535 = vshll.u32 %v6499, 16
        %v6537 = vrot.slane %v6535, 5
        %v6538 = vsel %vm1016, %v6533, %v6537
        %v6540 = vshrl.u32 %v6453, 16
        %v6542 = vrot.slane %v6540, 4
        %v6543 = vshll.u32 %v6453, 16
        %v6545 = vrot.slane %v6543, 5
        %v6546 = vor.u32 %v6542, %v6545
        %v6547 = vrot.slane %v6546, 4
        %v6549 = vshll.u32 %v6454, 16
        %v6551 = vrot.slane %v6549, 5
        %v6552 = vsel %vm1016, %v6547, %v6551
        %v6553 = vshrl.u32 %v6454, 16
        %v6555 = vrot.slane %v6553, 4
        %v6556 = vor.u32 %v6555, %v6551
        %v6557 = vrot.slane %v6556, 4
        %v6559 = vshll.u32 %v6500, 16
        %v6561 = vrot.slane %v6559, 5
        %v6562 = vsel %vm1016, %v6557, %v6561
        %v6564 = vshrl.u32 %v6455, 16
        %v6566 = vrot.slane %v6564, 4
        %v6567 = vshll.u32 %v6455, 16
        %v6569 = vrot.slane %v6567, 5
        %v6570 = vor.u32 %v6566, %v6569
        %v6571 = vrot.slane %v6570, 4
        %v6573 = vshll.u32 %v6456, 16
        %v6575 = vrot.slane %v6573, 5
        %v6576 = vsel %vm1016, %v6571, %v6575
        %v6577 = vshrl.u32 %v6456, 16
        %v6579 = vrot.slane %v6577, 4
        %v6580 = vor.u32 %v6579, %v6575
        %v6581 = vrot.slane %v6580, 4
        %v6583 = vshll.u32 %v6501, 16
        %v6585 = vrot.slane %v6583, 5
        %v6586 = vsel %vm1016, %v6581, %v6585
        %v6588 = vshrl.u32 %v6457, 16
        %v6590 = vrot.slane %v6588, 4
        %v6591 = vshll.u32 %v6457, 16
        %v6593 = vrot.slane %v6591, 5
        %v6594 = vor.u32 %v6590, %v6593
        %v6595 = vrot.slane %v6594, 4
        %v6597 = vshll.u32 %v6458, 16
        %v6599 = vrot.slane %v6597, 5
        %v6600 = vsel %vm1016, %v6595, %v6599
        %v6601 = vshrl.u32 %v6458, 16
        %v6603 = vrot.slane %v6601, 4
        %v6604 = vor.u32 %v6603, %v6599
        %v6605 = vrot.slane %v6604, 4
        %v6607 = vshll.u32 %v6502, 16
        %v6609 = vrot.slane %v6607, 5
        %v6610 = vsel %vm1016, %v6605, %v6609
        %v6612 = vshrl.u32 %v6459, 16
        %v6614 = vrot.slane %v6612, 4
        %v6615 = vshll.u32 %v6459, 16
        %v6617 = vrot.slane %v6615, 5
        %v6618 = vor.u32 %v6614, %v6617
        %v6619 = vrot.slane %v6618, 4
        %v6621 = vshll.u32 %v6460, 16
        %v6623 = vrot.slane %v6621, 5
        %v6624 = vsel %vm1016, %v6619, %v6623
        %v6625 = vshrl.u32 %v6460, 16
        %v6627 = vrot.slane %v6625, 4
        %v6628 = vor.u32 %v6627, %v6623
        %v6629 = vrot.slane %v6628, 4
        %v6631 = vshll.u32 %v6503, 16
        %v6633 = vrot.slane %v6631, 5
        %v6634 = vsel %vm1016, %v6629, %v6633
        %v6636 = vshrl.u32 %v6461, 16
        %v6638 = vrot.slane %v6636, 4
        %v6639 = vshll.u32 %v6461, 16
        %v6641 = vrot.slane %v6639, 5
        %v6642 = vor.u32 %v6638, %v6641
        %v6643 = vrot.slane %v6642, 4
        %v6645 = vshll.u32 %v6462, 16
        %v6647 = vrot.slane %v6645, 5
        %v6648 = vsel %vm1016, %v6643, %v6647
        %v6649 = vshrl.u32 %v6462, 16
        %v6651 = vrot.slane %v6649, 4
        %v6652 = vor.u32 %v6651, %v6647
        %v6653 = vrot.slane %v6652, 4
        %v6655 = vshll.u32 %v6504, 16
        %v6657 = vrot.slane %v6655, 5
        %v6658 = vsel %vm1016, %v6653, %v6657
        %v6660 = vshrl.u32 %v6463, 16
        %v6662 = vrot.slane %v6660, 4
        %v6663 = vshll.u32 %v6463, 16
        %v6665 = vrot.slane %v6663, 5
        %v6666 = vor.u32 %v6662, %v6665
        %v6667 = vrot.slane %v6666, 4
        %v6669 = vshll.u32 %v6464, 16
        %v6671 = vrot.slane %v6669, 5
        %v6672 = vsel %vm1016, %v6667, %v6671
        %v6673 = vshrl.u32 %v6464, 16
        %v6675 = vrot.slane %v6673, 4
        %v6676 = vor.u32 %v6675, %v6671
        %v6677 = vrot.slane %v6676, 4
        %v6679 = vshll.u32 %v6505, 16
        %v6681 = vrot.slane %v6679, 5
        %v6682 = vsel %vm1016, %v6677, %v6681
        %v6684 = vshrl.u32 %v6465, 16
        %v6686 = vrot.slane %v6684, 4
        %v6687 = vshll.u32 %v6465, 16
        %v6689 = vrot.slane %v6687, 5
        %v6690 = vor.u32 %v6686, %v6689
        %v6691 = vrot.slane %v6690, 4
        %v6693 = vshll.u32 %v6466, 16
        %v6695 = vrot.slane %v6693, 5
        %v6696 = vsel %vm1016, %v6691, %v6695
        %v6697 = vshrl.u32 %v6466, 16
        %v6699 = vrot.slane %v6697, 4
        %v6700 = vor.u32 %v6699, %v6695
        %v6701 = vrot.slane %v6700, 4
        %v6703 = vshll.u32 %v6506, 16
        %v6705 = vrot.slane %v6703, 5
        %v6706 = vsel %vm1016, %v6701, %v6705
        %v6708 = vshrl.u32 %v6467, 16
        %v6710 = vrot.slane %v6708, 4
        %v6711 = vshll.u32 %v6467, 16
        %v6713 = vrot.slane %v6711, 5
        %v6714 = vor.u32 %v6710, %v6713
        %v6715 = vrot.slane %v6714, 4
        %v6717 = vshll.u32 %v6468, 16
        %v6719 = vrot.slane %v6717, 5
        %v6720 = vsel %vm1016, %v6715, %v6719
        %v6721 = vshrl.u32 %v6468, 16
        %v6723 = vrot.slane %v6721, 4
        %v6724 = vor.u32 %v6723, %v6719
        %v6725 = vrot.slane %v6724, 4
        %v6727 = vshll.u32 %v6507, 16
        %v6729 = vrot.slane %v6727, 5
        %v6730 = vsel %vm1016, %v6725, %v6729
        %v6732 = vshrl.u32 %v6469, 16
        %v6734 = vrot.slane %v6732, 4
        %v6735 = vshll.u32 %v6469, 16
        %v6737 = vrot.slane %v6735, 5
        %v6738 = vor.u32 %v6734, %v6737
        %v6739 = vrot.slane %v6738, 4
        %v6741 = vshll.u32 %v6470, 16
        %v6743 = vrot.slane %v6741, 5
        %v6744 = vsel %vm1016, %v6739, %v6743
        %v6745 = vshrl.u32 %v6470, 16
        %v6747 = vrot.slane %v6745, 4
        %v6748 = vor.u32 %v6747, %v6743
        %v6749 = vrot.slane %v6748, 4
        %v6751 = vshll.u32 %v6508, 16
        %v6753 = vrot.slane %v6751, 5
        %v6754 = vsel %vm1016, %v6749, %v6753
        %v6756 = vshrl.u32 %v6471, 16
        %v6758 = vrot.slane %v6756, 4
        %v6759 = vshll.u32 %v6471, 16
        %v6761 = vrot.slane %v6759, 5
        %v6762 = vor.u32 %v6758, %v6761
        %v6763 = vrot.slane %v6762, 4
        %v6765 = vshll.u32 %v6472, 16
        %v6767 = vrot.slane %v6765, 5
        %v6768 = vsel %vm1016, %v6763, %v6767
        %v6769 = vshrl.u32 %v6472, 16
        %v6771 = vrot.slane %v6769, 4
        %v6772 = vor.u32 %v6771, %v6767
        %v6773 = vrot.slane %v6772, 4
        %v6775 = vshll.u32 %v6509, 16
        %v6777 = vrot.slane %v6775, 5
        %v6778 = vsel %vm1016, %v6773, %v6777
        %v6780 = vshrl.u32 %v6473, 16
        %v6782 = vrot.slane %v6780, 4
        %v6783 = vshll.u32 %v6473, 16
        %v6785 = vrot.slane %v6783, 5
        %v6786 = vor.u32 %v6782, %v6785
        %v6787 = vrot.slane %v6786, 4
        %v6789 = vshll.u32 %v6474, 16
        %v6791 = vrot.slane %v6789, 5
        %v6792 = vsel %vm1016, %v6787, %v6791
        %v6793 = vshrl.u32 %v6474, 16
        %v6795 = vrot.slane %v6793, 4
        %v6796 = vor.u32 %v6795, %v6791
        %v6797 = vrot.slane %v6796, 4
        %v6799 = vshll.u32 %v6510, 16
        %v6801 = vrot.slane %v6799, 5
        %v6802 = vsel %vm1016, %v6797, %v6801
        %v6804 = vshrl.u32 %v6475, 16
        %v6806 = vrot.slane %v6804, 4
        %v6807 = vshll.u32 %v6475, 16
        %v6809 = vrot.slane %v6807, 5
        %v6810 = vor.u32 %v6806, %v6809
        %v6811 = vrot.slane %v6810, 4
        %v6813 = vshll.u32 %v6476, 16
        %v6815 = vrot.slane %v6813, 5
        %v6816 = vsel %vm1016, %v6811, %v6815
        %v6817 = vshrl.u32 %v6476, 16
        %v6819 = vrot.slane %v6817, 4
        %v6820 = vor.u32 %v6819, %v6815
        %v6821 = vrot.slane %v6820, 4
        %v6823 = vshll.u32 %v6511, 16
        %v6825 = vrot.slane %v6823, 5
        %v6826 = vsel %vm1016, %v6821, %v6825
        %v6828 = vshrl.u32 %v6477, 16
        %v6830 = vrot.slane %v6828, 4
        %v6831 = vshll.u32 %v6477, 16
        %v6833 = vrot.slane %v6831, 5
        %v6834 = vor.u32 %v6830, %v6833
        %v6835 = vrot.slane %v6834, 4
        %v6837 = vshll.u32 %v6478, 16
        %v6839 = vrot.slane %v6837, 5
        %v6840 = vsel %vm1016, %v6835, %v6839
        %v6841 = vshrl.u32 %v6478, 16
        %v6843 = vrot.slane %v6841, 4
        %v6844 = vor.u32 %v6843, %v6839
        %v6845 = vrot.slane %v6844, 4
        %v6847 = vshll.u32 %v6512, 16
        %v6849 = vrot.slane %v6847, 5
        %v6850 = vsel %vm1016, %v6845, %v6849
        %v6852 = vshrl.u32 %v6479, 16
        %v6854 = vrot.slane %v6852, 4
        %v6855 = vshll.u32 %v6479, 16
        %v6857 = vrot.slane %v6855, 5
        %v6858 = vor.u32 %v6854, %v6857
        %v6859 = vrot.slane %v6858, 4
        %v6861 = vshll.u32 %v6480, 16
        %v6863 = vrot.slane %v6861, 5
        %v6864 = vsel %vm1016, %v6859, %v6863
        %v6865 = vshrl.u32 %v6480, 16
        %v6867 = vrot.slane %v6865, 4
        %v6868 = vor.u32 %v6867, %v6863
        %v6869 = vrot.slane %v6868, 4
        %v6871 = vshll.u32 %v6513, 16
        %v6873 = vrot.slane %v6871, 5
        %v6874 = vsel %vm1016, %v6869, %v6873
        %v6876 = vshrl.u32 %v6481, 16
        %v6878 = vrot.slane %v6876, 4
        %v6879 = vshll.u32 %v6481, 16
        %v6881 = vrot.slane %v6879, 5
        %v6882 = vor.u32 %v6878, %v6881
        %v6883 = vrot.slane %v6882, 4
        %v6885 = vshll.u32 %v6482, 16
        %v6887 = vrot.slane %v6885, 5
        %v6888 = vsel %vm1016, %v6883, %v6887
        %v6889 = vshrl.u32 %v6482, 16
        %v6891 = vrot.slane %v6889, 4
        %v6892 = vor.u32 %v6891, %v6887
        %v6893 = vrot.slane %v6892, 4
        %v6895 = vshll.u32 %v6514, 16
        %v6897 = vrot.slane %v6895, 5
        %v6898 = vsel %vm1016, %v6893, %v6897
        %s6899 = scalar_lea.vmem [#allocation9], 64
        %v6900 = vld [vmem:[%s6899] sm:$0xf]
        %v6901 = vld [vmem:[%s6899 + $0x4] sm:$0xf]
        %v6902 = vld [vmem:[%s6899 + $0x8] sm:$0xf]
        %v6903 = vld [vmem:[%s6899 + $0xc] sm:$0xf]
        %v6904 = vld [vmem:[%s6899 + $0x10] sm:$0xf]
        %v6905 = vld [vmem:[%s6899 + $0x14] sm:$0xf]
        %v6906 = vld [vmem:[%s6899 + $0x18] sm:$0xf]
        %v6907 = vld [vmem:[%s6899 + $0x1c] sm:$0xf]
        %v6908 = vld [vmem:[%s6899 + $0x20] sm:$0xf]
        %v6909 = vld [vmem:[%s6899 + $0x24] sm:$0xf]
        %v6910 = vld [vmem:[%s6899 + $0x28] sm:$0xf]
        %v6911 = vld [vmem:[%s6899 + $0x2c] sm:$0xf]
        %v6912 = vld [vmem:[%s6899 + $0x30] sm:$0xf]
        %v6913 = vld [vmem:[%s6899 + $0x34] sm:$0xf]
        %v6914 = vld [vmem:[%s6899 + $0x38] sm:$0xf]
        %v6915 = vld [vmem:[%s6899 + $0x3c] sm:$0xf]
        %v6916 = vunpack.c.l.b16 %v6528
        %v6917 = vunpack.c.l.b16 %v6538
        %v6918 = vunpack.c.l.b16 %v6552
        %v6919 = vunpack.c.l.b16 %v6562
        %v6920 = vunpack.c.l.b16 %v6576
        %v6921 = vunpack.c.l.b16 %v6586
        %v6922 = vunpack.c.l.b16 %v6600
        %v6923 = vunpack.c.l.b16 %v6610
        %v6924 = vunpack.c.l.b16 %v6624
        %v6925 = vunpack.c.l.b16 %v6634
        %v6926 = vunpack.c.l.b16 %v6648
        %v6927 = vunpack.c.l.b16 %v6658
        %v6928 = vunpack.c.l.b16 %v6672
        %v6929 = vunpack.c.l.b16 %v6682
        %v6930 = vunpack.c.l.b16 %v6696
        %v6931 = vunpack.c.l.b16 %v6706
        %v6932 = vunpack.c.l.b16 %v6720
        %v6933 = vunpack.c.l.b16 %v6730
        %v6934 = vunpack.c.l.b16 %v6744
        %v6935 = vunpack.c.l.b16 %v6754
        %v6936 = vunpack.c.l.b16 %v6768
        %v6937 = vunpack.c.l.b16 %v6778
        %v6938 = vunpack.c.l.b16 %v6792
        %v6939 = vunpack.c.l.b16 %v6802
        %v6940 = vunpack.c.l.b16 %v6816
        %v6941 = vunpack.c.l.b16 %v6826
        %v6942 = vunpack.c.l.b16 %v6840
        %v6943 = vunpack.c.l.b16 %v6850
        %v6944 = vunpack.c.l.b16 %v6864
        %v6945 = vunpack.c.l.b16 %v6874
        %v6946 = vunpack.c.l.b16 %v6888
        %v6947 = vunpack.c.l.b16 %v6898
        %v6948 = vpack.c.b16 %v6917, %v6916
        %v6949 = vpack.c.b16 %v6919, %v6918
        %v6950 = vpack.c.b16 %v6921, %v6920
        %v6951 = vpack.c.b16 %v6923, %v6922
        %v6952 = vpack.c.b16 %v6925, %v6924
        %v6953 = vpack.c.b16 %v6927, %v6926
        %v6954 = vpack.c.b16 %v6929, %v6928
        %v6955 = vpack.c.b16 %v6931, %v6930
        %v6956 = vpack.c.b16 %v6933, %v6932
        %v6957 = vpack.c.b16 %v6935, %v6934
        %v6958 = vpack.c.b16 %v6937, %v6936
        %v6959 = vpack.c.b16 %v6939, %v6938
        %v6960 = vpack.c.b16 %v6941, %v6940
        %v6961 = vpack.c.b16 %v6943, %v6942
        %v6962 = vpack.c.b16 %v6945, %v6944
        %v6963 = vpack.c.b16 %v6947, %v6946
        %v6996 = vunpack.c.l.b16 %v6900
        %v6997 = vunpack.c.l.b16 %v6901
        %v6998 = vunpack.c.l.b16 %v6902
        %v6999 = vunpack.c.l.b16 %v6903
        %v7000 = vunpack.c.l.b16 %v6904
        %v7001 = vunpack.c.l.b16 %v6905
        %v7002 = vunpack.c.l.b16 %v6906
        %v7003 = vunpack.c.l.b16 %v6907
        %v7004 = vunpack.c.l.b16 %v6908
        %v7005 = vunpack.c.l.b16 %v6909
        %v7006 = vunpack.c.l.b16 %v6910
        %v7007 = vunpack.c.l.b16 %v6911
        %v7008 = vunpack.c.l.b16 %v6912
        %v7009 = vunpack.c.l.b16 %v6913
        %v7010 = vunpack.c.l.b16 %v6914
        %v7011 = vunpack.c.l.b16 %v6915
        %v7012 = vpack.c.b16 %v6997, %v6996
        %v7013 = vpack.c.b16 %v6999, %v6998
        %v7014 = vpack.c.b16 %v7001, %v7000
        %v7015 = vpack.c.b16 %v7003, %v7002
        %v7016 = vpack.c.b16 %v7005, %v7004
        %v7017 = vpack.c.b16 %v7007, %v7006
        %v7018 = vpack.c.b16 %v7009, %v7008
        %v7019 = vpack.c.b16 %v7011, %v7010
        %7028 = vmatprep.subr.bf16.mxu0 0
        %7029 = vmatpush1.bf16.msra.mxu0 %v7019
        %7030 = vmatprep.subr.bf16.mxu0 0
        %7031 = vmatpush1.bf16.msra.mxu0 %v7018
        %7032 = vmatprep.subr.bf16.mxu0 0
        %7033 = vmatpush1.bf16.msra.mxu0 %v7017
        %7034 = vmatprep.subr.bf16.mxu0 0
        %7035 = vmatpush1.bf16.msra.mxu0 %v7016
        %7036 = vmatprep.subr.bf16.mxu0 0
        %7037 = vmatpush1.bf16.msra.mxu0 %v7015
        %7038 = vmatprep.subr.bf16.mxu0 0
        %7039 = vmatpush1.bf16.msra.mxu0 %v7014
        %7040 = vmatprep.subr.bf16.mxu0 0
        %7041 = vmatpush1.bf16.msra.mxu0 %v7013
        %7042 = vmatprep.subr.bf16.mxu0 0
        %7043 = vmatpush1.bf16.msra.mxu0 %v7012
        %7044 = vmatprep.subr.bf16.mxu0 0
        %7045 = vmatpush2.bf16.msra.mxu0 0
        %7046 = vmatprep.subr.bf16.mxu0 0
        %7047 = vmatpush2.bf16.msra.mxu0 0
        %7048 = vmatprep.subr.bf16.mxu0 0
        %7049 = vmatpush2.bf16.msra.mxu0 0
        %7050 = vmatprep.subr.bf16.mxu0 0
        %7051 = vmatpush2.bf16.msra.mxu0 0
        %7052 = vmatprep.subr.bf16.mxu0 0
        %7053 = vmatpush2.bf16.msra.mxu0 0
        %7054 = vmatprep.subr.bf16.mxu0 0
        %7055 = vmatpush2.bf16.msra.mxu0 0
        %7056 = vmatprep.subr.bf16.mxu0 0
        %7057 = vmatpush2.bf16.msra.mxu0 0
        %7058 = vmatprep.subr.bf16.mxu0 0
        %7059 = vmatpush2.bf16.msra.mxu0 0
        %7060 = vmatprep.mubr.bf16.mxu0 0
        %7061 = vmatmul.mubr.bf16.gmra.mxu0 %v6948
        %v7062 = vpop.f32.mrf.mxu0
        %v7063 = vadd.f32 0.0, %v7062
        %v7064 = vpop.f32.mrf.mxu0
        %v7065 = vpop.f32.mrf.mxu0
        %v7066 = vadd.f32 0.0, %v7065
        %v7067 = vpop.f32.mrf.mxu0
        %7068 = vmatprep.mubr.bf16.mxu0 0
        %7069 = vmatmul.mubr.bf16.gmra.mxu0 %v6949
        %v7070 = vpop.f32.mrf.mxu0
        %v7071 = vadd.f32 0.0, %v7070
        %v7072 = vpop.f32.mrf.mxu0
        %v7073 = vpop.f32.mrf.mxu0
        %v7074 = vadd.f32 0.0, %v7073
        %v7075 = vpop.f32.mrf.mxu0
        %7076 = vmatprep.mubr.bf16.mxu0 0
        %7077 = vmatmul.mubr.bf16.gmra.mxu0 %v6950
        %v7078 = vpop.f32.mrf.mxu0
        %v7079 = vadd.f32 0.0, %v7078
        %v7080 = vpop.f32.mrf.mxu0
        %v7081 = vpop.f32.mrf.mxu0
        %v7082 = vadd.f32 0.0, %v7081
        %v7083 = vpop.f32.mrf.mxu0
        %7084 = vmatprep.mubr.bf16.mxu0 0
        %7085 = vmatmul.mubr.bf16.gmra.mxu0 %v6951
        %v7086 = vpop.f32.mrf.mxu0
        %v7087 = vadd.f32 0.0, %v7086
        %v7088 = vpop.f32.mrf.mxu0
        %v7089 = vpop.f32.mrf.mxu0
        %v7090 = vadd.f32 0.0, %v7089
        %v7091 = vpop.f32.mrf.mxu0
        %7092 = vmatprep.mubr.bf16.mxu0 0
        %7093 = vmatmul.mubr.bf16.gmra.mxu0 %v6952
        %v7094 = vpop.f32.mrf.mxu0
        %v7095 = vadd.f32 0.0, %v7094
        %v7096 = vpop.f32.mrf.mxu0
        %v7097 = vpop.f32.mrf.mxu0
        %v7098 = vadd.f32 0.0, %v7097
        %v7099 = vpop.f32.mrf.mxu0
        %7100 = vmatprep.mubr.bf16.mxu0 0
        %7101 = vmatmul.mubr.bf16.gmra.mxu0 %v6953
        %v7102 = vpop.f32.mrf.mxu0
        %v7103 = vadd.f32 0.0, %v7102
        %v7104 = vpop.f32.mrf.mxu0
        %v7105 = vpop.f32.mrf.mxu0
        %v7106 = vadd.f32 0.0, %v7105
        %v7107 = vpop.f32.mrf.mxu0
        %7108 = vmatprep.mubr.bf16.mxu0 0
        %7109 = vmatmul.mubr.bf16.gmra.mxu0 %v6954
        %v7110 = vpop.f32.mrf.mxu0
        %v7111 = vadd.f32 0.0, %v7110
        %v7112 = vpop.f32.mrf.mxu0
        %v7113 = vpop.f32.mrf.mxu0
        %v7114 = vadd.f32 0.0, %v7113
        %v7115 = vpop.f32.mrf.mxu0
        %7116 = vmatprep.mubr.bf16.mxu0 0
        %7117 = vmatmul.mubr.bf16.gmra.mxu0 %v6955
        %v7118 = vpop.f32.mrf.mxu0
        %v7119 = vadd.f32 0.0, %v7118
        %v7120 = vpop.f32.mrf.mxu0
        %v7121 = vpop.f32.mrf.mxu0
        %v7122 = vadd.f32 0.0, %v7121
        %v7123 = vpop.f32.mrf.mxu0
        %7124 = vmatprep.mubr.bf16.mxu0 0
        %7125 = vmatmul.mubr.bf16.gmra.mxu0 %v6956
        %v7126 = vpop.f32.mrf.mxu0
        %v7127 = vadd.f32 0.0, %v7126
        %v7128 = vpop.f32.mrf.mxu0
        %v7129 = vpop.f32.mrf.mxu0
        %v7130 = vadd.f32 0.0, %v7129
        %v7131 = vpop.f32.mrf.mxu0
        %7132 = vmatprep.mubr.bf16.mxu0 0
        %7133 = vmatmul.mubr.bf16.gmra.mxu0 %v6957
        %v7134 = vpop.f32.mrf.mxu0
        %v7135 = vadd.f32 0.0, %v7134
        %v7136 = vpop.f32.mrf.mxu0
        %v7137 = vpop.f32.mrf.mxu0
        %v7138 = vadd.f32 0.0, %v7137
        %v7139 = vpop.f32.mrf.mxu0
        %7140 = vmatprep.mubr.bf16.mxu0 0
        %7141 = vmatmul.mubr.bf16.gmra.mxu0 %v6958
        %v7142 = vpop.f32.mrf.mxu0
        %v7143 = vadd.f32 0.0, %v7142
        %v7144 = vpop.f32.mrf.mxu0
        %v7145 = vpop.f32.mrf.mxu0
        %v7146 = vadd.f32 0.0, %v7145
        %v7147 = vpop.f32.mrf.mxu0
        %7148 = vmatprep.mubr.bf16.mxu0 0
        %7149 = vmatmul.mubr.bf16.gmra.mxu0 %v6959
        %v7150 = vpop.f32.mrf.mxu0
        %v7151 = vadd.f32 0.0, %v7150
        %v7152 = vpop.f32.mrf.mxu0
        %v7153 = vpop.f32.mrf.mxu0
        %v7154 = vadd.f32 0.0, %v7153
        %v7155 = vpop.f32.mrf.mxu0
        %7156 = vmatprep.mubr.bf16.mxu0 0
        %7157 = vmatmul.mubr.bf16.gmra.mxu0 %v6960
        %v7158 = vpop.f32.mrf.mxu0
        %v7159 = vadd.f32 0.0, %v7158
        %v7160 = vpop.f32.mrf.mxu0
        %v7161 = vpop.f32.mrf.mxu0
        %v7162 = vadd.f32 0.0, %v7161
        %v7163 = vpop.f32.mrf.mxu0
        %7164 = vmatprep.mubr.bf16.mxu0 0
        %7165 = vmatmul.mubr.bf16.gmra.mxu0 %v6961
        %v7166 = vpop.f32.mrf.mxu0
        %v7167 = vadd.f32 0.0, %v7166
        %v7168 = vpop.f32.mrf.mxu0
        %v7169 = vpop.f32.mrf.mxu0
        %v7170 = vadd.f32 0.0, %v7169
        %v7171 = vpop.f32.mrf.mxu0
        %7172 = vmatprep.mubr.bf16.mxu0 0
        %7173 = vmatmul.mubr.bf16.gmra.mxu0 %v6962
        %v7174 = vpop.f32.mrf.mxu0
        %v7175 = vadd.f32 0.0, %v7174
        %v7176 = vpop.f32.mrf.mxu0
        %v7177 = vpop.f32.mrf.mxu0
        %v7178 = vadd.f32 0.0, %v7177
        %v7179 = vpop.f32.mrf.mxu0
        %7180 = vmatprep.mubr.bf16.mxu0 0
        %7181 = vmatmul.mubr.bf16.gmra.mxu0 %v6963
        %v7182 = vpop.f32.mrf.mxu0
        %v7183 = vadd.f32 0.0, %v7182
        %v7184 = vpop.f32.mrf.mxu0
        %v7185 = vpop.f32.mrf.mxu0
        %v7186 = vadd.f32 0.0, %v7185
        %v7187 = vpop.f32.mrf.mxu0
        %7188 = vdwg.mxu0
        %v7221 = vunpack.c.l.b16 %v6451
        %v7222 = vunpack.c.l.b16 %v6452
        %v7223 = vunpack.c.l.b16 %v6453
        %v7224 = vunpack.c.l.b16 %v6454
        %v7225 = vunpack.c.l.b16 %v6455
        %v7226 = vunpack.c.l.b16 %v6456
        %v7227 = vunpack.c.l.b16 %v6457
        %v7228 = vunpack.c.l.b16 %v6458
        %v7229 = vunpack.c.l.b16 %v6459
        %v7230 = vunpack.c.l.b16 %v6460
        %v7231 = vunpack.c.l.b16 %v6461
        %v7232 = vunpack.c.l.b16 %v6462
        %v7233 = vunpack.c.l.b16 %v6463
        %v7234 = vunpack.c.l.b16 %v6464
        %v7235 = vunpack.c.l.b16 %v6465
        %v7236 = vunpack.c.l.b16 %v6466
        %v7237 = vunpack.c.l.b16 %v6467
        %v7238 = vunpack.c.l.b16 %v6468
        %v7239 = vunpack.c.l.b16 %v6469
        %v7240 = vunpack.c.l.b16 %v6470
        %v7241 = vunpack.c.l.b16 %v6471
        %v7242 = vunpack.c.l.b16 %v6472
        %v7243 = vunpack.c.l.b16 %v6473
        %v7244 = vunpack.c.l.b16 %v6474
        %v7245 = vunpack.c.l.b16 %v6475
        %v7246 = vunpack.c.l.b16 %v6476
        %v7247 = vunpack.c.l.b16 %v6477
        %v7248 = vunpack.c.l.b16 %v6478
        %v7249 = vunpack.c.l.b16 %v6479
        %v7250 = vunpack.c.l.b16 %v6480
        %v7251 = vunpack.c.l.b16 %v6481
        %v7252 = vunpack.c.l.b16 %v6482
        %v7253 = vpack.c.b16 %v7222, %v7221
        %v7254 = vpack.c.b16 %v7224, %v7223
        %v7255 = vpack.c.b16 %v7226, %v7225
        %v7256 = vpack.c.b16 %v7228, %v7227
        %v7257 = vpack.c.b16 %v7230, %v7229
        %v7258 = vpack.c.b16 %v7232, %v7231
        %v7259 = vpack.c.b16 %v7234, %v7233
        %v7260 = vpack.c.b16 %v7236, %v7235
        %v7261 = vpack.c.b16 %v7238, %v7237
        %v7262 = vpack.c.b16 %v7240, %v7239
        %v7263 = vpack.c.b16 %v7242, %v7241
        %v7264 = vpack.c.b16 %v7244, %v7243
        %v7265 = vpack.c.b16 %v7246, %v7245
        %v7266 = vpack.c.b16 %v7248, %v7247
        %v7267 = vpack.c.b16 %v7250, %v7249
        %v7268 = vpack.c.b16 %v7252, %v7251
        %v7301 = vunpack.c.l.b16 %v6483
        %v7302 = vunpack.c.l.b16 %v6484
        %v7303 = vunpack.c.l.b16 %v6485
        %v7304 = vunpack.c.l.b16 %v6486
        %v7305 = vunpack.c.l.b16 %v6487
        %v7306 = vunpack.c.l.b16 %v6488
        %v7307 = vunpack.c.l.b16 %v6489
        %v7308 = vunpack.c.l.b16 %v6490
        %v7309 = vunpack.c.l.b16 %v6491
        %v7310 = vunpack.c.l.b16 %v6492
        %v7311 = vunpack.c.l.b16 %v6493
        %v7312 = vunpack.c.l.b16 %v6494
        %v7313 = vunpack.c.l.b16 %v6495
        %v7314 = vunpack.c.l.b16 %v6496
        %v7315 = vunpack.c.l.b16 %v6497
        %v7316 = vunpack.c.l.b16 %v6498
        %v7317 = vpack.c.b16 %v7302, %v7301
        %v7318 = vpack.c.b16 %v7304, %v7303
        %v7319 = vpack.c.b16 %v7306, %v7305
        %v7320 = vpack.c.b16 %v7308, %v7307
        %v7321 = vpack.c.b16 %v7310, %v7309
        %v7322 = vpack.c.b16 %v7312, %v7311
        %v7323 = vpack.c.b16 %v7314, %v7313
        %v7324 = vpack.c.b16 %v7316, %v7315
        %7333 = vmatprep.subr.bf16.mxu0 0
        %7334 = vmatpush1.bf16.msra.mxu0 %v7324
        %7335 = vmatprep.subr.bf16.mxu0 0
        %7336 = vmatpush1.bf16.msra.mxu0 %v7323
        %7337 = vmatprep.subr.bf16.mxu0 0
        %7338 = vmatpush1.bf16.msra.mxu0 %v7322
        %7339 = vmatprep.subr.bf16.mxu0 0
        %7340 = vmatpush1.bf16.msra.mxu0 %v7321
        %7341 = vmatprep.subr.bf16.mxu0 0
        %7342 = vmatpush1.bf16.msra.mxu0 %v7320
        %7343 = vmatprep.subr.bf16.mxu0 0
        %7344 = vmatpush1.bf16.msra.mxu0 %v7319
        %7345 = vmatprep.subr.bf16.mxu0 0
        %7346 = vmatpush1.bf16.msra.mxu0 %v7318
        %7347 = vmatprep.subr.bf16.mxu0 0
        %7348 = vmatpush1.bf16.msra.mxu0 %v7317
        %7349 = vmatprep.subr.bf16.mxu0 0
        %7350 = vmatpush2.bf16.msra.mxu0 0
        %7351 = vmatprep.subr.bf16.mxu0 0
        %7352 = vmatpush2.bf16.msra.mxu0 0
        %7353 = vmatprep.subr.bf16.mxu0 0
        %7354 = vmatpush2.bf16.msra.mxu0 0
        %7355 = vmatprep.subr.bf16.mxu0 0
        %7356 = vmatpush2.bf16.msra.mxu0 0
        %7357 = vmatprep.subr.bf16.mxu0 0
        %7358 = vmatpush2.bf16.msra.mxu0 0
        %7359 = vmatprep.subr.bf16.mxu0 0
        %7360 = vmatpush2.bf16.msra.mxu0 0
        %7361 = vmatprep.subr.bf16.mxu0 0
        %7362 = vmatpush2.bf16.msra.mxu0 0
        %7363 = vmatprep.subr.bf16.mxu0 0
        %7364 = vmatpush2.bf16.msra.mxu0 0
        %7365 = vmatprep.mubr.bf16.mxu0 0
        %7366 = vmatmul.mubr.bf16.gmra.mxu0 %v7253
        %v7367 = vpop.f32.mrf.mxu0
        %v7368 = vadd.f32 %v7063, %v7367
        %v7369 = vpop.f32.mrf.mxu0
        %v7370 = vpop.f32.mrf.mxu0
        %v7371 = vadd.f32 %v7066, %v7370
        %v7372 = vpop.f32.mrf.mxu0
        %7373 = vmatprep.mubr.bf16.mxu0 0
        %7374 = vmatmul.mubr.bf16.gmra.mxu0 %v7254
        %v7375 = vpop.f32.mrf.mxu0
        %v7376 = vadd.f32 %v7071, %v7375
        %v7377 = vpop.f32.mrf.mxu0
        %v7378 = vpop.f32.mrf.mxu0
        %v7379 = vadd.f32 %v7074, %v7378
        %v7380 = vpop.f32.mrf.mxu0
        %7381 = vmatprep.mubr.bf16.mxu0 0
        %7382 = vmatmul.mubr.bf16.gmra.mxu0 %v7255
        %v7383 = vpop.f32.mrf.mxu0
        %v7384 = vadd.f32 %v7079, %v7383
        %v7385 = vpop.f32.mrf.mxu0
        %v7386 = vpop.f32.mrf.mxu0
        %v7387 = vadd.f32 %v7082, %v7386
        %v7388 = vpop.f32.mrf.mxu0
        %7389 = vmatprep.mubr.bf16.mxu0 0
        %7390 = vmatmul.mubr.bf16.gmra.mxu0 %v7256
        %v7391 = vpop.f32.mrf.mxu0
        %v7392 = vadd.f32 %v7087, %v7391
        %v7393 = vpop.f32.mrf.mxu0
        %v7394 = vpop.f32.mrf.mxu0
        %v7395 = vadd.f32 %v7090, %v7394
        %v7396 = vpop.f32.mrf.mxu0
        %7397 = vmatprep.mubr.bf16.mxu0 0
        %7398 = vmatmul.mubr.bf16.gmra.mxu0 %v7257
        %v7399 = vpop.f32.mrf.mxu0
        %v7400 = vadd.f32 %v7095, %v7399
        %v7401 = vpop.f32.mrf.mxu0
        %v7402 = vpop.f32.mrf.mxu0
        %v7403 = vadd.f32 %v7098, %v7402
        %v7404 = vpop.f32.mrf.mxu0
        %7405 = vmatprep.mubr.bf16.mxu0 0
        %7406 = vmatmul.mubr.bf16.gmra.mxu0 %v7258
        %v7407 = vpop.f32.mrf.mxu0
        %v7408 = vadd.f32 %v7103, %v7407
        %v7409 = vpop.f32.mrf.mxu0
        %v7410 = vpop.f32.mrf.mxu0
        %v7411 = vadd.f32 %v7106, %v7410
        %v7412 = vpop.f32.mrf.mxu0
        %7413 = vmatprep.mubr.bf16.mxu0 0
        %7414 = vmatmul.mubr.bf16.gmra.mxu0 %v7259
        %v7415 = vpop.f32.mrf.mxu0
        %v7416 = vadd.f32 %v7111, %v7415
        %v7417 = vpop.f32.mrf.mxu0
        %v7418 = vpop.f32.mrf.mxu0
        %v7419 = vadd.f32 %v7114, %v7418
        %v7420 = vpop.f32.mrf.mxu0
        %7421 = vmatprep.mubr.bf16.mxu0 0
        %7422 = vmatmul.mubr.bf16.gmra.mxu0 %v7260
        %v7423 = vpop.f32.mrf.mxu0
        %v7424 = vadd.f32 %v7119, %v7423
        %v7425 = vpop.f32.mrf.mxu0
        %v7426 = vpop.f32.mrf.mxu0
        %v7427 = vadd.f32 %v7122, %v7426
        %v7428 = vpop.f32.mrf.mxu0
        %7429 = vmatprep.mubr.bf16.mxu0 0
        %7430 = vmatmul.mubr.bf16.gmra.mxu0 %v7261
        %v7431 = vpop.f32.mrf.mxu0
        %v7432 = vadd.f32 %v7127, %v7431
        %v7433 = vpop.f32.mrf.mxu0
        %v7434 = vpop.f32.mrf.mxu0
        %v7435 = vadd.f32 %v7130, %v7434
        %v7436 = vpop.f32.mrf.mxu0
        %7437 = vmatprep.mubr.bf16.mxu0 0
        %7438 = vmatmul.mubr.bf16.gmra.mxu0 %v7262
        %v7439 = vpop.f32.mrf.mxu0
        %v7440 = vadd.f32 %v7135, %v7439
        %v7441 = vpop.f32.mrf.mxu0
        %v7442 = vpop.f32.mrf.mxu0
        %v7443 = vadd.f32 %v7138, %v7442
        %v7444 = vpop.f32.mrf.mxu0
        %7445 = vmatprep.mubr.bf16.mxu0 0
        %7446 = vmatmul.mubr.bf16.gmra.mxu0 %v7263
        %v7447 = vpop.f32.mrf.mxu0
        %v7448 = vadd.f32 %v7143, %v7447
        %v7449 = vpop.f32.mrf.mxu0
        %v7450 = vpop.f32.mrf.mxu0
        %v7451 = vadd.f32 %v7146, %v7450
        %v7452 = vpop.f32.mrf.mxu0
        %7453 = vmatprep.mubr.bf16.mxu0 0
        %7454 = vmatmul.mubr.bf16.gmra.mxu0 %v7264
        %v7455 = vpop.f32.mrf.mxu0
        %v7456 = vadd.f32 %v7151, %v7455
        %v7457 = vpop.f32.mrf.mxu0
        %v7458 = vpop.f32.mrf.mxu0
        %v7459 = vadd.f32 %v7154, %v7458
        %v7460 = vpop.f32.mrf.mxu0
        %7461 = vmatprep.mubr.bf16.mxu0 0
        %7462 = vmatmul.mubr.bf16.gmra.mxu0 %v7265
        %v7463 = vpop.f32.mrf.mxu0
        %v7464 = vadd.f32 %v7159, %v7463
        %v7465 = vpop.f32.mrf.mxu0
        %v7466 = vpop.f32.mrf.mxu0
        %v7467 = vadd.f32 %v7162, %v7466
        %v7468 = vpop.f32.mrf.mxu0
        %7469 = vmatprep.mubr.bf16.mxu0 0
        %7470 = vmatmul.mubr.bf16.gmra.mxu0 %v7266
        %v7471 = vpop.f32.mrf.mxu0
        %v7472 = vadd.f32 %v7167, %v7471
        %v7473 = vpop.f32.mrf.mxu0
        %v7474 = vpop.f32.mrf.mxu0
        %v7475 = vadd.f32 %v7170, %v7474
        %v7476 = vpop.f32.mrf.mxu0
        %7477 = vmatprep.mubr.bf16.mxu0 0
        %7478 = vmatmul.mubr.bf16.gmra.mxu0 %v7267
        %v7479 = vpop.f32.mrf.mxu0
        %v7480 = vadd.f32 %v7175, %v7479
        %v7481 = vpop.f32.mrf.mxu0
        %v7482 = vpop.f32.mrf.mxu0
        %v7483 = vadd.f32 %v7178, %v7482
        %v7484 = vpop.f32.mrf.mxu0
        %7485 = vmatprep.mubr.bf16.mxu0 0
        %7486 = vmatmul.mubr.bf16.gmra.mxu0 %v7268
        %v7487 = vpop.f32.mrf.mxu0
        %v7488 = vadd.f32 %v7183, %v7487
        %v7489 = vpop.f32.mrf.mxu0
        %v7490 = vpop.f32.mrf.mxu0
        %v7491 = vadd.f32 %v7186, %v7490
        %v7492 = vpop.f32.mrf.mxu0
        %7493 = vdwg.mxu0
        %v7494 = vld [vmem:[#allocation3] sm:$0xe]
        %v7495 = vld [vmem:[#allocation3 + $0xc] sm:$0xe]
        %v7496 = vld [vmem:[#allocation3 + $0x18] sm:$0xe]
        %v7497 = vld [vmem:[#allocation3 + $0x24] sm:$0xe]
        %v7498 = vld [vmem:[#allocation3 + $0x30] sm:$0xe]
        %v7499 = vld [vmem:[#allocation3 + $0x3c] sm:$0xe]
        %v7500 = vld [vmem:[#allocation3 + $0x48] sm:$0xe]
        %v7501 = vld [vmem:[#allocation3 + $0x54] sm:$0xe]
        %v7502 = vld [vmem:[#allocation3 + $0x60] sm:$0xe]
        %v7503 = vld [vmem:[#allocation3 + $0x6c] sm:$0xe]
        %v7504 = vld [vmem:[#allocation3 + $0x78] sm:$0xe]
        %v7505 = vld [vmem:[#allocation3 + $0x84] sm:$0xe]
        %v7506 = vld [vmem:[#allocation3 + $0x90] sm:$0xe]
        %v7507 = vld [vmem:[#allocation3 + $0x9c] sm:$0xe]
        %v7508 = vld [vmem:[#allocation3 + $0xa8] sm:$0xe]
        %v7509 = vld [vmem:[#allocation3 + $0xb4] sm:$0xe]
        %v7542 = vrot.slane %v7494, 5
        %v7543 = vrot.slane %v7542, 4
        %v7544 = vrot.slane %v6452, 5
        %v7545 = vsel %vm2046, %v7543, %v7544
        %v7546 = vrot.slane %v7544, 4
        %v7547 = vrot.slane %v6499, 5
        %v7548 = vsel %vm2046, %v7546, %v7547
        %v7549 = vrot.slane %v7495, 5
        %v7550 = vrot.slane %v7549, 4
        %v7551 = vrot.slane %v6454, 5
        %v7552 = vsel %vm2046, %v7550, %v7551
        %v7553 = vrot.slane %v7551, 4
        %v7554 = vrot.slane %v6500, 5
        %v7555 = vsel %vm2046, %v7553, %v7554
        %v7556 = vrot.slane %v7496, 5
        %v7557 = vrot.slane %v7556, 4
        %v7558 = vrot.slane %v6456, 5
        %v7559 = vsel %vm2046, %v7557, %v7558
        %v7560 = vrot.slane %v7558, 4
        %v7561 = vrot.slane %v6501, 5
        %v7562 = vsel %vm2046, %v7560, %v7561
        %v7563 = vrot.slane %v7497, 5
        %v7564 = vrot.slane %v7563, 4
        %v7565 = vrot.slane %v6458, 5
        %v7566 = vsel %vm2046, %v7564, %v7565
        %v7567 = vrot.slane %v7565, 4
        %v7568 = vrot.slane %v6502, 5
        %v7569 = vsel %vm2046, %v7567, %v7568
        %v7570 = vrot.slane %v7498, 5
        %v7571 = vrot.slane %v7570, 4
        %v7572 = vrot.slane %v6460, 5
        %v7573 = vsel %vm2046, %v7571, %v7572
        %v7574 = vrot.slane %v7572, 4
        %v7575 = vrot.slane %v6503, 5
        %v7576 = vsel %vm2046, %v7574, %v7575
        %v7577 = vrot.slane %v7499, 5
        %v7578 = vrot.slane %v7577, 4
        %v7579 = vrot.slane %v6462, 5
        %v7580 = vsel %vm2046, %v7578, %v7579
        %v7581 = vrot.slane %v7579, 4
        %v7582 = vrot.slane %v6504, 5
        %v7583 = vsel %vm2046, %v7581, %v7582
        %v7584 = vrot.slane %v7500, 5
        %v7585 = vrot.slane %v7584, 4
        %v7586 = vrot.slane %v6464, 5
        %v7587 = vsel %vm2046, %v7585, %v7586
        %v7588 = vrot.slane %v7586, 4
        %v7589 = vrot.slane %v6505, 5
        %v7590 = vsel %vm2046, %v7588, %v7589
        %v7591 = vrot.slane %v7501, 5
        %v7592 = vrot.slane %v7591, 4
        %v7593 = vrot.slane %v6466, 5
        %v7594 = vsel %vm2046, %v7592, %v7593
        %v7595 = vrot.slane %v7593, 4
        %v7596 = vrot.slane %v6506, 5
        %v7597 = vsel %vm2046, %v7595, %v7596
        %v7598 = vrot.slane %v7502, 5
        %v7599 = vrot.slane %v7598, 4
        %v7600 = vrot.slane %v6468, 5
        %v7601 = vsel %vm2046, %v7599, %v7600
        %v7602 = vrot.slane %v7600, 4
        %v7603 = vrot.slane %v6507, 5
        %v7604 = vsel %vm2046, %v7602, %v7603
        %v7605 = vrot.slane %v7503, 5
        %v7606 = vrot.slane %v7605, 4
        %v7607 = vrot.slane %v6470, 5
        %v7608 = vsel %vm2046, %v7606, %v7607
        %v7609 = vrot.slane %v7607, 4
        %v7610 = vrot.slane %v6508, 5
        %v7611 = vsel %vm2046, %v7609, %v7610
        %v7612 = vrot.slane %v7504, 5
        %v7613 = vrot.slane %v7612, 4
        %v7614 = vrot.slane %v6472, 5
        %v7615 = vsel %vm2046, %v7613, %v7614
        %v7616 = vrot.slane %v7614, 4
        %v7617 = vrot.slane %v6509, 5
        %v7618 = vsel %vm2046, %v7616, %v7617
        %v7619 = vrot.slane %v7505, 5
        %v7620 = vrot.slane %v7619, 4
        %v7621 = vrot.slane %v6474, 5
        %v7622 = vsel %vm2046, %v7620, %v7621
        %v7623 = vrot.slane %v7621, 4
        %v7624 = vrot.slane %v6510, 5
        %v7625 = vsel %vm2046, %v7623, %v7624
        %v7626 = vrot.slane %v7506, 5
        %v7627 = vrot.slane %v7626, 4
        %v7628 = vrot.slane %v6476, 5
        %v7629 = vsel %vm2046, %v7627, %v7628
        %v7630 = vrot.slane %v7628, 4
        %v7631 = vrot.slane %v6511, 5
        %v7632 = vsel %vm2046, %v7630, %v7631
        %v7633 = vrot.slane %v7507, 5
        %v7634 = vrot.slane %v7633, 4
        %v7635 = vrot.slane %v6478, 5
        %v7636 = vsel %vm2046, %v7634, %v7635
        %v7637 = vrot.slane %v7635, 4
        %v7638 = vrot.slane %v6512, 5
        %v7639 = vsel %vm2046, %v7637, %v7638
        %v7640 = vrot.slane %v7508, 5
        %v7641 = vrot.slane %v7640, 4
        %v7642 = vrot.slane %v6480, 5
        %v7643 = vsel %vm2046, %v7641, %v7642
        %v7644 = vrot.slane %v7642, 4
        %v7645 = vrot.slane %v6513, 5
        %v7646 = vsel %vm2046, %v7644, %v7645
        %v7647 = vrot.slane %v7509, 5
        %v7648 = vrot.slane %v7647, 4
        %v7649 = vrot.slane %v6482, 5
        %v7650 = vsel %vm2046, %v7648, %v7649
        %v7651 = vrot.slane %v7649, 4
        %v7652 = vrot.slane %v6514, 5
        %v7653 = vsel %vm2046, %v7651, %v7652
        %s7654 = scalar_lea.vmem [#allocation9], 128
        %v7655 = vld [vmem:[%s7654] sm:$0xf]
        %v7656 = vld [vmem:[%s7654 + $0x4] sm:$0xf]
        %v7657 = vld [vmem:[%s7654 + $0x8] sm:$0xf]
        %v7658 = vld [vmem:[%s7654 + $0xc] sm:$0xf]
        %v7659 = vld [vmem:[%s7654 + $0x10] sm:$0xf]
        %v7660 = vld [vmem:[%s7654 + $0x14] sm:$0xf]
        %v7661 = vld [vmem:[%s7654 + $0x18] sm:$0xf]
        %v7662 = vld [vmem:[%s7654 + $0x1c] sm:$0xf]
        %v7663 = vld [vmem:[%s7654 + $0x20] sm:$0xf]
        %v7664 = vld [vmem:[%s7654 + $0x24] sm:$0xf]
        %v7665 = vld [vmem:[%s7654 + $0x28] sm:$0xf]
        %v7666 = vld [vmem:[%s7654 + $0x2c] sm:$0xf]
        %v7667 = vld [vmem:[%s7654 + $0x30] sm:$0xf]
        %v7668 = vld [vmem:[%s7654 + $0x34] sm:$0xf]
        %v7669 = vld [vmem:[%s7654 + $0x38] sm:$0xf]
        %v7670 = vld [vmem:[%s7654 + $0x3c] sm:$0xf]
        %v7671 = vunpack.c.l.b16 %v7545
        %v7672 = vunpack.c.l.b16 %v7548
        %v7673 = vunpack.c.l.b16 %v7552
        %v7674 = vunpack.c.l.b16 %v7555
        %v7675 = vunpack.c.l.b16 %v7559
        %v7676 = vunpack.c.l.b16 %v7562
        %v7677 = vunpack.c.l.b16 %v7566
        %v7678 = vunpack.c.l.b16 %v7569
        %v7679 = vunpack.c.l.b16 %v7573
        %v7680 = vunpack.c.l.b16 %v7576
        %v7681 = vunpack.c.l.b16 %v7580
        %v7682 = vunpack.c.l.b16 %v7583
        %v7683 = vunpack.c.l.b16 %v7587
        %v7684 = vunpack.c.l.b16 %v7590
        %v7685 = vunpack.c.l.b16 %v7594
        %v7686 = vunpack.c.l.b16 %v7597
        %v7687 = vunpack.c.l.b16 %v7601
        %v7688 = vunpack.c.l.b16 %v7604
        %v7689 = vunpack.c.l.b16 %v7608
        %v7690 = vunpack.c.l.b16 %v7611
        %v7691 = vunpack.c.l.b16 %v7615
        %v7692 = vunpack.c.l.b16 %v7618
        %v7693 = vunpack.c.l.b16 %v7622
        %v7694 = vunpack.c.l.b16 %v7625
        %v7695 = vunpack.c.l.b16 %v7629
        %v7696 = vunpack.c.l.b16 %v7632
        %v7697 = vunpack.c.l.b16 %v7636
        %v7698 = vunpack.c.l.b16 %v7639
        %v7699 = vunpack.c.l.b16 %v7643
        %v7700 = vunpack.c.l.b16 %v7646
        %v7701 = vunpack.c.l.b16 %v7650
        %v7702 = vunpack.c.l.b16 %v7653
        %v7703 = vpack.c.b16 %v7672, %v7671
        %v7704 = vpack.c.b16 %v7674, %v7673
        %v7705 = vpack.c.b16 %v7676, %v7675
        %v7706 = vpack.c.b16 %v7678, %v7677
        %v7707 = vpack.c.b16 %v7680, %v7679
        %v7708 = vpack.c.b16 %v7682, %v7681
        %v7709 = vpack.c.b16 %v7684, %v7683
        %v7710 = vpack.c.b16 %v7686, %v7685
        %v7711 = vpack.c.b16 %v7688, %v7687
        %v7712 = vpack.c.b16 %v7690, %v7689
        %v7713 = vpack.c.b16 %v7692, %v7691
        %v7714 = vpack.c.b16 %v7694, %v7693
        %v7715 = vpack.c.b16 %v7696, %v7695
        %v7716 = vpack.c.b16 %v7698, %v7697
        %v7717 = vpack.c.b16 %v7700, %v7699
        %v7718 = vpack.c.b16 %v7702, %v7701
        %v7751 = vunpack.c.l.b16 %v7655
        %v7752 = vunpack.c.l.b16 %v7656
        %v7753 = vunpack.c.l.b16 %v7657
        %v7754 = vunpack.c.l.b16 %v7658
        %v7755 = vunpack.c.l.b16 %v7659
        %v7756 = vunpack.c.l.b16 %v7660
        %v7757 = vunpack.c.l.b16 %v7661
        %v7758 = vunpack.c.l.b16 %v7662
        %v7759 = vunpack.c.l.b16 %v7663
        %v7760 = vunpack.c.l.b16 %v7664
        %v7761 = vunpack.c.l.b16 %v7665
        %v7762 = vunpack.c.l.b16 %v7666
        %v7763 = vunpack.c.l.b16 %v7667
        %v7764 = vunpack.c.l.b16 %v7668
        %v7765 = vunpack.c.l.b16 %v7669
        %v7766 = vunpack.c.l.b16 %v7670
        %v7767 = vpack.c.b16 %v7752, %v7751
        %v7768 = vpack.c.b16 %v7754, %v7753
        %v7769 = vpack.c.b16 %v7756, %v7755
        %v7770 = vpack.c.b16 %v7758, %v7757
        %v7771 = vpack.c.b16 %v7760, %v7759
        %v7772 = vpack.c.b16 %v7762, %v7761
        %v7773 = vpack.c.b16 %v7764, %v7763
        %v7774 = vpack.c.b16 %v7766, %v7765
        %7783 = vmatprep.subr.bf16.mxu0 0
        %7784 = vmatpush1.bf16.msra.mxu0 %v7774
        %7785 = vmatprep.subr.bf16.mxu0 0
        %7786 = vmatpush1.bf16.msra.mxu0 %v7773
        %7787 = vmatprep.subr.bf16.mxu0 0
        %7788 = vmatpush1.bf16.msra.mxu0 %v7772
        %7789 = vmatprep.subr.bf16.mxu0 0
        %7790 = vmatpush1.bf16.msra.mxu0 %v7771
        %7791 = vmatprep.subr.bf16.mxu0 0
        %7792 = vmatpush1.bf16.msra.mxu0 %v7770
        %7793 = vmatprep.subr.bf16.mxu0 0
        %7794 = vmatpush1.bf16.msra.mxu0 %v7769
        %7795 = vmatprep.subr.bf16.mxu0 0
        %7796 = vmatpush1.bf16.msra.mxu0 %v7768
        %7797 = vmatprep.subr.bf16.mxu0 0
        %7798 = vmatpush1.bf16.msra.mxu0 %v7767
        %7799 = vmatprep.subr.bf16.mxu0 0
        %7800 = vmatpush2.bf16.msra.mxu0 0
        %7801 = vmatprep.subr.bf16.mxu0 0
        %7802 = vmatpush2.bf16.msra.mxu0 0
        %7803 = vmatprep.subr.bf16.mxu0 0
        %7804 = vmatpush2.bf16.msra.mxu0 0
        %7805 = vmatprep.subr.bf16.mxu0 0
        %7806 = vmatpush2.bf16.msra.mxu0 0
        %7807 = vmatprep.subr.bf16.mxu0 0
        %7808 = vmatpush2.bf16.msra.mxu0 0
        %7809 = vmatprep.subr.bf16.mxu0 0
        %7810 = vmatpush2.bf16.msra.mxu0 0
        %7811 = vmatprep.subr.bf16.mxu0 0
        %7812 = vmatpush2.bf16.msra.mxu0 0
        %7813 = vmatprep.subr.bf16.mxu0 0
        %7814 = vmatpush2.bf16.msra.mxu0 0
        %7815 = vmatprep.mubr.bf16.mxu0 0
        %7816 = vmatmul.mubr.bf16.gmra.mxu0 %v7703
        %v7817 = vpop.f32.mrf.mxu0
        %v7818 = vadd.f32 0.0, %v7817
        %v7819 = vpop.f32.mrf.mxu0
        %v7820 = vpop.f32.mrf.mxu0
        %v7821 = vadd.f32 0.0, %v7820
        %v7822 = vpop.f32.mrf.mxu0
        %7823 = vmatprep.mubr.bf16.mxu0 0
        %7824 = vmatmul.mubr.bf16.gmra.mxu0 %v7704
        %v7825 = vpop.f32.mrf.mxu0
        %v7826 = vadd.f32 0.0, %v7825
        %v7827 = vpop.f32.mrf.mxu0
        %v7828 = vpop.f32.mrf.mxu0
        %v7829 = vadd.f32 0.0, %v7828
        %v7830 = vpop.f32.mrf.mxu0
        %7831 = vmatprep.mubr.bf16.mxu0 0
        %7832 = vmatmul.mubr.bf16.gmra.mxu0 %v7705
        %v7833 = vpop.f32.mrf.mxu0
        %v7834 = vadd.f32 0.0, %v7833
        %v7835 = vpop.f32.mrf.mxu0
        %v7836 = vpop.f32.mrf.mxu0
        %v7837 = vadd.f32 0.0, %v7836
        %v7838 = vpop.f32.mrf.mxu0
        %7839 = vmatprep.mubr.bf16.mxu0 0
        %7840 = vmatmul.mubr.bf16.gmra.mxu0 %v7706
        %v7841 = vpop.f32.mrf.mxu0
        %v7842 = vadd.f32 0.0, %v7841
        %v7843 = vpop.f32.mrf.mxu0
        %v7844 = vpop.f32.mrf.mxu0
        %v7845 = vadd.f32 0.0, %v7844
        %v7846 = vpop.f32.mrf.mxu0
        %7847 = vmatprep.mubr.bf16.mxu0 0
        %7848 = vmatmul.mubr.bf16.gmra.mxu0 %v7707
        %v7849 = vpop.f32.mrf.mxu0
        %v7850 = vadd.f32 0.0, %v7849
        %v7851 = vpop.f32.mrf.mxu0
        %v7852 = vpop.f32.mrf.mxu0
        %v7853 = vadd.f32 0.0, %v7852
        %v7854 = vpop.f32.mrf.mxu0
        %7855 = vmatprep.mubr.bf16.mxu0 0
        %7856 = vmatmul.mubr.bf16.gmra.mxu0 %v7708
        %v7857 = vpop.f32.mrf.mxu0
        %v7858 = vadd.f32 0.0, %v7857
        %v7859 = vpop.f32.mrf.mxu0
        %v7860 = vpop.f32.mrf.mxu0
        %v7861 = vadd.f32 0.0, %v7860
        %v7862 = vpop.f32.mrf.mxu0
        %7863 = vmatprep.mubr.bf16.mxu0 0
        %7864 = vmatmul.mubr.bf16.gmra.mxu0 %v7709
        %v7865 = vpop.f32.mrf.mxu0
        %v7866 = vadd.f32 0.0, %v7865
        %v7867 = vpop.f32.mrf.mxu0
        %v7868 = vpop.f32.mrf.mxu0
        %v7869 = vadd.f32 0.0, %v7868
        %v7870 = vpop.f32.mrf.mxu0
        %7871 = vmatprep.mubr.bf16.mxu0 0
        %7872 = vmatmul.mubr.bf16.gmra.mxu0 %v7710
        %v7873 = vpop.f32.mrf.mxu0
        %v7874 = vadd.f32 0.0, %v7873
        %v7875 = vpop.f32.mrf.mxu0
        %v7876 = vpop.f32.mrf.mxu0
        %v7877 = vadd.f32 0.0, %v7876
        %v7878 = vpop.f32.mrf.mxu0
        %7879 = vmatprep.mubr.bf16.mxu0 0
        %7880 = vmatmul.mubr.bf16.gmra.mxu0 %v7711
        %v7881 = vpop.f32.mrf.mxu0
        %v7882 = vadd.f32 0.0, %v7881
        %v7883 = vpop.f32.mrf.mxu0
        %v7884 = vpop.f32.mrf.mxu0
        %v7885 = vadd.f32 0.0, %v7884
        %v7886 = vpop.f32.mrf.mxu0
        %7887 = vmatprep.mubr.bf16.mxu0 0
        %7888 = vmatmul.mubr.bf16.gmra.mxu0 %v7712
        %v7889 = vpop.f32.mrf.mxu0
        %v7890 = vadd.f32 0.0, %v7889
        %v7891 = vpop.f32.mrf.mxu0
        %v7892 = vpop.f32.mrf.mxu0
        %v7893 = vadd.f32 0.0, %v7892
        %v7894 = vpop.f32.mrf.mxu0
        %7895 = vmatprep.mubr.bf16.mxu0 0
        %7896 = vmatmul.mubr.bf16.gmra.mxu0 %v7713
        %v7897 = vpop.f32.mrf.mxu0
        %v7898 = vadd.f32 0.0, %v7897
        %v7899 = vpop.f32.mrf.mxu0
        %v7900 = vpop.f32.mrf.mxu0
        %v7901 = vadd.f32 0.0, %v7900
        %v7902 = vpop.f32.mrf.mxu0
        %7903 = vmatprep.mubr.bf16.mxu0 0
        %7904 = vmatmul.mubr.bf16.gmra.mxu0 %v7714
        %v7905 = vpop.f32.mrf.mxu0
        %v7906 = vadd.f32 0.0, %v7905
        %v7907 = vpop.f32.mrf.mxu0
        %v7908 = vpop.f32.mrf.mxu0
        %v7909 = vadd.f32 0.0, %v7908
        %v7910 = vpop.f32.mrf.mxu0
        %7911 = vmatprep.mubr.bf16.mxu0 0
        %7912 = vmatmul.mubr.bf16.gmra.mxu0 %v7715
        %v7913 = vpop.f32.mrf.mxu0
        %v7914 = vadd.f32 0.0, %v7913
        %v7915 = vpop.f32.mrf.mxu0
        %v7916 = vpop.f32.mrf.mxu0
        %v7917 = vadd.f32 0.0, %v7916
        %v7918 = vpop.f32.mrf.mxu0
        %7919 = vmatprep.mubr.bf16.mxu0 0
        %7920 = vmatmul.mubr.bf16.gmra.mxu0 %v7716
        %v7921 = vpop.f32.mrf.mxu0
        %v7922 = vadd.f32 0.0, %v7921
        %v7923 = vpop.f32.mrf.mxu0
        %v7924 = vpop.f32.mrf.mxu0
        %v7925 = vadd.f32 0.0, %v7924
        %v7926 = vpop.f32.mrf.mxu0
        %7927 = vmatprep.mubr.bf16.mxu0 0
        %7928 = vmatmul.mubr.bf16.gmra.mxu0 %v7717
        %v7929 = vpop.f32.mrf.mxu0
        %v7930 = vadd.f32 0.0, %v7929
        %v7931 = vpop.f32.mrf.mxu0
        %v7932 = vpop.f32.mrf.mxu0
        %v7933 = vadd.f32 0.0, %v7932
        %v7934 = vpop.f32.mrf.mxu0
        %7935 = vmatprep.mubr.bf16.mxu0 0
        %7936 = vmatmul.mubr.bf16.gmra.mxu0 %v7718
        %v7937 = vpop.f32.mrf.mxu0
        %v7938 = vadd.f32 0.0, %v7937
        %v7939 = vpop.f32.mrf.mxu0
        %v7940 = vpop.f32.mrf.mxu0
        %v7941 = vadd.f32 0.0, %v7940
        %v7942 = vpop.f32.mrf.mxu0
        %7943 = vdwg.mxu0
        %v7944 = vadd.f32 %v7368, %v7818
        %v7945 = vadd.f32 %v7371, %v7821
        %v7946 = vadd.f32 %v7376, %v7826
        %v7947 = vadd.f32 %v7379, %v7829
        %v7948 = vadd.f32 %v7384, %v7834
        %v7949 = vadd.f32 %v7387, %v7837
        %v7950 = vadd.f32 %v7392, %v7842
        %v7951 = vadd.f32 %v7395, %v7845
        %v7952 = vadd.f32 %v7400, %v7850
        %v7953 = vadd.f32 %v7403, %v7853
        %v7954 = vadd.f32 %v7408, %v7858
        %v7955 = vadd.f32 %v7411, %v7861
        %v7956 = vadd.f32 %v7416, %v7866
        %v7957 = vadd.f32 %v7419, %v7869
        %v7958 = vadd.f32 %v7424, %v7874
        %v7959 = vadd.f32 %v7427, %v7877
        %v7960 = vadd.f32 %v7432, %v7882
        %v7961 = vadd.f32 %v7435, %v7885
        %v7962 = vadd.f32 %v7440, %v7890
        %v7963 = vadd.f32 %v7443, %v7893
        %v7964 = vadd.f32 %v7448, %v7898
        %v7965 = vadd.f32 %v7451, %v7901
        %v7966 = vadd.f32 %v7456, %v7906
        %v7967 = vadd.f32 %v7459, %v7909
        %v7968 = vadd.f32 %v7464, %v7914
        %v7969 = vadd.f32 %v7467, %v7917
        %v7970 = vadd.f32 %v7472, %v7922
        %v7971 = vadd.f32 %v7475, %v7925
        %v7972 = vadd.f32 %v7480, %v7930
        %v7973 = vadd.f32 %v7483, %v7933
        %v7974 = vadd.f32 %v7488, %v7938
        %v7975 = vadd.f32 %v7491, %v7941
        %v7976 = vld [vmem:[%s6338] sm:$0xf]
        %v7977 = vld [vmem:[%s6338 + $0x4] sm:$0xf]
        %v7978 = vld [vmem:[%s6338 + $0xc] sm:$0xf]
        %v7979 = vld [vmem:[%s6338 + $0x10] sm:$0xf]
        %v7980 = vld [vmem:[%s6338 + $0x18] sm:$0xf]
        %v7981 = vld [vmem:[%s6338 + $0x1c] sm:$0xf]
        %v7982 = vld [vmem:[%s6338 + $0x24] sm:$0xf]
        %v7983 = vld [vmem:[%s6338 + $0x28] sm:$0xf]
        %v7984 = vld [vmem:[%s6338 + $0x30] sm:$0xf]
        %v7985 = vld [vmem:[%s6338 + $0x34] sm:$0xf]
        %v7986 = vld [vmem:[%s6338 + $0x3c] sm:$0xf]
        %v7987 = vld [vmem:[%s6338 + $0x40] sm:$0xf]
        %v7988 = vld [vmem:[%s6338 + $0x48] sm:$0xf]
        %v7989 = vld [vmem:[%s6338 + $0x4c] sm:$0xf]
        %v7990 = vld [vmem:[%s6338 + $0x54] sm:$0xf]
        %v7991 = vld [vmem:[%s6338 + $0x58] sm:$0xf]
        %v7992 = vld [vmem:[%s6338 + $0x60] sm:$0xf]
        %v7993 = vld [vmem:[%s6338 + $0x64] sm:$0xf]
        %v7994 = vld [vmem:[%s6338 + $0x6c] sm:$0xf]
        %v7995 = vld [vmem:[%s6338 + $0x70] sm:$0xf]
        %v7996 = vld [vmem:[%s6338 + $0x78] sm:$0xf]
        %v7997 = vld [vmem:[%s6338 + $0x7c] sm:$0xf]
        %v7998 = vld [vmem:[%s6338 + $0x84] sm:$0xf]
        %v7999 = vld [vmem:[%s6338 + $0x88] sm:$0xf]
        %v8000 = vld [vmem:[%s6338 + $0x90] sm:$0xf]
        %v8001 = vld [vmem:[%s6338 + $0x94] sm:$0xf]
        %v8002 = vld [vmem:[%s6338 + $0x9c] sm:$0xf]
        %v8003 = vld [vmem:[%s6338 + $0xa0] sm:$0xf]
        %v8004 = vld [vmem:[%s6338 + $0xa8] sm:$0xf]
        %v8005 = vld [vmem:[%s6338 + $0xac] sm:$0xf]
        %v8006 = vld [vmem:[%s6338 + $0xb4] sm:$0xf]
        %v8007 = vld [vmem:[%s6338 + $0xb8] sm:$0xf]
        %s8008 = scalar_lea.vmem [#allocation9], 192
        %v8009 = vld [vmem:[%s8008] sm:$0xf]
        %v8010 = vld [vmem:[%s8008 + $0x4] sm:$0xf]
        %v8011 = vld [vmem:[%s8008 + $0x8] sm:$0xf]
        %v8012 = vld [vmem:[%s8008 + $0xc] sm:$0xf]
        %v8013 = vld [vmem:[%s8008 + $0x10] sm:$0xf]
        %v8014 = vld [vmem:[%s8008 + $0x14] sm:$0xf]
        %v8015 = vld [vmem:[%s8008 + $0x18] sm:$0xf]
        %v8016 = vld [vmem:[%s8008 + $0x1c] sm:$0xf]
        %v8017 = vld [vmem:[%s8008 + $0x20] sm:$0xf]
        %v8018 = vld [vmem:[%s8008 + $0x24] sm:$0xf]
        %v8019 = vld [vmem:[%s8008 + $0x28] sm:$0xf]
        %v8020 = vld [vmem:[%s8008 + $0x2c] sm:$0xf]
        %v8021 = vld [vmem:[%s8008 + $0x30] sm:$0xf]
        %v8022 = vld [vmem:[%s8008 + $0x34] sm:$0xf]
        %v8023 = vld [vmem:[%s8008 + $0x38] sm:$0xf]
        %v8024 = vld [vmem:[%s8008 + $0x3c] sm:$0xf]
        %v8057 = vunpack.c.l.b16 %v7976
        %v8058 = vunpack.c.l.b16 %v7977
        %v8059 = vunpack.c.l.b16 %v7978
        %v8060 = vunpack.c.l.b16 %v7979
        %v8061 = vunpack.c.l.b16 %v7980
        %v8062 = vunpack.c.l.b16 %v7981
        %v8063 = vunpack.c.l.b16 %v7982
        %v8064 = vunpack.c.l.b16 %v7983
        %v8065 = vunpack.c.l.b16 %v7984
        %v8066 = vunpack.c.l.b16 %v7985
        %v8067 = vunpack.c.l.b16 %v7986
        %v8068 = vunpack.c.l.b16 %v7987
        %v8069 = vunpack.c.l.b16 %v7988
        %v8070 = vunpack.c.l.b16 %v7989
        %v8071 = vunpack.c.l.b16 %v7990
        %v8072 = vunpack.c.l.b16 %v7991
        %v8073 = vunpack.c.l.b16 %v7992
        %v8074 = vunpack.c.l.b16 %v7993
        %v8075 = vunpack.c.l.b16 %v7994
        %v8076 = vunpack.c.l.b16 %v7995
        %v8077 = vunpack.c.l.b16 %v7996
        %v8078 = vunpack.c.l.b16 %v7997
        %v8079 = vunpack.c.l.b16 %v7998
        %v8080 = vunpack.c.l.b16 %v7999
        %v8081 = vunpack.c.l.b16 %v8000
        %v8082 = vunpack.c.l.b16 %v8001
        %v8083 = vunpack.c.l.b16 %v8002
        %v8084 = vunpack.c.l.b16 %v8003
        %v8085 = vunpack.c.l.b16 %v8004
        %v8086 = vunpack.c.l.b16 %v8005
        %v8087 = vunpack.c.l.b16 %v8006
        %v8088 = vunpack.c.l.b16 %v8007
        %v8089 = vpack.c.b16 %v8058, %v8057
        %v8090 = vpack.c.b16 %v8060, %v8059
        %v8091 = vpack.c.b16 %v8062, %v8061
        %v8092 = vpack.c.b16 %v8064, %v8063
        %v8093 = vpack.c.b16 %v8066, %v8065
        %v8094 = vpack.c.b16 %v8068, %v8067
        %v8095 = vpack.c.b16 %v8070, %v8069
        %v8096 = vpack.c.b16 %v8072, %v8071
        %v8097 = vpack.c.b16 %v8074, %v8073
        %v8098 = vpack.c.b16 %v8076, %v8075
        %v8099 = vpack.c.b16 %v8078, %v8077
        %v8100 = vpack.c.b16 %v8080, %v8079
        %v8101 = vpack.c.b16 %v8082, %v8081
        %v8102 = vpack.c.b16 %v8084, %v8083
        %v8103 = vpack.c.b16 %v8086, %v8085
        %v8104 = vpack.c.b16 %v8088, %v8087
        %v8137 = vunpack.c.l.b16 %v8009
        %v8138 = vunpack.c.l.b16 %v8010
        %v8139 = vunpack.c.l.b16 %v8011
        %v8140 = vunpack.c.l.b16 %v8012
        %v8141 = vunpack.c.l.b16 %v8013
        %v8142 = vunpack.c.l.b16 %v8014
        %v8143 = vunpack.c.l.b16 %v8015
        %v8144 = vunpack.c.l.b16 %v8016
        %v8145 = vunpack.c.l.b16 %v8017
        %v8146 = vunpack.c.l.b16 %v8018
        %v8147 = vunpack.c.l.b16 %v8019
        %v8148 = vunpack.c.l.b16 %v8020
        %v8149 = vunpack.c.l.b16 %v8021
        %v8150 = vunpack.c.l.b16 %v8022
        %v8151 = vunpack.c.l.b16 %v8023
        %v8152 = vunpack.c.l.b16 %v8024
        %v8153 = vpack.c.b16 %v8138, %v8137
        %v8154 = vpack.c.b16 %v8140, %v8139
        %v8155 = vpack.c.b16 %v8142, %v8141
        %v8156 = vpack.c.b16 %v8144, %v8143
        %v8157 = vpack.c.b16 %v8146, %v8145
        %v8158 = vpack.c.b16 %v8148, %v8147
        %v8159 = vpack.c.b16 %v8150, %v8149
        %v8160 = vpack.c.b16 %v8152, %v8151
        %8169 = vmatprep.subr.bf16.mxu0 0
        %8170 = vmatpush1.bf16.msra.mxu0 %v8160
        %8171 = vmatprep.subr.bf16.mxu0 0
        %8172 = vmatpush1.bf16.msra.mxu0 %v8159
        %8173 = vmatprep.subr.bf16.mxu0 0
        %8174 = vmatpush1.bf16.msra.mxu0 %v8158
        %8175 = vmatprep.subr.bf16.mxu0 0
        %8176 = vmatpush1.bf16.msra.mxu0 %v8157
        %8177 = vmatprep.subr.bf16.mxu0 0
        %8178 = vmatpush1.bf16.msra.mxu0 %v8156
        %8179 = vmatprep.subr.bf16.mxu0 0
        %8180 = vmatpush1.bf16.msra.mxu0 %v8155
        %8181 = vmatprep.subr.bf16.mxu0 0
        %8182 = vmatpush1.bf16.msra.mxu0 %v8154
        %8183 = vmatprep.subr.bf16.mxu0 0
        %8184 = vmatpush1.bf16.msra.mxu0 %v8153
        %8185 = vmatprep.subr.bf16.mxu0 0
        %8186 = vmatpush2.bf16.msra.mxu0 0
        %8187 = vmatprep.subr.bf16.mxu0 0
        %8188 = vmatpush2.bf16.msra.mxu0 0
        %8189 = vmatprep.subr.bf16.mxu0 0
        %8190 = vmatpush2.bf16.msra.mxu0 0
        %8191 = vmatprep.subr.bf16.mxu0 0
        %8192 = vmatpush2.bf16.msra.mxu0 0
        %8193 = vmatprep.subr.bf16.mxu0 0
        %8194 = vmatpush2.bf16.msra.mxu0 0
        %8195 = vmatprep.subr.bf16.mxu0 0
        %8196 = vmatpush2.bf16.msra.mxu0 0
        %8197 = vmatprep.subr.bf16.mxu0 0
        %8198 = vmatpush2.bf16.msra.mxu0 0
        %8199 = vmatprep.subr.bf16.mxu0 0
        %8200 = vmatpush2.bf16.msra.mxu0 0
        %8201 = vmatprep.mubr.bf16.mxu0 0
        %8202 = vmatmul.mubr.bf16.gmra.mxu0 %v8089
        %v8203 = vpop.f32.mrf.mxu0
        %v8204 = vadd.f32 0.0, %v8203
        %v8205 = vpop.f32.mrf.mxu0
        %v8206 = vpop.f32.mrf.mxu0
        %v8207 = vadd.f32 0.0, %v8206
        %v8208 = vpop.f32.mrf.mxu0
        %8209 = vmatprep.mubr.bf16.mxu0 0
        %8210 = vmatmul.mubr.bf16.gmra.mxu0 %v8090
        %v8211 = vpop.f32.mrf.mxu0
        %v8212 = vadd.f32 0.0, %v8211
        %v8213 = vpop.f32.mrf.mxu0
        %v8214 = vpop.f32.mrf.mxu0
        %v8215 = vadd.f32 0.0, %v8214
        %v8216 = vpop.f32.mrf.mxu0
        %8217 = vmatprep.mubr.bf16.mxu0 0
        %8218 = vmatmul.mubr.bf16.gmra.mxu0 %v8091
        %v8219 = vpop.f32.mrf.mxu0
        %v8220 = vadd.f32 0.0, %v8219
        %v8221 = vpop.f32.mrf.mxu0
        %v8222 = vpop.f32.mrf.mxu0
        %v8223 = vadd.f32 0.0, %v8222
        %v8224 = vpop.f32.mrf.mxu0
        %8225 = vmatprep.mubr.bf16.mxu0 0
        %8226 = vmatmul.mubr.bf16.gmra.mxu0 %v8092
        %v8227 = vpop.f32.mrf.mxu0
        %v8228 = vadd.f32 0.0, %v8227
        %v8229 = vpop.f32.mrf.mxu0
        %v8230 = vpop.f32.mrf.mxu0
        %v8231 = vadd.f32 0.0, %v8230
        %v8232 = vpop.f32.mrf.mxu0
        %8233 = vmatprep.mubr.bf16.mxu0 0
        %8234 = vmatmul.mubr.bf16.gmra.mxu0 %v8093
        %v8235 = vpop.f32.mrf.mxu0
        %v8236 = vadd.f32 0.0, %v8235
        %v8237 = vpop.f32.mrf.mxu0
        %v8238 = vpop.f32.mrf.mxu0
        %v8239 = vadd.f32 0.0, %v8238
        %v8240 = vpop.f32.mrf.mxu0
        %8241 = vmatprep.mubr.bf16.mxu0 0
        %8242 = vmatmul.mubr.bf16.gmra.mxu0 %v8094
        %v8243 = vpop.f32.mrf.mxu0
        %v8244 = vadd.f32 0.0, %v8243
        %v8245 = vpop.f32.mrf.mxu0
        %v8246 = vpop.f32.mrf.mxu0
        %v8247 = vadd.f32 0.0, %v8246
        %v8248 = vpop.f32.mrf.mxu0
        %8249 = vmatprep.mubr.bf16.mxu0 0
        %8250 = vmatmul.mubr.bf16.gmra.mxu0 %v8095
        %v8251 = vpop.f32.mrf.mxu0
        %v8252 = vadd.f32 0.0, %v8251
        %v8253 = vpop.f32.mrf.mxu0
        %v8254 = vpop.f32.mrf.mxu0
        %v8255 = vadd.f32 0.0, %v8254
        %v8256 = vpop.f32.mrf.mxu0
        %8257 = vmatprep.mubr.bf16.mxu0 0
        %8258 = vmatmul.mubr.bf16.gmra.mxu0 %v8096
        %v8259 = vpop.f32.mrf.mxu0
        %v8260 = vadd.f32 0.0, %v8259
        %v8261 = vpop.f32.mrf.mxu0
        %v8262 = vpop.f32.mrf.mxu0
        %v8263 = vadd.f32 0.0, %v8262
        %v8264 = vpop.f32.mrf.mxu0
        %8265 = vmatprep.mubr.bf16.mxu0 0
        %8266 = vmatmul.mubr.bf16.gmra.mxu0 %v8097
        %v8267 = vpop.f32.mrf.mxu0
        %v8268 = vadd.f32 0.0, %v8267
        %v8269 = vpop.f32.mrf.mxu0
        %v8270 = vpop.f32.mrf.mxu0
        %v8271 = vadd.f32 0.0, %v8270
        %v8272 = vpop.f32.mrf.mxu0
        %8273 = vmatprep.mubr.bf16.mxu0 0
        %8274 = vmatmul.mubr.bf16.gmra.mxu0 %v8098
        %v8275 = vpop.f32.mrf.mxu0
        %v8276 = vadd.f32 0.0, %v8275
        %v8277 = vpop.f32.mrf.mxu0
        %v8278 = vpop.f32.mrf.mxu0
        %v8279 = vadd.f32 0.0, %v8278
        %v8280 = vpop.f32.mrf.mxu0
        %8281 = vmatprep.mubr.bf16.mxu0 0
        %8282 = vmatmul.mubr.bf16.gmra.mxu0 %v8099
        %v8283 = vpop.f32.mrf.mxu0
        %v8284 = vadd.f32 0.0, %v8283
        %v8285 = vpop.f32.mrf.mxu0
        %v8286 = vpop.f32.mrf.mxu0
        %v8287 = vadd.f32 0.0, %v8286
        %v8288 = vpop.f32.mrf.mxu0
        %8289 = vmatprep.mubr.bf16.mxu0 0
        %8290 = vmatmul.mubr.bf16.gmra.mxu0 %v8100
        %v8291 = vpop.f32.mrf.mxu0
        %v8292 = vadd.f32 0.0, %v8291
        %v8293 = vpop.f32.mrf.mxu0
        %v8294 = vpop.f32.mrf.mxu0
        %v8295 = vadd.f32 0.0, %v8294
        %v8296 = vpop.f32.mrf.mxu0
        %8297 = vmatprep.mubr.bf16.mxu0 0
        %8298 = vmatmul.mubr.bf16.gmra.mxu0 %v8101
        %v8299 = vpop.f32.mrf.mxu0
        %v8300 = vadd.f32 0.0, %v8299
        %v8301 = vpop.f32.mrf.mxu0
        %v8302 = vpop.f32.mrf.mxu0
        %v8303 = vadd.f32 0.0, %v8302
        %v8304 = vpop.f32.mrf.mxu0
        %8305 = vmatprep.mubr.bf16.mxu0 0
        %8306 = vmatmul.mubr.bf16.gmra.mxu0 %v8102
        %v8307 = vpop.f32.mrf.mxu0
        %v8308 = vadd.f32 0.0, %v8307
        %v8309 = vpop.f32.mrf.mxu0
        %v8310 = vpop.f32.mrf.mxu0
        %v8311 = vadd.f32 0.0, %v8310
        %v8312 = vpop.f32.mrf.mxu0
        %8313 = vmatprep.mubr.bf16.mxu0 0
        %8314 = vmatmul.mubr.bf16.gmra.mxu0 %v8103
        %v8315 = vpop.f32.mrf.mxu0
        %v8316 = vadd.f32 0.0, %v8315
        %v8317 = vpop.f32.mrf.mxu0
        %v8318 = vpop.f32.mrf.mxu0
        %v8319 = vadd.f32 0.0, %v8318
        %v8320 = vpop.f32.mrf.mxu0
        %8321 = vmatprep.mubr.bf16.mxu0 0
        %8322 = vmatmul.mubr.bf16.gmra.mxu0 %v8104
        %v8323 = vpop.f32.mrf.mxu0
        %v8324 = vadd.f32 0.0, %v8323
        %v8325 = vpop.f32.mrf.mxu0
        %v8326 = vpop.f32.mrf.mxu0
        %v8327 = vadd.f32 0.0, %v8326
        %v8328 = vpop.f32.mrf.mxu0
        %8329 = vdwg.mxu0
        %v8330 = vadd.f32 %v7944, %v8204
        %v8331 = vadd.f32 %v7945, %v8207
        %v8332 = vadd.f32 %v7946, %v8212
        %v8333 = vadd.f32 %v7947, %v8215
        %v8334 = vadd.f32 %v7948, %v8220
        %v8335 = vadd.f32 %v7949, %v8223
        %v8336 = vadd.f32 %v7950, %v8228
        %v8337 = vadd.f32 %v7951, %v8231
        %v8338 = vadd.f32 %v7952, %v8236
        %v8339 = vadd.f32 %v7953, %v8239
        %v8340 = vadd.f32 %v7954, %v8244
        %v8341 = vadd.f32 %v7955, %v8247
        %v8342 = vadd.f32 %v7956, %v8252
        %v8343 = vadd.f32 %v7957, %v8255
        %v8344 = vadd.f32 %v7958, %v8260
        %v8345 = vadd.f32 %v7959, %v8263
        %v8346 = vadd.f32 %v7960, %v8268
        %v8347 = vadd.f32 %v7961, %v8271
        %v8348 = vadd.f32 %v7962, %v8276
        %v8349 = vadd.f32 %v7963, %v8279
        %v8350 = vadd.f32 %v7964, %v8284
        %v8351 = vadd.f32 %v7965, %v8287
        %v8352 = vadd.f32 %v7966, %v8292
        %v8353 = vadd.f32 %v7967, %v8295
        %v8354 = vadd.f32 %v7968, %v8300
        %v8355 = vadd.f32 %v7969, %v8303
        %v8356 = vadd.f32 %v7970, %v8308
        %v8357 = vadd.f32 %v7971, %v8311
        %v8358 = vadd.f32 %v7972, %v8316
        %v8359 = vadd.f32 %v7973, %v8319
        %v8360 = vadd.f32 %v7974, %v8324
        %v8361 = vadd.f32 %v7975, %v8327
        %v8362 = vld [vmem:[%s6338] sm:$0xf]
        %v8363 = vld [vmem:[%s6338 + $0x4] sm:$0xf]
        %v8364 = vld [vmem:[%s6338 + $0x8] sm:$0x1]
        %v8365 = vld [vmem:[%s6338 + $0xc] sm:$0xf]
        %v8366 = vld [vmem:[%s6338 + $0x10] sm:$0xf]
        %v8367 = vld [vmem:[%s6338 + $0x14] sm:$0x1]
        %v8368 = vld [vmem:[%s6338 + $0x18] sm:$0xf]
        %v8369 = vld [vmem:[%s6338 + $0x1c] sm:$0xf]
        %v8370 = vld [vmem:[%s6338 + $0x20] sm:$0x1]
        %v8371 = vld [vmem:[%s6338 + $0x24] sm:$0xf]
        %v8372 = vld [vmem:[%s6338 + $0x28] sm:$0xf]
        %v8373 = vld [vmem:[%s6338 + $0x2c] sm:$0x1]
        %v8374 = vld [vmem:[%s6338 + $0x30] sm:$0xf]
        %v8375 = vld [vmem:[%s6338 + $0x34] sm:$0xf]
        %v8376 = vld [vmem:[%s6338 + $0x38] sm:$0x1]
        %v8377 = vld [vmem:[%s6338 + $0x3c] sm:$0xf]
        %v8378 = vld [vmem:[%s6338 + $0x40] sm:$0xf]
        %v8379 = vld [vmem:[%s6338 + $0x44] sm:$0x1]
        %v8380 = vld [vmem:[%s6338 + $0x48] sm:$0xf]
        %v8381 = vld [vmem:[%s6338 + $0x4c] sm:$0xf]
        %v8382 = vld [vmem:[%s6338 + $0x50] sm:$0x1]
        %v8383 = vld [vmem:[%s6338 + $0x54] sm:$0xf]
        %v8384 = vld [vmem:[%s6338 + $0x58] sm:$0xf]
        %v8385 = vld [vmem:[%s6338 + $0x5c] sm:$0x1]
        %v8386 = vld [vmem:[%s6338 + $0x60] sm:$0xf]
        %v8387 = vld [vmem:[%s6338 + $0x64] sm:$0xf]
        %v8388 = vld [vmem:[%s6338 + $0x68] sm:$0x1]
        %v8389 = vld [vmem:[%s6338 + $0x6c] sm:$0xf]
        %v8390 = vld [vmem:[%s6338 + $0x70] sm:$0xf]
        %v8391 = vld [vmem:[%s6338 + $0x74] sm:$0x1]
        %v8392 = vld [vmem:[%s6338 + $0x78] sm:$0xf]
        %v8393 = vld [vmem:[%s6338 + $0x7c] sm:$0xf]
        %v8394 = vld [vmem:[%s6338 + $0x80] sm:$0x1]
        %v8395 = vld [vmem:[%s6338 + $0x84] sm:$0xf]
        %v8396 = vld [vmem:[%s6338 + $0x88] sm:$0xf]
        %v8397 = vld [vmem:[%s6338 + $0x8c] sm:$0x1]
        %v8398 = vld [vmem:[%s6338 + $0x90] sm:$0xf]
        %v8399 = vld [vmem:[%s6338 + $0x94] sm:$0xf]
        %v8400 = vld [vmem:[%s6338 + $0x98] sm:$0x1]
        %v8401 = vld [vmem:[%s6338 + $0x9c] sm:$0xf]
        %v8402 = vld [vmem:[%s6338 + $0xa0] sm:$0xf]
        %v8403 = vld [vmem:[%s6338 + $0xa4] sm:$0x1]
        %v8404 = vld [vmem:[%s6338 + $0xa8] sm:$0xf]
        %v8405 = vld [vmem:[%s6338 + $0xac] sm:$0xf]
        %v8406 = vld [vmem:[%s6338 + $0xb0] sm:$0x1]
        %v8407 = vld [vmem:[%s6338 + $0xb4] sm:$0xf]
        %v8408 = vld [vmem:[%s6338 + $0xb8] sm:$0xf]
        %v8409 = vld [vmem:[%s6338 + $0xbc] sm:$0x1]
        %v8411 = vshrl.u32 %v8362, 16
        %v8413 = vrot.slane %v8411, 4
        %v8414 = vshll.u32 %v8362, 16
        %v8416 = vrot.slane %v8414, 5
        %v8417 = vor.u32 %v8413, %v8416
        %v8418 = vrot.slane %v8417, 4
        %v8420 = vshll.u32 %v8363, 16
        %v8422 = vrot.slane %v8420, 5
        %v8423 = vsel %vm1016, %v8418, %v8422
        %v8424 = vshrl.u32 %v8363, 16
        %v8426 = vrot.slane %v8424, 4
        %v8427 = vor.u32 %v8426, %v8422
        %v8428 = vrot.slane %v8427, 4
        %v8430 = vshll.u32 %v8364, 16
        %v8432 = vrot.slane %v8430, 5
        %v8433 = vsel %vm1016, %v8428, %v8432
        %v8435 = vshrl.u32 %v8365, 16
        %v8437 = vrot.slane %v8435, 4
        %v8438 = vshll.u32 %v8365, 16
        %v8440 = vrot.slane %v8438, 5
        %v8441 = vor.u32 %v8437, %v8440
        %v8442 = vrot.slane %v8441, 4
        %v8444 = vshll.u32 %v8366, 16
        %v8446 = vrot.slane %v8444, 5
        %v8447 = vsel %vm1016, %v8442, %v8446
        %v8448 = vshrl.u32 %v8366, 16
        %v8450 = vrot.slane %v8448, 4
        %v8451 = vor.u32 %v8450, %v8446
        %v8452 = vrot.slane %v8451, 4
        %v8454 = vshll.u32 %v8367, 16
        %v8456 = vrot.slane %v8454, 5
        %v8457 = vsel %vm1016, %v8452, %v8456
        %v8459 = vshrl.u32 %v8368, 16
        %v8461 = vrot.slane %v8459, 4
        %v8462 = vshll.u32 %v8368, 16
        %v8464 = vrot.slane %v8462, 5
        %v8465 = vor.u32 %v8461, %v8464
        %v8466 = vrot.slane %v8465, 4
        %v8468 = vshll.u32 %v8369, 16
        %v8470 = vrot.slane %v8468, 5
        %v8471 = vsel %vm1016, %v8466, %v8470
        %v8472 = vshrl.u32 %v8369, 16
        %v8474 = vrot.slane %v8472, 4
        %v8475 = vor.u32 %v8474, %v8470
        %v8476 = vrot.slane %v8475, 4
        %v8478 = vshll.u32 %v8370, 16
        %v8480 = vrot.slane %v8478, 5
        %v8481 = vsel %vm1016, %v8476, %v8480
        %v8483 = vshrl.u32 %v8371, 16
        %v8485 = vrot.slane %v8483, 4
        %v8486 = vshll.u32 %v8371, 16
        %v8488 = vrot.slane %v8486, 5
        %v8489 = vor.u32 %v8485, %v8488
        %v8490 = vrot.slane %v8489, 4
        %v8492 = vshll.u32 %v8372, 16
        %v8494 = vrot.slane %v8492, 5
        %v8495 = vsel %vm1016, %v8490, %v8494
        %v8496 = vshrl.u32 %v8372, 16
        %v8498 = vrot.slane %v8496, 4
        %v8499 = vor.u32 %v8498, %v8494
        %v8500 = vrot.slane %v8499, 4
        %v8502 = vshll.u32 %v8373, 16
        %v8504 = vrot.slane %v8502, 5
        %v8505 = vsel %vm1016, %v8500, %v8504
        %v8507 = vshrl.u32 %v8374, 16
        %v8509 = vrot.slane %v8507, 4
        %v8510 = vshll.u32 %v8374, 16
        %v8512 = vrot.slane %v8510, 5
        %v8513 = vor.u32 %v8509, %v8512
        %v8514 = vrot.slane %v8513, 4
        %v8516 = vshll.u32 %v8375, 16
        %v8518 = vrot.slane %v8516, 5
        %v8519 = vsel %vm1016, %v8514, %v8518
        %v8520 = vshrl.u32 %v8375, 16
        %v8522 = vrot.slane %v8520, 4
        %v8523 = vor.u32 %v8522, %v8518
        %v8524 = vrot.slane %v8523, 4
        %v8526 = vshll.u32 %v8376, 16
        %v8528 = vrot.slane %v8526, 5
        %v8529 = vsel %vm1016, %v8524, %v8528
        %v8531 = vshrl.u32 %v8377, 16
        %v8533 = vrot.slane %v8531, 4
        %v8534 = vshll.u32 %v8377, 16
        %v8536 = vrot.slane %v8534, 5
        %v8537 = vor.u32 %v8533, %v8536
        %v8538 = vrot.slane %v8537, 4
        %v8540 = vshll.u32 %v8378, 16
        %v8542 = vrot.slane %v8540, 5
        %v8543 = vsel %vm1016, %v8538, %v8542
        %v8544 = vshrl.u32 %v8378, 16
        %v8546 = vrot.slane %v8544, 4
        %v8547 = vor.u32 %v8546, %v8542
        %v8548 = vrot.slane %v8547, 4
        %v8550 = vshll.u32 %v8379, 16
        %v8552 = vrot.slane %v8550, 5
        %v8553 = vsel %vm1016, %v8548, %v8552
        %v8555 = vshrl.u32 %v8380, 16
        %v8557 = vrot.slane %v8555, 4
        %v8558 = vshll.u32 %v8380, 16
        %v8560 = vrot.slane %v8558, 5
        %v8561 = vor.u32 %v8557, %v8560
        %v8562 = vrot.slane %v8561, 4
        %v8564 = vshll.u32 %v8381, 16
        %v8566 = vrot.slane %v8564, 5
        %v8567 = vsel %vm1016, %v8562, %v8566
        %v8568 = vshrl.u32 %v8381, 16
        %v8570 = vrot.slane %v8568, 4
        %v8571 = vor.u32 %v8570, %v8566
        %v8572 = vrot.slane %v8571, 4
        %v8574 = vshll.u32 %v8382, 16
        %v8576 = vrot.slane %v8574, 5
        %v8577 = vsel %vm1016, %v8572, %v8576
        %v8579 = vshrl.u32 %v8383, 16
        %v8581 = vrot.slane %v8579, 4
        %v8582 = vshll.u32 %v8383, 16
        %v8584 = vrot.slane %v8582, 5
        %v8585 = vor.u32 %v8581, %v8584
        %v8586 = vrot.slane %v8585, 4
        %v8588 = vshll.u32 %v8384, 16
        %v8590 = vrot.slane %v8588, 5
        %v8591 = vsel %vm1016, %v8586, %v8590
        %v8592 = vshrl.u32 %v8384, 16
        %v8594 = vrot.slane %v8592, 4
        %v8595 = vor.u32 %v8594, %v8590
        %v8596 = vrot.slane %v8595, 4
        %v8598 = vshll.u32 %v8385, 16
        %v8600 = vrot.slane %v8598, 5
        %v8601 = vsel %vm1016, %v8596, %v8600
        %v8603 = vshrl.u32 %v8386, 16
        %v8605 = vrot.slane %v8603, 4
        %v8606 = vshll.u32 %v8386, 16
        %v8608 = vrot.slane %v8606, 5
        %v8609 = vor.u32 %v8605, %v8608
        %v8610 = vrot.slane %v8609, 4
        %v8612 = vshll.u32 %v8387, 16
        %v8614 = vrot.slane %v8612, 5
        %v8615 = vsel %vm1016, %v8610, %v8614
        %v8616 = vshrl.u32 %v8387, 16
        %v8618 = vrot.slane %v8616, 4
        %v8619 = vor.u32 %v8618, %v8614
        %v8620 = vrot.slane %v8619, 4
        %v8622 = vshll.u32 %v8388, 16
        %v8624 = vrot.slane %v8622, 5
        %v8625 = vsel %vm1016, %v8620, %v8624
        %v8627 = vshrl.u32 %v8389, 16
        %v8629 = vrot.slane %v8627, 4
        %v8630 = vshll.u32 %v8389, 16
        %v8632 = vrot.slane %v8630, 5
        %v8633 = vor.u32 %v8629, %v8632
        %v8634 = vrot.slane %v8633, 4
        %v8636 = vshll.u32 %v8390, 16
        %v8638 = vrot.slane %v8636, 5
        %v8639 = vsel %vm1016, %v8634, %v8638
        %v8640 = vshrl.u32 %v8390, 16
        %v8642 = vrot.slane %v8640, 4
        %v8643 = vor.u32 %v8642, %v8638
        %v8644 = vrot.slane %v8643, 4
        %v8646 = vshll.u32 %v8391, 16
        %v8648 = vrot.slane %v8646, 5
        %v8649 = vsel %vm1016, %v8644, %v8648
        %v8651 = vshrl.u32 %v8392, 16
        %v8653 = vrot.slane %v8651, 4
        %v8654 = vshll.u32 %v8392, 16
        %v8656 = vrot.slane %v8654, 5
        %v8657 = vor.u32 %v8653, %v8656
        %v8658 = vrot.slane %v8657, 4
        %v8660 = vshll.u32 %v8393, 16
        %v8662 = vrot.slane %v8660, 5
        %v8663 = vsel %vm1016, %v8658, %v8662
        %v8664 = vshrl.u32 %v8393, 16
        %v8666 = vrot.slane %v8664, 4
        %v8667 = vor.u32 %v8666, %v8662
        %v8668 = vrot.slane %v8667, 4
        %v8670 = vshll.u32 %v8394, 16
        %v8672 = vrot.slane %v8670, 5
        %v8673 = vsel %vm1016, %v8668, %v8672
        %v8675 = vshrl.u32 %v8395, 16
        %v8677 = vrot.slane %v8675, 4
        %v8678 = vshll.u32 %v8395, 16
        %v8680 = vrot.slane %v8678, 5
        %v8681 = vor.u32 %v8677, %v8680
        %v8682 = vrot.slane %v8681, 4
        %v8684 = vshll.u32 %v8396, 16
        %v8686 = vrot.slane %v8684, 5
        %v8687 = vsel %vm1016, %v8682, %v8686
        %v8688 = vshrl.u32 %v8396, 16
        %v8690 = vrot.slane %v8688, 4
        %v8691 = vor.u32 %v8690, %v8686
        %v8692 = vrot.slane %v8691, 4
        %v8694 = vshll.u32 %v8397, 16
        %v8696 = vrot.slane %v8694, 5
        %v8697 = vsel %vm1016, %v8692, %v8696
        %v8699 = vshrl.u32 %v8398, 16
        %v8701 = vrot.slane %v8699, 4
        %v8702 = vshll.u32 %v8398, 16
        %v8704 = vrot.slane %v8702, 5
        %v8705 = vor.u32 %v8701, %v8704
        %v8706 = vrot.slane %v8705, 4
        %v8708 = vshll.u32 %v8399, 16
        %v8710 = vrot.slane %v8708, 5
        %v8711 = vsel %vm1016, %v8706, %v8710
        %v8712 = vshrl.u32 %v8399, 16
        %v8714 = vrot.slane %v8712, 4
        %v8715 = vor.u32 %v8714, %v8710
        %v8716 = vrot.slane %v8715, 4
        %v8718 = vshll.u32 %v8400, 16
        %v8720 = vrot.slane %v8718, 5
        %v8721 = vsel %vm1016, %v8716, %v8720
        %v8723 = vshrl.u32 %v8401, 16
        %v8725 = vrot.slane %v8723, 4
        %v8726 = vshll.u32 %v8401, 16
        %v8728 = vrot.slane %v8726, 5
        %v8729 = vor.u32 %v8725, %v8728
        %v8730 = vrot.slane %v8729, 4
        %v8732 = vshll.u32 %v8402, 16
        %v8734 = vrot.slane %v8732, 5
        %v8735 = vsel %vm1016, %v8730, %v8734
        %v8736 = vshrl.u32 %v8402, 16
        %v8738 = vrot.slane %v8736, 4
        %v8739 = vor.u32 %v8738, %v8734
        %v8740 = vrot.slane %v8739, 4
        %v8742 = vshll.u32 %v8403, 16
        %v8744 = vrot.slane %v8742, 5
        %v8745 = vsel %vm1016, %v8740, %v8744
        %v8747 = vshrl.u32 %v8404, 16
        %v8749 = vrot.slane %v8747, 4
        %v8750 = vshll.u32 %v8404, 16
        %v8752 = vrot.slane %v8750, 5
        %v8753 = vor.u32 %v8749, %v8752
        %v8754 = vrot.slane %v8753, 4
        %v8756 = vshll.u32 %v8405, 16
        %v8758 = vrot.slane %v8756, 5
        %v8759 = vsel %vm1016, %v8754, %v8758
        %v8760 = vshrl.u32 %v8405, 16
        %v8762 = vrot.slane %v8760, 4
        %v8763 = vor.u32 %v8762, %v8758
        %v8764 = vrot.slane %v8763, 4
        %v8766 = vshll.u32 %v8406, 16
        %v8768 = vrot.slane %v8766, 5
        %v8769 = vsel %vm1016, %v8764, %v8768
        %v8771 = vshrl.u32 %v8407, 16
        %v8773 = vrot.slane %v8771, 4
        %v8774 = vshll.u32 %v8407, 16
        %v8776 = vrot.slane %v8774, 5
        %v8777 = vor.u32 %v8773, %v8776
        %v8778 = vrot.slane %v8777, 4
        %v8780 = vshll.u32 %v8408, 16
        %v8782 = vrot.slane %v8780, 5
        %v8783 = vsel %vm1016, %v8778, %v8782
        %v8784 = vshrl.u32 %v8408, 16
        %v8786 = vrot.slane %v8784, 4
        %v8787 = vor.u32 %v8786, %v8782
        %v8788 = vrot.slane %v8787, 4
        %v8790 = vshll.u32 %v8409, 16
        %v8792 = vrot.slane %v8790, 5
        %v8793 = vsel %vm1016, %v8788, %v8792
        %s8794 = scalar_lea.vmem [#allocation9], 256
        %v8795 = vld [vmem:[%s8794] sm:$0xf]
        %v8796 = vld [vmem:[%s8794 + $0x4] sm:$0xf]
        %v8797 = vld [vmem:[%s8794 + $0x8] sm:$0xf]
        %v8798 = vld [vmem:[%s8794 + $0xc] sm:$0xf]
        %v8799 = vld [vmem:[%s8794 + $0x10] sm:$0xf]
        %v8800 = vld [vmem:[%s8794 + $0x14] sm:$0xf]
        %v8801 = vld [vmem:[%s8794 + $0x18] sm:$0xf]
        %v8802 = vld [vmem:[%s8794 + $0x1c] sm:$0xf]
        %v8803 = vld [vmem:[%s8794 + $0x20] sm:$0xf]
        %v8804 = vld [vmem:[%s8794 + $0x24] sm:$0xf]
        %v8805 = vld [vmem:[%s8794 + $0x28] sm:$0xf]
        %v8806 = vld [vmem:[%s8794 + $0x2c] sm:$0xf]
        %v8807 = vld [vmem:[%s8794 + $0x30] sm:$0xf]
        %v8808 = vld [vmem:[%s8794 + $0x34] sm:$0xf]
        %v8809 = vld [vmem:[%s8794 + $0x38] sm:$0xf]
        %v8810 = vld [vmem:[%s8794 + $0x3c] sm:$0xf]
        %v8811 = vunpack.c.l.b16 %v8423
        %v8812 = vunpack.c.l.b16 %v8433
        %v8813 = vunpack.c.l.b16 %v8447
        %v8814 = vunpack.c.l.b16 %v8457
        %v8815 = vunpack.c.l.b16 %v8471
        %v8816 = vunpack.c.l.b16 %v8481
        %v8817 = vunpack.c.l.b16 %v8495
        %v8818 = vunpack.c.l.b16 %v8505
        %v8819 = vunpack.c.l.b16 %v8519
        %v8820 = vunpack.c.l.b16 %v8529
        %v8821 = vunpack.c.l.b16 %v8543
        %v8822 = vunpack.c.l.b16 %v8553
        %v8823 = vunpack.c.l.b16 %v8567
        %v8824 = vunpack.c.l.b16 %v8577
        %v8825 = vunpack.c.l.b16 %v8591
        %v8826 = vunpack.c.l.b16 %v8601
        %v8827 = vunpack.c.l.b16 %v8615
        %v8828 = vunpack.c.l.b16 %v8625
        %v8829 = vunpack.c.l.b16 %v8639
        %v8830 = vunpack.c.l.b16 %v8649
        %v8831 = vunpack.c.l.b16 %v8663
        %v8832 = vunpack.c.l.b16 %v8673
        %v8833 = vunpack.c.l.b16 %v8687
        %v8834 = vunpack.c.l.b16 %v8697
        %v8835 = vunpack.c.l.b16 %v8711
        %v8836 = vunpack.c.l.b16 %v8721
        %v8837 = vunpack.c.l.b16 %v8735
        %v8838 = vunpack.c.l.b16 %v8745
        %v8839 = vunpack.c.l.b16 %v8759
        %v8840 = vunpack.c.l.b16 %v8769
        %v8841 = vunpack.c.l.b16 %v8783
        %v8842 = vunpack.c.l.b16 %v8793
        %v8843 = vpack.c.b16 %v8812, %v8811
        %v8844 = vpack.c.b16 %v8814, %v8813
        %v8845 = vpack.c.b16 %v8816, %v8815
        %v8846 = vpack.c.b16 %v8818, %v8817
        %v8847 = vpack.c.b16 %v8820, %v8819
        %v8848 = vpack.c.b16 %v8822, %v8821
        %v8849 = vpack.c.b16 %v8824, %v8823
        %v8850 = vpack.c.b16 %v8826, %v8825
        %v8851 = vpack.c.b16 %v8828, %v8827
        %v8852 = vpack.c.b16 %v8830, %v8829
        %v8853 = vpack.c.b16 %v8832, %v8831
        %v8854 = vpack.c.b16 %v8834, %v8833
        %v8855 = vpack.c.b16 %v8836, %v8835
        %v8856 = vpack.c.b16 %v8838, %v8837
        %v8857 = vpack.c.b16 %v8840, %v8839
        %v8858 = vpack.c.b16 %v8842, %v8841
        %v8891 = vunpack.c.l.b16 %v8795
        %v8892 = vunpack.c.l.b16 %v8796
        %v8893 = vunpack.c.l.b16 %v8797
        %v8894 = vunpack.c.l.b16 %v8798
        %v8895 = vunpack.c.l.b16 %v8799
        %v8896 = vunpack.c.l.b16 %v8800
        %v8897 = vunpack.c.l.b16 %v8801
        %v8898 = vunpack.c.l.b16 %v8802
        %v8899 = vunpack.c.l.b16 %v8803
        %v8900 = vunpack.c.l.b16 %v8804
        %v8901 = vunpack.c.l.b16 %v8805
        %v8902 = vunpack.c.l.b16 %v8806
        %v8903 = vunpack.c.l.b16 %v8807
        %v8904 = vunpack.c.l.b16 %v8808
        %v8905 = vunpack.c.l.b16 %v8809
        %v8906 = vunpack.c.l.b16 %v8810
        %v8907 = vpack.c.b16 %v8892, %v8891
        %v8908 = vpack.c.b16 %v8894, %v8893
        %v8909 = vpack.c.b16 %v8896, %v8895
        %v8910 = vpack.c.b16 %v8898, %v8897
        %v8911 = vpack.c.b16 %v8900, %v8899
        %v8912 = vpack.c.b16 %v8902, %v8901
        %v8913 = vpack.c.b16 %v8904, %v8903
        %v8914 = vpack.c.b16 %v8906, %v8905
        %8923 = vmatprep.subr.bf16.mxu0 0
        %8924 = vmatpush1.bf16.msra.mxu0 %v8914
        %8925 = vmatprep.subr.bf16.mxu0 0
        %8926 = vmatpush1.bf16.msra.mxu0 %v8913
        %8927 = vmatprep.subr.bf16.mxu0 0
        %8928 = vmatpush1.bf16.msra.mxu0 %v8912
        %8929 = vmatprep.subr.bf16.mxu0 0
        %8930 = vmatpush1.bf16.msra.mxu0 %v8911
        %8931 = vmatprep.subr.bf16.mxu0 0
        %8932 = vmatpush1.bf16.msra.mxu0 %v8910
        %8933 = vmatprep.subr.bf16.mxu0 0
        %8934 = vmatpush1.bf16.msra.mxu0 %v8909
        %8935 = vmatprep.subr.bf16.mxu0 0
        %8936 = vmatpush1.bf16.msra.mxu0 %v8908
        %8937 = vmatprep.subr.bf16.mxu0 0
        %8938 = vmatpush1.bf16.msra.mxu0 %v8907
        %8939 = vmatprep.subr.bf16.mxu0 0
        %8940 = vmatpush2.bf16.msra.mxu0 0
        %8941 = vmatprep.subr.bf16.mxu0 0
        %8942 = vmatpush2.bf16.msra.mxu0 0
        %8943 = vmatprep.subr.bf16.mxu0 0
        %8944 = vmatpush2.bf16.msra.mxu0 0
        %8945 = vmatprep.subr.bf16.mxu0 0
        %8946 = vmatpush2.bf16.msra.mxu0 0
        %8947 = vmatprep.subr.bf16.mxu0 0
        %8948 = vmatpush2.bf16.msra.mxu0 0
        %8949 = vmatprep.subr.bf16.mxu0 0
        %8950 = vmatpush2.bf16.msra.mxu0 0
        %8951 = vmatprep.subr.bf16.mxu0 0
        %8952 = vmatpush2.bf16.msra.mxu0 0
        %8953 = vmatprep.subr.bf16.mxu0 0
        %8954 = vmatpush2.bf16.msra.mxu0 0
        %8955 = vmatprep.mubr.bf16.mxu0 0
        %8956 = vmatmul.mubr.bf16.gmra.mxu0 %v8843
        %v8957 = vpop.f32.mrf.mxu0
        %v8958 = vadd.f32 0.0, %v8957
        %v8959 = vpop.f32.mrf.mxu0
        %v8960 = vpop.f32.mrf.mxu0
        %v8961 = vadd.f32 0.0, %v8960
        %v8962 = vpop.f32.mrf.mxu0
        %8963 = vmatprep.mubr.bf16.mxu0 0
        %8964 = vmatmul.mubr.bf16.gmra.mxu0 %v8844
        %v8965 = vpop.f32.mrf.mxu0
        %v8966 = vadd.f32 0.0, %v8965
        %v8967 = vpop.f32.mrf.mxu0
        %v8968 = vpop.f32.mrf.mxu0
        %v8969 = vadd.f32 0.0, %v8968
        %v8970 = vpop.f32.mrf.mxu0
        %8971 = vmatprep.mubr.bf16.mxu0 0
        %8972 = vmatmul.mubr.bf16.gmra.mxu0 %v8845
        %v8973 = vpop.f32.mrf.mxu0
        %v8974 = vadd.f32 0.0, %v8973
        %v8975 = vpop.f32.mrf.mxu0
        %v8976 = vpop.f32.mrf.mxu0
        %v8977 = vadd.f32 0.0, %v8976
        %v8978 = vpop.f32.mrf.mxu0
        %8979 = vmatprep.mubr.bf16.mxu0 0
        %8980 = vmatmul.mubr.bf16.gmra.mxu0 %v8846
        %v8981 = vpop.f32.mrf.mxu0
        %v8982 = vadd.f32 0.0, %v8981
        %v8983 = vpop.f32.mrf.mxu0
        %v8984 = vpop.f32.mrf.mxu0
        %v8985 = vadd.f32 0.0, %v8984
        %v8986 = vpop.f32.mrf.mxu0
        %8987 = vmatprep.mubr.bf16.mxu0 0
        %8988 = vmatmul.mubr.bf16.gmra.mxu0 %v8847
        %v8989 = vpop.f32.mrf.mxu0
        %v8990 = vadd.f32 0.0, %v8989
        %v8991 = vpop.f32.mrf.mxu0
        %v8992 = vpop.f32.mrf.mxu0
        %v8993 = vadd.f32 0.0, %v8992
        %v8994 = vpop.f32.mrf.mxu0
        %8995 = vmatprep.mubr.bf16.mxu0 0
        %8996 = vmatmul.mubr.bf16.gmra.mxu0 %v8848
        %v8997 = vpop.f32.mrf.mxu0
        %v8998 = vadd.f32 0.0, %v8997
        %v8999 = vpop.f32.mrf.mxu0
        %v9000 = vpop.f32.mrf.mxu0
        %v9001 = vadd.f32 0.0, %v9000
        %v9002 = vpop.f32.mrf.mxu0
        %9003 = vmatprep.mubr.bf16.mxu0 0
        %9004 = vmatmul.mubr.bf16.gmra.mxu0 %v8849
        %v9005 = vpop.f32.mrf.mxu0
        %v9006 = vadd.f32 0.0, %v9005
        %v9007 = vpop.f32.mrf.mxu0
        %v9008 = vpop.f32.mrf.mxu0
        %v9009 = vadd.f32 0.0, %v9008
        %v9010 = vpop.f32.mrf.mxu0
        %9011 = vmatprep.mubr.bf16.mxu0 0
        %9012 = vmatmul.mubr.bf16.gmra.mxu0 %v8850
        %v9013 = vpop.f32.mrf.mxu0
        %v9014 = vadd.f32 0.0, %v9013
        %v9015 = vpop.f32.mrf.mxu0
        %v9016 = vpop.f32.mrf.mxu0
        %v9017 = vadd.f32 0.0, %v9016
        %v9018 = vpop.f32.mrf.mxu0
        %9019 = vmatprep.mubr.bf16.mxu0 0
        %9020 = vmatmul.mubr.bf16.gmra.mxu0 %v8851
        %v9021 = vpop.f32.mrf.mxu0
        %v9022 = vadd.f32 0.0, %v9021
        %v9023 = vpop.f32.mrf.mxu0
        %v9024 = vpop.f32.mrf.mxu0
        %v9025 = vadd.f32 0.0, %v9024
        %v9026 = vpop.f32.mrf.mxu0
        %9027 = vmatprep.mubr.bf16.mxu0 0
        %9028 = vmatmul.mubr.bf16.gmra.mxu0 %v8852
        %v9029 = vpop.f32.mrf.mxu0
        %v9030 = vadd.f32 0.0, %v9029
        %v9031 = vpop.f32.mrf.mxu0
        %v9032 = vpop.f32.mrf.mxu0
        %v9033 = vadd.f32 0.0, %v9032
        %v9034 = vpop.f32.mrf.mxu0
        %9035 = vmatprep.mubr.bf16.mxu0 0
        %9036 = vmatmul.mubr.bf16.gmra.mxu0 %v8853
        %v9037 = vpop.f32.mrf.mxu0
        %v9038 = vadd.f32 0.0, %v9037
        %v9039 = vpop.f32.mrf.mxu0
        %v9040 = vpop.f32.mrf.mxu0
        %v9041 = vadd.f32 0.0, %v9040
        %v9042 = vpop.f32.mrf.mxu0
        %9043 = vmatprep.mubr.bf16.mxu0 0
        %9044 = vmatmul.mubr.bf16.gmra.mxu0 %v8854
        %v9045 = vpop.f32.mrf.mxu0
        %v9046 = vadd.f32 0.0, %v9045
        %v9047 = vpop.f32.mrf.mxu0
        %v9048 = vpop.f32.mrf.mxu0
        %v9049 = vadd.f32 0.0, %v9048
        %v9050 = vpop.f32.mrf.mxu0
        %9051 = vmatprep.mubr.bf16.mxu0 0
        %9052 = vmatmul.mubr.bf16.gmra.mxu0 %v8855
        %v9053 = vpop.f32.mrf.mxu0
        %v9054 = vadd.f32 0.0, %v9053
        %v9055 = vpop.f32.mrf.mxu0
        %v9056 = vpop.f32.mrf.mxu0
        %v9057 = vadd.f32 0.0, %v9056
        %v9058 = vpop.f32.mrf.mxu0
        %9059 = vmatprep.mubr.bf16.mxu0 0
        %9060 = vmatmul.mubr.bf16.gmra.mxu0 %v8856
        %v9061 = vpop.f32.mrf.mxu0
        %v9062 = vadd.f32 0.0, %v9061
        %v9063 = vpop.f32.mrf.mxu0
        %v9064 = vpop.f32.mrf.mxu0
        %v9065 = vadd.f32 0.0, %v9064
        %v9066 = vpop.f32.mrf.mxu0
        %9067 = vmatprep.mubr.bf16.mxu0 0
        %9068 = vmatmul.mubr.bf16.gmra.mxu0 %v8857
        %v9069 = vpop.f32.mrf.mxu0
        %v9070 = vadd.f32 0.0, %v9069
        %v9071 = vpop.f32.mrf.mxu0
        %v9072 = vpop.f32.mrf.mxu0
        %v9073 = vadd.f32 0.0, %v9072
        %v9074 = vpop.f32.mrf.mxu0
        %9075 = vmatprep.mubr.bf16.mxu0 0
        %9076 = vmatmul.mubr.bf16.gmra.mxu0 %v8858
        %v9077 = vpop.f32.mrf.mxu0
        %v9078 = vadd.f32 0.0, %v9077
        %v9079 = vpop.f32.mrf.mxu0
        %v9080 = vpop.f32.mrf.mxu0
        %v9081 = vadd.f32 0.0, %v9080
        %v9082 = vpop.f32.mrf.mxu0
        %9083 = vdwg.mxu0
        %v9084 = vadd.f32 %v8330, %v8958
        %v9085 = vadd.f32 %v8331, %v8961
        %v9086 = vadd.f32 %v8332, %v8966
        %v9087 = vadd.f32 %v8333, %v8969
        %v9088 = vadd.f32 %v8334, %v8974
        %v9089 = vadd.f32 %v8335, %v8977
        %v9090 = vadd.f32 %v8336, %v8982
        %v9091 = vadd.f32 %v8337, %v8985
        %v9092 = vadd.f32 %v8338, %v8990
        %v9093 = vadd.f32 %v8339, %v8993
        %v9094 = vadd.f32 %v8340, %v8998
        %v9095 = vadd.f32 %v8341, %v9001
        %v9096 = vadd.f32 %v8342, %v9006
        %v9097 = vadd.f32 %v8343, %v9009
        %v9098 = vadd.f32 %v8344, %v9014
        %v9099 = vadd.f32 %v8345, %v9017
        %v9100 = vadd.f32 %v8346, %v9022
        %v9101 = vadd.f32 %v8347, %v9025
        %v9102 = vadd.f32 %v8348, %v9030
        %v9103 = vadd.f32 %v8349, %v9033
        %v9104 = vadd.f32 %v8350, %v9038
        %v9105 = vadd.f32 %v8351, %v9041
        %v9106 = vadd.f32 %v8352, %v9046
        %v9107 = vadd.f32 %v8353, %v9049
        %v9108 = vadd.f32 %v8354, %v9054
        %v9109 = vadd.f32 %v8355, %v9057
        %v9110 = vadd.f32 %v8356, %v9062
        %v9111 = vadd.f32 %v8357, %v9065
        %v9112 = vadd.f32 %v8358, %v9070
        %v9113 = vadd.f32 %v8359, %v9073
        %v9114 = vadd.f32 %v8360, %v9078
        %v9115 = vadd.f32 %v8361, %v9081
        %v9116 = vld [vmem:[%s6338] sm:$0xe]
        %v9117 = vld [vmem:[%s6338 + $0xc] sm:$0xe]
        %v9118 = vld [vmem:[%s6338 + $0x18] sm:$0xe]
        %v9119 = vld [vmem:[%s6338 + $0x24] sm:$0xe]
        %v9120 = vld [vmem:[%s6338 + $0x30] sm:$0xe]
        %v9121 = vld [vmem:[%s6338 + $0x3c] sm:$0xe]
        %v9122 = vld [vmem:[%s6338 + $0x48] sm:$0xe]
        %v9123 = vld [vmem:[%s6338 + $0x54] sm:$0xe]
        %v9124 = vld [vmem:[%s6338 + $0x60] sm:$0xe]
        %v9125 = vld [vmem:[%s6338 + $0x6c] sm:$0xe]
        %v9126 = vld [vmem:[%s6338 + $0x78] sm:$0xe]
        %v9127 = vld [vmem:[%s6338 + $0x84] sm:$0xe]
        %v9128 = vld [vmem:[%s6338 + $0x90] sm:$0xe]
        %v9129 = vld [vmem:[%s6338 + $0x9c] sm:$0xe]
        %v9130 = vld [vmem:[%s6338 + $0xa8] sm:$0xe]
        %v9131 = vld [vmem:[%s6338 + $0xb4] sm:$0xe]
        %v9180 = vrot.slane %v9116, 5
        %v9181 = vrot.slane %v9180, 4
        %v9182 = vrot.slane %v8363, 5
        %v9183 = vsel %vm2046, %v9181, %v9182
        %v9184 = vrot.slane %v9182, 4
        %v9185 = vrot.slane %v8364, 5
        %v9186 = vsel %vm2046, %v9184, %v9185
        %v9187 = vrot.slane %v9117, 5
        %v9188 = vrot.slane %v9187, 4
        %v9189 = vrot.slane %v8366, 5
        %v9190 = vsel %vm2046, %v9188, %v9189
        %v9191 = vrot.slane %v9189, 4
        %v9192 = vrot.slane %v8367, 5
        %v9193 = vsel %vm2046, %v9191, %v9192
        %v9194 = vrot.slane %v9118, 5
        %v9195 = vrot.slane %v9194, 4
        %v9196 = vrot.slane %v8369, 5
        %v9197 = vsel %vm2046, %v9195, %v9196
        %v9198 = vrot.slane %v9196, 4
        %v9199 = vrot.slane %v8370, 5
        %v9200 = vsel %vm2046, %v9198, %v9199
        %v9201 = vrot.slane %v9119, 5
        %v9202 = vrot.slane %v9201, 4
        %v9203 = vrot.slane %v8372, 5
        %v9204 = vsel %vm2046, %v9202, %v9203
        %v9205 = vrot.slane %v9203, 4
        %v9206 = vrot.slane %v8373, 5
        %v9207 = vsel %vm2046, %v9205, %v9206
        %v9208 = vrot.slane %v9120, 5
        %v9209 = vrot.slane %v9208, 4
        %v9210 = vrot.slane %v8375, 5
        %v9211 = vsel %vm2046, %v9209, %v9210
        %v9212 = vrot.slane %v9210, 4
        %v9213 = vrot.slane %v8376, 5
        %v9214 = vsel %vm2046, %v9212, %v9213
        %v9215 = vrot.slane %v9121, 5
        %v9216 = vrot.slane %v9215, 4
        %v9217 = vrot.slane %v8378, 5
        %v9218 = vsel %vm2046, %v9216, %v9217
        %v9219 = vrot.slane %v9217, 4
        %v9220 = vrot.slane %v8379, 5
        %v9221 = vsel %vm2046, %v9219, %v9220
        %v9222 = vrot.slane %v9122, 5
        %v9223 = vrot.slane %v9222, 4
        %v9224 = vrot.slane %v8381, 5
        %v9225 = vsel %vm2046, %v9223, %v9224
        %v9226 = vrot.slane %v9224, 4
        %v9227 = vrot.slane %v8382, 5
        %v9228 = vsel %vm2046, %v9226, %v9227
        %v9229 = vrot.slane %v9123, 5
        %v9230 = vrot.slane %v9229, 4
        %v9231 = vrot.slane %v8384, 5
        %v9232 = vsel %vm2046, %v9230, %v9231
        %v9233 = vrot.slane %v9231, 4
        %v9234 = vrot.slane %v8385, 5
        %v9235 = vsel %vm2046, %v9233, %v9234
        %v9236 = vrot.slane %v9124, 5
        %v9237 = vrot.slane %v9236, 4
        %v9238 = vrot.slane %v8387, 5
        %v9239 = vsel %vm2046, %v9237, %v9238
        %v9240 = vrot.slane %v9238, 4
        %v9241 = vrot.slane %v8388, 5
        %v9242 = vsel %vm2046, %v9240, %v9241
        %v9243 = vrot.slane %v9125, 5
        %v9244 = vrot.slane %v9243, 4
        %v9245 = vrot.slane %v8390, 5
        %v9246 = vsel %vm2046, %v9244, %v9245
        %v9247 = vrot.slane %v9245, 4
        %v9248 = vrot.slane %v8391, 5
        %v9249 = vsel %vm2046, %v9247, %v9248
        %v9250 = vrot.slane %v9126, 5
        %v9251 = vrot.slane %v9250, 4
        %v9252 = vrot.slane %v8393, 5
        %v9253 = vsel %vm2046, %v9251, %v9252
        %v9254 = vrot.slane %v9252, 4
        %v9255 = vrot.slane %v8394, 5
        %v9256 = vsel %vm2046, %v9254, %v9255
        %v9257 = vrot.slane %v9127, 5
        %v9258 = vrot.slane %v9257, 4
        %v9259 = vrot.slane %v8396, 5
        %v9260 = vsel %vm2046, %v9258, %v9259
        %v9261 = vrot.slane %v9259, 4
        %v9262 = vrot.slane %v8397, 5
        %v9263 = vsel %vm2046, %v9261, %v9262
        %v9264 = vrot.slane %v9128, 5
        %v9265 = vrot.slane %v9264, 4
        %v9266 = vrot.slane %v8399, 5
        %v9267 = vsel %vm2046, %v9265, %v9266
        %v9268 = vrot.slane %v9266, 4
        %v9269 = vrot.slane %v8400, 5
        %v9270 = vsel %vm2046, %v9268, %v9269
        %v9271 = vrot.slane %v9129, 5
        %v9272 = vrot.slane %v9271, 4
        %v9273 = vrot.slane %v8402, 5
        %v9274 = vsel %vm2046, %v9272, %v9273
        %v9275 = vrot.slane %v9273, 4
        %v9276 = vrot.slane %v8403, 5
        %v9277 = vsel %vm2046, %v9275, %v9276
        %v9278 = vrot.slane %v9130, 5
        %v9279 = vrot.slane %v9278, 4
        %v9280 = vrot.slane %v8405, 5
        %v9281 = vsel %vm2046, %v9279, %v9280
        %v9282 = vrot.slane %v9280, 4
        %v9283 = vrot.slane %v8406, 5
        %v9284 = vsel %vm2046, %v9282, %v9283
        %v9285 = vrot.slane %v9131, 5
        %v9286 = vrot.slane %v9285, 4
        %v9287 = vrot.slane %v8408, 5
        %v9288 = vsel %vm2046, %v9286, %v9287
        %v9289 = vrot.slane %v9287, 4
        %v9290 = vrot.slane %v8409, 5
        %v9291 = vsel %vm2046, %v9289, %v9290
        %s9292 = scalar_lea.vmem [#allocation9], 320
        %v9293 = vld [vmem:[%s9292] sm:$0xf]
        %v9294 = vld [vmem:[%s9292 + $0x4] sm:$0xf]
        %v9295 = vld [vmem:[%s9292 + $0x8] sm:$0xf]
        %v9296 = vld [vmem:[%s9292 + $0xc] sm:$0xf]
        %v9297 = vld [vmem:[%s9292 + $0x10] sm:$0xf]
        %v9298 = vld [vmem:[%s9292 + $0x14] sm:$0xf]
        %v9299 = vld [vmem:[%s9292 + $0x18] sm:$0xf]
        %v9300 = vld [vmem:[%s9292 + $0x1c] sm:$0xf]
        %v9301 = vld [vmem:[%s9292 + $0x20] sm:$0xf]
        %v9302 = vld [vmem:[%s9292 + $0x24] sm:$0xf]
        %v9303 = vld [vmem:[%s9292 + $0x28] sm:$0xf]
        %v9304 = vld [vmem:[%s9292 + $0x2c] sm:$0xf]
        %v9305 = vld [vmem:[%s9292 + $0x30] sm:$0xf]
        %v9306 = vld [vmem:[%s9292 + $0x34] sm:$0xf]
        %v9307 = vld [vmem:[%s9292 + $0x38] sm:$0xf]
        %v9308 = vld [vmem:[%s9292 + $0x3c] sm:$0xf]
        %v9309 = vunpack.c.l.b16 %v9183
        %v9310 = vunpack.c.l.b16 %v9186
        %v9311 = vunpack.c.l.b16 %v9190
        %v9312 = vunpack.c.l.b16 %v9193
        %v9313 = vunpack.c.l.b16 %v9197
        %v9314 = vunpack.c.l.b16 %v9200
        %v9315 = vunpack.c.l.b16 %v9204
        %v9316 = vunpack.c.l.b16 %v9207
        %v9317 = vunpack.c.l.b16 %v9211
        %v9318 = vunpack.c.l.b16 %v9214
        %v9319 = vunpack.c.l.b16 %v9218
        %v9320 = vunpack.c.l.b16 %v9221
        %v9321 = vunpack.c.l.b16 %v9225
        %v9322 = vunpack.c.l.b16 %v9228
        %v9323 = vunpack.c.l.b16 %v9232
        %v9324 = vunpack.c.l.b16 %v9235
        %v9325 = vunpack.c.l.b16 %v9239
        %v9326 = vunpack.c.l.b16 %v9242
        %v9327 = vunpack.c.l.b16 %v9246
        %v9328 = vunpack.c.l.b16 %v9249
        %v9329 = vunpack.c.l.b16 %v9253
        %v9330 = vunpack.c.l.b16 %v9256
        %v9331 = vunpack.c.l.b16 %v9260
        %v9332 = vunpack.c.l.b16 %v9263
        %v9333 = vunpack.c.l.b16 %v9267
        %v9334 = vunpack.c.l.b16 %v9270
        %v9335 = vunpack.c.l.b16 %v9274
        %v9336 = vunpack.c.l.b16 %v9277
        %v9337 = vunpack.c.l.b16 %v9281
        %v9338 = vunpack.c.l.b16 %v9284
        %v9339 = vunpack.c.l.b16 %v9288
        %v9340 = vunpack.c.l.b16 %v9291
        %v9341 = vpack.c.b16 %v9310, %v9309
        %v9342 = vpack.c.b16 %v9312, %v9311
        %v9343 = vpack.c.b16 %v9314, %v9313
        %v9344 = vpack.c.b16 %v9316, %v9315
        %v9345 = vpack.c.b16 %v9318, %v9317
        %v9346 = vpack.c.b16 %v9320, %v9319
        %v9347 = vpack.c.b16 %v9322, %v9321
        %v9348 = vpack.c.b16 %v9324, %v9323
        %v9349 = vpack.c.b16 %v9326, %v9325
        %v9350 = vpack.c.b16 %v9328, %v9327
        %v9351 = vpack.c.b16 %v9330, %v9329
        %v9352 = vpack.c.b16 %v9332, %v9331
        %v9353 = vpack.c.b16 %v9334, %v9333
        %v9354 = vpack.c.b16 %v9336, %v9335
        %v9355 = vpack.c.b16 %v9338, %v9337
        %v9356 = vpack.c.b16 %v9340, %v9339
        %v9389 = vunpack.c.l.b16 %v9293
        %v9390 = vunpack.c.l.b16 %v9294
        %v9391 = vunpack.c.l.b16 %v9295
        %v9392 = vunpack.c.l.b16 %v9296
        %v9393 = vunpack.c.l.b16 %v9297
        %v9394 = vunpack.c.l.b16 %v9298
        %v9395 = vunpack.c.l.b16 %v9299
        %v9396 = vunpack.c.l.b16 %v9300
        %v9397 = vunpack.c.l.b16 %v9301
        %v9398 = vunpack.c.l.b16 %v9302
        %v9399 = vunpack.c.l.b16 %v9303
        %v9400 = vunpack.c.l.b16 %v9304
        %v9401 = vunpack.c.l.b16 %v9305
        %v9402 = vunpack.c.l.b16 %v9306
        %v9403 = vunpack.c.l.b16 %v9307
        %v9404 = vunpack.c.l.b16 %v9308
        %v9405 = vpack.c.b16 %v9390, %v9389
        %v9406 = vpack.c.b16 %v9392, %v9391
        %v9407 = vpack.c.b16 %v9394, %v9393
        %v9408 = vpack.c.b16 %v9396, %v9395
        %v9409 = vpack.c.b16 %v9398, %v9397
        %v9410 = vpack.c.b16 %v9400, %v9399
        %v9411 = vpack.c.b16 %v9402, %v9401
        %v9412 = vpack.c.b16 %v9404, %v9403
        %9421 = vmatprep.subr.bf16.mxu0 0
        %9422 = vmatpush1.bf16.msra.mxu0 %v9412
        %9423 = vmatprep.subr.bf16.mxu0 0
        %9424 = vmatpush1.bf16.msra.mxu0 %v9411
        %9425 = vmatprep.subr.bf16.mxu0 0
        %9426 = vmatpush1.bf16.msra.mxu0 %v9410
        %9427 = vmatprep.subr.bf16.mxu0 0
        %9428 = vmatpush1.bf16.msra.mxu0 %v9409
        %9429 = vmatprep.subr.bf16.mxu0 0
        %9430 = vmatpush1.bf16.msra.mxu0 %v9408
        %9431 = vmatprep.subr.bf16.mxu0 0
        %9432 = vmatpush1.bf16.msra.mxu0 %v9407
        %9433 = vmatprep.subr.bf16.mxu0 0
        %9434 = vmatpush1.bf16.msra.mxu0 %v9406
        %9435 = vmatprep.subr.bf16.mxu0 0
        %9436 = vmatpush1.bf16.msra.mxu0 %v9405
        %9437 = vmatprep.subr.bf16.mxu0 0
        %9438 = vmatpush2.bf16.msra.mxu0 0
        %9439 = vmatprep.subr.bf16.mxu0 0
        %9440 = vmatpush2.bf16.msra.mxu0 0
        %9441 = vmatprep.subr.bf16.mxu0 0
        %9442 = vmatpush2.bf16.msra.mxu0 0
        %9443 = vmatprep.subr.bf16.mxu0 0
        %9444 = vmatpush2.bf16.msra.mxu0 0
        %9445 = vmatprep.subr.bf16.mxu0 0
        %9446 = vmatpush2.bf16.msra.mxu0 0
        %9447 = vmatprep.subr.bf16.mxu0 0
        %9448 = vmatpush2.bf16.msra.mxu0 0
        %9449 = vmatprep.subr.bf16.mxu0 0
        %9450 = vmatpush2.bf16.msra.mxu0 0
        %9451 = vmatprep.subr.bf16.mxu0 0
        %9452 = vmatpush2.bf16.msra.mxu0 0
        %9453 = vmatprep.mubr.bf16.mxu0 0
        %9454 = vmatmul.mubr.bf16.gmra.mxu0 %v9341
        %v9455 = vpop.f32.mrf.mxu0
        %v9456 = vadd.f32 0.0, %v9455
        %v9457 = vpop.f32.mrf.mxu0
        %v9458 = vpop.f32.mrf.mxu0
        %v9459 = vadd.f32 0.0, %v9458
        %v9460 = vpop.f32.mrf.mxu0
        %9461 = vmatprep.mubr.bf16.mxu0 0
        %9462 = vmatmul.mubr.bf16.gmra.mxu0 %v9342
        %v9463 = vpop.f32.mrf.mxu0
        %v9464 = vadd.f32 0.0, %v9463
        %v9465 = vpop.f32.mrf.mxu0
        %v9466 = vpop.f32.mrf.mxu0
        %v9467 = vadd.f32 0.0, %v9466
        %v9468 = vpop.f32.mrf.mxu0
        %9469 = vmatprep.mubr.bf16.mxu0 0
        %9470 = vmatmul.mubr.bf16.gmra.mxu0 %v9343
        %v9471 = vpop.f32.mrf.mxu0
        %v9472 = vadd.f32 0.0, %v9471
        %v9473 = vpop.f32.mrf.mxu0
        %v9474 = vpop.f32.mrf.mxu0
        %v9475 = vadd.f32 0.0, %v9474
        %v9476 = vpop.f32.mrf.mxu0
        %9477 = vmatprep.mubr.bf16.mxu0 0
        %9478 = vmatmul.mubr.bf16.gmra.mxu0 %v9344
        %v9479 = vpop.f32.mrf.mxu0
        %v9480 = vadd.f32 0.0, %v9479
        %v9481 = vpop.f32.mrf.mxu0
        %v9482 = vpop.f32.mrf.mxu0
        %v9483 = vadd.f32 0.0, %v9482
        %v9484 = vpop.f32.mrf.mxu0
        %9485 = vmatprep.mubr.bf16.mxu0 0
        %9486 = vmatmul.mubr.bf16.gmra.mxu0 %v9345
        %v9487 = vpop.f32.mrf.mxu0
        %v9488 = vadd.f32 0.0, %v9487
        %v9489 = vpop.f32.mrf.mxu0
        %v9490 = vpop.f32.mrf.mxu0
        %v9491 = vadd.f32 0.0, %v9490
        %v9492 = vpop.f32.mrf.mxu0
        %9493 = vmatprep.mubr.bf16.mxu0 0
        %9494 = vmatmul.mubr.bf16.gmra.mxu0 %v9346
        %v9495 = vpop.f32.mrf.mxu0
        %v9496 = vadd.f32 0.0, %v9495
        %v9497 = vpop.f32.mrf.mxu0
        %v9498 = vpop.f32.mrf.mxu0
        %v9499 = vadd.f32 0.0, %v9498
        %v9500 = vpop.f32.mrf.mxu0
        %9501 = vmatprep.mubr.bf16.mxu0 0
        %9502 = vmatmul.mubr.bf16.gmra.mxu0 %v9347
        %v9503 = vpop.f32.mrf.mxu0
        %v9504 = vadd.f32 0.0, %v9503
        %v9505 = vpop.f32.mrf.mxu0
        %v9506 = vpop.f32.mrf.mxu0
        %v9507 = vadd.f32 0.0, %v9506
        %v9508 = vpop.f32.mrf.mxu0
        %9509 = vmatprep.mubr.bf16.mxu0 0
        %9510 = vmatmul.mubr.bf16.gmra.mxu0 %v9348
        %v9511 = vpop.f32.mrf.mxu0
        %v9512 = vadd.f32 0.0, %v9511
        %v9513 = vpop.f32.mrf.mxu0
        %v9514 = vpop.f32.mrf.mxu0
        %v9515 = vadd.f32 0.0, %v9514
        %v9516 = vpop.f32.mrf.mxu0
        %9517 = vmatprep.mubr.bf16.mxu0 0
        %9518 = vmatmul.mubr.bf16.gmra.mxu0 %v9349
        %v9519 = vpop.f32.mrf.mxu0
        %v9520 = vadd.f32 0.0, %v9519
        %v9521 = vpop.f32.mrf.mxu0
        %v9522 = vpop.f32.mrf.mxu0
        %v9523 = vadd.f32 0.0, %v9522
        %v9524 = vpop.f32.mrf.mxu0
        %9525 = vmatprep.mubr.bf16.mxu0 0
        %9526 = vmatmul.mubr.bf16.gmra.mxu0 %v9350
        %v9527 = vpop.f32.mrf.mxu0
        %v9528 = vadd.f32 0.0, %v9527
        %v9529 = vpop.f32.mrf.mxu0
        %v9530 = vpop.f32.mrf.mxu0
        %v9531 = vadd.f32 0.0, %v9530
        %v9532 = vpop.f32.mrf.mxu0
        %9533 = vmatprep.mubr.bf16.mxu0 0
        %9534 = vmatmul.mubr.bf16.gmra.mxu0 %v9351
        %v9535 = vpop.f32.mrf.mxu0
        %v9536 = vadd.f32 0.0, %v9535
        %v9537 = vpop.f32.mrf.mxu0
        %v9538 = vpop.f32.mrf.mxu0
        %v9539 = vadd.f32 0.0, %v9538
        %v9540 = vpop.f32.mrf.mxu0
        %9541 = vmatprep.mubr.bf16.mxu0 0
        %9542 = vmatmul.mubr.bf16.gmra.mxu0 %v9352
        %v9543 = vpop.f32.mrf.mxu0
        %v9544 = vadd.f32 0.0, %v9543
        %v9545 = vpop.f32.mrf.mxu0
        %v9546 = vpop.f32.mrf.mxu0
        %v9547 = vadd.f32 0.0, %v9546
        %v9548 = vpop.f32.mrf.mxu0
        %9549 = vmatprep.mubr.bf16.mxu0 0
        %9550 = vmatmul.mubr.bf16.gmra.mxu0 %v9353
        %v9551 = vpop.f32.mrf.mxu0
        %v9552 = vadd.f32 0.0, %v9551
        %v9553 = vpop.f32.mrf.mxu0
        %v9554 = vpop.f32.mrf.mxu0
        %v9555 = vadd.f32 0.0, %v9554
        %v9556 = vpop.f32.mrf.mxu0
        %9557 = vmatprep.mubr.bf16.mxu0 0
        %9558 = vmatmul.mubr.bf16.gmra.mxu0 %v9354
        %v9559 = vpop.f32.mrf.mxu0
        %v9560 = vadd.f32 0.0, %v9559
        %v9561 = vpop.f32.mrf.mxu0
        %v9562 = vpop.f32.mrf.mxu0
        %v9563 = vadd.f32 0.0, %v9562
        %v9564 = vpop.f32.mrf.mxu0
        %9565 = vmatprep.mubr.bf16.mxu0 0
        %9566 = vmatmul.mubr.bf16.gmra.mxu0 %v9355
        %v9567 = vpop.f32.mrf.mxu0
        %v9568 = vadd.f32 0.0, %v9567
        %v9569 = vpop.f32.mrf.mxu0
        %v9570 = vpop.f32.mrf.mxu0
        %v9571 = vadd.f32 0.0, %v9570
        %v9572 = vpop.f32.mrf.mxu0
        %9573 = vmatprep.mubr.bf16.mxu0 0
        %9574 = vmatmul.mubr.bf16.gmra.mxu0 %v9356
        %v9575 = vpop.f32.mrf.mxu0
        %v9576 = vadd.f32 0.0, %v9575
        %v9577 = vpop.f32.mrf.mxu0
        %v9578 = vpop.f32.mrf.mxu0
        %v9579 = vadd.f32 0.0, %v9578
        %v9580 = vpop.f32.mrf.mxu0
        %9581 = vdwg.mxu0
        %v9582 = vadd.f32 %v9084, %v9456
        %v9583 = vadd.f32 %v9085, %v9459
        %v9584 = vadd.f32 %v9086, %v9464
        %v9585 = vadd.f32 %v9087, %v9467
        %v9586 = vadd.f32 %v9088, %v9472
        %v9587 = vadd.f32 %v9089, %v9475
        %v9588 = vadd.f32 %v9090, %v9480
        %v9589 = vadd.f32 %v9091, %v9483
        %v9590 = vadd.f32 %v9092, %v9488
        %v9591 = vadd.f32 %v9093, %v9491
        %v9592 = vadd.f32 %v9094, %v9496
        %v9593 = vadd.f32 %v9095, %v9499
        %v9594 = vadd.f32 %v9096, %v9504
        %v9595 = vadd.f32 %v9097, %v9507
        %v9596 = vadd.f32 %v9098, %v9512
        %v9597 = vadd.f32 %v9099, %v9515
        %v9598 = vadd.f32 %v9100, %v9520
        %v9599 = vadd.f32 %v9101, %v9523
        %v9600 = vadd.f32 %v9102, %v9528
        %v9601 = vadd.f32 %v9103, %v9531
        %v9602 = vadd.f32 %v9104, %v9536
        %v9603 = vadd.f32 %v9105, %v9539
        %v9604 = vadd.f32 %v9106, %v9544
        %v9605 = vadd.f32 %v9107, %v9547
        %v9606 = vadd.f32 %v9108, %v9552
        %v9607 = vadd.f32 %v9109, %v9555
        %v9608 = vadd.f32 %v9110, %v9560
        %v9609 = vadd.f32 %v9111, %v9563
        %v9610 = vadd.f32 %v9112, %v9568
        %v9611 = vadd.f32 %v9113, %v9571
        %v9612 = vadd.f32 %v9114, %v9576
        %v9613 = vadd.f32 %v9115, %v9579
        %s9614 = scalar_lea.vmem [#allocation3], 24
        %v9615 = vld [vmem:[%s9614] sm:$0xf]
        %v9616 = vld [vmem:[%s9614 + $0x4] sm:$0xf]
        %v9617 = vld [vmem:[%s9614 + $0xc] sm:$0xf]
        %v9618 = vld [vmem:[%s9614 + $0x10] sm:$0xf]
        %v9619 = vld [vmem:[%s9614 + $0x18] sm:$0xf]
        %v9620 = vld [vmem:[%s9614 + $0x1c] sm:$0xf]
        %v9621 = vld [vmem:[%s9614 + $0x24] sm:$0xf]
        %v9622 = vld [vmem:[%s9614 + $0x28] sm:$0xf]
        %v9623 = vld [vmem:[%s9614 + $0x30] sm:$0xf]
        %v9624 = vld [vmem:[%s9614 + $0x34] sm:$0xf]
        %v9625 = vld [vmem:[%s9614 + $0x3c] sm:$0xf]
        %v9626 = vld [vmem:[%s9614 + $0x40] sm:$0xf]
        %v9627 = vld [vmem:[%s9614 + $0x48] sm:$0xf]
        %v9628 = vld [vmem:[%s9614 + $0x4c] sm:$0xf]
        %v9629 = vld [vmem:[%s9614 + $0x54] sm:$0xf]
        %v9630 = vld [vmem:[%s9614 + $0x58] sm:$0xf]
        %v9631 = vld [vmem:[%s9614 + $0x60] sm:$0xf]
        %v9632 = vld [vmem:[%s9614 + $0x64] sm:$0xf]
        %v9633 = vld [vmem:[%s9614 + $0x6c] sm:$0xf]
        %v9634 = vld [vmem:[%s9614 + $0x70] sm:$0xf]
        %v9635 = vld [vmem:[%s9614 + $0x78] sm:$0xf]
        %v9636 = vld [vmem:[%s9614 + $0x7c] sm:$0xf]
        %v9637 = vld [vmem:[%s9614 + $0x84] sm:$0xf]
        %v9638 = vld [vmem:[%s9614 + $0x88] sm:$0xf]
        %v9639 = vld [vmem:[%s9614 + $0x90] sm:$0xf]
        %v9640 = vld [vmem:[%s9614 + $0x94] sm:$0xf]
        %v9641 = vld [vmem:[%s9614 + $0x9c] sm:$0xf]
        %v9642 = vld [vmem:[%s9614 + $0xa0] sm:$0xf]
        %v9643 = vld [vmem:[%s9614 + $0xa8] sm:$0xf]
        %v9644 = vld [vmem:[%s9614 + $0xac] sm:$0xf]
        %v9645 = vld [vmem:[%s9614 + $0xb4] sm:$0xf]
        %v9646 = vld [vmem:[%s9614 + $0xb8] sm:$0xf]
        %s9647 = scalar_lea.vmem [#allocation9], 384
        %v9648 = vld [vmem:[%s9647] sm:$0xf]
        %v9649 = vld [vmem:[%s9647 + $0x4] sm:$0xf]
        %v9650 = vld [vmem:[%s9647 + $0x8] sm:$0xf]
        %v9651 = vld [vmem:[%s9647 + $0xc] sm:$0xf]
        %v9652 = vld [vmem:[%s9647 + $0x10] sm:$0xf]
        %v9653 = vld [vmem:[%s9647 + $0x14] sm:$0xf]
        %v9654 = vld [vmem:[%s9647 + $0x18] sm:$0xf]
        %v9655 = vld [vmem:[%s9647 + $0x1c] sm:$0xf]
        %v9656 = vld [vmem:[%s9647 + $0x20] sm:$0xf]
        %v9657 = vld [vmem:[%s9647 + $0x24] sm:$0xf]
        %v9658 = vld [vmem:[%s9647 + $0x28] sm:$0xf]
        %v9659 = vld [vmem:[%s9647 + $0x2c] sm:$0xf]
        %v9660 = vld [vmem:[%s9647 + $0x30] sm:$0xf]
        %v9661 = vld [vmem:[%s9647 + $0x34] sm:$0xf]
        %v9662 = vld [vmem:[%s9647 + $0x38] sm:$0xf]
        %v9663 = vld [vmem:[%s9647 + $0x3c] sm:$0xf]
        %v9696 = vunpack.c.l.b16 %v9615
        %v9697 = vunpack.c.l.b16 %v9616
        %v9698 = vunpack.c.l.b16 %v9617
        %v9699 = vunpack.c.l.b16 %v9618
        %v9700 = vunpack.c.l.b16 %v9619
        %v9701 = vunpack.c.l.b16 %v9620
        %v9702 = vunpack.c.l.b16 %v9621
        %v9703 = vunpack.c.l.b16 %v9622
        %v9704 = vunpack.c.l.b16 %v9623
        %v9705 = vunpack.c.l.b16 %v9624
        %v9706 = vunpack.c.l.b16 %v9625
        %v9707 = vunpack.c.l.b16 %v9626
        %v9708 = vunpack.c.l.b16 %v9627
        %v9709 = vunpack.c.l.b16 %v9628
        %v9710 = vunpack.c.l.b16 %v9629
        %v9711 = vunpack.c.l.b16 %v9630
        %v9712 = vunpack.c.l.b16 %v9631
        %v9713 = vunpack.c.l.b16 %v9632
        %v9714 = vunpack.c.l.b16 %v9633
        %v9715 = vunpack.c.l.b16 %v9634
        %v9716 = vunpack.c.l.b16 %v9635
        %v9717 = vunpack.c.l.b16 %v9636
        %v9718 = vunpack.c.l.b16 %v9637
        %v9719 = vunpack.c.l.b16 %v9638
        %v9720 = vunpack.c.l.b16 %v9639
        %v9721 = vunpack.c.l.b16 %v9640
        %v9722 = vunpack.c.l.b16 %v9641
        %v9723 = vunpack.c.l.b16 %v9642
        %v9724 = vunpack.c.l.b16 %v9643
        %v9725 = vunpack.c.l.b16 %v9644
        %v9726 = vunpack.c.l.b16 %v9645
        %v9727 = vunpack.c.l.b16 %v9646
        %v9728 = vpack.c.b16 %v9697, %v9696
        %v9729 = vpack.c.b16 %v9699, %v9698
        %v9730 = vpack.c.b16 %v9701, %v9700
        %v9731 = vpack.c.b16 %v9703, %v9702
        %v9732 = vpack.c.b16 %v9705, %v9704
        %v9733 = vpack.c.b16 %v9707, %v9706
        %v9734 = vpack.c.b16 %v9709, %v9708
        %v9735 = vpack.c.b16 %v9711, %v9710
        %v9736 = vpack.c.b16 %v9713, %v9712
        %v9737 = vpack.c.b16 %v9715, %v9714
        %v9738 = vpack.c.b16 %v9717, %v9716
        %v9739 = vpack.c.b16 %v9719, %v9718
        %v9740 = vpack.c.b16 %v9721, %v9720
        %v9741 = vpack.c.b16 %v9723, %v9722
        %v9742 = vpack.c.b16 %v9725, %v9724
        %v9743 = vpack.c.b16 %v9727, %v9726
        %v9776 = vunpack.c.l.b16 %v9648
        %v9777 = vunpack.c.l.b16 %v9649
        %v9778 = vunpack.c.l.b16 %v9650
        %v9779 = vunpack.c.l.b16 %v9651
        %v9780 = vunpack.c.l.b16 %v9652
        %v9781 = vunpack.c.l.b16 %v9653
        %v9782 = vunpack.c.l.b16 %v9654
        %v9783 = vunpack.c.l.b16 %v9655
        %v9784 = vunpack.c.l.b16 %v9656
        %v9785 = vunpack.c.l.b16 %v9657
        %v9786 = vunpack.c.l.b16 %v9658
        %v9787 = vunpack.c.l.b16 %v9659
        %v9788 = vunpack.c.l.b16 %v9660
        %v9789 = vunpack.c.l.b16 %v9661
        %v9790 = vunpack.c.l.b16 %v9662
        %v9791 = vunpack.c.l.b16 %v9663
        %v9792 = vpack.c.b16 %v9777, %v9776
        %v9793 = vpack.c.b16 %v9779, %v9778
        %v9794 = vpack.c.b16 %v9781, %v9780
        %v9795 = vpack.c.b16 %v9783, %v9782
        %v9796 = vpack.c.b16 %v9785, %v9784
        %v9797 = vpack.c.b16 %v9787, %v9786
        %v9798 = vpack.c.b16 %v9789, %v9788
        %v9799 = vpack.c.b16 %v9791, %v9790
        %9808 = vmatprep.subr.bf16.mxu0 0
        %9809 = vmatpush1.bf16.msra.mxu0 %v9799
        %9810 = vmatprep.subr.bf16.mxu0 0
        %9811 = vmatpush1.bf16.msra.mxu0 %v9798
        %9812 = vmatprep.subr.bf16.mxu0 0
        %9813 = vmatpush1.bf16.msra.mxu0 %v9797
        %9814 = vmatprep.subr.bf16.mxu0 0
        %9815 = vmatpush1.bf16.msra.mxu0 %v9796
        %9816 = vmatprep.subr.bf16.mxu0 0
        %9817 = vmatpush1.bf16.msra.mxu0 %v9795
        %9818 = vmatprep.subr.bf16.mxu0 0
        %9819 = vmatpush1.bf16.msra.mxu0 %v9794
        %9820 = vmatprep.subr.bf16.mxu0 0
        %9821 = vmatpush1.bf16.msra.mxu0 %v9793
        %9822 = vmatprep.subr.bf16.mxu0 0
        %9823 = vmatpush1.bf16.msra.mxu0 %v9792
        %9824 = vmatprep.subr.bf16.mxu0 0
        %9825 = vmatpush2.bf16.msra.mxu0 0
        %9826 = vmatprep.subr.bf16.mxu0 0
        %9827 = vmatpush2.bf16.msra.mxu0 0
        %9828 = vmatprep.subr.bf16.mxu0 0
        %9829 = vmatpush2.bf16.msra.mxu0 0
        %9830 = vmatprep.subr.bf16.mxu0 0
        %9831 = vmatpush2.bf16.msra.mxu0 0
        %9832 = vmatprep.subr.bf16.mxu0 0
        %9833 = vmatpush2.bf16.msra.mxu0 0
        %9834 = vmatprep.subr.bf16.mxu0 0
        %9835 = vmatpush2.bf16.msra.mxu0 0
        %9836 = vmatprep.subr.bf16.mxu0 0
        %9837 = vmatpush2.bf16.msra.mxu0 0
        %9838 = vmatprep.subr.bf16.mxu0 0
        %9839 = vmatpush2.bf16.msra.mxu0 0
        %9840 = vmatprep.mubr.bf16.mxu0 0
        %9841 = vmatmul.mubr.bf16.gmra.mxu0 %v9728
        %v9842 = vpop.f32.mrf.mxu0
        %v9843 = vadd.f32 0.0, %v9842
        %v9844 = vpop.f32.mrf.mxu0
        %v9845 = vpop.f32.mrf.mxu0
        %v9846 = vadd.f32 0.0, %v9845
        %v9847 = vpop.f32.mrf.mxu0
        %9848 = vmatprep.mubr.bf16.mxu0 0
        %9849 = vmatmul.mubr.bf16.gmra.mxu0 %v9729
        %v9850 = vpop.f32.mrf.mxu0
        %v9851 = vadd.f32 0.0, %v9850
        %v9852 = vpop.f32.mrf.mxu0
        %v9853 = vpop.f32.mrf.mxu0
        %v9854 = vadd.f32 0.0, %v9853
        %v9855 = vpop.f32.mrf.mxu0
        %9856 = vmatprep.mubr.bf16.mxu0 0
        %9857 = vmatmul.mubr.bf16.gmra.mxu0 %v9730
        %v9858 = vpop.f32.mrf.mxu0
        %v9859 = vadd.f32 0.0, %v9858
        %v9860 = vpop.f32.mrf.mxu0
        %v9861 = vpop.f32.mrf.mxu0
        %v9862 = vadd.f32 0.0, %v9861
        %v9863 = vpop.f32.mrf.mxu0
        %9864 = vmatprep.mubr.bf16.mxu0 0
        %9865 = vmatmul.mubr.bf16.gmra.mxu0 %v9731
        %v9866 = vpop.f32.mrf.mxu0
        %v9867 = vadd.f32 0.0, %v9866
        %v9868 = vpop.f32.mrf.mxu0
        %v9869 = vpop.f32.mrf.mxu0
        %v9870 = vadd.f32 0.0, %v9869
        %v9871 = vpop.f32.mrf.mxu0
        %9872 = vmatprep.mubr.bf16.mxu0 0
        %9873 = vmatmul.mubr.bf16.gmra.mxu0 %v9732
        %v9874 = vpop.f32.mrf.mxu0
        %v9875 = vadd.f32 0.0, %v9874
        %v9876 = vpop.f32.mrf.mxu0
        %v9877 = vpop.f32.mrf.mxu0
        %v9878 = vadd.f32 0.0, %v9877
        %v9879 = vpop.f32.mrf.mxu0
        %9880 = vmatprep.mubr.bf16.mxu0 0
        %9881 = vmatmul.mubr.bf16.gmra.mxu0 %v9733
        %v9882 = vpop.f32.mrf.mxu0
        %v9883 = vadd.f32 0.0, %v9882
        %v9884 = vpop.f32.mrf.mxu0
        %v9885 = vpop.f32.mrf.mxu0
        %v9886 = vadd.f32 0.0, %v9885
        %v9887 = vpop.f32.mrf.mxu0
        %9888 = vmatprep.mubr.bf16.mxu0 0
        %9889 = vmatmul.mubr.bf16.gmra.mxu0 %v9734
        %v9890 = vpop.f32.mrf.mxu0
        %v9891 = vadd.f32 0.0, %v9890
        %v9892 = vpop.f32.mrf.mxu0
        %v9893 = vpop.f32.mrf.mxu0
        %v9894 = vadd.f32 0.0, %v9893
        %v9895 = vpop.f32.mrf.mxu0
        %9896 = vmatprep.mubr.bf16.mxu0 0
        %9897 = vmatmul.mubr.bf16.gmra.mxu0 %v9735
        %v9898 = vpop.f32.mrf.mxu0
        %v9899 = vadd.f32 0.0, %v9898
        %v9900 = vpop.f32.mrf.mxu0
        %v9901 = vpop.f32.mrf.mxu0
        %v9902 = vadd.f32 0.0, %v9901
        %v9903 = vpop.f32.mrf.mxu0
        %9904 = vmatprep.mubr.bf16.mxu0 0
        %9905 = vmatmul.mubr.bf16.gmra.mxu0 %v9736
        %v9906 = vpop.f32.mrf.mxu0
        %v9907 = vadd.f32 0.0, %v9906
        %v9908 = vpop.f32.mrf.mxu0
        %v9909 = vpop.f32.mrf.mxu0
        %v9910 = vadd.f32 0.0, %v9909
        %v9911 = vpop.f32.mrf.mxu0
        %9912 = vmatprep.mubr.bf16.mxu0 0
        %9913 = vmatmul.mubr.bf16.gmra.mxu0 %v9737
        %v9914 = vpop.f32.mrf.mxu0
        %v9915 = vadd.f32 0.0, %v9914
        %v9916 = vpop.f32.mrf.mxu0
        %v9917 = vpop.f32.mrf.mxu0
        %v9918 = vadd.f32 0.0, %v9917
        %v9919 = vpop.f32.mrf.mxu0
        %9920 = vmatprep.mubr.bf16.mxu0 0
        %9921 = vmatmul.mubr.bf16.gmra.mxu0 %v9738
        %v9922 = vpop.f32.mrf.mxu0
        %v9923 = vadd.f32 0.0, %v9922
        %v9924 = vpop.f32.mrf.mxu0
        %v9925 = vpop.f32.mrf.mxu0
        %v9926 = vadd.f32 0.0, %v9925
        %v9927 = vpop.f32.mrf.mxu0
        %9928 = vmatprep.mubr.bf16.mxu0 0
        %9929 = vmatmul.mubr.bf16.gmra.mxu0 %v9739
        %v9930 = vpop.f32.mrf.mxu0
        %v9931 = vadd.f32 0.0, %v9930
        %v9932 = vpop.f32.mrf.mxu0
        %v9933 = vpop.f32.mrf.mxu0
        %v9934 = vadd.f32 0.0, %v9933
        %v9935 = vpop.f32.mrf.mxu0
        %9936 = vmatprep.mubr.bf16.mxu0 0
        %9937 = vmatmul.mubr.bf16.gmra.mxu0 %v9740
        %v9938 = vpop.f32.mrf.mxu0
        %v9939 = vadd.f32 0.0, %v9938
        %v9940 = vpop.f32.mrf.mxu0
        %v9941 = vpop.f32.mrf.mxu0
        %v9942 = vadd.f32 0.0, %v9941
        %v9943 = vpop.f32.mrf.mxu0
        %9944 = vmatprep.mubr.bf16.mxu0 0
        %9945 = vmatmul.mubr.bf16.gmra.mxu0 %v9741
        %v9946 = vpop.f32.mrf.mxu0
        %v9947 = vadd.f32 0.0, %v9946
        %v9948 = vpop.f32.mrf.mxu0
        %v9949 = vpop.f32.mrf.mxu0
        %v9950 = vadd.f32 0.0, %v9949
        %v9951 = vpop.f32.mrf.mxu0
        %9952 = vmatprep.mubr.bf16.mxu0 0
        %9953 = vmatmul.mubr.bf16.gmra.mxu0 %v9742
        %v9954 = vpop.f32.mrf.mxu0
        %v9955 = vadd.f32 0.0, %v9954
        %v9956 = vpop.f32.mrf.mxu0
        %v9957 = vpop.f32.mrf.mxu0
        %v9958 = vadd.f32 0.0, %v9957
        %v9959 = vpop.f32.mrf.mxu0
        %9960 = vmatprep.mubr.bf16.mxu0 0
        %9961 = vmatmul.mubr.bf16.gmra.mxu0 %v9743
        %v9962 = vpop.f32.mrf.mxu0
        %v9963 = vadd.f32 0.0, %v9962
        %v9964 = vpop.f32.mrf.mxu0
        %v9965 = vpop.f32.mrf.mxu0
        %v9966 = vadd.f32 0.0, %v9965
        %v9967 = vpop.f32.mrf.mxu0
        %9968 = vdwg.mxu0
        %v9969 = vadd.f32 %v9582, %v9843
        %v9970 = vadd.f32 %v9583, %v9846
        %v9971 = vadd.f32 %v9584, %v9851
        %v9972 = vadd.f32 %v9585, %v9854
        %v9973 = vadd.f32 %v9586, %v9859
        %v9974 = vadd.f32 %v9587, %v9862
        %v9975 = vadd.f32 %v9588, %v9867
        %v9976 = vadd.f32 %v9589, %v9870
        %v9977 = vadd.f32 %v9590, %v9875
        %v9978 = vadd.f32 %v9591, %v9878
        %v9979 = vadd.f32 %v9592, %v9883
        %v9980 = vadd.f32 %v9593, %v9886
        %v9981 = vadd.f32 %v9594, %v9891
        %v9982 = vadd.f32 %v9595, %v9894
        %v9983 = vadd.f32 %v9596, %v9899
        %v9984 = vadd.f32 %v9597, %v9902
        %v9985 = vadd.f32 %v9598, %v9907
        %v9986 = vadd.f32 %v9599, %v9910
        %v9987 = vadd.f32 %v9600, %v9915
        %v9988 = vadd.f32 %v9601, %v9918
        %v9989 = vadd.f32 %v9602, %v9923
        %v9990 = vadd.f32 %v9603, %v9926
        %v9991 = vadd.f32 %v9604, %v9931
        %v9992 = vadd.f32 %v9605, %v9934
        %v9993 = vadd.f32 %v9606, %v9939
        %v9994 = vadd.f32 %v9607, %v9942
        %v9995 = vadd.f32 %v9608, %v9947
        %v9996 = vadd.f32 %v9609, %v9950
        %v9997 = vadd.f32 %v9610, %v9955
        %v9998 = vadd.f32 %v9611, %v9958
        %v9999 = vadd.f32 %v9612, %v9963
        %v10000 = vadd.f32 %v9613, %v9966
        %v10001 = vld [vmem:[%s9614] sm:$0xf]
        %v10002 = vld [vmem:[%s9614 + $0x4] sm:$0xf]
        %v10003 = vld [vmem:[%s9614 + $0x8] sm:$0x1]
        %v10004 = vld [vmem:[%s9614 + $0xc] sm:$0xf]
        %v10005 = vld [vmem:[%s9614 + $0x10] sm:$0xf]
        %v10006 = vld [vmem:[%s9614 + $0x14] sm:$0x1]
        %v10007 = vld [vmem:[%s9614 + $0x18] sm:$0xf]
        %v10008 = vld [vmem:[%s9614 + $0x1c] sm:$0xf]
        %v10009 = vld [vmem:[%s9614 + $0x20] sm:$0x1]
        %v10010 = vld [vmem:[%s9614 + $0x24] sm:$0xf]
        %v10011 = vld [vmem:[%s9614 + $0x28] sm:$0xf]
        %v10012 = vld [vmem:[%s9614 + $0x2c] sm:$0x1]
        %v10013 = vld [vmem:[%s9614 + $0x30] sm:$0xf]
        %v10014 = vld [vmem:[%s9614 + $0x34] sm:$0xf]
        %v10015 = vld [vmem:[%s9614 + $0x38] sm:$0x1]
        %v10016 = vld [vmem:[%s9614 + $0x3c] sm:$0xf]
        %v10017 = vld [vmem:[%s9614 + $0x40] sm:$0xf]
        %v10018 = vld [vmem:[%s9614 + $0x44] sm:$0x1]
        %v10019 = vld [vmem:[%s9614 + $0x48] sm:$0xf]
        %v10020 = vld [vmem:[%s9614 + $0x4c] sm:$0xf]
        %v10021 = vld [vmem:[%s9614 + $0x50] sm:$0x1]
        %v10022 = vld [vmem:[%s9614 + $0x54] sm:$0xf]
        %v10023 = vld [vmem:[%s9614 + $0x58] sm:$0xf]
        %v10024 = vld [vmem:[%s9614 + $0x5c] sm:$0x1]
        %v10025 = vld [vmem:[%s9614 + $0x60] sm:$0xf]
        %v10026 = vld [vmem:[%s9614 + $0x64] sm:$0xf]
        %v10027 = vld [vmem:[%s9614 + $0x68] sm:$0x1]
        %v10028 = vld [vmem:[%s9614 + $0x6c] sm:$0xf]
        %v10029 = vld [vmem:[%s9614 + $0x70] sm:$0xf]
        %v10030 = vld [vmem:[%s9614 + $0x74] sm:$0x1]
        %v10031 = vld [vmem:[%s9614 + $0x78] sm:$0xf]
        %v10032 = vld [vmem:[%s9614 + $0x7c] sm:$0xf]
        %v10033 = vld [vmem:[%s9614 + $0x80] sm:$0x1]
        %v10034 = vld [vmem:[%s9614 + $0x84] sm:$0xf]
        %v10035 = vld [vmem:[%s9614 + $0x88] sm:$0xf]
        %v10036 = vld [vmem:[%s9614 + $0x8c] sm:$0x1]
        %v10037 = vld [vmem:[%s9614 + $0x90] sm:$0xf]
        %v10038 = vld [vmem:[%s9614 + $0x94] sm:$0xf]
        %v10039 = vld [vmem:[%s9614 + $0x98] sm:$0x1]
        %v10040 = vld [vmem:[%s9614 + $0x9c] sm:$0xf]
        %v10041 = vld [vmem:[%s9614 + $0xa0] sm:$0xf]
        %v10042 = vld [vmem:[%s9614 + $0xa4] sm:$0x1]
        %v10043 = vld [vmem:[%s9614 + $0xa8] sm:$0xf]
        %v10044 = vld [vmem:[%s9614 + $0xac] sm:$0xf]
        %v10045 = vld [vmem:[%s9614 + $0xb0] sm:$0x1]
        %v10046 = vld [vmem:[%s9614 + $0xb4] sm:$0xf]
        %v10047 = vld [vmem:[%s9614 + $0xb8] sm:$0xf]
        %v10048 = vld [vmem:[%s9614 + $0xbc] sm:$0x1]
        %v10050 = vshrl.u32 %v10001, 16
        %v10052 = vrot.slane %v10050, 4
        %v10053 = vshll.u32 %v10001, 16
        %v10055 = vrot.slane %v10053, 5
        %v10056 = vor.u32 %v10052, %v10055
        %v10057 = vrot.slane %v10056, 4
        %v10059 = vshll.u32 %v10002, 16
        %v10061 = vrot.slane %v10059, 5
        %v10062 = vsel %vm1016, %v10057, %v10061
        %v10063 = vshrl.u32 %v10002, 16
        %v10065 = vrot.slane %v10063, 4
        %v10066 = vor.u32 %v10065, %v10061
        %v10067 = vrot.slane %v10066, 4
        %v10069 = vshll.u32 %v10003, 16
        %v10071 = vrot.slane %v10069, 5
        %v10072 = vsel %vm1016, %v10067, %v10071
        %v10074 = vshrl.u32 %v10004, 16
        %v10076 = vrot.slane %v10074, 4
        %v10077 = vshll.u32 %v10004, 16
        %v10079 = vrot.slane %v10077, 5
        %v10080 = vor.u32 %v10076, %v10079
        %v10081 = vrot.slane %v10080, 4
        %v10083 = vshll.u32 %v10005, 16
        %v10085 = vrot.slane %v10083, 5
        %v10086 = vsel %vm1016, %v10081, %v10085
        %v10087 = vshrl.u32 %v10005, 16
        %v10089 = vrot.slane %v10087, 4
        %v10090 = vor.u32 %v10089, %v10085
        %v10091 = vrot.slane %v10090, 4
        %v10093 = vshll.u32 %v10006, 16
        %v10095 = vrot.slane %v10093, 5
        %v10096 = vsel %vm1016, %v10091, %v10095
        %v10098 = vshrl.u32 %v10007, 16
        %v10100 = vrot.slane %v10098, 4
        %v10101 = vshll.u32 %v10007, 16
        %v10103 = vrot.slane %v10101, 5
        %v10104 = vor.u32 %v10100, %v10103
        %v10105 = vrot.slane %v10104, 4
        %v10107 = vshll.u32 %v10008, 16
        %v10109 = vrot.slane %v10107, 5
        %v10110 = vsel %vm1016, %v10105, %v10109
        %v10111 = vshrl.u32 %v10008, 16
        %v10113 = vrot.slane %v10111, 4
        %v10114 = vor.u32 %v10113, %v10109
        %v10115 = vrot.slane %v10114, 4
        %v10117 = vshll.u32 %v10009, 16
        %v10119 = vrot.slane %v10117, 5
        %v10120 = vsel %vm1016, %v10115, %v10119
        %v10122 = vshrl.u32 %v10010, 16
        %v10124 = vrot.slane %v10122, 4
        %v10125 = vshll.u32 %v10010, 16
        %v10127 = vrot.slane %v10125, 5
        %v10128 = vor.u32 %v10124, %v10127
        %v10129 = vrot.slane %v10128, 4
        %v10131 = vshll.u32 %v10011, 16
        %v10133 = vrot.slane %v10131, 5
        %v10134 = vsel %vm1016, %v10129, %v10133
        %v10135 = vshrl.u32 %v10011, 16
        %v10137 = vrot.slane %v10135, 4
        %v10138 = vor.u32 %v10137, %v10133
        %v10139 = vrot.slane %v10138, 4
        %v10141 = vshll.u32 %v10012, 16
        %v10143 = vrot.slane %v10141, 5
        %v10144 = vsel %vm1016, %v10139, %v10143
        %v10146 = vshrl.u32 %v10013, 16
        %v10148 = vrot.slane %v10146, 4
        %v10149 = vshll.u32 %v10013, 16
        %v10151 = vrot.slane %v10149, 5
        %v10152 = vor.u32 %v10148, %v10151
        %v10153 = vrot.slane %v10152, 4
        %v10155 = vshll.u32 %v10014, 16
        %v10157 = vrot.slane %v10155, 5
        %v10158 = vsel %vm1016, %v10153, %v10157
        %v10159 = vshrl.u32 %v10014, 16
        %v10161 = vrot.slane %v10159, 4
        %v10162 = vor.u32 %v10161, %v10157
        %v10163 = vrot.slane %v10162, 4
        %v10165 = vshll.u32 %v10015, 16
        %v10167 = vrot.slane %v10165, 5
        %v10168 = vsel %vm1016, %v10163, %v10167
        %v10170 = vshrl.u32 %v10016, 16
        %v10172 = vrot.slane %v10170, 4
        %v10173 = vshll.u32 %v10016, 16
        %v10175 = vrot.slane %v10173, 5
        %v10176 = vor.u32 %v10172, %v10175
        %v10177 = vrot.slane %v10176, 4
        %v10179 = vshll.u32 %v10017, 16
        %v10181 = vrot.slane %v10179, 5
        %v10182 = vsel %vm1016, %v10177, %v10181
        %v10183 = vshrl.u32 %v10017, 16
        %v10185 = vrot.slane %v10183, 4
        %v10186 = vor.u32 %v10185, %v10181
        %v10187 = vrot.slane %v10186, 4
        %v10189 = vshll.u32 %v10018, 16
        %v10191 = vrot.slane %v10189, 5
        %v10192 = vsel %vm1016, %v10187, %v10191
        %v10194 = vshrl.u32 %v10019, 16
        %v10196 = vrot.slane %v10194, 4
        %v10197 = vshll.u32 %v10019, 16
        %v10199 = vrot.slane %v10197, 5
        %v10200 = vor.u32 %v10196, %v10199
        %v10201 = vrot.slane %v10200, 4
        %v10203 = vshll.u32 %v10020, 16
        %v10205 = vrot.slane %v10203, 5
        %v10206 = vsel %vm1016, %v10201, %v10205
        %v10207 = vshrl.u32 %v10020, 16
        %v10209 = vrot.slane %v10207, 4
        %v10210 = vor.u32 %v10209, %v10205
        %v10211 = vrot.slane %v10210, 4
        %v10213 = vshll.u32 %v10021, 16
        %v10215 = vrot.slane %v10213, 5
        %v10216 = vsel %vm1016, %v10211, %v10215
        %v10218 = vshrl.u32 %v10022, 16
        %v10220 = vrot.slane %v10218, 4
        %v10221 = vshll.u32 %v10022, 16
        %v10223 = vrot.slane %v10221, 5
        %v10224 = vor.u32 %v10220, %v10223
        %v10225 = vrot.slane %v10224, 4
        %v10227 = vshll.u32 %v10023, 16
        %v10229 = vrot.slane %v10227, 5
        %v10230 = vsel %vm1016, %v10225, %v10229
        %v10231 = vshrl.u32 %v10023, 16
        %v10233 = vrot.slane %v10231, 4
        %v10234 = vor.u32 %v10233, %v10229
        %v10235 = vrot.slane %v10234, 4
        %v10237 = vshll.u32 %v10024, 16
        %v10239 = vrot.slane %v10237, 5
        %v10240 = vsel %vm1016, %v10235, %v10239
        %v10242 = vshrl.u32 %v10025, 16
        %v10244 = vrot.slane %v10242, 4
        %v10245 = vshll.u32 %v10025, 16
        %v10247 = vrot.slane %v10245, 5
        %v10248 = vor.u32 %v10244, %v10247
        %v10249 = vrot.slane %v10248, 4
        %v10251 = vshll.u32 %v10026, 16
        %v10253 = vrot.slane %v10251, 5
        %v10254 = vsel %vm1016, %v10249, %v10253
        %v10255 = vshrl.u32 %v10026, 16
        %v10257 = vrot.slane %v10255, 4
        %v10258 = vor.u32 %v10257, %v10253
        %v10259 = vrot.slane %v10258, 4
        %v10261 = vshll.u32 %v10027, 16
        %v10263 = vrot.slane %v10261, 5
        %v10264 = vsel %vm1016, %v10259, %v10263
        %v10266 = vshrl.u32 %v10028, 16
        %v10268 = vrot.slane %v10266, 4
        %v10269 = vshll.u32 %v10028, 16
        %v10271 = vrot.slane %v10269, 5
        %v10272 = vor.u32 %v10268, %v10271
        %v10273 = vrot.slane %v10272, 4
        %v10275 = vshll.u32 %v10029, 16
        %v10277 = vrot.slane %v10275, 5
        %v10278 = vsel %vm1016, %v10273, %v10277
        %v10279 = vshrl.u32 %v10029, 16
        %v10281 = vrot.slane %v10279, 4
        %v10282 = vor.u32 %v10281, %v10277
        %v10283 = vrot.slane %v10282, 4
        %v10285 = vshll.u32 %v10030, 16
        %v10287 = vrot.slane %v10285, 5
        %v10288 = vsel %vm1016, %v10283, %v10287
        %v10290 = vshrl.u32 %v10031, 16
        %v10292 = vrot.slane %v10290, 4
        %v10293 = vshll.u32 %v10031, 16
        %v10295 = vrot.slane %v10293, 5
        %v10296 = vor.u32 %v10292, %v10295
        %v10297 = vrot.slane %v10296, 4
        %v10299 = vshll.u32 %v10032, 16
        %v10301 = vrot.slane %v10299, 5
        %v10302 = vsel %vm1016, %v10297, %v10301
        %v10303 = vshrl.u32 %v10032, 16
        %v10305 = vrot.slane %v10303, 4
        %v10306 = vor.u32 %v10305, %v10301
        %v10307 = vrot.slane %v10306, 4
        %v10309 = vshll.u32 %v10033, 16
        %v10311 = vrot.slane %v10309, 5
        %v10312 = vsel %vm1016, %v10307, %v10311
        %v10314 = vshrl.u32 %v10034, 16
        %v10316 = vrot.slane %v10314, 4
        %v10317 = vshll.u32 %v10034, 16
        %v10319 = vrot.slane %v10317, 5
        %v10320 = vor.u32 %v10316, %v10319
        %v10321 = vrot.slane %v10320, 4
        %v10323 = vshll.u32 %v10035, 16
        %v10325 = vrot.slane %v10323, 5
        %v10326 = vsel %vm1016, %v10321, %v10325
        %v10327 = vshrl.u32 %v10035, 16
        %v10329 = vrot.slane %v10327, 4
        %v10330 = vor.u32 %v10329, %v10325
        %v10331 = vrot.slane %v10330, 4
        %v10333 = vshll.u32 %v10036, 16
        %v10335 = vrot.slane %v10333, 5
        %v10336 = vsel %vm1016, %v10331, %v10335
        %v10338 = vshrl.u32 %v10037, 16
        %v10340 = vrot.slane %v10338, 4
        %v10341 = vshll.u32 %v10037, 16
        %v10343 = vrot.slane %v10341, 5
        %v10344 = vor.u32 %v10340, %v10343
        %v10345 = vrot.slane %v10344, 4
        %v10347 = vshll.u32 %v10038, 16
        %v10349 = vrot.slane %v10347, 5
        %v10350 = vsel %vm1016, %v10345, %v10349
        %v10351 = vshrl.u32 %v10038, 16
        %v10353 = vrot.slane %v10351, 4
        %v10354 = vor.u32 %v10353, %v10349
        %v10355 = vrot.slane %v10354, 4
        %v10357 = vshll.u32 %v10039, 16
        %v10359 = vrot.slane %v10357, 5
        %v10360 = vsel %vm1016, %v10355, %v10359
        %v10362 = vshrl.u32 %v10040, 16
        %v10364 = vrot.slane %v10362, 4
        %v10365 = vshll.u32 %v10040, 16
        %v10367 = vrot.slane %v10365, 5
        %v10368 = vor.u32 %v10364, %v10367
        %v10369 = vrot.slane %v10368, 4
        %v10371 = vshll.u32 %v10041, 16
        %v10373 = vrot.slane %v10371, 5
        %v10374 = vsel %vm1016, %v10369, %v10373
        %v10375 = vshrl.u32 %v10041, 16
        %v10377 = vrot.slane %v10375, 4
        %v10378 = vor.u32 %v10377, %v10373
        %v10379 = vrot.slane %v10378, 4
        %v10381 = vshll.u32 %v10042, 16
        %v10383 = vrot.slane %v10381, 5
        %v10384 = vsel %vm1016, %v10379, %v10383
        %v10386 = vshrl.u32 %v10043, 16
        %v10388 = vrot.slane %v10386, 4
        %v10389 = vshll.u32 %v10043, 16
        %v10391 = vrot.slane %v10389, 5
        %v10392 = vor.u32 %v10388, %v10391
        %v10393 = vrot.slane %v10392, 4
        %v10395 = vshll.u32 %v10044, 16
        %v10397 = vrot.slane %v10395, 5
        %v10398 = vsel %vm1016, %v10393, %v10397
        %v10399 = vshrl.u32 %v10044, 16
        %v10401 = vrot.slane %v10399, 4
        %v10402 = vor.u32 %v10401, %v10397
        %v10403 = vrot.slane %v10402, 4
        %v10405 = vshll.u32 %v10045, 16
        %v10407 = vrot.slane %v10405, 5
        %v10408 = vsel %vm1016, %v10403, %v10407
        %v10410 = vshrl.u32 %v10046, 16
        %v10412 = vrot.slane %v10410, 4
        %v10413 = vshll.u32 %v10046, 16
        %v10415 = vrot.slane %v10413, 5
        %v10416 = vor.u32 %v10412, %v10415
        %v10417 = vrot.slane %v10416, 4
        %v10419 = vshll.u32 %v10047, 16
        %v10421 = vrot.slane %v10419, 5
        %v10422 = vsel %vm1016, %v10417, %v10421
        %v10423 = vshrl.u32 %v10047, 16
        %v10425 = vrot.slane %v10423, 4
        %v10426 = vor.u32 %v10425, %v10421
        %v10427 = vrot.slane %v10426, 4
        %v10429 = vshll.u32 %v10048, 16
        %v10431 = vrot.slane %v10429, 5
        %v10432 = vsel %vm1016, %v10427, %v10431
        %s10433 = scalar_lea.vmem [#allocation9], 448
        %v10434 = vld [vmem:[%s10433] sm:$0xf]
        %v10435 = vld [vmem:[%s10433 + $0x4] sm:$0xf]
        %v10436 = vld [vmem:[%s10433 + $0x8] sm:$0xf]
        %v10437 = vld [vmem:[%s10433 + $0xc] sm:$0xf]
        %v10438 = vld [vmem:[%s10433 + $0x10] sm:$0xf]
        %v10439 = vld [vmem:[%s10433 + $0x14] sm:$0xf]
        %v10440 = vld [vmem:[%s10433 + $0x18] sm:$0xf]
        %v10441 = vld [vmem:[%s10433 + $0x1c] sm:$0xf]
        %v10442 = vld [vmem:[%s10433 + $0x20] sm:$0xf]
        %v10443 = vld [vmem:[%s10433 + $0x24] sm:$0xf]
        %v10444 = vld [vmem:[%s10433 + $0x28] sm:$0xf]
        %v10445 = vld [vmem:[%s10433 + $0x2c] sm:$0xf]
        %v10446 = vld [vmem:[%s10433 + $0x30] sm:$0xf]
        %v10447 = vld [vmem:[%s10433 + $0x34] sm:$0xf]
        %v10448 = vld [vmem:[%s10433 + $0x38] sm:$0xf]
        %v10449 = vld [vmem:[%s10433 + $0x3c] sm:$0xf]
        %v10450 = vunpack.c.l.b16 %v10062
        %v10451 = vunpack.c.l.b16 %v10072
        %v10452 = vunpack.c.l.b16 %v10086
        %v10453 = vunpack.c.l.b16 %v10096
        %v10454 = vunpack.c.l.b16 %v10110
        %v10455 = vunpack.c.l.b16 %v10120
        %v10456 = vunpack.c.l.b16 %v10134
        %v10457 = vunpack.c.l.b16 %v10144
        %v10458 = vunpack.c.l.b16 %v10158
        %v10459 = vunpack.c.l.b16 %v10168
        %v10460 = vunpack.c.l.b16 %v10182
        %v10461 = vunpack.c.l.b16 %v10192
        %v10462 = vunpack.c.l.b16 %v10206
        %v10463 = vunpack.c.l.b16 %v10216
        %v10464 = vunpack.c.l.b16 %v10230
        %v10465 = vunpack.c.l.b16 %v10240
        %v10466 = vunpack.c.l.b16 %v10254
        %v10467 = vunpack.c.l.b16 %v10264
        %v10468 = vunpack.c.l.b16 %v10278
        %v10469 = vunpack.c.l.b16 %v10288
        %v10470 = vunpack.c.l.b16 %v10302
        %v10471 = vunpack.c.l.b16 %v10312
        %v10472 = vunpack.c.l.b16 %v10326
        %v10473 = vunpack.c.l.b16 %v10336
        %v10474 = vunpack.c.l.b16 %v10350
        %v10475 = vunpack.c.l.b16 %v10360
        %v10476 = vunpack.c.l.b16 %v10374
        %v10477 = vunpack.c.l.b16 %v10384
        %v10478 = vunpack.c.l.b16 %v10398
        %v10479 = vunpack.c.l.b16 %v10408
        %v10480 = vunpack.c.l.b16 %v10422
        %v10481 = vunpack.c.l.b16 %v10432
        %v10482 = vpack.c.b16 %v10451, %v10450
        %v10483 = vpack.c.b16 %v10453, %v10452
        %v10484 = vpack.c.b16 %v10455, %v10454
        %v10485 = vpack.c.b16 %v10457, %v10456
        %v10486 = vpack.c.b16 %v10459, %v10458
        %v10487 = vpack.c.b16 %v10461, %v10460
        %v10488 = vpack.c.b16 %v10463, %v10462
        %v10489 = vpack.c.b16 %v10465, %v10464
        %v10490 = vpack.c.b16 %v10467, %v10466
        %v10491 = vpack.c.b16 %v10469, %v10468
        %v10492 = vpack.c.b16 %v10471, %v10470
        %v10493 = vpack.c.b16 %v10473, %v10472
        %v10494 = vpack.c.b16 %v10475, %v10474
        %v10495 = vpack.c.b16 %v10477, %v10476
        %v10496 = vpack.c.b16 %v10479, %v10478
        %v10497 = vpack.c.b16 %v10481, %v10480
        %v10530 = vunpack.c.l.b16 %v10434
        %v10531 = vunpack.c.l.b16 %v10435
        %v10532 = vunpack.c.l.b16 %v10436
        %v10533 = vunpack.c.l.b16 %v10437
        %v10534 = vunpack.c.l.b16 %v10438
        %v10535 = vunpack.c.l.b16 %v10439
        %v10536 = vunpack.c.l.b16 %v10440
        %v10537 = vunpack.c.l.b16 %v10441
        %v10538 = vunpack.c.l.b16 %v10442
        %v10539 = vunpack.c.l.b16 %v10443
        %v10540 = vunpack.c.l.b16 %v10444
        %v10541 = vunpack.c.l.b16 %v10445
        %v10542 = vunpack.c.l.b16 %v10446
        %v10543 = vunpack.c.l.b16 %v10447
        %v10544 = vunpack.c.l.b16 %v10448
        %v10545 = vunpack.c.l.b16 %v10449
        %v10546 = vpack.c.b16 %v10531, %v10530
        %v10547 = vpack.c.b16 %v10533, %v10532
        %v10548 = vpack.c.b16 %v10535, %v10534
        %v10549 = vpack.c.b16 %v10537, %v10536
        %v10550 = vpack.c.b16 %v10539, %v10538
        %v10551 = vpack.c.b16 %v10541, %v10540
        %v10552 = vpack.c.b16 %v10543, %v10542
        %v10553 = vpack.c.b16 %v10545, %v10544
        %10562 = vmatprep.subr.bf16.mxu0 0
        %10563 = vmatpush1.bf16.msra.mxu0 %v10553
        %10564 = vmatprep.subr.bf16.mxu0 0
        %10565 = vmatpush1.bf16.msra.mxu0 %v10552
        %10566 = vmatprep.subr.bf16.mxu0 0
        %10567 = vmatpush1.bf16.msra.mxu0 %v10551
        %10568 = vmatprep.subr.bf16.mxu0 0
        %10569 = vmatpush1.bf16.msra.mxu0 %v10550
        %10570 = vmatprep.subr.bf16.mxu0 0
        %10571 = vmatpush1.bf16.msra.mxu0 %v10549
        %10572 = vmatprep.subr.bf16.mxu0 0
        %10573 = vmatpush1.bf16.msra.mxu0 %v10548
        %10574 = vmatprep.subr.bf16.mxu0 0
        %10575 = vmatpush1.bf16.msra.mxu0 %v10547
        %10576 = vmatprep.subr.bf16.mxu0 0
        %10577 = vmatpush1.bf16.msra.mxu0 %v10546
        %10578 = vmatprep.subr.bf16.mxu0 0
        %10579 = vmatpush2.bf16.msra.mxu0 0
        %10580 = vmatprep.subr.bf16.mxu0 0
        %10581 = vmatpush2.bf16.msra.mxu0 0
        %10582 = vmatprep.subr.bf16.mxu0 0
        %10583 = vmatpush2.bf16.msra.mxu0 0
        %10584 = vmatprep.subr.bf16.mxu0 0
        %10585 = vmatpush2.bf16.msra.mxu0 0
        %10586 = vmatprep.subr.bf16.mxu0 0
        %10587 = vmatpush2.bf16.msra.mxu0 0
        %10588 = vmatprep.subr.bf16.mxu0 0
        %10589 = vmatpush2.bf16.msra.mxu0 0
        %10590 = vmatprep.subr.bf16.mxu0 0
        %10591 = vmatpush2.bf16.msra.mxu0 0
        %10592 = vmatprep.subr.bf16.mxu0 0
        %10593 = vmatpush2.bf16.msra.mxu0 0
        %10594 = vmatprep.mubr.bf16.mxu0 0
        %10595 = vmatmul.mubr.bf16.gmra.mxu0 %v10482
        %v10596 = vpop.f32.mrf.mxu0
        %v10597 = vadd.f32 0.0, %v10596
        %v10598 = vpop.f32.mrf.mxu0
        %v10599 = vpop.f32.mrf.mxu0
        %v10600 = vadd.f32 0.0, %v10599
        %v10601 = vpop.f32.mrf.mxu0
        %10602 = vmatprep.mubr.bf16.mxu0 0
        %10603 = vmatmul.mubr.bf16.gmra.mxu0 %v10483
        %v10604 = vpop.f32.mrf.mxu0
        %v10605 = vadd.f32 0.0, %v10604
        %v10606 = vpop.f32.mrf.mxu0
        %v10607 = vpop.f32.mrf.mxu0
        %v10608 = vadd.f32 0.0, %v10607
        %v10609 = vpop.f32.mrf.mxu0
        %10610 = vmatprep.mubr.bf16.mxu0 0
        %10611 = vmatmul.mubr.bf16.gmra.mxu0 %v10484
        %v10612 = vpop.f32.mrf.mxu0
        %v10613 = vadd.f32 0.0, %v10612
        %v10614 = vpop.f32.mrf.mxu0
        %v10615 = vpop.f32.mrf.mxu0
        %v10616 = vadd.f32 0.0, %v10615
        %v10617 = vpop.f32.mrf.mxu0
        %10618 = vmatprep.mubr.bf16.mxu0 0
        %10619 = vmatmul.mubr.bf16.gmra.mxu0 %v10485
        %v10620 = vpop.f32.mrf.mxu0
        %v10621 = vadd.f32 0.0, %v10620
        %v10622 = vpop.f32.mrf.mxu0
        %v10623 = vpop.f32.mrf.mxu0
        %v10624 = vadd.f32 0.0, %v10623
        %v10625 = vpop.f32.mrf.mxu0
        %10626 = vmatprep.mubr.bf16.mxu0 0
        %10627 = vmatmul.mubr.bf16.gmra.mxu0 %v10486
        %v10628 = vpop.f32.mrf.mxu0
        %v10629 = vadd.f32 0.0, %v10628
        %v10630 = vpop.f32.mrf.mxu0
        %v10631 = vpop.f32.mrf.mxu0
        %v10632 = vadd.f32 0.0, %v10631
        %v10633 = vpop.f32.mrf.mxu0
        %10634 = vmatprep.mubr.bf16.mxu0 0
        %10635 = vmatmul.mubr.bf16.gmra.mxu0 %v10487
        %v10636 = vpop.f32.mrf.mxu0
        %v10637 = vadd.f32 0.0, %v10636
        %v10638 = vpop.f32.mrf.mxu0
        %v10639 = vpop.f32.mrf.mxu0
        %v10640 = vadd.f32 0.0, %v10639
        %v10641 = vpop.f32.mrf.mxu0
        %10642 = vmatprep.mubr.bf16.mxu0 0
        %10643 = vmatmul.mubr.bf16.gmra.mxu0 %v10488
        %v10644 = vpop.f32.mrf.mxu0
        %v10645 = vadd.f32 0.0, %v10644
        %v10646 = vpop.f32.mrf.mxu0
        %v10647 = vpop.f32.mrf.mxu0
        %v10648 = vadd.f32 0.0, %v10647
        %v10649 = vpop.f32.mrf.mxu0
        %10650 = vmatprep.mubr.bf16.mxu0 0
        %10651 = vmatmul.mubr.bf16.gmra.mxu0 %v10489
        %v10652 = vpop.f32.mrf.mxu0
        %v10653 = vadd.f32 0.0, %v10652
        %v10654 = vpop.f32.mrf.mxu0
        %v10655 = vpop.f32.mrf.mxu0
        %v10656 = vadd.f32 0.0, %v10655
        %v10657 = vpop.f32.mrf.mxu0
        %10658 = vmatprep.mubr.bf16.mxu0 0
        %10659 = vmatmul.mubr.bf16.gmra.mxu0 %v10490
        %v10660 = vpop.f32.mrf.mxu0
        %v10661 = vadd.f32 0.0, %v10660
        %v10662 = vpop.f32.mrf.mxu0
        %v10663 = vpop.f32.mrf.mxu0
        %v10664 = vadd.f32 0.0, %v10663
        %v10665 = vpop.f32.mrf.mxu0
        %10666 = vmatprep.mubr.bf16.mxu0 0
        %10667 = vmatmul.mubr.bf16.gmra.mxu0 %v10491
        %v10668 = vpop.f32.mrf.mxu0
        %v10669 = vadd.f32 0.0, %v10668
        %v10670 = vpop.f32.mrf.mxu0
        %v10671 = vpop.f32.mrf.mxu0
        %v10672 = vadd.f32 0.0, %v10671
        %v10673 = vpop.f32.mrf.mxu0
        %10674 = vmatprep.mubr.bf16.mxu0 0
        %10675 = vmatmul.mubr.bf16.gmra.mxu0 %v10492
        %v10676 = vpop.f32.mrf.mxu0
        %v10677 = vadd.f32 0.0, %v10676
        %v10678 = vpop.f32.mrf.mxu0
        %v10679 = vpop.f32.mrf.mxu0
        %v10680 = vadd.f32 0.0, %v10679
        %v10681 = vpop.f32.mrf.mxu0
        %10682 = vmatprep.mubr.bf16.mxu0 0
        %10683 = vmatmul.mubr.bf16.gmra.mxu0 %v10493
        %v10684 = vpop.f32.mrf.mxu0
        %v10685 = vadd.f32 0.0, %v10684
        %v10686 = vpop.f32.mrf.mxu0
        %v10687 = vpop.f32.mrf.mxu0
        %v10688 = vadd.f32 0.0, %v10687
        %v10689 = vpop.f32.mrf.mxu0
        %10690 = vmatprep.mubr.bf16.mxu0 0
        %10691 = vmatmul.mubr.bf16.gmra.mxu0 %v10494
        %v10692 = vpop.f32.mrf.mxu0
        %v10693 = vadd.f32 0.0, %v10692
        %v10694 = vpop.f32.mrf.mxu0
        %v10695 = vpop.f32.mrf.mxu0
        %v10696 = vadd.f32 0.0, %v10695
        %v10697 = vpop.f32.mrf.mxu0
        %10698 = vmatprep.mubr.bf16.mxu0 0
        %10699 = vmatmul.mubr.bf16.gmra.mxu0 %v10495
        %v10700 = vpop.f32.mrf.mxu0
        %v10701 = vadd.f32 0.0, %v10700
        %v10702 = vpop.f32.mrf.mxu0
        %v10703 = vpop.f32.mrf.mxu0
        %v10704 = vadd.f32 0.0, %v10703
        %v10705 = vpop.f32.mrf.mxu0
        %10706 = vmatprep.mubr.bf16.mxu0 0
        %10707 = vmatmul.mubr.bf16.gmra.mxu0 %v10496
        %v10708 = vpop.f32.mrf.mxu0
        %v10709 = vadd.f32 0.0, %v10708
        %v10710 = vpop.f32.mrf.mxu0
        %v10711 = vpop.f32.mrf.mxu0
        %v10712 = vadd.f32 0.0, %v10711
        %v10713 = vpop.f32.mrf.mxu0
        %10714 = vmatprep.mubr.bf16.mxu0 0
        %10715 = vmatmul.mubr.bf16.gmra.mxu0 %v10497
        %v10716 = vpop.f32.mrf.mxu0
        %v10717 = vadd.f32 0.0, %v10716
        %v10718 = vpop.f32.mrf.mxu0
        %v10719 = vpop.f32.mrf.mxu0
        %v10720 = vadd.f32 0.0, %v10719
        %v10721 = vpop.f32.mrf.mxu0
        %10722 = vdwg.mxu0
        %v10723 = vadd.f32 %v9969, %v10597
        %v10724 = vadd.f32 %v9970, %v10600
        %v10725 = vadd.f32 %v9971, %v10605
        %v10726 = vadd.f32 %v9972, %v10608
        %v10727 = vadd.f32 %v9973, %v10613
        %v10728 = vadd.f32 %v9974, %v10616
        %v10729 = vadd.f32 %v9975, %v10621
        %v10730 = vadd.f32 %v9976, %v10624
        %v10731 = vadd.f32 %v9977, %v10629
        %v10732 = vadd.f32 %v9978, %v10632
        %v10733 = vadd.f32 %v9979, %v10637
        %v10734 = vadd.f32 %v9980, %v10640
        %v10735 = vadd.f32 %v9981, %v10645
        %v10736 = vadd.f32 %v9982, %v10648
        %v10737 = vadd.f32 %v9983, %v10653
        %v10738 = vadd.f32 %v9984, %v10656
        %v10739 = vadd.f32 %v9985, %v10661
        %v10740 = vadd.f32 %v9986, %v10664
        %v10741 = vadd.f32 %v9987, %v10669
        %v10742 = vadd.f32 %v9988, %v10672
        %v10743 = vadd.f32 %v9989, %v10677
        %v10744 = vadd.f32 %v9990, %v10680
        %v10745 = vadd.f32 %v9991, %v10685
        %v10746 = vadd.f32 %v9992, %v10688
        %v10747 = vadd.f32 %v9993, %v10693
        %v10748 = vadd.f32 %v9994, %v10696
        %v10749 = vadd.f32 %v9995, %v10701
        %v10750 = vadd.f32 %v9996, %v10704
        %v10751 = vadd.f32 %v9997, %v10709
        %v10752 = vadd.f32 %v9998, %v10712
        %v10753 = vadd.f32 %v9999, %v10717
        %v10754 = vadd.f32 %v10000, %v10720
        %v10755 = vld [vmem:[%s9614] sm:$0xe]
        %v10756 = vld [vmem:[%s9614 + $0xc] sm:$0xe]
        %v10757 = vld [vmem:[%s9614 + $0x18] sm:$0xe]
        %v10758 = vld [vmem:[%s9614 + $0x24] sm:$0xe]
        %v10759 = vld [vmem:[%s9614 + $0x30] sm:$0xe]
        %v10760 = vld [vmem:[%s9614 + $0x3c] sm:$0xe]
        %v10761 = vld [vmem:[%s9614 + $0x48] sm:$0xe]
        %v10762 = vld [vmem:[%s9614 + $0x54] sm:$0xe]
        %v10763 = vld [vmem:[%s9614 + $0x60] sm:$0xe]
        %v10764 = vld [vmem:[%s9614 + $0x6c] sm:$0xe]
        %v10765 = vld [vmem:[%s9614 + $0x78] sm:$0xe]
        %v10766 = vld [vmem:[%s9614 + $0x84] sm:$0xe]
        %v10767 = vld [vmem:[%s9614 + $0x90] sm:$0xe]
        %v10768 = vld [vmem:[%s9614 + $0x9c] sm:$0xe]
        %v10769 = vld [vmem:[%s9614 + $0xa8] sm:$0xe]
        %v10770 = vld [vmem:[%s9614 + $0xb4] sm:$0xe]
        %v10819 = vrot.slane %v10755, 5
        %v10820 = vrot.slane %v10819, 4
        %v10821 = vrot.slane %v10002, 5
        %v10822 = vsel %vm2046, %v10820, %v10821
        %v10823 = vrot.slane %v10821, 4
        %v10824 = vrot.slane %v10003, 5
        %v10825 = vsel %vm2046, %v10823, %v10824
        %v10826 = vrot.slane %v10756, 5
        %v10827 = vrot.slane %v10826, 4
        %v10828 = vrot.slane %v10005, 5
        %v10829 = vsel %vm2046, %v10827, %v10828
        %v10830 = vrot.slane %v10828, 4
        %v10831 = vrot.slane %v10006, 5
        %v10832 = vsel %vm2046, %v10830, %v10831
        %v10833 = vrot.slane %v10757, 5
        %v10834 = vrot.slane %v10833, 4
        %v10835 = vrot.slane %v10008, 5
        %v10836 = vsel %vm2046, %v10834, %v10835
        %v10837 = vrot.slane %v10835, 4
        %v10838 = vrot.slane %v10009, 5
        %v10839 = vsel %vm2046, %v10837, %v10838
        %v10840 = vrot.slane %v10758, 5
        %v10841 = vrot.slane %v10840, 4
        %v10842 = vrot.slane %v10011, 5
        %v10843 = vsel %vm2046, %v10841, %v10842
        %v10844 = vrot.slane %v10842, 4
        %v10845 = vrot.slane %v10012, 5
        %v10846 = vsel %vm2046, %v10844, %v10845
        %v10847 = vrot.slane %v10759, 5
        %v10848 = vrot.slane %v10847, 4
        %v10849 = vrot.slane %v10014, 5
        %v10850 = vsel %vm2046, %v10848, %v10849
        %v10851 = vrot.slane %v10849, 4
        %v10852 = vrot.slane %v10015, 5
        %v10853 = vsel %vm2046, %v10851, %v10852
        %v10854 = vrot.slane %v10760, 5
        %v10855 = vrot.slane %v10854, 4
        %v10856 = vrot.slane %v10017, 5
        %v10857 = vsel %vm2046, %v10855, %v10856
        %v10858 = vrot.slane %v10856, 4
        %v10859 = vrot.slane %v10018, 5
        %v10860 = vsel %vm2046, %v10858, %v10859
        %v10861 = vrot.slane %v10761, 5
        %v10862 = vrot.slane %v10861, 4
        %v10863 = vrot.slane %v10020, 5
        %v10864 = vsel %vm2046, %v10862, %v10863
        %v10865 = vrot.slane %v10863, 4
        %v10866 = vrot.slane %v10021, 5
        %v10867 = vsel %vm2046, %v10865, %v10866
        %v10868 = vrot.slane %v10762, 5
        %v10869 = vrot.slane %v10868, 4
        %v10870 = vrot.slane %v10023, 5
        %v10871 = vsel %vm2046, %v10869, %v10870
        %v10872 = vrot.slane %v10870, 4
        %v10873 = vrot.slane %v10024, 5
        %v10874 = vsel %vm2046, %v10872, %v10873
        %v10875 = vrot.slane %v10763, 5
        %v10876 = vrot.slane %v10875, 4
        %v10877 = vrot.slane %v10026, 5
        %v10878 = vsel %vm2046, %v10876, %v10877
        %v10879 = vrot.slane %v10877, 4
        %v10880 = vrot.slane %v10027, 5
        %v10881 = vsel %vm2046, %v10879, %v10880
        %v10882 = vrot.slane %v10764, 5
        %v10883 = vrot.slane %v10882, 4
        %v10884 = vrot.slane %v10029, 5
        %v10885 = vsel %vm2046, %v10883, %v10884
        %v10886 = vrot.slane %v10884, 4
        %v10887 = vrot.slane %v10030, 5
        %v10888 = vsel %vm2046, %v10886, %v10887
        %v10889 = vrot.slane %v10765, 5
        %v10890 = vrot.slane %v10889, 4
        %v10891 = vrot.slane %v10032, 5
        %v10892 = vsel %vm2046, %v10890, %v10891
        %v10893 = vrot.slane %v10891, 4
        %v10894 = vrot.slane %v10033, 5
        %v10895 = vsel %vm2046, %v10893, %v10894
        %v10896 = vrot.slane %v10766, 5
        %v10897 = vrot.slane %v10896, 4
        %v10898 = vrot.slane %v10035, 5
        %v10899 = vsel %vm2046, %v10897, %v10898
        %v10900 = vrot.slane %v10898, 4
        %v10901 = vrot.slane %v10036, 5
        %v10902 = vsel %vm2046, %v10900, %v10901
        %v10903 = vrot.slane %v10767, 5
        %v10904 = vrot.slane %v10903, 4
        %v10905 = vrot.slane %v10038, 5
        %v10906 = vsel %vm2046, %v10904, %v10905
        %v10907 = vrot.slane %v10905, 4
        %v10908 = vrot.slane %v10039, 5
        %v10909 = vsel %vm2046, %v10907, %v10908
        %v10910 = vrot.slane %v10768, 5
        %v10911 = vrot.slane %v10910, 4
        %v10912 = vrot.slane %v10041, 5
        %v10913 = vsel %vm2046, %v10911, %v10912
        %v10914 = vrot.slane %v10912, 4
        %v10915 = vrot.slane %v10042, 5
        %v10916 = vsel %vm2046, %v10914, %v10915
        %v10917 = vrot.slane %v10769, 5
        %v10918 = vrot.slane %v10917, 4
        %v10919 = vrot.slane %v10044, 5
        %v10920 = vsel %vm2046, %v10918, %v10919
        %v10921 = vrot.slane %v10919, 4
        %v10922 = vrot.slane %v10045, 5
        %v10923 = vsel %vm2046, %v10921, %v10922
        %v10924 = vrot.slane %v10770, 5
        %v10925 = vrot.slane %v10924, 4
        %v10926 = vrot.slane %v10047, 5
        %v10927 = vsel %vm2046, %v10925, %v10926
        %v10928 = vrot.slane %v10926, 4
        %v10929 = vrot.slane %v10048, 5
        %v10930 = vsel %vm2046, %v10928, %v10929
        %s10931 = scalar_lea.vmem [#allocation9], 512
        %v10932 = vld [vmem:[%s10931] sm:$0xf]
        %v10933 = vld [vmem:[%s10931 + $0x4] sm:$0xf]
        %v10934 = vld [vmem:[%s10931 + $0x8] sm:$0xf]
        %v10935 = vld [vmem:[%s10931 + $0xc] sm:$0xf]
        %v10936 = vld [vmem:[%s10931 + $0x10] sm:$0xf]
        %v10937 = vld [vmem:[%s10931 + $0x14] sm:$0xf]
        %v10938 = vld [vmem:[%s10931 + $0x18] sm:$0xf]
        %v10939 = vld [vmem:[%s10931 + $0x1c] sm:$0xf]
        %v10940 = vld [vmem:[%s10931 + $0x20] sm:$0xf]
        %v10941 = vld [vmem:[%s10931 + $0x24] sm:$0xf]
        %v10942 = vld [vmem:[%s10931 + $0x28] sm:$0xf]
        %v10943 = vld [vmem:[%s10931 + $0x2c] sm:$0xf]
        %v10944 = vld [vmem:[%s10931 + $0x30] sm:$0xf]
        %v10945 = vld [vmem:[%s10931 + $0x34] sm:$0xf]
        %v10946 = vld [vmem:[%s10931 + $0x38] sm:$0xf]
        %v10947 = vld [vmem:[%s10931 + $0x3c] sm:$0xf]
        %v10948 = vunpack.c.l.b16 %v10822
        %v10949 = vunpack.c.l.b16 %v10825
        %v10950 = vunpack.c.l.b16 %v10829
        %v10951 = vunpack.c.l.b16 %v10832
        %v10952 = vunpack.c.l.b16 %v10836
        %v10953 = vunpack.c.l.b16 %v10839
        %v10954 = vunpack.c.l.b16 %v10843
        %v10955 = vunpack.c.l.b16 %v10846
        %v10956 = vunpack.c.l.b16 %v10850
        %v10957 = vunpack.c.l.b16 %v10853
        %v10958 = vunpack.c.l.b16 %v10857
        %v10959 = vunpack.c.l.b16 %v10860
        %v10960 = vunpack.c.l.b16 %v10864
        %v10961 = vunpack.c.l.b16 %v10867
        %v10962 = vunpack.c.l.b16 %v10871
        %v10963 = vunpack.c.l.b16 %v10874
        %v10964 = vunpack.c.l.b16 %v10878
        %v10965 = vunpack.c.l.b16 %v10881
        %v10966 = vunpack.c.l.b16 %v10885
        %v10967 = vunpack.c.l.b16 %v10888
        %v10968 = vunpack.c.l.b16 %v10892
        %v10969 = vunpack.c.l.b16 %v10895
        %v10970 = vunpack.c.l.b16 %v10899
        %v10971 = vunpack.c.l.b16 %v10902
        %v10972 = vunpack.c.l.b16 %v10906
        %v10973 = vunpack.c.l.b16 %v10909
        %v10974 = vunpack.c.l.b16 %v10913
        %v10975 = vunpack.c.l.b16 %v10916
        %v10976 = vunpack.c.l.b16 %v10920
        %v10977 = vunpack.c.l.b16 %v10923
        %v10978 = vunpack.c.l.b16 %v10927
        %v10979 = vunpack.c.l.b16 %v10930
        %v10980 = vpack.c.b16 %v10949, %v10948
        %v10981 = vpack.c.b16 %v10951, %v10950
        %v10982 = vpack.c.b16 %v10953, %v10952
        %v10983 = vpack.c.b16 %v10955, %v10954
        %v10984 = vpack.c.b16 %v10957, %v10956
        %v10985 = vpack.c.b16 %v10959, %v10958
        %v10986 = vpack.c.b16 %v10961, %v10960
        %v10987 = vpack.c.b16 %v10963, %v10962
        %v10988 = vpack.c.b16 %v10965, %v10964
        %v10989 = vpack.c.b16 %v10967, %v10966
        %v10990 = vpack.c.b16 %v10969, %v10968
        %v10991 = vpack.c.b16 %v10971, %v10970
        %v10992 = vpack.c.b16 %v10973, %v10972
        %v10993 = vpack.c.b16 %v10975, %v10974
        %v10994 = vpack.c.b16 %v10977, %v10976
        %v10995 = vpack.c.b16 %v10979, %v10978
        %v11028 = vunpack.c.l.b16 %v10932
        %v11029 = vunpack.c.l.b16 %v10933
        %v11030 = vunpack.c.l.b16 %v10934
        %v11031 = vunpack.c.l.b16 %v10935
        %v11032 = vunpack.c.l.b16 %v10936
        %v11033 = vunpack.c.l.b16 %v10937
        %v11034 = vunpack.c.l.b16 %v10938
        %v11035 = vunpack.c.l.b16 %v10939
        %v11036 = vunpack.c.l.b16 %v10940
        %v11037 = vunpack.c.l.b16 %v10941
        %v11038 = vunpack.c.l.b16 %v10942
        %v11039 = vunpack.c.l.b16 %v10943
        %v11040 = vunpack.c.l.b16 %v10944
        %v11041 = vunpack.c.l.b16 %v10945
        %v11042 = vunpack.c.l.b16 %v10946
        %v11043 = vunpack.c.l.b16 %v10947
        %v11044 = vpack.c.b16 %v11029, %v11028
        %v11045 = vpack.c.b16 %v11031, %v11030
        %v11046 = vpack.c.b16 %v11033, %v11032
        %v11047 = vpack.c.b16 %v11035, %v11034
        %v11048 = vpack.c.b16 %v11037, %v11036
        %v11049 = vpack.c.b16 %v11039, %v11038
        %v11050 = vpack.c.b16 %v11041, %v11040
        %v11051 = vpack.c.b16 %v11043, %v11042
        %11060 = vmatprep.subr.bf16.mxu0 0
        %11061 = vmatpush1.bf16.msra.mxu0 %v11051
        %11062 = vmatprep.subr.bf16.mxu0 0
        %11063 = vmatpush1.bf16.msra.mxu0 %v11050
        %11064 = vmatprep.subr.bf16.mxu0 0
        %11065 = vmatpush1.bf16.msra.mxu0 %v11049
        %11066 = vmatprep.subr.bf16.mxu0 0
        %11067 = vmatpush1.bf16.msra.mxu0 %v11048
        %11068 = vmatprep.subr.bf16.mxu0 0
        %11069 = vmatpush1.bf16.msra.mxu0 %v11047
        %11070 = vmatprep.subr.bf16.mxu0 0
        %11071 = vmatpush1.bf16.msra.mxu0 %v11046
        %11072 = vmatprep.subr.bf16.mxu0 0
        %11073 = vmatpush1.bf16.msra.mxu0 %v11045
        %11074 = vmatprep.subr.bf16.mxu0 0
        %11075 = vmatpush1.bf16.msra.mxu0 %v11044
        %11076 = vmatprep.subr.bf16.mxu0 0
        %11077 = vmatpush2.bf16.msra.mxu0 0
        %11078 = vmatprep.subr.bf16.mxu0 0
        %11079 = vmatpush2.bf16.msra.mxu0 0
        %11080 = vmatprep.subr.bf16.mxu0 0
        %11081 = vmatpush2.bf16.msra.mxu0 0
        %11082 = vmatprep.subr.bf16.mxu0 0
        %11083 = vmatpush2.bf16.msra.mxu0 0
        %11084 = vmatprep.subr.bf16.mxu0 0
        %11085 = vmatpush2.bf16.msra.mxu0 0
        %11086 = vmatprep.subr.bf16.mxu0 0
        %11087 = vmatpush2.bf16.msra.mxu0 0
        %11088 = vmatprep.subr.bf16.mxu0 0
        %11089 = vmatpush2.bf16.msra.mxu0 0
        %11090 = vmatprep.subr.bf16.mxu0 0
        %11091 = vmatpush2.bf16.msra.mxu0 0
        %11092 = vmatprep.mubr.bf16.mxu0 0
        %11093 = vmatmul.mubr.bf16.gmra.mxu0 %v10980
        %v11094 = vpop.f32.mrf.mxu0
        %v11095 = vadd.f32 0.0, %v11094
        %v11096 = vpop.f32.mrf.mxu0
        %v11097 = vpop.f32.mrf.mxu0
        %v11098 = vadd.f32 0.0, %v11097
        %v11099 = vpop.f32.mrf.mxu0
        %11100 = vmatprep.mubr.bf16.mxu0 0
        %11101 = vmatmul.mubr.bf16.gmra.mxu0 %v10981
        %v11102 = vpop.f32.mrf.mxu0
        %v11103 = vadd.f32 0.0, %v11102
        %v11104 = vpop.f32.mrf.mxu0
        %v11105 = vpop.f32.mrf.mxu0
        %v11106 = vadd.f32 0.0, %v11105
        %v11107 = vpop.f32.mrf.mxu0
        %11108 = vmatprep.mubr.bf16.mxu0 0
        %11109 = vmatmul.mubr.bf16.gmra.mxu0 %v10982
        %v11110 = vpop.f32.mrf.mxu0
        %v11111 = vadd.f32 0.0, %v11110
        %v11112 = vpop.f32.mrf.mxu0
        %v11113 = vpop.f32.mrf.mxu0
        %v11114 = vadd.f32 0.0, %v11113
        %v11115 = vpop.f32.mrf.mxu0
        %11116 = vmatprep.mubr.bf16.mxu0 0
        %11117 = vmatmul.mubr.bf16.gmra.mxu0 %v10983
        %v11118 = vpop.f32.mrf.mxu0
        %v11119 = vadd.f32 0.0, %v11118
        %v11120 = vpop.f32.mrf.mxu0
        %v11121 = vpop.f32.mrf.mxu0
        %v11122 = vadd.f32 0.0, %v11121
        %v11123 = vpop.f32.mrf.mxu0
        %11124 = vmatprep.mubr.bf16.mxu0 0
        %11125 = vmatmul.mubr.bf16.gmra.mxu0 %v10984
        %v11126 = vpop.f32.mrf.mxu0
        %v11127 = vadd.f32 0.0, %v11126
        %v11128 = vpop.f32.mrf.mxu0
        %v11129 = vpop.f32.mrf.mxu0
        %v11130 = vadd.f32 0.0, %v11129
        %v11131 = vpop.f32.mrf.mxu0
        %11132 = vmatprep.mubr.bf16.mxu0 0
        %11133 = vmatmul.mubr.bf16.gmra.mxu0 %v10985
        %v11134 = vpop.f32.mrf.mxu0
        %v11135 = vadd.f32 0.0, %v11134
        %v11136 = vpop.f32.mrf.mxu0
        %v11137 = vpop.f32.mrf.mxu0
        %v11138 = vadd.f32 0.0, %v11137
        %v11139 = vpop.f32.mrf.mxu0
        %11140 = vmatprep.mubr.bf16.mxu0 0
        %11141 = vmatmul.mubr.bf16.gmra.mxu0 %v10986
        %v11142 = vpop.f32.mrf.mxu0
        %v11143 = vadd.f32 0.0, %v11142
        %v11144 = vpop.f32.mrf.mxu0
        %v11145 = vpop.f32.mrf.mxu0
        %v11146 = vadd.f32 0.0, %v11145
        %v11147 = vpop.f32.mrf.mxu0
        %11148 = vmatprep.mubr.bf16.mxu0 0
        %11149 = vmatmul.mubr.bf16.gmra.mxu0 %v10987
        %v11150 = vpop.f32.mrf.mxu0
        %v11151 = vadd.f32 0.0, %v11150
        %v11152 = vpop.f32.mrf.mxu0
        %v11153 = vpop.f32.mrf.mxu0
        %v11154 = vadd.f32 0.0, %v11153
        %v11155 = vpop.f32.mrf.mxu0
        %11156 = vmatprep.mubr.bf16.mxu0 0
        %11157 = vmatmul.mubr.bf16.gmra.mxu0 %v10988
        %v11158 = vpop.f32.mrf.mxu0
        %v11159 = vadd.f32 0.0, %v11158
        %v11160 = vpop.f32.mrf.mxu0
        %v11161 = vpop.f32.mrf.mxu0
        %v11162 = vadd.f32 0.0, %v11161
        %v11163 = vpop.f32.mrf.mxu0
        %11164 = vmatprep.mubr.bf16.mxu0 0
        %11165 = vmatmul.mubr.bf16.gmra.mxu0 %v10989
        %v11166 = vpop.f32.mrf.mxu0
        %v11167 = vadd.f32 0.0, %v11166
        %v11168 = vpop.f32.mrf.mxu0
        %v11169 = vpop.f32.mrf.mxu0
        %v11170 = vadd.f32 0.0, %v11169
        %v11171 = vpop.f32.mrf.mxu0
        %11172 = vmatprep.mubr.bf16.mxu0 0
        %11173 = vmatmul.mubr.bf16.gmra.mxu0 %v10990
        %v11174 = vpop.f32.mrf.mxu0
        %v11175 = vadd.f32 0.0, %v11174
        %v11176 = vpop.f32.mrf.mxu0
        %v11177 = vpop.f32.mrf.mxu0
        %v11178 = vadd.f32 0.0, %v11177
        %v11179 = vpop.f32.mrf.mxu0
        %11180 = vmatprep.mubr.bf16.mxu0 0
        %11181 = vmatmul.mubr.bf16.gmra.mxu0 %v10991
        %v11182 = vpop.f32.mrf.mxu0
        %v11183 = vadd.f32 0.0, %v11182
        %v11184 = vpop.f32.mrf.mxu0
        %v11185 = vpop.f32.mrf.mxu0
        %v11186 = vadd.f32 0.0, %v11185
        %v11187 = vpop.f32.mrf.mxu0
        %11188 = vmatprep.mubr.bf16.mxu0 0
        %11189 = vmatmul.mubr.bf16.gmra.mxu0 %v10992
        %v11190 = vpop.f32.mrf.mxu0
        %v11191 = vadd.f32 0.0, %v11190
        %v11192 = vpop.f32.mrf.mxu0
        %v11193 = vpop.f32.mrf.mxu0
        %v11194 = vadd.f32 0.0, %v11193
        %v11195 = vpop.f32.mrf.mxu0
        %11196 = vmatprep.mubr.bf16.mxu0 0
        %11197 = vmatmul.mubr.bf16.gmra.mxu0 %v10993
        %v11198 = vpop.f32.mrf.mxu0
        %v11199 = vadd.f32 0.0, %v11198
        %v11200 = vpop.f32.mrf.mxu0
        %v11201 = vpop.f32.mrf.mxu0
        %v11202 = vadd.f32 0.0, %v11201
        %v11203 = vpop.f32.mrf.mxu0
        %11204 = vmatprep.mubr.bf16.mxu0 0
        %11205 = vmatmul.mubr.bf16.gmra.mxu0 %v10994
        %v11206 = vpop.f32.mrf.mxu0
        %v11207 = vadd.f32 0.0, %v11206
        %v11208 = vpop.f32.mrf.mxu0
        %v11209 = vpop.f32.mrf.mxu0
        %v11210 = vadd.f32 0.0, %v11209
        %v11211 = vpop.f32.mrf.mxu0
        %11212 = vmatprep.mubr.bf16.mxu0 0
        %11213 = vmatmul.mubr.bf16.gmra.mxu0 %v10995
        %v11214 = vpop.f32.mrf.mxu0
        %v11215 = vadd.f32 0.0, %v11214
        %v11216 = vpop.f32.mrf.mxu0
        %v11217 = vpop.f32.mrf.mxu0
        %v11218 = vadd.f32 0.0, %v11217
        %v11219 = vpop.f32.mrf.mxu0
        %11220 = vdwg.mxu0
        %v11221 = vadd.f32 %v10723, %v11095
        %v11222 = vadd.f32 %v10724, %v11098
        %v11223 = vadd.f32 %v10725, %v11103
        %v11224 = vadd.f32 %v10726, %v11106
        %v11225 = vadd.f32 %v10727, %v11111
        %v11226 = vadd.f32 %v10728, %v11114
        %v11227 = vadd.f32 %v10729, %v11119
        %v11228 = vadd.f32 %v10730, %v11122
        %v11229 = vadd.f32 %v10731, %v11127
        %v11230 = vadd.f32 %v10732, %v11130
        %v11231 = vadd.f32 %v10733, %v11135
        %v11232 = vadd.f32 %v10734, %v11138
        %v11233 = vadd.f32 %v10735, %v11143
        %v11234 = vadd.f32 %v10736, %v11146
        %v11235 = vadd.f32 %v10737, %v11151
        %v11236 = vadd.f32 %v10738, %v11154
        %v11237 = vadd.f32 %v10739, %v11159
        %v11238 = vadd.f32 %v10740, %v11162
        %v11239 = vadd.f32 %v10741, %v11167
        %v11240 = vadd.f32 %v10742, %v11170
        %v11241 = vadd.f32 %v10743, %v11175
        %v11242 = vadd.f32 %v10744, %v11178
        %v11243 = vadd.f32 %v10745, %v11183
        %v11244 = vadd.f32 %v10746, %v11186
        %v11245 = vadd.f32 %v10747, %v11191
        %v11246 = vadd.f32 %v10748, %v11194
        %v11247 = vadd.f32 %v10749, %v11199
        %v11248 = vadd.f32 %v10750, %v11202
        %v11249 = vadd.f32 %v10751, %v11207
        %v11250 = vadd.f32 %v10752, %v11210
        %v11251 = vadd.f32 %v10753, %v11215
        %v11252 = vadd.f32 %v10754, %v11218
        %v11253 = vld [vmem:[%s5] sm:$0x1]
        %v11255 = vlaneseq
        %v11256 = vshrl.u32 %v11255, 7
        %v11257 = vsub.s32 0, %v11256
        %v11258 = vrot.slane %v11253, %v11257
        %v11260 = vmul.f32 %v11221, %v11258
        %v11261 = vmul.f32 %v11222, %v11258
        %v11262 = vmul.f32 %v11223, %v11258
        %v11263 = vmul.f32 %v11224, %v11258
        %v11264 = vmul.f32 %v11225, %v11258
        %v11265 = vmul.f32 %v11226, %v11258
        %v11266 = vmul.f32 %v11227, %v11258
        %v11267 = vmul.f32 %v11228, %v11258
        %v11268 = vmul.f32 %v11229, %v11258
        %v11269 = vmul.f32 %v11230, %v11258
        %v11270 = vmul.f32 %v11231, %v11258
        %v11271 = vmul.f32 %v11232, %v11258
        %v11272 = vmul.f32 %v11233, %v11258
        %v11273 = vmul.f32 %v11234, %v11258
        %v11274 = vmul.f32 %v11235, %v11258
        %v11275 = vmul.f32 %v11236, %v11258
        %v11276 = vmul.f32 %v11237, %v11258
        %v11277 = vmul.f32 %v11238, %v11258
        %v11278 = vmul.f32 %v11239, %v11258
        %v11279 = vmul.f32 %v11240, %v11258
        %v11280 = vmul.f32 %v11241, %v11258
        %v11281 = vmul.f32 %v11242, %v11258
        %v11282 = vmul.f32 %v11243, %v11258
        %v11283 = vmul.f32 %v11244, %v11258
        %v11284 = vmul.f32 %v11245, %v11258
        %v11285 = vmul.f32 %v11246, %v11258
        %v11286 = vmul.f32 %v11247, %v11258
        %v11287 = vmul.f32 %v11248, %v11258
        %v11288 = vmul.f32 %v11249, %v11258
        %v11289 = vmul.f32 %v11250, %v11258
        %v11290 = vmul.f32 %v11251, %v11258
        %v11291 = vmul.f32 %v11252, %v11258
        %v11292 = vld [vmem:[%s6] sm:$0x1]
        %v11294 = vlaneseq
        %v11295 = vshrl.u32 %v11294, 7
        %v11296 = vsub.s32 0, %v11295
        %v11297 = vrot.slane %v11292, %v11296
        %v11299 = vadd.f32 %v11260, %v11297
        %v11300 = vadd.f32 %v11261, %v11297
        %v11301 = vadd.f32 %v11262, %v11297
        %v11302 = vadd.f32 %v11263, %v11297
        %v11303 = vadd.f32 %v11264, %v11297
        %v11304 = vadd.f32 %v11265, %v11297
        %v11305 = vadd.f32 %v11266, %v11297
        %v11306 = vadd.f32 %v11267, %v11297
        %v11307 = vadd.f32 %v11268, %v11297
        %v11308 = vadd.f32 %v11269, %v11297
        %v11309 = vadd.f32 %v11270, %v11297
        %v11310 = vadd.f32 %v11271, %v11297
        %v11311 = vadd.f32 %v11272, %v11297
        %v11312 = vadd.f32 %v11273, %v11297
        %v11313 = vadd.f32 %v11274, %v11297
        %v11314 = vadd.f32 %v11275, %v11297
        %v11315 = vadd.f32 %v11276, %v11297
        %v11316 = vadd.f32 %v11277, %v11297
        %v11317 = vadd.f32 %v11278, %v11297
        %v11318 = vadd.f32 %v11279, %v11297
        %v11319 = vadd.f32 %v11280, %v11297
        %v11320 = vadd.f32 %v11281, %v11297
        %v11321 = vadd.f32 %v11282, %v11297
        %v11322 = vadd.f32 %v11283, %v11297
        %v11323 = vadd.f32 %v11284, %v11297
        %v11324 = vadd.f32 %v11285, %v11297
        %v11325 = vadd.f32 %v11286, %v11297
        %v11326 = vadd.f32 %v11287, %v11297
        %v11327 = vadd.f32 %v11288, %v11297
        %v11328 = vadd.f32 %v11289, %v11297
        %v11329 = vadd.f32 %v11290, %v11297
        %v11330 = vadd.f32 %v11291, %v11297
        %v11331 = vld [vmem:[%s373] sm:$0xf]
        %v11332 = vld [vmem:[%s373 + $0x4] sm:$0xf]
        %v11333 = vld [vmem:[%s373 + $0x8] sm:$0xf]
        %v11334 = vld [vmem:[%s373 + $0xc] sm:$0xf]
        %v11335 = vld [vmem:[%s373 + $0x10] sm:$0xf]
        %v11336 = vld [vmem:[%s373 + $0x14] sm:$0xf]
        %v11337 = vld [vmem:[%s373 + $0x18] sm:$0xf]
        %v11338 = vld [vmem:[%s373 + $0x1c] sm:$0xf]
        %v11339 = vld [vmem:[%s373 + $0x20] sm:$0xf]
        %v11340 = vld [vmem:[%s373 + $0x24] sm:$0xf]
        %v11341 = vld [vmem:[%s373 + $0x28] sm:$0xf]
        %v11342 = vld [vmem:[%s373 + $0x2c] sm:$0xf]
        %v11343 = vld [vmem:[%s373 + $0x30] sm:$0xf]
        %v11344 = vld [vmem:[%s373 + $0x34] sm:$0xf]
        %v11345 = vld [vmem:[%s373 + $0x38] sm:$0xf]
        %v11346 = vld [vmem:[%s373 + $0x3c] sm:$0xf]
        %v11347 = vld [vmem:[%s373 + $0x40] sm:$0xf]
        %v11348 = vld [vmem:[%s373 + $0x44] sm:$0xf]
        %v11349 = vld [vmem:[%s373 + $0x48] sm:$0xf]
        %v11350 = vld [vmem:[%s373 + $0x4c] sm:$0xf]
        %v11351 = vld [vmem:[%s373 + $0x50] sm:$0xf]
        %v11352 = vld [vmem:[%s373 + $0x54] sm:$0xf]
        %v11353 = vld [vmem:[%s373 + $0x58] sm:$0xf]
        %v11354 = vld [vmem:[%s373 + $0x5c] sm:$0xf]
        %v11355 = vld [vmem:[%s373 + $0x60] sm:$0xf]
        %v11356 = vld [vmem:[%s373 + $0x64] sm:$0xf]
        %v11357 = vld [vmem:[%s373 + $0x68] sm:$0xf]
        %v11358 = vld [vmem:[%s373 + $0x6c] sm:$0xf]
        %v11359 = vld [vmem:[%s373 + $0x70] sm:$0xf]
        %v11360 = vld [vmem:[%s373 + $0x74] sm:$0xf]
        %v11361 = vld [vmem:[%s373 + $0x78] sm:$0xf]
        %v11362 = vld [vmem:[%s373 + $0x7c] sm:$0xf]
        %v11363 = vld [vmem:[#allocation10] sm:$0xf]
        %v11364 = vld [vmem:[#allocation10 + $0x4] sm:$0xf]
        %v11365 = vld [vmem:[#allocation10 + $0x8] sm:$0xf]
        %v11366 = vld [vmem:[#allocation10 + $0xc] sm:$0xf]
        %v11367 = vld [vmem:[#allocation10 + $0x10] sm:$0xf]
        %v11368 = vld [vmem:[#allocation10 + $0x14] sm:$0xf]
        %v11369 = vld [vmem:[#allocation10 + $0x18] sm:$0xf]
        %v11370 = vld [vmem:[#allocation10 + $0x1c] sm:$0xf]
        %v11371 = vld [vmem:[#allocation10 + $0x20] sm:$0xf]
        %v11372 = vld [vmem:[#allocation10 + $0x24] sm:$0xf]
        %v11373 = vld [vmem:[#allocation10 + $0x28] sm:$0xf]
        %v11374 = vld [vmem:[#allocation10 + $0x2c] sm:$0xf]
        %v11375 = vld [vmem:[#allocation10 + $0x30] sm:$0xf]
        %v11376 = vld [vmem:[#allocation10 + $0x34] sm:$0xf]
        %v11377 = vld [vmem:[#allocation10 + $0x38] sm:$0xf]
        %v11378 = vld [vmem:[#allocation10 + $0x3c] sm:$0xf]
        %v11411 = vunpack.c.l.b16 %v11331
        %v11412 = vunpack.c.l.b16 %v11332
        %v11413 = vunpack.c.l.b16 %v11333
        %v11414 = vunpack.c.l.b16 %v11334
        %v11415 = vunpack.c.l.b16 %v11335
        %v11416 = vunpack.c.l.b16 %v11336
        %v11417 = vunpack.c.l.b16 %v11337
        %v11418 = vunpack.c.l.b16 %v11338
        %v11419 = vunpack.c.l.b16 %v11339
        %v11420 = vunpack.c.l.b16 %v11340
        %v11421 = vunpack.c.l.b16 %v11341
        %v11422 = vunpack.c.l.b16 %v11342
        %v11423 = vunpack.c.l.b16 %v11343
        %v11424 = vunpack.c.l.b16 %v11344
        %v11425 = vunpack.c.l.b16 %v11345
        %v11426 = vunpack.c.l.b16 %v11346
        %v11427 = vunpack.c.l.b16 %v11347
        %v11428 = vunpack.c.l.b16 %v11348
        %v11429 = vunpack.c.l.b16 %v11349
        %v11430 = vunpack.c.l.b16 %v11350
        %v11431 = vunpack.c.l.b16 %v11351
        %v11432 = vunpack.c.l.b16 %v11352
        %v11433 = vunpack.c.l.b16 %v11353
        %v11434 = vunpack.c.l.b16 %v11354
        %v11435 = vunpack.c.l.b16 %v11355
        %v11436 = vunpack.c.l.b16 %v11356
        %v11437 = vunpack.c.l.b16 %v11357
        %v11438 = vunpack.c.l.b16 %v11358
        %v11439 = vunpack.c.l.b16 %v11359
        %v11440 = vunpack.c.l.b16 %v11360
        %v11441 = vunpack.c.l.b16 %v11361
        %v11442 = vunpack.c.l.b16 %v11362
        %v11443 = vpack.c.b16 %v11412, %v11411
        %v11444 = vpack.c.b16 %v11414, %v11413
        %v11445 = vpack.c.b16 %v11416, %v11415
        %v11446 = vpack.c.b16 %v11418, %v11417
        %v11447 = vpack.c.b16 %v11420, %v11419
        %v11448 = vpack.c.b16 %v11422, %v11421
        %v11449 = vpack.c.b16 %v11424, %v11423
        %v11450 = vpack.c.b16 %v11426, %v11425
        %v11451 = vpack.c.b16 %v11428, %v11427
        %v11452 = vpack.c.b16 %v11430, %v11429
        %v11453 = vpack.c.b16 %v11432, %v11431
        %v11454 = vpack.c.b16 %v11434, %v11433
        %v11455 = vpack.c.b16 %v11436, %v11435
        %v11456 = vpack.c.b16 %v11438, %v11437
        %v11457 = vpack.c.b16 %v11440, %v11439
        %v11458 = vpack.c.b16 %v11442, %v11441
        %v11491 = vunpack.c.l.b16 %v11363
        %v11492 = vunpack.c.l.b16 %v11364
        %v11493 = vunpack.c.l.b16 %v11365
        %v11494 = vunpack.c.l.b16 %v11366
        %v11495 = vunpack.c.l.b16 %v11367
        %v11496 = vunpack.c.l.b16 %v11368
        %v11497 = vunpack.c.l.b16 %v11369
        %v11498 = vunpack.c.l.b16 %v11370
        %v11499 = vunpack.c.l.b16 %v11371
        %v11500 = vunpack.c.l.b16 %v11372
        %v11501 = vunpack.c.l.b16 %v11373
        %v11502 = vunpack.c.l.b16 %v11374
        %v11503 = vunpack.c.l.b16 %v11375
        %v11504 = vunpack.c.l.b16 %v11376
        %v11505 = vunpack.c.l.b16 %v11377
        %v11506 = vunpack.c.l.b16 %v11378
        %v11507 = vpack.c.b16 %v11492, %v11491
        %v11508 = vpack.c.b16 %v11494, %v11493
        %v11509 = vpack.c.b16 %v11496, %v11495
        %v11510 = vpack.c.b16 %v11498, %v11497
        %v11511 = vpack.c.b16 %v11500, %v11499
        %v11512 = vpack.c.b16 %v11502, %v11501
        %v11513 = vpack.c.b16 %v11504, %v11503
        %v11514 = vpack.c.b16 %v11506, %v11505
        %11523 = vmatprep.subr.bf16.mxu0 0
        %11524 = vmatpush1.bf16.msra.mxu0 %v11514
        %11525 = vmatprep.subr.bf16.mxu0 0
        %11526 = vmatpush1.bf16.msra.mxu0 %v11513
        %11527 = vmatprep.subr.bf16.mxu0 0
        %11528 = vmatpush1.bf16.msra.mxu0 %v11512
        %11529 = vmatprep.subr.bf16.mxu0 0
        %11530 = vmatpush1.bf16.msra.mxu0 %v11511
        %11531 = vmatprep.subr.bf16.mxu0 0
        %11532 = vmatpush1.bf16.msra.mxu0 %v11510
        %11533 = vmatprep.subr.bf16.mxu0 0
        %11534 = vmatpush1.bf16.msra.mxu0 %v11509
        %11535 = vmatprep.subr.bf16.mxu0 0
        %11536 = vmatpush1.bf16.msra.mxu0 %v11508
        %11537 = vmatprep.subr.bf16.mxu0 0
        %11538 = vmatpush1.bf16.msra.mxu0 %v11507
        %11539 = vmatprep.subr.bf16.mxu0 0
        %11540 = vmatpush2.bf16.msra.mxu0 0
        %11541 = vmatprep.subr.bf16.mxu0 0
        %11542 = vmatpush2.bf16.msra.mxu0 0
        %11543 = vmatprep.subr.bf16.mxu0 0
        %11544 = vmatpush2.bf16.msra.mxu0 0
        %11545 = vmatprep.subr.bf16.mxu0 0
        %11546 = vmatpush2.bf16.msra.mxu0 0
        %11547 = vmatprep.subr.bf16.mxu0 0
        %11548 = vmatpush2.bf16.msra.mxu0 0
        %11549 = vmatprep.subr.bf16.mxu0 0
        %11550 = vmatpush2.bf16.msra.mxu0 0
        %11551 = vmatprep.subr.bf16.mxu0 0
        %11552 = vmatpush2.bf16.msra.mxu0 0
        %11553 = vmatprep.subr.bf16.mxu0 0
        %11554 = vmatpush2.bf16.msra.mxu0 0
        %11555 = vmatprep.mubr.bf16.mxu0 0
        %11556 = vmatmul.mubr.bf16.gmra.mxu0 %v11443
        %v11557 = vpop.f32.mrf.mxu0
        %v11558 = vadd.f32 0.0, %v11557
        %v11559 = vpop.f32.mrf.mxu0
        %v11560 = vpop.f32.mrf.mxu0
        %v11561 = vadd.f32 0.0, %v11560
        %v11562 = vpop.f32.mrf.mxu0
        %11563 = vmatprep.mubr.bf16.mxu0 0
        %11564 = vmatmul.mubr.bf16.gmra.mxu0 %v11444
        %v11565 = vpop.f32.mrf.mxu0
        %v11566 = vadd.f32 0.0, %v11565
        %v11567 = vpop.f32.mrf.mxu0
        %v11568 = vpop.f32.mrf.mxu0
        %v11569 = vadd.f32 0.0, %v11568
        %v11570 = vpop.f32.mrf.mxu0
        %11571 = vmatprep.mubr.bf16.mxu0 0
        %11572 = vmatmul.mubr.bf16.gmra.mxu0 %v11445
        %v11573 = vpop.f32.mrf.mxu0
        %v11574 = vadd.f32 0.0, %v11573
        %v11575 = vpop.f32.mrf.mxu0
        %v11576 = vpop.f32.mrf.mxu0
        %v11577 = vadd.f32 0.0, %v11576
        %v11578 = vpop.f32.mrf.mxu0
        %11579 = vmatprep.mubr.bf16.mxu0 0
        %11580 = vmatmul.mubr.bf16.gmra.mxu0 %v11446
        %v11581 = vpop.f32.mrf.mxu0
        %v11582 = vadd.f32 0.0, %v11581
        %v11583 = vpop.f32.mrf.mxu0
        %v11584 = vpop.f32.mrf.mxu0
        %v11585 = vadd.f32 0.0, %v11584
        %v11586 = vpop.f32.mrf.mxu0
        %11587 = vmatprep.mubr.bf16.mxu0 0
        %11588 = vmatmul.mubr.bf16.gmra.mxu0 %v11447
        %v11589 = vpop.f32.mrf.mxu0
        %v11590 = vadd.f32 0.0, %v11589
        %v11591 = vpop.f32.mrf.mxu0
        %v11592 = vpop.f32.mrf.mxu0
        %v11593 = vadd.f32 0.0, %v11592
        %v11594 = vpop.f32.mrf.mxu0
        %11595 = vmatprep.mubr.bf16.mxu0 0
        %11596 = vmatmul.mubr.bf16.gmra.mxu0 %v11448
        %v11597 = vpop.f32.mrf.mxu0
        %v11598 = vadd.f32 0.0, %v11597
        %v11599 = vpop.f32.mrf.mxu0
        %v11600 = vpop.f32.mrf.mxu0
        %v11601 = vadd.f32 0.0, %v11600
        %v11602 = vpop.f32.mrf.mxu0
        %11603 = vmatprep.mubr.bf16.mxu0 0
        %11604 = vmatmul.mubr.bf16.gmra.mxu0 %v11449
        %v11605 = vpop.f32.mrf.mxu0
        %v11606 = vadd.f32 0.0, %v11605
        %v11607 = vpop.f32.mrf.mxu0
        %v11608 = vpop.f32.mrf.mxu0
        %v11609 = vadd.f32 0.0, %v11608
        %v11610 = vpop.f32.mrf.mxu0
        %11611 = vmatprep.mubr.bf16.mxu0 0
        %11612 = vmatmul.mubr.bf16.gmra.mxu0 %v11450
        %v11613 = vpop.f32.mrf.mxu0
        %v11614 = vadd.f32 0.0, %v11613
        %v11615 = vpop.f32.mrf.mxu0
        %v11616 = vpop.f32.mrf.mxu0
        %v11617 = vadd.f32 0.0, %v11616
        %v11618 = vpop.f32.mrf.mxu0
        %11619 = vmatprep.mubr.bf16.mxu0 0
        %11620 = vmatmul.mubr.bf16.gmra.mxu0 %v11451
        %v11621 = vpop.f32.mrf.mxu0
        %v11622 = vadd.f32 0.0, %v11621
        %v11623 = vpop.f32.mrf.mxu0
        %v11624 = vpop.f32.mrf.mxu0
        %v11625 = vadd.f32 0.0, %v11624
        %v11626 = vpop.f32.mrf.mxu0
        %11627 = vmatprep.mubr.bf16.mxu0 0
        %11628 = vmatmul.mubr.bf16.gmra.mxu0 %v11452
        %v11629 = vpop.f32.mrf.mxu0
        %v11630 = vadd.f32 0.0, %v11629
        %v11631 = vpop.f32.mrf.mxu0
        %v11632 = vpop.f32.mrf.mxu0
        %v11633 = vadd.f32 0.0, %v11632
        %v11634 = vpop.f32.mrf.mxu0
        %11635 = vmatprep.mubr.bf16.mxu0 0
        %11636 = vmatmul.mubr.bf16.gmra.mxu0 %v11453
        %v11637 = vpop.f32.mrf.mxu0
        %v11638 = vadd.f32 0.0, %v11637
        %v11639 = vpop.f32.mrf.mxu0
        %v11640 = vpop.f32.mrf.mxu0
        %v11641 = vadd.f32 0.0, %v11640
        %v11642 = vpop.f32.mrf.mxu0
        %11643 = vmatprep.mubr.bf16.mxu0 0
        %11644 = vmatmul.mubr.bf16.gmra.mxu0 %v11454
        %v11645 = vpop.f32.mrf.mxu0
        %v11646 = vadd.f32 0.0, %v11645
        %v11647 = vpop.f32.mrf.mxu0
        %v11648 = vpop.f32.mrf.mxu0
        %v11649 = vadd.f32 0.0, %v11648
        %v11650 = vpop.f32.mrf.mxu0
        %11651 = vmatprep.mubr.bf16.mxu0 0
        %11652 = vmatmul.mubr.bf16.gmra.mxu0 %v11455
        %v11653 = vpop.f32.mrf.mxu0
        %v11654 = vadd.f32 0.0, %v11653
        %v11655 = vpop.f32.mrf.mxu0
        %v11656 = vpop.f32.mrf.mxu0
        %v11657 = vadd.f32 0.0, %v11656
        %v11658 = vpop.f32.mrf.mxu0
        %11659 = vmatprep.mubr.bf16.mxu0 0
        %11660 = vmatmul.mubr.bf16.gmra.mxu0 %v11456
        %v11661 = vpop.f32.mrf.mxu0
        %v11662 = vadd.f32 0.0, %v11661
        %v11663 = vpop.f32.mrf.mxu0
        %v11664 = vpop.f32.mrf.mxu0
        %v11665 = vadd.f32 0.0, %v11664
        %v11666 = vpop.f32.mrf.mxu0
        %11667 = vmatprep.mubr.bf16.mxu0 0
        %11668 = vmatmul.mubr.bf16.gmra.mxu0 %v11457
        %v11669 = vpop.f32.mrf.mxu0
        %v11670 = vadd.f32 0.0, %v11669
        %v11671 = vpop.f32.mrf.mxu0
        %v11672 = vpop.f32.mrf.mxu0
        %v11673 = vadd.f32 0.0, %v11672
        %v11674 = vpop.f32.mrf.mxu0
        %11675 = vmatprep.mubr.bf16.mxu0 0
        %11676 = vmatmul.mubr.bf16.gmra.mxu0 %v11458
        %v11677 = vpop.f32.mrf.mxu0
        %v11678 = vadd.f32 0.0, %v11677
        %v11679 = vpop.f32.mrf.mxu0
        %v11680 = vpop.f32.mrf.mxu0
        %v11681 = vadd.f32 0.0, %v11680
        %v11682 = vpop.f32.mrf.mxu0
        %11683 = vdwg.mxu0
        %v11684 = vld [vmem:[%s8] sm:$0x1]
        %v11686 = vlaneseq
        %v11687 = vshrl.u32 %v11686, 7
        %v11688 = vsub.s32 0, %v11687
        %v11689 = vrot.slane %v11684, %v11688
        %v11691 = vmul.f32 %v11558, %v11689
        %v11692 = vmul.f32 %v11561, %v11689
        %v11693 = vmul.f32 %v11566, %v11689
        %v11694 = vmul.f32 %v11569, %v11689
        %v11695 = vmul.f32 %v11574, %v11689
        %v11696 = vmul.f32 %v11577, %v11689
        %v11697 = vmul.f32 %v11582, %v11689
        %v11698 = vmul.f32 %v11585, %v11689
        %v11699 = vmul.f32 %v11590, %v11689
        %v11700 = vmul.f32 %v11593, %v11689
        %v11701 = vmul.f32 %v11598, %v11689
        %v11702 = vmul.f32 %v11601, %v11689
        %v11703 = vmul.f32 %v11606, %v11689
        %v11704 = vmul.f32 %v11609, %v11689
        %v11705 = vmul.f32 %v11614, %v11689
        %v11706 = vmul.f32 %v11617, %v11689
        %v11707 = vmul.f32 %v11622, %v11689
        %v11708 = vmul.f32 %v11625, %v11689
        %v11709 = vmul.f32 %v11630, %v11689
        %v11710 = vmul.f32 %v11633, %v11689
        %v11711 = vmul.f32 %v11638, %v11689
        %v11712 = vmul.f32 %v11641, %v11689
        %v11713 = vmul.f32 %v11646, %v11689
        %v11714 = vmul.f32 %v11649, %v11689
        %v11715 = vmul.f32 %v11654, %v11689
        %v11716 = vmul.f32 %v11657, %v11689
        %v11717 = vmul.f32 %v11662, %v11689
        %v11718 = vmul.f32 %v11665, %v11689
        %v11719 = vmul.f32 %v11670, %v11689
        %v11720 = vmul.f32 %v11673, %v11689
        %v11721 = vmul.f32 %v11678, %v11689
        %v11722 = vmul.f32 %v11681, %v11689
        %v11723 = vld [vmem:[%s9] sm:$0x1]
        %v11725 = vlaneseq
        %v11726 = vshrl.u32 %v11725, 7
        %v11727 = vsub.s32 0, %v11726
        %v11728 = vrot.slane %v11723, %v11727
        %v11730 = vadd.f32 %v11691, %v11728
        %v11731 = vadd.f32 %v11692, %v11728
        %v11732 = vadd.f32 %v11693, %v11728
        %v11733 = vadd.f32 %v11694, %v11728
        %v11734 = vadd.f32 %v11695, %v11728
        %v11735 = vadd.f32 %v11696, %v11728
        %v11736 = vadd.f32 %v11697, %v11728
        %v11737 = vadd.f32 %v11698, %v11728
        %v11738 = vadd.f32 %v11699, %v11728
        %v11739 = vadd.f32 %v11700, %v11728
        %v11740 = vadd.f32 %v11701, %v11728
        %v11741 = vadd.f32 %v11702, %v11728
        %v11742 = vadd.f32 %v11703, %v11728
        %v11743 = vadd.f32 %v11704, %v11728
        %v11744 = vadd.f32 %v11705, %v11728
        %v11745 = vadd.f32 %v11706, %v11728
        %v11746 = vadd.f32 %v11707, %v11728
        %v11747 = vadd.f32 %v11708, %v11728
        %v11748 = vadd.f32 %v11709, %v11728
        %v11749 = vadd.f32 %v11710, %v11728
        %v11750 = vadd.f32 %v11711, %v11728
        %v11751 = vadd.f32 %v11712, %v11728
        %v11752 = vadd.f32 %v11713, %v11728
        %v11753 = vadd.f32 %v11714, %v11728
        %v11754 = vadd.f32 %v11715, %v11728
        %v11755 = vadd.f32 %v11716, %v11728
        %v11756 = vadd.f32 %v11717, %v11728
        %v11757 = vadd.f32 %v11718, %v11728
        %v11758 = vadd.f32 %v11719, %v11728
        %v11759 = vadd.f32 %v11720, %v11728
        %v11760 = vadd.f32 %v11721, %v11728
        %v11761 = vadd.f32 %v11722, %v11728
        %v11762 = vadd.f32 %v11299, %v11730
        %v11763 = vadd.f32 %v11300, %v11731
        %v11764 = vadd.f32 %v11301, %v11732
        %v11765 = vadd.f32 %v11302, %v11733
        %v11766 = vadd.f32 %v11303, %v11734
        %v11767 = vadd.f32 %v11304, %v11735
        %v11768 = vadd.f32 %v11305, %v11736
        %v11769 = vadd.f32 %v11306, %v11737
        %v11770 = vadd.f32 %v11307, %v11738
        %v11771 = vadd.f32 %v11308, %v11739
        %v11772 = vadd.f32 %v11309, %v11740
        %v11773 = vadd.f32 %v11310, %v11741
        %v11774 = vadd.f32 %v11311, %v11742
        %v11775 = vadd.f32 %v11312, %v11743
        %v11776 = vadd.f32 %v11313, %v11744
        %v11777 = vadd.f32 %v11314, %v11745
        %v11778 = vadd.f32 %v11315, %v11746
        %v11779 = vadd.f32 %v11316, %v11747
        %v11780 = vadd.f32 %v11317, %v11748
        %v11781 = vadd.f32 %v11318, %v11749
        %v11782 = vadd.f32 %v11319, %v11750
        %v11783 = vadd.f32 %v11320, %v11751
        %v11784 = vadd.f32 %v11321, %v11752
        %v11785 = vadd.f32 %v11322, %v11753
        %v11786 = vadd.f32 %v11323, %v11754
        %v11787 = vadd.f32 %v11324, %v11755
        %v11788 = vadd.f32 %v11325, %v11756
        %v11789 = vadd.f32 %v11326, %v11757
        %v11790 = vadd.f32 %v11327, %v11758
        %v11791 = vadd.f32 %v11328, %v11759
        %v11792 = vadd.f32 %v11329, %v11760
        %v11793 = vadd.f32 %v11330, %v11761
        %v11794 = vmax.f32 %v11762, 0.0
        %v11795 = vmax.f32 %v11763, 0.0
        %v11796 = vmax.f32 %v11764, 0.0
        %v11797 = vmax.f32 %v11765, 0.0
        %v11798 = vmax.f32 %v11766, 0.0
        %v11799 = vmax.f32 %v11767, 0.0
        %v11800 = vmax.f32 %v11768, 0.0
        %v11801 = vmax.f32 %v11769, 0.0
        %v11802 = vmax.f32 %v11770, 0.0
        %v11803 = vmax.f32 %v11771, 0.0
        %v11804 = vmax.f32 %v11772, 0.0
        %v11805 = vmax.f32 %v11773, 0.0
        %v11806 = vmax.f32 %v11774, 0.0
        %v11807 = vmax.f32 %v11775, 0.0
        %v11808 = vmax.f32 %v11776, 0.0
        %v11809 = vmax.f32 %v11777, 0.0
        %v11810 = vmax.f32 %v11778, 0.0
        %v11811 = vmax.f32 %v11779, 0.0
        %v11812 = vmax.f32 %v11780, 0.0
        %v11813 = vmax.f32 %v11781, 0.0
        %v11814 = vmax.f32 %v11782, 0.0
        %v11815 = vmax.f32 %v11783, 0.0
        %v11816 = vmax.f32 %v11784, 0.0
        %v11817 = vmax.f32 %v11785, 0.0
        %v11818 = vmax.f32 %v11786, 0.0
        %v11819 = vmax.f32 %v11787, 0.0
        %v11820 = vmax.f32 %v11788, 0.0
        %v11821 = vmax.f32 %v11789, 0.0
        %v11822 = vmax.f32 %v11790, 0.0
        %v11823 = vmax.f32 %v11791, 0.0
        %v11824 = vmax.f32 %v11792, 0.0
        %v11825 = vmax.f32 %v11793, 0.0
        %11826 = vst [vmem:[%s421] sm:$0xff] %v11794
        %11827 = vst [vmem:[%s421 + $0x8] sm:$0xff] %v11795
        %11828 = vst [vmem:[%s421 + $0x10] sm:$0xff] %v11796
        %11829 = vst [vmem:[%s421 + $0x18] sm:$0xff] %v11797
        %11830 = vst [vmem:[%s421 + $0x20] sm:$0xff] %v11798
        %11831 = vst [vmem:[%s421 + $0x28] sm:$0xff] %v11799
        %11832 = vst [vmem:[%s421 + $0x30] sm:$0xff] %v11800
        %11833 = vst [vmem:[%s421 + $0x38] sm:$0xff] %v11801
        %11834 = vst [vmem:[%s421 + $0x40] sm:$0xff] %v11802
        %11835 = vst [vmem:[%s421 + $0x48] sm:$0xff] %v11803
        %11836 = vst [vmem:[%s421 + $0x50] sm:$0xff] %v11804
        %11837 = vst [vmem:[%s421 + $0x58] sm:$0xff] %v11805
        %11838 = vst [vmem:[%s421 + $0x60] sm:$0xff] %v11806
        %11839 = vst [vmem:[%s421 + $0x68] sm:$0xff] %v11807
        %11840 = vst [vmem:[%s421 + $0x70] sm:$0xff] %v11808
        %11841 = vst [vmem:[%s421 + $0x78] sm:$0xff] %v11809
        %11842 = vst [vmem:[%s421 + $0x80] sm:$0xff] %v11810
        %11843 = vst [vmem:[%s421 + $0x88] sm:$0xff] %v11811
        %11844 = vst [vmem:[%s421 + $0x90] sm:$0xff] %v11812
        %11845 = vst [vmem:[%s421 + $0x98] sm:$0xff] %v11813
        %11846 = vst [vmem:[%s421 + $0xa0] sm:$0xff] %v11814
        %11847 = vst [vmem:[%s421 + $0xa8] sm:$0xff] %v11815
        %11848 = vst [vmem:[%s421 + $0xb0] sm:$0xff] %v11816
        %11849 = vst [vmem:[%s421 + $0xb8] sm:$0xff] %v11817
        %11850 = vst [vmem:[%s421 + $0xc0] sm:$0xff] %v11818
        %11851 = vst [vmem:[%s421 + $0xc8] sm:$0xff] %v11819
        %11852 = vst [vmem:[%s421 + $0xd0] sm:$0xff] %v11820
        %11853 = vst [vmem:[%s421 + $0xd8] sm:$0xff] %v11821
        %11854 = vst [vmem:[%s421 + $0xe0] sm:$0xff] %v11822
        %11855 = vst [vmem:[%s421 + $0xe8] sm:$0xff] %v11823
        %11856 = vst [vmem:[%s421 + $0xf0] sm:$0xff] %v11824
        %11857 = vst [vmem:[%s421 + $0xf8] sm:$0xff] %v11825
        %s11858 = sand.u32 %s252, 1
        %s11859 = scalar_lea.sflag [#allocation6], %s11858
        %s11860 = sand.u32 %s252, 1
        %s11861 = smul.addr %s11860, 256
        %s11862 = scalar_lea.vmem [#allocation12], %s11861
        // Predicated region
        $region77: #{tpu_custom_call.1} parent=59 // pred_check
          %p11863 = pneg %p262
        $region78: #{tpu_custom_call.1} parent=59 // pred_check_branch
          %11865 = sbr.rel (%p11863) target = $region80
        $region79: #{tpu_custom_call.1} parent=59 // pred_region
          %s11867 = ssub.s32 4096, 4096
          %11868 = vsyncadd %s11859, %s11867
          %s11869 = smul.addr %s29, 32
          %s11870 = smul.addr %s11869, 128
          %s11871 = scalar_lea.hbm %s10, %s11870
          %s11872 = sshll.u32 %s11862, 4
          %s11873 = int_to_ptr.vmem [resolvable:$true] %s11872
          %11878 = dma.vmem_to_hbm [thread:$0]  %s11873, 4096, %s11871, %s11859, 128, 128, 8
        $region80: #{tpu_custom_call.1} parent=59 // pred_fallthru
          _
      $region60: #{tpu_custom_call.1} parent=5 // pred_fallthru
        _
      %p11879 = scmp.le.s32.totalorder 2, %s24
      // Predicated region
      $region81: #{tpu_custom_call.1} parent=5 // pred_check
        %p11880 = pneg %p11879
      $region82: #{tpu_custom_call.1} parent=5 // pred_check_branch
        %11882 = sbr.rel (%p11880) target = $region84
      $region83: #{tpu_custom_call.1} parent=5 // pred_region
        %s11883 = ssub.s32 %s24, 2
        // Predicated region
        $region85: #{tpu_custom_call.1} parent=83 // pred_check
          %p11884 = pneg %p268
        $region86: #{tpu_custom_call.1} parent=83 // pred_check_branch
          %11886 = sbr.rel (%p11884) target = $region88
        $region87: #{tpu_custom_call.1} parent=83 // pred_region
          %s11887 = sand.u32 %s253, 1
          %s11888 = scalar_lea.sflag [#allocation6], %s11887
          %s11889 = sand.u32 %s253, 1
          %s11890 = smul.addr %s11889, 256
          %s11891 = scalar_lea.vmem [#allocation12], %s11890
          %11892 = dma.done %s11888, 4096
        $region88: #{tpu_custom_call.1} parent=83 // pred_fallthru
          _
      $region84: #{tpu_custom_call.1} parent=5 // pred_fallthru
        _
    $region6: #{tpu_custom_call.1} parent=1 // loop_footer
      %s28 = sadd.s32 1, %s24
    $region7: #{tpu_custom_call.1} parent=1 // loop_footer_branch
      %23 = sbr.rel target = $region3
    $region8: #{tpu_custom_call.1} parent=1 // loop_exit
      _
    %11893 = vsyncpa [#allocation5], 1
    %s11894 = scalar_lea.sflag [#allocation5], 1
    %11895 = vsyncpa %s11894, 1
    %11896 = vsyncpa [#allocation8], 1
    %11897 = vsyncpa [#allocation11], 1
    %11898 = vsyncpa [#allocation6], 1
    %s11899 = scalar_lea.sflag [#allocation6], 1
    %11900 = vsyncpa %s11899, 1

</llo_original>
